<compile_context>
chip_gen: v6e
topology: v6e:2x2x1
jax: 0.10.0
libtpu: 0.0.40
codegen_flags: <defaults>
</compile_context>

<pallas_src>
import numpy as np
import jax
import jax.numpy as jnp
from jax.experimental import pallas as pl
from jax.experimental.pallas import tpu as pltpu  # noqa: F401  (TPU backend assumed)

# ---------------- model hyper-params (small, consistent with the module) -------------
N   = 2          # batch
LQ  = 8          # decoder (target) sequence length
LK  = 8          # encoder (source) sequence length
E   = 32         # embed_size
H   = 4          # heads
D   = E // H     # head_dim
FE  = 2          # forward_expansion
F   = FE * E     # ffn hidden
EPS = 1e-5       # nn.LayerNorm default eps

# ---------------------------- weight-slab row offsets ---------------------------------
ROW_WQ1, ROW_WK1, ROW_WV1, ROW_WO1 = 0, 32, 64, 96
ROW_WQ2, ROW_WK2, ROW_WV2, ROW_WO2 = 128, 160, 192, 224
ROW_WF1A, ROW_WF1B, ROW_WF2A, ROW_WF2B = 256, 288, 320, 352
ROW_BO1, ROW_GN, ROW_BN, ROW_BO2 = 384, 385, 386, 387
ROW_G1, ROW_B1 = 388, 389
ROW_BF1A, ROW_BF1B, ROW_BF2 = 390, 391, 392
ROW_G2, ROW_B2 = 393, 394
SLAB_ROWS = 400   # padded to a multiple of 8 sublanes


def _layernorm(x, g, b):
    mu = jnp.mean(x, axis=-1, keepdims=True)
    var = jnp.mean((x - mu) ** 2, axis=-1, keepdims=True)
    return (x - mu) / jnp.sqrt(var + EPS) * g + b


def _attention(q_in, k_in, v_in, bias, wq, wk, wv, wo, bo):
    """SelfAttention for one batch element.

    q_in:(Lq,E)  k_in/v_in:(Lk,E)  bias:(Lq,Lk) additive (0 / -1e20).
    wq/wk/wv are block-diagonal (E,E) (per-head D×D fused), wq pre-scaled by 1/sqrt(E).
    Heads are processed with static lane slices (no (L,H,D) reshapes / transposes).
    """
    q = jnp.dot(q_in, wq, preferred_element_type=jnp.float32)   # (Lq, E), pre-scaled
    k = jnp.dot(k_in, wk, preferred_element_type=jnp.float32)   # (Lk, E)
    v = jnp.dot(v_in, wv, preferred_element_type=jnp.float32)   # (Lk, E)

    out = None
    for h in range(H):                       # static unroll, H = 4
        cs = slice(h * D, (h + 1) * D)
        # scores: (Lq, D) x (Lk, D)^T -> (Lq, Lk)
        s = jax.lax.dot_general(q[:, cs], k[:, cs],
                                (((1,), (1,)), ((), ())),
                                preferred_element_type=jnp.float32)
        s = s + bias                          # additive mask bias
        m = jnp.max(s, axis=-1, keepdims=True)
        p = jnp.exp(s - m)
        att = p * pl.reciprocal(jnp.sum(p, axis=-1, keepdims=True), approx=True)
        ctx_h = jnp.dot(att, v[:, cs], preferred_element_type=jnp.float32)    # (Lq, D)
        # fold the per-head context straight through the matching rows of fc_out
        contrib = jnp.dot(ctx_h, wo[h * D:(h + 1) * D, :],
                          preferred_element_type=jnp.float32)                 # (Lq, E)
        out = contrib if out is None else out + contrib
    return out + bo


def decoder_block_kernel(x_ref, v_ref, k_ref, tb_ref, sb_ref, w_ref, out_ref):
    # ---- hoist all weight/bias loads out of the batch loop (single slab in VMEM) ----
    mat = lambda r: w_ref[r:r + E, :]
    vec = lambda r: w_ref[r:r + 1, :]

    wq1, wk1, wv1, wo1 = mat(ROW_WQ1), mat(ROW_WK1), mat(ROW_WV1), mat(ROW_WO1)
    wq2, wk2, wv2, wo2 = mat(ROW_WQ2), mat(ROW_WK2), mat(ROW_WV2), mat(ROW_WO2)
    wf1a, wf1b = mat(ROW_WF1A), mat(ROW_WF1B)
    wf2a, wf2b = mat(ROW_WF2A), mat(ROW_WF2B)
    bo1, gn, bn, bo2 = vec(ROW_BO1), vec(ROW_GN), vec(ROW_BN), vec(ROW_BO2)
    g1, b1 = vec(ROW_G1), vec(ROW_B1)
    bf1a, bf1b, bf2 = vec(ROW_BF1A), vec(ROW_BF1B), vec(ROW_BF2)
    g2, b2 = vec(ROW_G2), vec(ROW_B2)

    for n in range(N):                        # static unroll, N = 2 (whole batch, one step)
        rq = slice(n * LQ, (n + 1) * LQ)
        rk = slice(n * LK, (n + 1) * LK)
        xq = x_ref[rq, :]                     # (LQ, E)
        vv = v_ref[rk, :]                     # (LK, E)
        kk = k_ref[rk, :]                     # (LK, E)
        tb = tb_ref[n]                        # (LQ, LQ) additive bias
        sb = sb_ref[n]                        # (LQ, LK) additive bias

        # ---- DecoderBlock.attention(x, x, x, trg_mask) ----
        a1 = _attention(xq, xq, xq, tb, wq1, wk1, wv1, wo1, bo1)
        query = _layernorm(a1 + xq, gn, bn)             # dropout == identity

        # ---- TransformerBlock.attention(value, key, query, src_mask) ----
        a2 = _attention(query, kk, vv, sb, wq2, wk2, wv2, wo2, bo2)
        Xn = _layernorm(a2 + query, g1, b1)

        # ---- feed_forward: Linear(E, F) -> ReLU -> Linear(F, E) (F split in two E-wide halves)
        ha = jnp.maximum(jnp.dot(Xn, wf1a, preferred_element_type=jnp.float32) + bf1a, 0.0)
        hb = jnp.maximum(jnp.dot(Xn, wf1b, preferred_element_type=jnp.float32) + bf1b, 0.0)
        ff = (jnp.dot(ha, wf2a, preferred_element_type=jnp.float32)
              + jnp.dot(hb, wf2b, preferred_element_type=jnp.float32) + bf2)

        out_ref[rq, :] = _layernorm(ff + Xn, g2, b2)


# ------------------------------- host-side wrapper ------------------------------------
def pack_params(p):
    """Fuse per-head (D,D) projections into block-diagonal (E,E) weights (softmax scale
    folded into Wq) and concatenate every weight/bias into one (SLAB_ROWS, E) f32 slab."""
    scale = jnp.float32(1.0 / np.sqrt(E))
    eye = jnp.eye(H, dtype=jnp.float32)
    bd = lambda w: jnp.kron(eye, w)

    rows = [bd(p['wq1']) * scale, bd(p['wk1']), bd(p['wv1']), p['wo1'],
            bd(p['wq2']) * scale, bd(p['wk2']), bd(p['wv2']), p['wo2'],
            p['wf1'][:, :E], p['wf1'][:, E:],          # (E,F) split into two (E,E)
            p['wf2'][:E, :], p['wf2'][E:, :],          # (F,E) split into two (E,E)
            p['bo1'], p['gn'], p['bn'], p['bo2'],
            p['g1'], p['b1'],
            p['bf1'][:, :E], p['bf1'][:, E:], p['bf2'],
            p['g2'], p['b2']]
    slab = jnp.concatenate(rows, axis=0).astype(jnp.float32)     # (395, E)
    return jnp.pad(slab, ((0, SLAB_ROWS - slab.shape[0]), (0, 0)))


def decoder_block(x, value, key, src_mask, trg_mask, w_slab):
    """x:(N,LQ,E) value/key:(N,LK,E) trg_mask:(N,LQ,LQ) src_mask:(N,LQ,LK) int (1=keep)."""
    xf = x.reshape(N * LQ, E)
    vf = value.reshape(N * LK, E)
    kf = key.reshape(N * LK, E)
    # masks -> additive f32 bias (0 keep / -1e20 masked), computed once in the wrapper
    tb = (trg_mask.astype(jnp.float32) - 1.0) * jnp.float32(1e20)
    sb = (src_mask.astype(jnp.float32) - 1.0) * jnp.float32(1e20)

    out = pl.pallas_call(
        decoder_block_kernel,
        out_shape=jax.ShapeDtypeStruct((N * LQ, E), jnp.float32),
    )(xf, vf, kf, tb, sb, w_slab)
    return out.reshape(N, LQ, E)


# ------------------------- plain-JAX reference (for sanity) ---------------------------
def _attn_ref(q, k, v, mask, wq, wk, wv, wo, bo):
    Nb, Lq, _ = q.shape
    Lk = k.shape[1]
    qh = q.reshape(Nb, Lq, H, D) @ wq
    kh = k.reshape(Nb, Lk, H, D) @ wk
    vh = v.reshape(Nb, Lk, H, D) @ wv
    energy = jnp.einsum('nqhd,nkhd->nhqk', qh, kh)
    energy = jnp.where(mask[:, None, :, :] == 0, -1e20, energy)
    att = jax.nn.softmax(energy / jnp.sqrt(E), axis=3)
    out = jnp.einsum('nhqk,nkhd->nqhd', att, vh).reshape(Nb, Lq, E)
    return out @ wo + bo


def _ln_ref(x, g, b):
    mu = x.mean(-1, keepdims=True)
    var = ((x - mu) ** 2).mean(-1, keepdims=True)
    return (x - mu) / jnp.sqrt(var + EPS) * g + b


def decoder_block_ref(x, value, key, src_mask, trg_mask, p):
    a1 = _attn_ref(x, x, x, trg_mask, p['wq1'], p['wk1'], p['wv1'], p['wo1'], p['bo1'])
    query = _ln_ref(a1 + x, p['gn'], p['bn'])
    a2 = _attn_ref(query, key, value, src_mask,
                   p['wq2'], p['wk2'], p['wv2'], p['wo2'], p['bo2'])
    Xn = _ln_ref(a2 + query, p['g1'], p['b1'])
    ff = jnp.maximum(Xn @ p['wf1'] + p['bf1'], 0.0) @ p['wf2'] + p['bf2']
    return _ln_ref(ff + Xn, p['g2'], p['b2'])


# --------------------------------------- main ------------------------------------------
if __name__ == "__main__":
    root = jax.random.PRNGKey(0)
    ks = jax.random.split(root, 20)

    def rnd(key_, shape, scale=0.1):
        return jax.random.normal(key_, shape, dtype=jnp.float32) * scale

    # All weights stored pre-transposed so forward computes x @ W (== x @ W_torch.T).
    params = {
        # self-attention (DecoderBlock.attention)
        'wq1': rnd(ks[0], (D, D)), 'wk1': rnd(ks[1], (D, D)), 'wv1': rnd(ks[2], (D, D)),
        'wo1': rnd(ks[3], (E, E)), 'bo1': rnd(ks[4], (1, E)),
        # DecoderBlock.norm
        'gn': jnp.ones((1, E), jnp.float32), 'bn': jnp.zeros((1, E), jnp.float32),
        # cross-attention (TransformerBlock.attention)
        'wq2': rnd(ks[5], (D, D)), 'wk2': rnd(ks[6], (D, D)), 'wv2': rnd(ks[7], (D, D)),
        'wo2': rnd(ks[8], (E, E)), 'bo2': rnd(ks[9], (1, E)),
        # TransformerBlock.norm1 / norm2
        'g1': jnp.ones((1, E), jnp.float32), 'b1': jnp.zeros((1, E), jnp.float32),
        'g2': jnp.ones((1, E), jnp.float32), 'b2': jnp.zeros((1, E), jnp.float32),
        # feed-forward
        'wf1': rnd(ks[10], (E, F)), 'bf1': rnd(ks[11], (1, F)),
        'wf2': rnd(ks[12], (F, E)), 'bf2': rnd(ks[13], (1, E)),
    }

    x = jax.random.normal(ks[14], (N, LQ, E), dtype=jnp.float32)
    value = jax.random.normal(ks[15], (N, LK, E), dtype=jnp.float32)
    key = jax.random.normal(ks[16], (N, LK, E), dtype=jnp.float32)

    # trg_mask: causal (lower-triangular); src_mask: all ones (broadcast over heads)
    trg_mask = jnp.broadcast_to(
        jnp.tril(jnp.ones((LQ, LQ), jnp.int32))[None], (N, LQ, LQ))
    src_mask = jnp.ones((N, LQ, LK), jnp.int32)

    w_slab = pack_params(params)                 # one-time weight packing (1 DMA slab)

    out = decoder_block(x, value, key, src_mask, trg_mask, w_slab)
    out = jax.block_until_ready(out)

    ref = decoder_block_ref(x, value, key, src_mask, trg_mask, params)
    # slightly relaxed tolerance: softmax denominator uses the EUP approx reciprocal
    np.testing.assert_allclose(np.asarray(out), np.asarray(ref), atol=2e-3, rtol=2e-3)

    print("KERNEL_OK")
</pallas_src>

<mosaic_0001>
module attributes {stable_mosaic.version = 11 : i64} {
  func.func @decoder_block_kernel(%arg0: memref<16x32xf32, #tpu.memory_space<vmem>>, %arg1: memref<16x32xf32, #tpu.memory_space<vmem>>, %arg2: memref<16x32xf32, #tpu.memory_space<vmem>>, %arg3: memref<2x8x8xf32, #tpu.memory_space<vmem>>, %arg4: memref<2x8x8xf32, #tpu.memory_space<vmem>>, %arg5: memref<400x32xf32, #tpu.memory_space<vmem>>, %arg6: memref<16x32xf32, #tpu.memory_space<vmem>>) attributes {dimension_semantics = [], scalar_prefetch = 0 : i64, scratch_operands = 0 : i64, tpu.core_type = #tpu.core_type<tc>} {
    %c0 = arith.constant 0 : index
    %c0_0 = arith.constant 0 : index
    %0 = vector.load %arg5[%c0, %c0_0] : memref<400x32xf32, #tpu.memory_space<vmem>>, vector<32x32xf32>
    %c32 = arith.constant 32 : index
    %c0_1 = arith.constant 0 : index
    %1 = vector.load %arg5[%c32, %c0_1] : memref<400x32xf32, #tpu.memory_space<vmem>>, vector<32x32xf32>
    %c64 = arith.constant 64 : index
    %c0_2 = arith.constant 0 : index
    %2 = vector.load %arg5[%c64, %c0_2] : memref<400x32xf32, #tpu.memory_space<vmem>>, vector<32x32xf32>
    %c96 = arith.constant 96 : index
    %c0_3 = arith.constant 0 : index
    %3 = vector.load %arg5[%c96, %c0_3] : memref<400x32xf32, #tpu.memory_space<vmem>>, vector<32x32xf32>
    %c128 = arith.constant 128 : index
    %c0_4 = arith.constant 0 : index
    %4 = vector.load %arg5[%c128, %c0_4] : memref<400x32xf32, #tpu.memory_space<vmem>>, vector<32x32xf32>
    %c160 = arith.constant 160 : index
    %c0_5 = arith.constant 0 : index
    %5 = vector.load %arg5[%c160, %c0_5] : memref<400x32xf32, #tpu.memory_space<vmem>>, vector<32x32xf32>
    %c192 = arith.constant 192 : index
    %c0_6 = arith.constant 0 : index
    %6 = vector.load %arg5[%c192, %c0_6] : memref<400x32xf32, #tpu.memory_space<vmem>>, vector<32x32xf32>
    %c224 = arith.constant 224 : index
    %c0_7 = arith.constant 0 : index
    %7 = vector.load %arg5[%c224, %c0_7] : memref<400x32xf32, #tpu.memory_space<vmem>>, vector<32x32xf32>
    %c256 = arith.constant 256 : index
    %c0_8 = arith.constant 0 : index
    %8 = vector.load %arg5[%c256, %c0_8] : memref<400x32xf32, #tpu.memory_space<vmem>>, vector<32x32xf32>
    %c288 = arith.constant 288 : index
    %c0_9 = arith.constant 0 : index
    %9 = vector.load %arg5[%c288, %c0_9] : memref<400x32xf32, #tpu.memory_space<vmem>>, vector<32x32xf32>
    %c320 = arith.constant 320 : index
    %c0_10 = arith.constant 0 : index
    %10 = vector.load %arg5[%c320, %c0_10] : memref<400x32xf32, #tpu.memory_space<vmem>>, vector<32x32xf32>
    %c352 = arith.constant 352 : index
    %c0_11 = arith.constant 0 : index
    %11 = vector.load %arg5[%c352, %c0_11] : memref<400x32xf32, #tpu.memory_space<vmem>>, vector<32x32xf32>
    %c384 = arith.constant 384 : index
    %c0_12 = arith.constant 0 : index
    %12 = vector.load %arg5[%c384, %c0_12] : memref<400x32xf32, #tpu.memory_space<vmem>>, vector<1x32xf32>
    %c385 = arith.constant 385 : index
    %c0_13 = arith.constant 0 : index
    %13 = vector.load %arg5[%c385, %c0_13] : memref<400x32xf32, #tpu.memory_space<vmem>>, vector<1x32xf32>
    %c386 = arith.constant 386 : index
    %c0_14 = arith.constant 0 : index
    %14 = vector.load %arg5[%c386, %c0_14] : memref<400x32xf32, #tpu.memory_space<vmem>>, vector<1x32xf32>
    %c387 = arith.constant 387 : index
    %c0_15 = arith.constant 0 : index
    %15 = vector.load %arg5[%c387, %c0_15] : memref<400x32xf32, #tpu.memory_space<vmem>>, vector<1x32xf32>
    %c388 = arith.constant 388 : index
    %c0_16 = arith.constant 0 : index
    %16 = vector.load %arg5[%c388, %c0_16] : memref<400x32xf32, #tpu.memory_space<vmem>>, vector<1x32xf32>
    %c389 = arith.constant 389 : index
    %c0_17 = arith.constant 0 : index
    %17 = vector.load %arg5[%c389, %c0_17] : memref<400x32xf32, #tpu.memory_space<vmem>>, vector<1x32xf32>
    %c390 = arith.constant 390 : index
    %c0_18 = arith.constant 0 : index
    %18 = vector.load %arg5[%c390, %c0_18] : memref<400x32xf32, #tpu.memory_space<vmem>>, vector<1x32xf32>
    %c391 = arith.constant 391 : index
    %c0_19 = arith.constant 0 : index
    %19 = vector.load %arg5[%c391, %c0_19] : memref<400x32xf32, #tpu.memory_space<vmem>>, vector<1x32xf32>
    %c392 = arith.constant 392 : index
    %c0_20 = arith.constant 0 : index
    %20 = vector.load %arg5[%c392, %c0_20] : memref<400x32xf32, #tpu.memory_space<vmem>>, vector<1x32xf32>
    %c393 = arith.constant 393 : index
    %c0_21 = arith.constant 0 : index
    %21 = vector.load %arg5[%c393, %c0_21] : memref<400x32xf32, #tpu.memory_space<vmem>>, vector<1x32xf32>
    %c394 = arith.constant 394 : index
    %c0_22 = arith.constant 0 : index
    %22 = vector.load %arg5[%c394, %c0_22] : memref<400x32xf32, #tpu.memory_space<vmem>>, vector<1x32xf32>
    %c0_23 = arith.constant 0 : index
    %c0_24 = arith.constant 0 : index
    %23 = vector.load %arg0[%c0_23, %c0_24] : memref<16x32xf32, #tpu.memory_space<vmem>>, vector<8x32xf32>
    %c0_25 = arith.constant 0 : index
    %c0_26 = arith.constant 0 : index
    %24 = vector.load %arg1[%c0_25, %c0_26] : memref<16x32xf32, #tpu.memory_space<vmem>>, vector<8x32xf32>
    %c0_27 = arith.constant 0 : index
    %c0_28 = arith.constant 0 : index
    %25 = vector.load %arg2[%c0_27, %c0_28] : memref<16x32xf32, #tpu.memory_space<vmem>>, vector<8x32xf32>
    %c0_29 = arith.constant 0 : index
    %c0_30 = arith.constant 0 : index
    %c0_31 = arith.constant 0 : index
    %26 = vector.load %arg3[%c0_29, %c0_30, %c0_31] : memref<2x8x8xf32, #tpu.memory_space<vmem>>, vector<1x8x8xf32>
    %27 = vector.shape_cast %26 : vector<1x8x8xf32> to vector<8x8xf32>
    %c0_32 = arith.constant 0 : index
    %c0_33 = arith.constant 0 : index
    %c0_34 = arith.constant 0 : index
    %28 = vector.load %arg4[%c0_32, %c0_33, %c0_34] : memref<2x8x8xf32, #tpu.memory_space<vmem>>, vector<1x8x8xf32>
    %29 = vector.shape_cast %28 : vector<1x8x8xf32> to vector<8x8xf32>
    %cst = arith.constant dense<0.000000e+00> : vector<8x32xf32>
    %30 = tpu.matmul %23, %0, %cst {dimension_numbers = #tpu.dot_dimension_numbers<[1], [0], [0], [1], [0, 0, 1, 1], [], []>} : vector<8x32xf32>, vector<32x32xf32>, vector<8x32xf32> -> vector<8x32xf32>
    %cst_35 = arith.constant dense<0.000000e+00> : vector<8x32xf32>
    %31 = tpu.matmul %23, %1, %cst_35 {dimension_numbers = #tpu.dot_dimension_numbers<[1], [0], [0], [1], [0, 0, 1, 1], [], []>} : vector<8x32xf32>, vector<32x32xf32>, vector<8x32xf32> -> vector<8x32xf32>
    %cst_36 = arith.constant dense<0.000000e+00> : vector<8x32xf32>
    %32 = tpu.matmul %23, %2, %cst_36 {dimension_numbers = #tpu.dot_dimension_numbers<[1], [0], [0], [1], [0, 0, 1, 1], [], []>} : vector<8x32xf32>, vector<32x32xf32>, vector<8x32xf32> -> vector<8x32xf32>
    %33 = vector.extract_strided_slice %30 {offsets = [0, 0], sizes = [8, 8], strides = [1, 1]} : vector<8x32xf32> to vector<8x8xf32>
    %34 = vector.extract_strided_slice %31 {offsets = [0, 0], sizes = [8, 8], strides = [1, 1]} : vector<8x32xf32> to vector<8x8xf32>
    %cst_37 = arith.constant dense<0.000000e+00> : vector<8x8xf32>
    %35 = tpu.matmul %33, %34, %cst_37 {dimension_numbers = #tpu.dot_dimension_numbers<[1], [1], [0], [0], [0, 0, 1, 0], [], []>} : vector<8x8xf32>, vector<8x8xf32>, vector<8x8xf32> -> vector<8x8xf32>
    %36 = arith.addf %35, %27 : vector<8x8xf32>
    %cst_38 = arith.constant dense<0xFF800000> : vector<8xf32>
    %37 = vector.multi_reduction <maximumf>, %36, %cst_38 [1] : vector<8x8xf32> to vector<8xf32>
    %38 = vector.shape_cast %37 : vector<8xf32> to vector<8x1xf32>
    %39 = vector.broadcast %38 : vector<8x1xf32> to vector<8x8xf32>
    %40 = arith.subf %36, %39 : vector<8x8xf32>
    %41 = math.exp %40 : vector<8x8xf32>
    %cst_39 = arith.constant dense<0.000000e+00> : vector<8xf32>
    %42 = vector.multi_reduction <add>, %41, %cst_39 [1] : vector<8x8xf32> to vector<8xf32>
    %43 = vector.shape_cast %42 : vector<8xf32> to vector<8x1xf32>
    %44 = tpu.reciprocal %43 {approx = true} : vector<8x1xf32> -> vector<8x1xf32>
    %45 = vector.broadcast %44 : vector<8x1xf32> to vector<8x8xf32>
    %46 = arith.mulf %41, %45 : vector<8x8xf32>
    %47 = vector.extract_strided_slice %32 {offsets = [0, 0], sizes = [8, 8], strides = [1, 1]} : vector<8x32xf32> to vector<8x8xf32>
    %cst_40 = arith.constant dense<0.000000e+00> : vector<8x8xf32>
    %48 = tpu.matmul %46, %47, %cst_40 {dimension_numbers = #tpu.dot_dimension_numbers<[1], [0], [0], [1], [0, 0, 1, 1], [], []>} : vector<8x8xf32>, vector<8x8xf32>, vector<8x8xf32> -> vector<8x8xf32>
    %49 = vector.extract_strided_slice %3 {offsets = [0, 0], sizes = [8, 32], strides = [1, 1]} : vector<32x32xf32> to vector<8x32xf32>
    %cst_41 = arith.constant dense<0.000000e+00> : vector<8x32xf32>
    %50 = tpu.matmul %48, %49, %cst_41 {dimension_numbers = #tpu.dot_dimension_numbers<[1], [0], [0], [1], [0, 0, 1, 1], [], []>} : vector<8x8xf32>, vector<8x32xf32>, vector<8x32xf32> -> vector<8x32xf32>
    %51 = vector.extract_strided_slice %30 {offsets = [0, 8], sizes = [8, 8], strides = [1, 1]} : vector<8x32xf32> to vector<8x8xf32>
    %52 = vector.extract_strided_slice %31 {offsets = [0, 8], sizes = [8, 8], strides = [1, 1]} : vector<8x32xf32> to vector<8x8xf32>
    %cst_42 = arith.constant dense<0.000000e+00> : vector<8x8xf32>
    %53 = tpu.matmul %51, %52, %cst_42 {dimension_numbers = #tpu.dot_dimension_numbers<[1], [1], [0], [0], [0, 0, 1, 0], [], []>} : vector<8x8xf32>, vector<8x8xf32>, vector<8x8xf32> -> vector<8x8xf32>
    %54 = arith.addf %53, %27 : vector<8x8xf32>
    %cst_43 = arith.constant dense<0xFF800000> : vector<8xf32>
    %55 = vector.multi_reduction <maximumf>, %54, %cst_43 [1] : vector<8x8xf32> to vector<8xf32>
    %56 = vector.shape_cast %55 : vector<8xf32> to vector<8x1xf32>
    %57 = vector.broadcast %56 : vector<8x1xf32> to vector<8x8xf32>
    %58 = arith.subf %54, %57 : vector<8x8xf32>
    %59 = math.exp %58 : vector<8x8xf32>
    %cst_44 = arith.constant dense<0.000000e+00> : vector<8xf32>
    %60 = vector.multi_reduction <add>, %59, %cst_44 [1] : vector<8x8xf32> to vector<8xf32>
    %61 = vector.shape_cast %60 : vector<8xf32> to vector<8x1xf32>
    %62 = tpu.reciprocal %61 {approx = true} : vector<8x1xf32> -> vector<8x1xf32>
    %63 = vector.broadcast %62 : vector<8x1xf32> to vector<8x8xf32>
    %64 = arith.mulf %59, %63 : vector<8x8xf32>
    %65 = vector.extract_strided_slice %32 {offsets = [0, 8], sizes = [8, 8], strides = [1, 1]} : vector<8x32xf32> to vector<8x8xf32>
    %cst_45 = arith.constant dense<0.000000e+00> : vector<8x8xf32>
    %66 = tpu.matmul %64, %65, %cst_45 {dimension_numbers = #tpu.dot_dimension_numbers<[1], [0], [0], [1], [0, 0, 1, 1], [], []>} : vector<8x8xf32>, vector<8x8xf32>, vector<8x8xf32> -> vector<8x8xf32>
    %67 = vector.extract_strided_slice %3 {offsets = [8, 0], sizes = [8, 32], strides = [1, 1]} : vector<32x32xf32> to vector<8x32xf32>
    %cst_46 = arith.constant dense<0.000000e+00> : vector<8x32xf32>
    %68 = tpu.matmul %66, %67, %cst_46 {dimension_numbers = #tpu.dot_dimension_numbers<[1], [0], [0], [1], [0, 0, 1, 1], [], []>} : vector<8x8xf32>, vector<8x32xf32>, vector<8x32xf32> -> vector<8x32xf32>
    %69 = arith.addf %50, %68 : vector<8x32xf32>
    %70 = vector.extract_strided_slice %30 {offsets = [0, 16], sizes = [8, 8], strides = [1, 1]} : vector<8x32xf32> to vector<8x8xf32>
    %71 = vector.extract_strided_slice %31 {offsets = [0, 16], sizes = [8, 8], strides = [1, 1]} : vector<8x32xf32> to vector<8x8xf32>
    %cst_47 = arith.constant dense<0.000000e+00> : vector<8x8xf32>
    %72 = tpu.matmul %70, %71, %cst_47 {dimension_numbers = #tpu.dot_dimension_numbers<[1], [1], [0], [0], [0, 0, 1, 0], [], []>} : vector<8x8xf32>, vector<8x8xf32>, vector<8x8xf32> -> vector<8x8xf32>
    %73 = arith.addf %72, %27 : vector<8x8xf32>
    %cst_48 = arith.constant dense<0xFF800000> : vector<8xf32>
    %74 = vector.multi_reduction <maximumf>, %73, %cst_48 [1] : vector<8x8xf32> to vector<8xf32>
    %75 = vector.shape_cast %74 : vector<8xf32> to vector<8x1xf32>
    %76 = vector.broadcast %75 : vector<8x1xf32> to vector<8x8xf32>
    %77 = arith.subf %73, %76 : vector<8x8xf32>
    %78 = math.exp %77 : vector<8x8xf32>
    %cst_49 = arith.constant dense<0.000000e+00> : vector<8xf32>
    %79 = vector.multi_reduction <add>, %78, %cst_49 [1] : vector<8x8xf32> to vector<8xf32>
    %80 = vector.shape_cast %79 : vector<8xf32> to vector<8x1xf32>
    %81 = tpu.reciprocal %80 {approx = true} : vector<8x1xf32> -> vector<8x1xf32>
    %82 = vector.broadcast %81 : vector<8x1xf32> to vector<8x8xf32>
    %83 = arith.mulf %78, %82 : vector<8x8xf32>
    %84 = vector.extract_strided_slice %32 {offsets = [0, 16], sizes = [8, 8], strides = [1, 1]} : vector<8x32xf32> to vector<8x8xf32>
    %cst_50 = arith.constant dense<0.000000e+00> : vector<8x8xf32>
    %85 = tpu.matmul %83, %84, %cst_50 {dimension_numbers = #tpu.dot_dimension_numbers<[1], [0], [0], [1], [0, 0, 1, 1], [], []>} : vector<8x8xf32>, vector<8x8xf32>, vector<8x8xf32> -> vector<8x8xf32>
    %86 = vector.extract_strided_slice %3 {offsets = [16, 0], sizes = [8, 32], strides = [1, 1]} : vector<32x32xf32> to vector<8x32xf32>
    %cst_51 = arith.constant dense<0.000000e+00> : vector<8x32xf32>
    %87 = tpu.matmul %85, %86, %cst_51 {dimension_numbers = #tpu.dot_dimension_numbers<[1], [0], [0], [1], [0, 0, 1, 1], [], []>} : vector<8x8xf32>, vector<8x32xf32>, vector<8x32xf32> -> vector<8x32xf32>
    %88 = arith.addf %69, %87 : vector<8x32xf32>
    %89 = vector.extract_strided_slice %30 {offsets = [0, 24], sizes = [8, 8], strides = [1, 1]} : vector<8x32xf32> to vector<8x8xf32>
    %90 = vector.extract_strided_slice %31 {offsets = [0, 24], sizes = [8, 8], strides = [1, 1]} : vector<8x32xf32> to vector<8x8xf32>
    %cst_52 = arith.constant dense<0.000000e+00> : vector<8x8xf32>
    %91 = tpu.matmul %89, %90, %cst_52 {dimension_numbers = #tpu.dot_dimension_numbers<[1], [1], [0], [0], [0, 0, 1, 0], [], []>} : vector<8x8xf32>, vector<8x8xf32>, vector<8x8xf32> -> vector<8x8xf32>
    %92 = arith.addf %91, %27 : vector<8x8xf32>
    %cst_53 = arith.constant dense<0xFF800000> : vector<8xf32>
    %93 = vector.multi_reduction <maximumf>, %92, %cst_53 [1] : vector<8x8xf32> to vector<8xf32>
    %94 = vector.shape_cast %93 : vector<8xf32> to vector<8x1xf32>
    %95 = vector.broadcast %94 : vector<8x1xf32> to vector<8x8xf32>
    %96 = arith.subf %92, %95 : vector<8x8xf32>
    %97 = math.exp %96 : vector<8x8xf32>
    %cst_54 = arith.constant dense<0.000000e+00> : vector<8xf32>
    %98 = vector.multi_reduction <add>, %97, %cst_54 [1] : vector<8x8xf32> to vector<8xf32>
    %99 = vector.shape_cast %98 : vector<8xf32> to vector<8x1xf32>
    %100 = tpu.reciprocal %99 {approx = true} : vector<8x1xf32> -> vector<8x1xf32>
    %101 = vector.broadcast %100 : vector<8x1xf32> to vector<8x8xf32>
    %102 = arith.mulf %97, %101 : vector<8x8xf32>
    %103 = vector.extract_strided_slice %32 {offsets = [0, 24], sizes = [8, 8], strides = [1, 1]} : vector<8x32xf32> to vector<8x8xf32>
    %cst_55 = arith.constant dense<0.000000e+00> : vector<8x8xf32>
    %104 = tpu.matmul %102, %103, %cst_55 {dimension_numbers = #tpu.dot_dimension_numbers<[1], [0], [0], [1], [0, 0, 1, 1], [], []>} : vector<8x8xf32>, vector<8x8xf32>, vector<8x8xf32> -> vector<8x8xf32>
    %105 = vector.extract_strided_slice %3 {offsets = [24, 0], sizes = [8, 32], strides = [1, 1]} : vector<32x32xf32> to vector<8x32xf32>
    %cst_56 = arith.constant dense<0.000000e+00> : vector<8x32xf32>
    %106 = tpu.matmul %104, %105, %cst_56 {dimension_numbers = #tpu.dot_dimension_numbers<[1], [0], [0], [1], [0, 0, 1, 1], [], []>} : vector<8x8xf32>, vector<8x32xf32>, vector<8x32xf32> -> vector<8x32xf32>
    %107 = arith.addf %88, %106 : vector<8x32xf32>
    %108 = vector.broadcast %12 : vector<1x32xf32> to vector<8x32xf32>
    %109 = arith.addf %107, %108 : vector<8x32xf32>
    %110 = arith.addf %109, %23 : vector<8x32xf32>
    %cst_57 = arith.constant dense<0.000000e+00> : vector<8xf32>
    %111 = vector.multi_reduction <add>, %110, %cst_57 [1] : vector<8x32xf32> to vector<8xf32>
    %112 = vector.shape_cast %111 : vector<8xf32> to vector<8x1xf32>
    %cst_58 = arith.constant 3.200000e+01 : f32
    %113 = vector.broadcast %cst_58 : f32 to vector<8x1xf32>
    %114 = arith.divf %112, %113 : vector<8x1xf32>
    %115 = vector.broadcast %114 : vector<8x1xf32> to vector<8x32xf32>
    %116 = arith.subf %110, %115 : vector<8x32xf32>
    %117 = arith.mulf %116, %116 : vector<8x32xf32>
    %cst_59 = arith.constant dense<0.000000e+00> : vector<8xf32>
    %118 = vector.multi_reduction <add>, %117, %cst_59 [1] : vector<8x32xf32> to vector<8xf32>
    %119 = vector.shape_cast %118 : vector<8xf32> to vector<8x1xf32>
    %cst_60 = arith.constant 3.200000e+01 : f32
    %120 = vector.broadcast %cst_60 : f32 to vector<8x1xf32>
    %121 = arith.divf %119, %120 : vector<8x1xf32>
    %122 = vector.broadcast %114 : vector<8x1xf32> to vector<8x32xf32>
    %123 = arith.subf %110, %122 : vector<8x32xf32>
    %cst_61 = arith.constant 9.99999974E-6 : f32
    %124 = vector.broadcast %cst_61 : f32 to vector<8x1xf32>
    %125 = arith.addf %121, %124 : vector<8x1xf32>
    %126 = math.sqrt %125 : vector<8x1xf32>
    %127 = vector.broadcast %126 : vector<8x1xf32> to vector<8x32xf32>
    %128 = arith.divf %123, %127 : vector<8x32xf32>
    %129 = vector.broadcast %13 : vector<1x32xf32> to vector<8x32xf32>
    %130 = arith.mulf %128, %129 : vector<8x32xf32>
    %131 = vector.broadcast %14 : vector<1x32xf32> to vector<8x32xf32>
    %132 = arith.addf %130, %131 : vector<8x32xf32>
    %cst_62 = arith.constant dense<0.000000e+00> : vector<8x32xf32>
    %133 = tpu.matmul %132, %4, %cst_62 {dimension_numbers = #tpu.dot_dimension_numbers<[1], [0], [0], [1], [0, 0, 1, 1], [], []>} : vector<8x32xf32>, vector<32x32xf32>, vector<8x32xf32> -> vector<8x32xf32>
    %cst_63 = arith.constant dense<0.000000e+00> : vector<8x32xf32>
    %134 = tpu.matmul %25, %5, %cst_63 {dimension_numbers = #tpu.dot_dimension_numbers<[1], [0], [0], [1], [0, 0, 1, 1], [], []>} : vector<8x32xf32>, vector<32x32xf32>, vector<8x32xf32> -> vector<8x32xf32>
    %cst_64 = arith.constant dense<0.000000e+00> : vector<8x32xf32>
    %135 = tpu.matmul %24, %6, %cst_64 {dimension_numbers = #tpu.dot_dimension_numbers<[1], [0], [0], [1], [0, 0, 1, 1], [], []>} : vector<8x32xf32>, vector<32x32xf32>, vector<8x32xf32> -> vector<8x32xf32>
    %136 = vector.extract_strided_slice %133 {offsets = [0, 0], sizes = [8, 8], strides = [1, 1]} : vector<8x32xf32> to vector<8x8xf32>
    %137 = vector.extract_strided_slice %134 {offsets = [0, 0], sizes = [8, 8], strides = [1, 1]} : vector<8x32xf32> to vector<8x8xf32>
    %cst_65 = arith.constant dense<0.000000e+00> : vector<8x8xf32>
    %138 = tpu.matmul %136, %137, %cst_65 {dimension_numbers = #tpu.dot_dimension_numbers<[1], [1], [0], [0], [0, 0, 1, 0], [], []>} : vector<8x8xf32>, vector<8x8xf32>, vector<8x8xf32> -> vector<8x8xf32>
    %139 = arith.addf %138, %29 : vector<8x8xf32>
    %cst_66 = arith.constant dense<0xFF800000> : vector<8xf32>
    %140 = vector.multi_reduction <maximumf>, %139, %cst_66 [1] : vector<8x8xf32> to vector<8xf32>
    %141 = vector.shape_cast %140 : vector<8xf32> to vector<8x1xf32>
    %142 = vector.broadcast %141 : vector<8x1xf32> to vector<8x8xf32>
    %143 = arith.subf %139, %142 : vector<8x8xf32>
    %144 = math.exp %143 : vector<8x8xf32>
    %cst_67 = arith.constant dense<0.000000e+00> : vector<8xf32>
    %145 = vector.multi_reduction <add>, %144, %cst_67 [1] : vector<8x8xf32> to vector<8xf32>
    %146 = vector.shape_cast %145 : vector<8xf32> to vector<8x1xf32>
    %147 = tpu.reciprocal %146 {approx = true} : vector<8x1xf32> -> vector<8x1xf32>
    %148 = vector.broadcast %147 : vector<8x1xf32> to vector<8x8xf32>
    %149 = arith.mulf %144, %148 : vector<8x8xf32>
    %150 = vector.extract_strided_slice %135 {offsets = [0, 0], sizes = [8, 8], strides = [1, 1]} : vector<8x32xf32> to vector<8x8xf32>
    %cst_68 = arith.constant dense<0.000000e+00> : vector<8x8xf32>
    %151 = tpu.matmul %149, %150, %cst_68 {dimension_numbers = #tpu.dot_dimension_numbers<[1], [0], [0], [1], [0, 0, 1, 1], [], []>} : vector<8x8xf32>, vector<8x8xf32>, vector<8x8xf32> -> vector<8x8xf32>
    %152 = vector.extract_strided_slice %7 {offsets = [0, 0], sizes = [8, 32], strides = [1, 1]} : vector<32x32xf32> to vector<8x32xf32>
    %cst_69 = arith.constant dense<0.000000e+00> : vector<8x32xf32>
    %153 = tpu.matmul %151, %152, %cst_69 {dimension_numbers = #tpu.dot_dimension_numbers<[1], [0], [0], [1], [0, 0, 1, 1], [], []>} : vector<8x8xf32>, vector<8x32xf32>, vector<8x32xf32> -> vector<8x32xf32>
    %154 = vector.extract_strided_slice %133 {offsets = [0, 8], sizes = [8, 8], strides = [1, 1]} : vector<8x32xf32> to vector<8x8xf32>
    %155 = vector.extract_strided_slice %134 {offsets = [0, 8], sizes = [8, 8], strides = [1, 1]} : vector<8x32xf32> to vector<8x8xf32>
    %cst_70 = arith.constant dense<0.000000e+00> : vector<8x8xf32>
    %156 = tpu.matmul %154, %155, %cst_70 {dimension_numbers = #tpu.dot_dimension_numbers<[1], [1], [0], [0], [0, 0, 1, 0], [], []>} : vector<8x8xf32>, vector<8x8xf32>, vector<8x8xf32> -> vector<8x8xf32>
    %157 = arith.addf %156, %29 : vector<8x8xf32>
    %cst_71 = arith.constant dense<0xFF800000> : vector<8xf32>
    %158 = vector.multi_reduction <maximumf>, %157, %cst_71 [1] : vector<8x8xf32> to vector<8xf32>
    %159 = vector.shape_cast %158 : vector<8xf32> to vector<8x1xf32>
    %160 = vector.broadcast %159 : vector<8x1xf32> to vector<8x8xf32>
    %161 = arith.subf %157, %160 : vector<8x8xf32>
    %162 = math.exp %161 : vector<8x8xf32>
    %cst_72 = arith.constant dense<0.000000e+00> : vector<8xf32>
    %163 = vector.multi_reduction <add>, %162, %cst_72 [1] : vector<8x8xf32> to vector<8xf32>
    %164 = vector.shape_cast %163 : vector<8xf32> to vector<8x1xf32>
    %165 = tpu.reciprocal %164 {approx = true} : vector<8x1xf32> -> vector<8x1xf32>
    %166 = vector.broadcast %165 : vector<8x1xf32> to vector<8x8xf32>
    %167 = arith.mulf %162, %166 : vector<8x8xf32>
    %168 = vector.extract_strided_slice %135 {offsets = [0, 8], sizes = [8, 8], strides = [1, 1]} : vector<8x32xf32> to vector<8x8xf32>
    %cst_73 = arith.constant dense<0.000000e+00> : vector<8x8xf32>
    %169 = tpu.matmul %167, %168, %cst_73 {dimension_numbers = #tpu.dot_dimension_numbers<[1], [0], [0], [1], [0, 0, 1, 1], [], []>} : vector<8x8xf32>, vector<8x8xf32>, vector<8x8xf32> -> vector<8x8xf32>
    %170 = vector.extract_strided_slice %7 {offsets = [8, 0], sizes = [8, 32], strides = [1, 1]} : vector<32x32xf32> to vector<8x32xf32>
    %cst_74 = arith.constant dense<0.000000e+00> : vector<8x32xf32>
    %171 = tpu.matmul %169, %170, %cst_74 {dimension_numbers = #tpu.dot_dimension_numbers<[1], [0], [0], [1], [0, 0, 1, 1], [], []>} : vector<8x8xf32>, vector<8x32xf32>, vector<8x32xf32> -> vector<8x32xf32>
    %172 = arith.addf %153, %171 : vector<8x32xf32>
    %173 = vector.extract_strided_slice %133 {offsets = [0, 16], sizes = [8, 8], strides = [1, 1]} : vector<8x32xf32> to vector<8x8xf32>
    %174 = vector.extract_strided_slice %134 {offsets = [0, 16], sizes = [8, 8], strides = [1, 1]} : vector<8x32xf32> to vector<8x8xf32>
    %cst_75 = arith.constant dense<0.000000e+00> : vector<8x8xf32>
    %175 = tpu.matmul %173, %174, %cst_75 {dimension_numbers = #tpu.dot_dimension_numbers<[1], [1], [0], [0], [0, 0, 1, 0], [], []>} : vector<8x8xf32>, vector<8x8xf32>, vector<8x8xf32> -> vector<8x8xf32>
    %176 = arith.addf %175, %29 : vector<8x8xf32>
    %cst_76 = arith.constant dense<0xFF800000> : vector<8xf32>
    %177 = vector.multi_reduction <maximumf>, %176, %cst_76 [1] : vector<8x8xf32> to vector<8xf32>
    %178 = vector.shape_cast %177 : vector<8xf32> to vector<8x1xf32>
    %179 = vector.broadcast %178 : vector<8x1xf32> to vector<8x8xf32>
    %180 = arith.subf %176, %179 : vector<8x8xf32>
    %181 = math.exp %180 : vector<8x8xf32>
    %cst_77 = arith.constant dense<0.000000e+00> : vector<8xf32>
    %182 = vector.multi_reduction <add>, %181, %cst_77 [1] : vector<8x8xf32> to vector<8xf32>
    %183 = vector.shape_cast %182 : vector<8xf32> to vector<8x1xf32>
    %184 = tpu.reciprocal %183 {approx = true} : vector<8x1xf32> -> vector<8x1xf32>
    %185 = vector.broadcast %184 : vector<8x1xf32> to vector<8x8xf32>
    %186 = arith.mulf %181, %185 : vector<8x8xf32>
    %187 = vector.extract_strided_slice %135 {offsets = [0, 16], sizes = [8, 8], strides = [1, 1]} : vector<8x32xf32> to vector<8x8xf32>
    %cst_78 = arith.constant dense<0.000000e+00> : vector<8x8xf32>
    %188 = tpu.matmul %186, %187, %cst_78 {dimension_numbers = #tpu.dot_dimension_numbers<[1], [0], [0], [1], [0, 0, 1, 1], [], []>} : vector<8x8xf32>, vector<8x8xf32>, vector<8x8xf32> -> vector<8x8xf32>
    %189 = vector.extract_strided_slice %7 {offsets = [16, 0], sizes = [8, 32], strides = [1, 1]} : vector<32x32xf32> to vector<8x32xf32>
    %cst_79 = arith.constant dense<0.000000e+00> : vector<8x32xf32>
    %190 = tpu.matmul %188, %189, %cst_79 {dimension_numbers = #tpu.dot_dimension_numbers<[1], [0], [0], [1], [0, 0, 1, 1], [], []>} : vector<8x8xf32>, vector<8x32xf32>, vector<8x32xf32> -> vector<8x32xf32>
    %191 = arith.addf %172, %190 : vector<8x32xf32>
    %192 = vector.extract_strided_slice %133 {offsets = [0, 24], sizes = [8, 8], strides = [1, 1]} : vector<8x32xf32> to vector<8x8xf32>
    %193 = vector.extract_strided_slice %134 {offsets = [0, 24], sizes = [8, 8], strides = [1, 1]} : vector<8x32xf32> to vector<8x8xf32>
    %cst_80 = arith.constant dense<0.000000e+00> : vector<8x8xf32>
    %194 = tpu.matmul %192, %193, %cst_80 {dimension_numbers = #tpu.dot_dimension_numbers<[1], [1], [0], [0], [0, 0, 1, 0], [], []>} : vector<8x8xf32>, vector<8x8xf32>, vector<8x8xf32> -> vector<8x8xf32>
    %195 = arith.addf %194, %29 : vector<8x8xf32>
    %cst_81 = arith.constant dense<0xFF800000> : vector<8xf32>
    %196 = vector.multi_reduction <maximumf>, %195, %cst_81 [1] : vector<8x8xf32> to vector<8xf32>
    %197 = vector.shape_cast %196 : vector<8xf32> to vector<8x1xf32>
    %198 = vector.broadcast %197 : vector<8x1xf32> to vector<8x8xf32>
    %199 = arith.subf %195, %198 : vector<8x8xf32>
    %200 = math.exp %199 : vector<8x8xf32>
    %cst_82 = arith.constant dense<0.000000e+00> : vector<8xf32>
    %201 = vector.multi_reduction <add>, %200, %cst_82 [1] : vector<8x8xf32> to vector<8xf32>
    %202 = vector.shape_cast %201 : vector<8xf32> to vector<8x1xf32>
    %203 = tpu.reciprocal %202 {approx = true} : vector<8x1xf32> -> vector<8x1xf32>
    %204 = vector.broadcast %203 : vector<8x1xf32> to vector<8x8xf32>
    %205 = arith.mulf %200, %204 : vector<8x8xf32>
    %206 = vector.extract_strided_slice %135 {offsets = [0, 24], sizes = [8, 8], strides = [1, 1]} : vector<8x32xf32> to vector<8x8xf32>
    %cst_83 = arith.constant dense<0.000000e+00> : vector<8x8xf32>
    %207 = tpu.matmul %205, %206, %cst_83 {dimension_numbers = #tpu.dot_dimension_numbers<[1], [0], [0], [1], [0, 0, 1, 1], [], []>} : vector<8x8xf32>, vector<8x8xf32>, vector<8x8xf32> -> vector<8x8xf32>
    %208 = vector.extract_strided_slice %7 {offsets = [24, 0], sizes = [8, 32], strides = [1, 1]} : vector<32x32xf32> to vector<8x32xf32>
    %cst_84 = arith.constant dense<0.000000e+00> : vector<8x32xf32>
    %209 = tpu.matmul %207, %208, %cst_84 {dimension_numbers = #tpu.dot_dimension_numbers<[1], [0], [0], [1], [0, 0, 1, 1], [], []>} : vector<8x8xf32>, vector<8x32xf32>, vector<8x32xf32> -> vector<8x32xf32>
    %210 = arith.addf %191, %209 : vector<8x32xf32>
    %211 = vector.broadcast %15 : vector<1x32xf32> to vector<8x32xf32>
    %212 = arith.addf %210, %211 : vector<8x32xf32>
    %213 = arith.addf %212, %132 : vector<8x32xf32>
    %cst_85 = arith.constant dense<0.000000e+00> : vector<8xf32>
    %214 = vector.multi_reduction <add>, %213, %cst_85 [1] : vector<8x32xf32> to vector<8xf32>
    %215 = vector.shape_cast %214 : vector<8xf32> to vector<8x1xf32>
    %cst_86 = arith.constant 3.200000e+01 : f32
    %216 = vector.broadcast %cst_86 : f32 to vector<8x1xf32>
    %217 = arith.divf %215, %216 : vector<8x1xf32>
    %218 = vector.broadcast %217 : vector<8x1xf32> to vector<8x32xf32>
    %219 = arith.subf %213, %218 : vector<8x32xf32>
    %220 = arith.mulf %219, %219 : vector<8x32xf32>
    %cst_87 = arith.constant dense<0.000000e+00> : vector<8xf32>
    %221 = vector.multi_reduction <add>, %220, %cst_87 [1] : vector<8x32xf32> to vector<8xf32>
    %222 = vector.shape_cast %221 : vector<8xf32> to vector<8x1xf32>
    %cst_88 = arith.constant 3.200000e+01 : f32
    %223 = vector.broadcast %cst_88 : f32 to vector<8x1xf32>
    %224 = arith.divf %222, %223 : vector<8x1xf32>
    %225 = vector.broadcast %217 : vector<8x1xf32> to vector<8x32xf32>
    %226 = arith.subf %213, %225 : vector<8x32xf32>
    %cst_89 = arith.constant 9.99999974E-6 : f32
    %227 = vector.broadcast %cst_89 : f32 to vector<8x1xf32>
    %228 = arith.addf %224, %227 : vector<8x1xf32>
    %229 = math.sqrt %228 : vector<8x1xf32>
    %230 = vector.broadcast %229 : vector<8x1xf32> to vector<8x32xf32>
    %231 = arith.divf %226, %230 : vector<8x32xf32>
    %232 = vector.broadcast %16 : vector<1x32xf32> to vector<8x32xf32>
    %233 = arith.mulf %231, %232 : vector<8x32xf32>
    %234 = vector.broadcast %17 : vector<1x32xf32> to vector<8x32xf32>
    %235 = arith.addf %233, %234 : vector<8x32xf32>
    %cst_90 = arith.constant dense<0.000000e+00> : vector<8x32xf32>
    %236 = tpu.matmul %235, %8, %cst_90 {dimension_numbers = #tpu.dot_dimension_numbers<[1], [0], [0], [1], [0, 0, 1, 1], [], []>} : vector<8x32xf32>, vector<32x32xf32>, vector<8x32xf32> -> vector<8x32xf32>
    %237 = vector.broadcast %18 : vector<1x32xf32> to vector<8x32xf32>
    %238 = arith.addf %236, %237 : vector<8x32xf32>
    %cst_91 = arith.constant 0.000000e+00 : f32
    %239 = vector.broadcast %cst_91 : f32 to vector<8x32xf32>
    %240 = arith.maximumf %238, %239 : vector<8x32xf32>
    %cst_92 = arith.constant dense<0.000000e+00> : vector<8x32xf32>
    %241 = tpu.matmul %235, %9, %cst_92 {dimension_numbers = #tpu.dot_dimension_numbers<[1], [0], [0], [1], [0, 0, 1, 1], [], []>} : vector<8x32xf32>, vector<32x32xf32>, vector<8x32xf32> -> vector<8x32xf32>
    %242 = vector.broadcast %19 : vector<1x32xf32> to vector<8x32xf32>
    %243 = arith.addf %241, %242 : vector<8x32xf32>
    %cst_93 = arith.constant 0.000000e+00 : f32
    %244 = vector.broadcast %cst_93 : f32 to vector<8x32xf32>
    %245 = arith.maximumf %243, %244 : vector<8x32xf32>
    %cst_94 = arith.constant dense<0.000000e+00> : vector<8x32xf32>
    %246 = tpu.matmul %240, %10, %cst_94 {dimension_numbers = #tpu.dot_dimension_numbers<[1], [0], [0], [1], [0, 0, 1, 1], [], []>} : vector<8x32xf32>, vector<32x32xf32>, vector<8x32xf32> -> vector<8x32xf32>
    %cst_95 = arith.constant dense<0.000000e+00> : vector<8x32xf32>
    %247 = tpu.matmul %245, %11, %cst_95 {dimension_numbers = #tpu.dot_dimension_numbers<[1], [0], [0], [1], [0, 0, 1, 1], [], []>} : vector<8x32xf32>, vector<32x32xf32>, vector<8x32xf32> -> vector<8x32xf32>
    %248 = arith.addf %246, %247 : vector<8x32xf32>
    %249 = vector.broadcast %20 : vector<1x32xf32> to vector<8x32xf32>
    %250 = arith.addf %248, %249 : vector<8x32xf32>
    %251 = arith.addf %250, %235 : vector<8x32xf32>
    %cst_96 = arith.constant dense<0.000000e+00> : vector<8xf32>
    %252 = vector.multi_reduction <add>, %251, %cst_96 [1] : vector<8x32xf32> to vector<8xf32>
    %253 = vector.shape_cast %252 : vector<8xf32> to vector<8x1xf32>
    %cst_97 = arith.constant 3.200000e+01 : f32
    %254 = vector.broadcast %cst_97 : f32 to vector<8x1xf32>
    %255 = arith.divf %253, %254 : vector<8x1xf32>
    %256 = vector.broadcast %255 : vector<8x1xf32> to vector<8x32xf32>
    %257 = arith.subf %251, %256 : vector<8x32xf32>
    %258 = arith.mulf %257, %257 : vector<8x32xf32>
    %cst_98 = arith.constant dense<0.000000e+00> : vector<8xf32>
    %259 = vector.multi_reduction <add>, %258, %cst_98 [1] : vector<8x32xf32> to vector<8xf32>
    %260 = vector.shape_cast %259 : vector<8xf32> to vector<8x1xf32>
    %cst_99 = arith.constant 3.200000e+01 : f32
    %261 = vector.broadcast %cst_99 : f32 to vector<8x1xf32>
    %262 = arith.divf %260, %261 : vector<8x1xf32>
    %263 = vector.broadcast %255 : vector<8x1xf32> to vector<8x32xf32>
    %264 = arith.subf %251, %263 : vector<8x32xf32>
    %cst_100 = arith.constant 9.99999974E-6 : f32
    %265 = vector.broadcast %cst_100 : f32 to vector<8x1xf32>
    %266 = arith.addf %262, %265 : vector<8x1xf32>
    %267 = math.sqrt %266 : vector<8x1xf32>
    %268 = vector.broadcast %267 : vector<8x1xf32> to vector<8x32xf32>
    %269 = arith.divf %264, %268 : vector<8x32xf32>
    %270 = vector.broadcast %21 : vector<1x32xf32> to vector<8x32xf32>
    %271 = arith.mulf %269, %270 : vector<8x32xf32>
    %272 = vector.broadcast %22 : vector<1x32xf32> to vector<8x32xf32>
    %273 = arith.addf %271, %272 : vector<8x32xf32>
    %c0_101 = arith.constant 0 : index
    %c0_102 = arith.constant 0 : index
    %274 = vector.load %arg6[%c0_101, %c0_102] : memref<16x32xf32, #tpu.memory_space<vmem>>, vector<8x32xf32>
    tpu.vector_store %arg6[%c0_101, %c0_102], %273 {strides = array<i32>} : memref<16x32xf32, #tpu.memory_space<vmem>>, vector<8x32xf32>,
    %c8 = arith.constant 8 : index
    %c0_103 = arith.constant 0 : index
    %275 = vector.load %arg0[%c8, %c0_103] : memref<16x32xf32, #tpu.memory_space<vmem>>, vector<8x32xf32>
    %c8_104 = arith.constant 8 : index
    %c0_105 = arith.constant 0 : index
    %276 = vector.load %arg1[%c8_104, %c0_105] : memref<16x32xf32, #tpu.memory_space<vmem>>, vector<8x32xf32>
    %c8_106 = arith.constant 8 : index
    %c0_107 = arith.constant 0 : index
    %277 = vector.load %arg2[%c8_106, %c0_107] : memref<16x32xf32, #tpu.memory_space<vmem>>, vector<8x32xf32>
    %c1 = arith.constant 1 : index
    %c0_108 = arith.constant 0 : index
    %c0_109 = arith.constant 0 : index
    %278 = vector.load %arg3[%c1, %c0_108, %c0_109] : memref<2x8x8xf32, #tpu.memory_space<vmem>>, vector<1x8x8xf32>
    %279 = vector.shape_cast %278 : vector<1x8x8xf32> to vector<8x8xf32>
    %c1_110 = arith.constant 1 : index
    %c0_111 = arith.constant 0 : index
    %c0_112 = arith.constant 0 : index
    %280 = vector.load %arg4[%c1_110, %c0_111, %c0_112] : memref<2x8x8xf32, #tpu.memory_space<vmem>>, vector<1x8x8xf32>
    %281 = vector.shape_cast %280 : vector<1x8x8xf32> to vector<8x8xf32>
    %cst_113 = arith.constant dense<0.000000e+00> : vector<8x32xf32>
    %282 = tpu.matmul %275, %0, %cst_113 {dimension_numbers = #tpu.dot_dimension_numbers<[1], [0], [0], [1], [0, 0, 1, 1], [], []>} : vector<8x32xf32>, vector<32x32xf32>, vector<8x32xf32> -> vector<8x32xf32>
    %cst_114 = arith.constant dense<0.000000e+00> : vector<8x32xf32>
    %283 = tpu.matmul %275, %1, %cst_114 {dimension_numbers = #tpu.dot_dimension_numbers<[1], [0], [0], [1], [0, 0, 1, 1], [], []>} : vector<8x32xf32>, vector<32x32xf32>, vector<8x32xf32> -> vector<8x32xf32>
    %cst_115 = arith.constant dense<0.000000e+00> : vector<8x32xf32>
    %284 = tpu.matmul %275, %2, %cst_115 {dimension_numbers = #tpu.dot_dimension_numbers<[1], [0], [0], [1], [0, 0, 1, 1], [], []>} : vector<8x32xf32>, vector<32x32xf32>, vector<8x32xf32> -> vector<8x32xf32>
    %285 = vector.extract_strided_slice %282 {offsets = [0, 0], sizes = [8, 8], strides = [1, 1]} : vector<8x32xf32> to vector<8x8xf32>
    %286 = vector.extract_strided_slice %283 {offsets = [0, 0], sizes = [8, 8], strides = [1, 1]} : vector<8x32xf32> to vector<8x8xf32>
    %cst_116 = arith.constant dense<0.000000e+00> : vector<8x8xf32>
    %287 = tpu.matmul %285, %286, %cst_116 {dimension_numbers = #tpu.dot_dimension_numbers<[1], [1], [0], [0], [0, 0, 1, 0], [], []>} : vector<8x8xf32>, vector<8x8xf32>, vector<8x8xf32> -> vector<8x8xf32>
    %288 = arith.addf %287, %279 : vector<8x8xf32>
    %cst_117 = arith.constant dense<0xFF800000> : vector<8xf32>
    %289 = vector.multi_reduction <maximumf>, %288, %cst_117 [1] : vector<8x8xf32> to vector<8xf32>
    %290 = vector.shape_cast %289 : vector<8xf32> to vector<8x1xf32>
    %291 = vector.broadcast %290 : vector<8x1xf32> to vector<8x8xf32>
    %292 = arith.subf %288, %291 : vector<8x8xf32>
    %293 = math.exp %292 : vector<8x8xf32>
    %cst_118 = arith.constant dense<0.000000e+00> : vector<8xf32>
    %294 = vector.multi_reduction <add>, %293, %cst_118 [1] : vector<8x8xf32> to vector<8xf32>
    %295 = vector.shape_cast %294 : vector<8xf32> to vector<8x1xf32>
    %296 = tpu.reciprocal %295 {approx = true} : vector<8x1xf32> -> vector<8x1xf32>
    %297 = vector.broadcast %296 : vector<8x1xf32> to vector<8x8xf32>
    %298 = arith.mulf %293, %297 : vector<8x8xf32>
    %299 = vector.extract_strided_slice %284 {offsets = [0, 0], sizes = [8, 8], strides = [1, 1]} : vector<8x32xf32> to vector<8x8xf32>
    %cst_119 = arith.constant dense<0.000000e+00> : vector<8x8xf32>
    %300 = tpu.matmul %298, %299, %cst_119 {dimension_numbers = #tpu.dot_dimension_numbers<[1], [0], [0], [1], [0, 0, 1, 1], [], []>} : vector<8x8xf32>, vector<8x8xf32>, vector<8x8xf32> -> vector<8x8xf32>
    %301 = vector.extract_strided_slice %3 {offsets = [0, 0], sizes = [8, 32], strides = [1, 1]} : vector<32x32xf32> to vector<8x32xf32>
    %cst_120 = arith.constant dense<0.000000e+00> : vector<8x32xf32>
    %302 = tpu.matmul %300, %301, %cst_120 {dimension_numbers = #tpu.dot_dimension_numbers<[1], [0], [0], [1], [0, 0, 1, 1], [], []>} : vector<8x8xf32>, vector<8x32xf32>, vector<8x32xf32> -> vector<8x32xf32>
    %303 = vector.extract_strided_slice %282 {offsets = [0, 8], sizes = [8, 8], strides = [1, 1]} : vector<8x32xf32> to vector<8x8xf32>
    %304 = vector.extract_strided_slice %283 {offsets = [0, 8], sizes = [8, 8], strides = [1, 1]} : vector<8x32xf32> to vector<8x8xf32>
    %cst_121 = arith.constant dense<0.000000e+00> : vector<8x8xf32>
    %305 = tpu.matmul %303, %304, %cst_121 {dimension_numbers = #tpu.dot_dimension_numbers<[1], [1], [0], [0], [0, 0, 1, 0], [], []>} : vector<8x8xf32>, vector<8x8xf32>, vector<8x8xf32> -> vector<8x8xf32>
    %306 = arith.addf %305, %279 : vector<8x8xf32>
    %cst_122 = arith.constant dense<0xFF800000> : vector<8xf32>
    %307 = vector.multi_reduction <maximumf>, %306, %cst_122 [1] : vector<8x8xf32> to vector<8xf32>
    %308 = vector.shape_cast %307 : vector<8xf32> to vector<8x1xf32>
    %309 = vector.broadcast %308 : vector<8x1xf32> to vector<8x8xf32>
    %310 = arith.subf %306, %309 : vector<8x8xf32>
    %311 = math.exp %310 : vector<8x8xf32>
    %cst_123 = arith.constant dense<0.000000e+00> : vector<8xf32>
    %312 = vector.multi_reduction <add>, %311, %cst_123 [1] : vector<8x8xf32> to vector<8xf32>
    %313 = vector.shape_cast %312 : vector<8xf32> to vector<8x1xf32>
    %314 = tpu.reciprocal %313 {approx = true} : vector<8x1xf32> -> vector<8x1xf32>
    %315 = vector.broadcast %314 : vector<8x1xf32> to vector<8x8xf32>
    %316 = arith.mulf %311, %315 : vector<8x8xf32>
    %317 = vector.extract_strided_slice %284 {offsets = [0, 8], sizes = [8, 8], strides = [1, 1]} : vector<8x32xf32> to vector<8x8xf32>
    %cst_124 = arith.constant dense<0.000000e+00> : vector<8x8xf32>
    %318 = tpu.matmul %316, %317, %cst_124 {dimension_numbers = #tpu.dot_dimension_numbers<[1], [0], [0], [1], [0, 0, 1, 1], [], []>} : vector<8x8xf32>, vector<8x8xf32>, vector<8x8xf32> -> vector<8x8xf32>
    %319 = vector.extract_strided_slice %3 {offsets = [8, 0], sizes = [8, 32], strides = [1, 1]} : vector<32x32xf32> to vector<8x32xf32>
    %cst_125 = arith.constant dense<0.000000e+00> : vector<8x32xf32>
    %320 = tpu.matmul %318, %319, %cst_125 {dimension_numbers = #tpu.dot_dimension_numbers<[1], [0], [0], [1], [0, 0, 1, 1], [], []>} : vector<8x8xf32>, vector<8x32xf32>, vector<8x32xf32> -> vector<8x32xf32>
    %321 = arith.addf %302, %320 : vector<8x32xf32>
    %322 = vector.extract_strided_slice %282 {offsets = [0, 16], sizes = [8, 8], strides = [1, 1]} : vector<8x32xf32> to vector<8x8xf32>
    %323 = vector.extract_strided_slice %283 {offsets = [0, 16], sizes = [8, 8], strides = [1, 1]} : vector<8x32xf32> to vector<8x8xf32>
    %cst_126 = arith.constant dense<0.000000e+00> : vector<8x8xf32>
    %324 = tpu.matmul %322, %323, %cst_126 {dimension_numbers = #tpu.dot_dimension_numbers<[1], [1], [0], [0], [0, 0, 1, 0], [], []>} : vector<8x8xf32>, vector<8x8xf32>, vector<8x8xf32> -> vector<8x8xf32>
    %325 = arith.addf %324, %279 : vector<8x8xf32>
    %cst_127 = arith.constant dense<0xFF800000> : vector<8xf32>
    %326 = vector.multi_reduction <maximumf>, %325, %cst_127 [1] : vector<8x8xf32> to vector<8xf32>
    %327 = vector.shape_cast %326 : vector<8xf32> to vector<8x1xf32>
    %328 = vector.broadcast %327 : vector<8x1xf32> to vector<8x8xf32>
    %329 = arith.subf %325, %328 : vector<8x8xf32>
    %330 = math.exp %329 : vector<8x8xf32>
    %cst_128 = arith.constant dense<0.000000e+00> : vector<8xf32>
    %331 = vector.multi_reduction <add>, %330, %cst_128 [1] : vector<8x8xf32> to vector<8xf32>
    %332 = vector.shape_cast %331 : vector<8xf32> to vector<8x1xf32>
    %333 = tpu.reciprocal %332 {approx = true} : vector<8x1xf32> -> vector<8x1xf32>
    %334 = vector.broadcast %333 : vector<8x1xf32> to vector<8x8xf32>
    %335 = arith.mulf %330, %334 : vector<8x8xf32>
    %336 = vector.extract_strided_slice %284 {offsets = [0, 16], sizes = [8, 8], strides = [1, 1]} : vector<8x32xf32> to vector<8x8xf32>
    %cst_129 = arith.constant dense<0.000000e+00> : vector<8x8xf32>
    %337 = tpu.matmul %335, %336, %cst_129 {dimension_numbers = #tpu.dot_dimension_numbers<[1], [0], [0], [1], [0, 0, 1, 1], [], []>} : vector<8x8xf32>, vector<8x8xf32>, vector<8x8xf32> -> vector<8x8xf32>
    %338 = vector.extract_strided_slice %3 {offsets = [16, 0], sizes = [8, 32], strides = [1, 1]} : vector<32x32xf32> to vector<8x32xf32>
    %cst_130 = arith.constant dense<0.000000e+00> : vector<8x32xf32>
    %339 = tpu.matmul %337, %338, %cst_130 {dimension_numbers = #tpu.dot_dimension_numbers<[1], [0], [0], [1], [0, 0, 1, 1], [], []>} : vector<8x8xf32>, vector<8x32xf32>, vector<8x32xf32> -> vector<8x32xf32>
    %340 = arith.addf %321, %339 : vector<8x32xf32>
    %341 = vector.extract_strided_slice %282 {offsets = [0, 24], sizes = [8, 8], strides = [1, 1]} : vector<8x32xf32> to vector<8x8xf32>
    %342 = vector.extract_strided_slice %283 {offsets = [0, 24], sizes = [8, 8], strides = [1, 1]} : vector<8x32xf32> to vector<8x8xf32>
    %cst_131 = arith.constant dense<0.000000e+00> : vector<8x8xf32>
    %343 = tpu.matmul %341, %342, %cst_131 {dimension_numbers = #tpu.dot_dimension_numbers<[1], [1], [0], [0], [0, 0, 1, 0], [], []>} : vector<8x8xf32>, vector<8x8xf32>, vector<8x8xf32> -> vector<8x8xf32>
    %344 = arith.addf %343, %279 : vector<8x8xf32>
    %cst_132 = arith.constant dense<0xFF800000> : vector<8xf32>
    %345 = vector.multi_reduction <maximumf>, %344, %cst_132 [1] : vector<8x8xf32> to vector<8xf32>
    %346 = vector.shape_cast %345 : vector<8xf32> to vector<8x1xf32>
    %347 = vector.broadcast %346 : vector<8x1xf32> to vector<8x8xf32>
    %348 = arith.subf %344, %347 : vector<8x8xf32>
    %349 = math.exp %348 : vector<8x8xf32>
    %cst_133 = arith.constant dense<0.000000e+00> : vector<8xf32>
    %350 = vector.multi_reduction <add>, %349, %cst_133 [1] : vector<8x8xf32> to vector<8xf32>
    %351 = vector.shape_cast %350 : vector<8xf32> to vector<8x1xf32>
    %352 = tpu.reciprocal %351 {approx = true} : vector<8x1xf32> -> vector<8x1xf32>
    %353 = vector.broadcast %352 : vector<8x1xf32> to vector<8x8xf32>
    %354 = arith.mulf %349, %353 : vector<8x8xf32>
    %355 = vector.extract_strided_slice %284 {offsets = [0, 24], sizes = [8, 8], strides = [1, 1]} : vector<8x32xf32> to vector<8x8xf32>
    %cst_134 = arith.constant dense<0.000000e+00> : vector<8x8xf32>
    %356 = tpu.matmul %354, %355, %cst_134 {dimension_numbers = #tpu.dot_dimension_numbers<[1], [0], [0], [1], [0, 0, 1, 1], [], []>} : vector<8x8xf32>, vector<8x8xf32>, vector<8x8xf32> -> vector<8x8xf32>
    %357 = vector.extract_strided_slice %3 {offsets = [24, 0], sizes = [8, 32], strides = [1, 1]} : vector<32x32xf32> to vector<8x32xf32>
    %cst_135 = arith.constant dense<0.000000e+00> : vector<8x32xf32>
    %358 = tpu.matmul %356, %357, %cst_135 {dimension_numbers = #tpu.dot_dimension_numbers<[1], [0], [0], [1], [0, 0, 1, 1], [], []>} : vector<8x8xf32>, vector<8x32xf32>, vector<8x32xf32> -> vector<8x32xf32>
    %359 = arith.addf %340, %358 : vector<8x32xf32>
    %360 = vector.broadcast %12 : vector<1x32xf32> to vector<8x32xf32>
    %361 = arith.addf %359, %360 : vector<8x32xf32>
    %362 = arith.addf %361, %275 : vector<8x32xf32>
    %cst_136 = arith.constant dense<0.000000e+00> : vector<8xf32>
    %363 = vector.multi_reduction <add>, %362, %cst_136 [1] : vector<8x32xf32> to vector<8xf32>
    %364 = vector.shape_cast %363 : vector<8xf32> to vector<8x1xf32>
    %cst_137 = arith.constant 3.200000e+01 : f32
    %365 = vector.broadcast %cst_137 : f32 to vector<8x1xf32>
    %366 = arith.divf %364, %365 : vector<8x1xf32>
    %367 = vector.broadcast %366 : vector<8x1xf32> to vector<8x32xf32>
    %368 = arith.subf %362, %367 : vector<8x32xf32>
    %369 = arith.mulf %368, %368 : vector<8x32xf32>
    %cst_138 = arith.constant dense<0.000000e+00> : vector<8xf32>
    %370 = vector.multi_reduction <add>, %369, %cst_138 [1] : vector<8x32xf32> to vector<8xf32>
    %371 = vector.shape_cast %370 : vector<8xf32> to vector<8x1xf32>
    %cst_139 = arith.constant 3.200000e+01 : f32
    %372 = vector.broadcast %cst_139 : f32 to vector<8x1xf32>
    %373 = arith.divf %371, %372 : vector<8x1xf32>
    %374 = vector.broadcast %366 : vector<8x1xf32> to vector<8x32xf32>
    %375 = arith.subf %362, %374 : vector<8x32xf32>
    %cst_140 = arith.constant 9.99999974E-6 : f32
    %376 = vector.broadcast %cst_140 : f32 to vector<8x1xf32>
    %377 = arith.addf %373, %376 : vector<8x1xf32>
    %378 = math.sqrt %377 : vector<8x1xf32>
    %379 = vector.broadcast %378 : vector<8x1xf32> to vector<8x32xf32>
    %380 = arith.divf %375, %379 : vector<8x32xf32>
    %381 = vector.broadcast %13 : vector<1x32xf32> to vector<8x32xf32>
    %382 = arith.mulf %380, %381 : vector<8x32xf32>
    %383 = vector.broadcast %14 : vector<1x32xf32> to vector<8x32xf32>
    %384 = arith.addf %382, %383 : vector<8x32xf32>
    %cst_141 = arith.constant dense<0.000000e+00> : vector<8x32xf32>
    %385 = tpu.matmul %384, %4, %cst_141 {dimension_numbers = #tpu.dot_dimension_numbers<[1], [0], [0], [1], [0, 0, 1, 1], [], []>} : vector<8x32xf32>, vector<32x32xf32>, vector<8x32xf32> -> vector<8x32xf32>
    %cst_142 = arith.constant dense<0.000000e+00> : vector<8x32xf32>
    %386 = tpu.matmul %277, %5, %cst_142 {dimension_numbers = #tpu.dot_dimension_numbers<[1], [0], [0], [1], [0, 0, 1, 1], [], []>} : vector<8x32xf32>, vector<32x32xf32>, vector<8x32xf32> -> vector<8x32xf32>
    %cst_143 = arith.constant dense<0.000000e+00> : vector<8x32xf32>
    %387 = tpu.matmul %276, %6, %cst_143 {dimension_numbers = #tpu.dot_dimension_numbers<[1], [0], [0], [1], [0, 0, 1, 1], [], []>} : vector<8x32xf32>, vector<32x32xf32>, vector<8x32xf32> -> vector<8x32xf32>
    %388 = vector.extract_strided_slice %385 {offsets = [0, 0], sizes = [8, 8], strides = [1, 1]} : vector<8x32xf32> to vector<8x8xf32>
    %389 = vector.extract_strided_slice %386 {offsets = [0, 0], sizes = [8, 8], strides = [1, 1]} : vector<8x32xf32> to vector<8x8xf32>
    %cst_144 = arith.constant dense<0.000000e+00> : vector<8x8xf32>
    %390 = tpu.matmul %388, %389, %cst_144 {dimension_numbers = #tpu.dot_dimension_numbers<[1], [1], [0], [0], [0, 0, 1, 0], [], []>} : vector<8x8xf32>, vector<8x8xf32>, vector<8x8xf32> -> vector<8x8xf32>
    %391 = arith.addf %390, %281 : vector<8x8xf32>
    %cst_145 = arith.constant dense<0xFF800000> : vector<8xf32>
    %392 = vector.multi_reduction <maximumf>, %391, %cst_145 [1] : vector<8x8xf32> to vector<8xf32>
    %393 = vector.shape_cast %392 : vector<8xf32> to vector<8x1xf32>
    %394 = vector.broadcast %393 : vector<8x1xf32> to vector<8x8xf32>
    %395 = arith.subf %391, %394 : vector<8x8xf32>
    %396 = math.exp %395 : vector<8x8xf32>
    %cst_146 = arith.constant dense<0.000000e+00> : vector<8xf32>
    %397 = vector.multi_reduction <add>, %396, %cst_146 [1] : vector<8x8xf32> to vector<8xf32>
    %398 = vector.shape_cast %397 : vector<8xf32> to vector<8x1xf32>
    %399 = tpu.reciprocal %398 {approx = true} : vector<8x1xf32> -> vector<8x1xf32>
    %400 = vector.broadcast %399 : vector<8x1xf32> to vector<8x8xf32>
    %401 = arith.mulf %396, %400 : vector<8x8xf32>
    %402 = vector.extract_strided_slice %387 {offsets = [0, 0], sizes = [8, 8], strides = [1, 1]} : vector<8x32xf32> to vector<8x8xf32>
    %cst_147 = arith.constant dense<0.000000e+00> : vector<8x8xf32>
    %403 = tpu.matmul %401, %402, %cst_147 {dimension_numbers = #tpu.dot_dimension_numbers<[1], [0], [0], [1], [0, 0, 1, 1], [], []>} : vector<8x8xf32>, vector<8x8xf32>, vector<8x8xf32> -> vector<8x8xf32>
    %404 = vector.extract_strided_slice %7 {offsets = [0, 0], sizes = [8, 32], strides = [1, 1]} : vector<32x32xf32> to vector<8x32xf32>
    %cst_148 = arith.constant dense<0.000000e+00> : vector<8x32xf32>
    %405 = tpu.matmul %403, %404, %cst_148 {dimension_numbers = #tpu.dot_dimension_numbers<[1], [0], [0], [1], [0, 0, 1, 1], [], []>} : vector<8x8xf32>, vector<8x32xf32>, vector<8x32xf32> -> vector<8x32xf32>
    %406 = vector.extract_strided_slice %385 {offsets = [0, 8], sizes = [8, 8], strides = [1, 1]} : vector<8x32xf32> to vector<8x8xf32>
    %407 = vector.extract_strided_slice %386 {offsets = [0, 8], sizes = [8, 8], strides = [1, 1]} : vector<8x32xf32> to vector<8x8xf32>
    %cst_149 = arith.constant dense<0.000000e+00> : vector<8x8xf32>
    %408 = tpu.matmul %406, %407, %cst_149 {dimension_numbers = #tpu.dot_dimension_numbers<[1], [1], [0], [0], [0, 0, 1, 0], [], []>} : vector<8x8xf32>, vector<8x8xf32>, vector<8x8xf32> -> vector<8x8xf32>
    %409 = arith.addf %408, %281 : vector<8x8xf32>
    %cst_150 = arith.constant dense<0xFF800000> : vector<8xf32>
    %410 = vector.multi_reduction <maximumf>, %409, %cst_150 [1] : vector<8x8xf32> to vector<8xf32>
    %411 = vector.shape_cast %410 : vector<8xf32> to vector<8x1xf32>
    %412 = vector.broadcast %411 : vector<8x1xf32> to vector<8x8xf32>
    %413 = arith.subf %409, %412 : vector<8x8xf32>
    %414 = math.exp %413 : vector<8x8xf32>
    %cst_151 = arith.constant dense<0.000000e+00> : vector<8xf32>
    %415 = vector.multi_reduction <add>, %414, %cst_151 [1] : vector<8x8xf32> to vector<8xf32>
    %416 = vector.shape_cast %415 : vector<8xf32> to vector<8x1xf32>
    %417 = tpu.reciprocal %416 {approx = true} : vector<8x1xf32> -> vector<8x1xf32>
    %418 = vector.broadcast %417 : vector<8x1xf32> to vector<8x8xf32>
    %419 = arith.mulf %414, %418 : vector<8x8xf32>
    %420 = vector.extract_strided_slice %387 {offsets = [0, 8], sizes = [8, 8], strides = [1, 1]} : vector<8x32xf32> to vector<8x8xf32>
    %cst_152 = arith.constant dense<0.000000e+00> : vector<8x8xf32>
    %421 = tpu.matmul %419, %420, %cst_152 {dimension_numbers = #tpu.dot_dimension_numbers<[1], [0], [0], [1], [0, 0, 1, 1], [], []>} : vector<8x8xf32>, vector<8x8xf32>, vector<8x8xf32> -> vector<8x8xf32>
    %422 = vector.extract_strided_slice %7 {offsets = [8, 0], sizes = [8, 32], strides = [1, 1]} : vector<32x32xf32> to vector<8x32xf32>
    %cst_153 = arith.constant dense<0.000000e+00> : vector<8x32xf32>
    %423 = tpu.matmul %421, %422, %cst_153 {dimension_numbers = #tpu.dot_dimension_numbers<[1], [0], [0], [1], [0, 0, 1, 1], [], []>} : vector<8x8xf32>, vector<8x32xf32>, vector<8x32xf32> -> vector<8x32xf32>
    %424 = arith.addf %405, %423 : vector<8x32xf32>
    %425 = vector.extract_strided_slice %385 {offsets = [0, 16], sizes = [8, 8], strides = [1, 1]} : vector<8x32xf32> to vector<8x8xf32>
    %426 = vector.extract_strided_slice %386 {offsets = [0, 16], sizes = [8, 8], strides = [1, 1]} : vector<8x32xf32> to vector<8x8xf32>
    %cst_154 = arith.constant dense<0.000000e+00> : vector<8x8xf32>
    %427 = tpu.matmul %425, %426, %cst_154 {dimension_numbers = #tpu.dot_dimension_numbers<[1], [1], [0], [0], [0, 0, 1, 0], [], []>} : vector<8x8xf32>, vector<8x8xf32>, vector<8x8xf32> -> vector<8x8xf32>
    %428 = arith.addf %427, %281 : vector<8x8xf32>
    %cst_155 = arith.constant dense<0xFF800000> : vector<8xf32>
    %429 = vector.multi_reduction <maximumf>, %428, %cst_155 [1] : vector<8x8xf32> to vector<8xf32>
    %430 = vector.shape_cast %429 : vector<8xf32> to vector<8x1xf32>
    %431 = vector.broadcast %430 : vector<8x1xf32> to vector<8x8xf32>
    %432 = arith.subf %428, %431 : vector<8x8xf32>
    %433 = math.exp %432 : vector<8x8xf32>
    %cst_156 = arith.constant dense<0.000000e+00> : vector<8xf32>
    %434 = vector.multi_reduction <add>, %433, %cst_156 [1] : vector<8x8xf32> to vector<8xf32>
    %435 = vector.shape_cast %434 : vector<8xf32> to vector<8x1xf32>
    %436 = tpu.reciprocal %435 {approx = true} : vector<8x1xf32> -> vector<8x1xf32>
    %437 = vector.broadcast %436 : vector<8x1xf32> to vector<8x8xf32>
    %438 = arith.mulf %433, %437 : vector<8x8xf32>
    %439 = vector.extract_strided_slice %387 {offsets = [0, 16], sizes = [8, 8], strides = [1, 1]} : vector<8x32xf32> to vector<8x8xf32>
    %cst_157 = arith.constant dense<0.000000e+00> : vector<8x8xf32>
    %440 = tpu.matmul %438, %439, %cst_157 {dimension_numbers = #tpu.dot_dimension_numbers<[1], [0], [0], [1], [0, 0, 1, 1], [], []>} : vector<8x8xf32>, vector<8x8xf32>, vector<8x8xf32> -> vector<8x8xf32>
    %441 = vector.extract_strided_slice %7 {offsets = [16, 0], sizes = [8, 32], strides = [1, 1]} : vector<32x32xf32> to vector<8x32xf32>
    %cst_158 = arith.constant dense<0.000000e+00> : vector<8x32xf32>
    %442 = tpu.matmul %440, %441, %cst_158 {dimension_numbers = #tpu.dot_dimension_numbers<[1], [0], [0], [1], [0, 0, 1, 1], [], []>} : vector<8x8xf32>, vector<8x32xf32>, vector<8x32xf32> -> vector<8x32xf32>
    %443 = arith.addf %424, %442 : vector<8x32xf32>
    %444 = vector.extract_strided_slice %385 {offsets = [0, 24], sizes = [8, 8], strides = [1, 1]} : vector<8x32xf32> to vector<8x8xf32>
    %445 = vector.extract_strided_slice %386 {offsets = [0, 24], sizes = [8, 8], strides = [1, 1]} : vector<8x32xf32> to vector<8x8xf32>
    %cst_159 = arith.constant dense<0.000000e+00> : vector<8x8xf32>
    %446 = tpu.matmul %444, %445, %cst_159 {dimension_numbers = #tpu.dot_dimension_numbers<[1], [1], [0], [0], [0, 0, 1, 0], [], []>} : vector<8x8xf32>, vector<8x8xf32>, vector<8x8xf32> -> vector<8x8xf32>
    %447 = arith.addf %446, %281 : vector<8x8xf32>
    %cst_160 = arith.constant dense<0xFF800000> : vector<8xf32>
    %448 = vector.multi_reduction <maximumf>, %447, %cst_160 [1] : vector<8x8xf32> to vector<8xf32>
    %449 = vector.shape_cast %448 : vector<8xf32> to vector<8x1xf32>
    %450 = vector.broadcast %449 : vector<8x1xf32> to vector<8x8xf32>
    %451 = arith.subf %447, %450 : vector<8x8xf32>
    %452 = math.exp %451 : vector<8x8xf32>
    %cst_161 = arith.constant dense<0.000000e+00> : vector<8xf32>
    %453 = vector.multi_reduction <add>, %452, %cst_161 [1] : vector<8x8xf32> to vector<8xf32>
    %454 = vector.shape_cast %453 : vector<8xf32> to vector<8x1xf32>
    %455 = tpu.reciprocal %454 {approx = true} : vector<8x1xf32> -> vector<8x1xf32>
    %456 = vector.broadcast %455 : vector<8x1xf32> to vector<8x8xf32>
    %457 = arith.mulf %452, %456 : vector<8x8xf32>
    %458 = vector.extract_strided_slice %387 {offsets = [0, 24], sizes = [8, 8], strides = [1, 1]} : vector<8x32xf32> to vector<8x8xf32>
    %cst_162 = arith.constant dense<0.000000e+00> : vector<8x8xf32>
    %459 = tpu.matmul %457, %458, %cst_162 {dimension_numbers = #tpu.dot_dimension_numbers<[1], [0], [0], [1], [0, 0, 1, 1], [], []>} : vector<8x8xf32>, vector<8x8xf32>, vector<8x8xf32> -> vector<8x8xf32>
    %460 = vector.extract_strided_slice %7 {offsets = [24, 0], sizes = [8, 32], strides = [1, 1]} : vector<32x32xf32> to vector<8x32xf32>
    %cst_163 = arith.constant dense<0.000000e+00> : vector<8x32xf32>
    %461 = tpu.matmul %459, %460, %cst_163 {dimension_numbers = #tpu.dot_dimension_numbers<[1], [0], [0], [1], [0, 0, 1, 1], [], []>} : vector<8x8xf32>, vector<8x32xf32>, vector<8x32xf32> -> vector<8x32xf32>
    %462 = arith.addf %443, %461 : vector<8x32xf32>
    %463 = vector.broadcast %15 : vector<1x32xf32> to vector<8x32xf32>
    %464 = arith.addf %462, %463 : vector<8x32xf32>
    %465 = arith.addf %464, %384 : vector<8x32xf32>
    %cst_164 = arith.constant dense<0.000000e+00> : vector<8xf32>
    %466 = vector.multi_reduction <add>, %465, %cst_164 [1] : vector<8x32xf32> to vector<8xf32>
    %467 = vector.shape_cast %466 : vector<8xf32> to vector<8x1xf32>
    %cst_165 = arith.constant 3.200000e+01 : f32
    %468 = vector.broadcast %cst_165 : f32 to vector<8x1xf32>
    %469 = arith.divf %467, %468 : vector<8x1xf32>
    %470 = vector.broadcast %469 : vector<8x1xf32> to vector<8x32xf32>
    %471 = arith.subf %465, %470 : vector<8x32xf32>
    %472 = arith.mulf %471, %471 : vector<8x32xf32>
    %cst_166 = arith.constant dense<0.000000e+00> : vector<8xf32>
    %473 = vector.multi_reduction <add>, %472, %cst_166 [1] : vector<8x32xf32> to vector<8xf32>
    %474 = vector.shape_cast %473 : vector<8xf32> to vector<8x1xf32>
    %cst_167 = arith.constant 3.200000e+01 : f32
    %475 = vector.broadcast %cst_167 : f32 to vector<8x1xf32>
    %476 = arith.divf %474, %475 : vector<8x1xf32>
    %477 = vector.broadcast %469 : vector<8x1xf32> to vector<8x32xf32>
    %478 = arith.subf %465, %477 : vector<8x32xf32>
    %cst_168 = arith.constant 9.99999974E-6 : f32
    %479 = vector.broadcast %cst_168 : f32 to vector<8x1xf32>
    %480 = arith.addf %476, %479 : vector<8x1xf32>
    %481 = math.sqrt %480 : vector<8x1xf32>
    %482 = vector.broadcast %481 : vector<8x1xf32> to vector<8x32xf32>
    %483 = arith.divf %478, %482 : vector<8x32xf32>
    %484 = vector.broadcast %16 : vector<1x32xf32> to vector<8x32xf32>
    %485 = arith.mulf %483, %484 : vector<8x32xf32>
    %486 = vector.broadcast %17 : vector<1x32xf32> to vector<8x32xf32>
    %487 = arith.addf %485, %486 : vector<8x32xf32>
    %cst_169 = arith.constant dense<0.000000e+00> : vector<8x32xf32>
    %488 = tpu.matmul %487, %8, %cst_169 {dimension_numbers = #tpu.dot_dimension_numbers<[1], [0], [0], [1], [0, 0, 1, 1], [], []>} : vector<8x32xf32>, vector<32x32xf32>, vector<8x32xf32> -> vector<8x32xf32>
    %489 = vector.broadcast %18 : vector<1x32xf32> to vector<8x32xf32>
    %490 = arith.addf %488, %489 : vector<8x32xf32>
    %cst_170 = arith.constant 0.000000e+00 : f32
    %491 = vector.broadcast %cst_170 : f32 to vector<8x32xf32>
    %492 = arith.maximumf %490, %491 : vector<8x32xf32>
    %cst_171 = arith.constant dense<0.000000e+00> : vector<8x32xf32>
    %493 = tpu.matmul %487, %9, %cst_171 {dimension_numbers = #tpu.dot_dimension_numbers<[1], [0], [0], [1], [0, 0, 1, 1], [], []>} : vector<8x32xf32>, vector<32x32xf32>, vector<8x32xf32> -> vector<8x32xf32>
    %494 = vector.broadcast %19 : vector<1x32xf32> to vector<8x32xf32>
    %495 = arith.addf %493, %494 : vector<8x32xf32>
    %cst_172 = arith.constant 0.000000e+00 : f32
    %496 = vector.broadcast %cst_172 : f32 to vector<8x32xf32>
    %497 = arith.maximumf %495, %496 : vector<8x32xf32>
    %cst_173 = arith.constant dense<0.000000e+00> : vector<8x32xf32>
    %498 = tpu.matmul %492, %10, %cst_173 {dimension_numbers = #tpu.dot_dimension_numbers<[1], [0], [0], [1], [0, 0, 1, 1], [], []>} : vector<8x32xf32>, vector<32x32xf32>, vector<8x32xf32> -> vector<8x32xf32>
    %cst_174 = arith.constant dense<0.000000e+00> : vector<8x32xf32>
    %499 = tpu.matmul %497, %11, %cst_174 {dimension_numbers = #tpu.dot_dimension_numbers<[1], [0], [0], [1], [0, 0, 1, 1], [], []>} : vector<8x32xf32>, vector<32x32xf32>, vector<8x32xf32> -> vector<8x32xf32>
    %500 = arith.addf %498, %499 : vector<8x32xf32>
    %501 = vector.broadcast %20 : vector<1x32xf32> to vector<8x32xf32>
    %502 = arith.addf %500, %501 : vector<8x32xf32>
    %503 = arith.addf %502, %487 : vector<8x32xf32>
    %cst_175 = arith.constant dense<0.000000e+00> : vector<8xf32>
    %504 = vector.multi_reduction <add>, %503, %cst_175 [1] : vector<8x32xf32> to vector<8xf32>
    %505 = vector.shape_cast %504 : vector<8xf32> to vector<8x1xf32>
    %cst_176 = arith.constant 3.200000e+01 : f32
    %506 = vector.broadcast %cst_176 : f32 to vector<8x1xf32>
    %507 = arith.divf %505, %506 : vector<8x1xf32>
    %508 = vector.broadcast %507 : vector<8x1xf32> to vector<8x32xf32>
    %509 = arith.subf %503, %508 : vector<8x32xf32>
    %510 = arith.mulf %509, %509 : vector<8x32xf32>
    %cst_177 = arith.constant dense<0.000000e+00> : vector<8xf32>
    %511 = vector.multi_reduction <add>, %510, %cst_177 [1] : vector<8x32xf32> to vector<8xf32>
    %512 = vector.shape_cast %511 : vector<8xf32> to vector<8x1xf32>
    %cst_178 = arith.constant 3.200000e+01 : f32
    %513 = vector.broadcast %cst_178 : f32 to vector<8x1xf32>
    %514 = arith.divf %512, %513 : vector<8x1xf32>
    %515 = vector.broadcast %507 : vector<8x1xf32> to vector<8x32xf32>
    %516 = arith.subf %503, %515 : vector<8x32xf32>
    %cst_179 = arith.constant 9.99999974E-6 : f32
    %517 = vector.broadcast %cst_179 : f32 to vector<8x1xf32>
    %518 = arith.addf %514, %517 : vector<8x1xf32>
    %519 = math.sqrt %518 : vector<8x1xf32>
    %520 = vector.broadcast %519 : vector<8x1xf32> to vector<8x32xf32>
    %521 = arith.divf %516, %520 : vector<8x32xf32>
    %522 = vector.broadcast %21 : vector<1x32xf32> to vector<8x32xf32>
    %523 = arith.mulf %521, %522 : vector<8x32xf32>
    %524 = vector.broadcast %22 : vector<1x32xf32> to vector<8x32xf32>
    %525 = arith.addf %523, %524 : vector<8x32xf32>
    %c8_180 = arith.constant 8 : index
    %c0_181 = arith.constant 0 : index
    %526 = vector.load %arg6[%c8_180, %c0_181] : memref<16x32xf32, #tpu.memory_space<vmem>>, vector<8x32xf32>
    tpu.vector_store %arg6[%c8_180, %c0_181], %525 {strides = array<i32>} : memref<16x32xf32, #tpu.memory_space<vmem>>, vector<8x32xf32>,
    return
  }
}

</mosaic_0001>

<llo_original>
// kernel: tpu_custom_call.1
$region0: #{tpu_custom_call.1}
  #allocation0 [shape = 'u32[]', space=smem, size = 0x4, offset = 0x4, fixed_abs, tag = 'smem constant byte address 0x4 - core index']
  #allocation1 [shape = 'u32[144,128]{1,0:T(1,128)}', space=vmem, size = 0x12000, scoped, tag = 'internal scratch']
  %s0 = inlined_call_operand.vmem [shape: f32[16,32], index: 0, kind: input, shape index: {}]
  %s1 = inlined_call_operand.vmem [shape: f32[16,32], index: 1, kind: input, shape index: {}]
  %s2 = inlined_call_operand.vmem [shape: f32[16,32], index: 2, kind: input, shape index: {}]
  %s3 = inlined_call_operand.vmem [shape: f32[2,8,8], index: 3, kind: input, shape index: {}]
  %s4 = inlined_call_operand.vmem [shape: f32[2,8,8], index: 4, kind: input, shape index: {}]
  %s5 = inlined_call_operand.vmem [shape: f32[400,32], index: 5, kind: input, shape index: {}]
  %s6 = inlined_call_operand.hbm [shape: f32[16,32], index: 6, kind: output, shape index: {}]
  %s7 = sld [smem:[#allocation0]]
  $region34: #{tpu_custom_call.1} parent=0
    _
  %s9 = ssub.s32 1, %s7
  %s10 = scalar_select 0, %s9, %s7
  $region1: #{tpu_custom_call.1} parent=0
    #allocation2 [shape = 'u8[8192]{0}', space=vmem, size = 0x2000, scoped, tag = 'output window, operand 0, single buffered']
    #allocation3 [shape = 's32[1]{0}', space=sflag, size = 0x4, scoped, tag = 'scoped memory for tpu_custom_call.1']
    %11 = vsyncpa [#allocation3], 0
    // Predicated region
    $region2: #{tpu_custom_call.1} parent=1 // pred_check
      _
    $region3: #{tpu_custom_call.1} parent=1 // pred_check_branch
      %13 = sbr.rel (0) target = $region5
    $region4: #{tpu_custom_call.1} parent=1 // pred_region
      _
    $region5: #{tpu_custom_call.1} parent=1 // pred_fallthru
      _
    // Predicated region
    $region6: #{tpu_custom_call.1} parent=1 // pred_check
      _
    $region7: #{tpu_custom_call.1} parent=1 // pred_check_branch
      %15 = sbr.rel (0) target = $region9
    $region8: #{tpu_custom_call.1} parent=1 // pred_region
      _
    $region9: #{tpu_custom_call.1} parent=1 // pred_fallthru
      _
    // Predicated region
    $region10: #{tpu_custom_call.1} parent=1 // pred_check
      _
    $region11: #{tpu_custom_call.1} parent=1 // pred_check_branch
      %17 = sbr.rel (0) target = $region13
    $region12: #{tpu_custom_call.1} parent=1 // pred_region
      _
    $region13: #{tpu_custom_call.1} parent=1 // pred_fallthru
      _
    // Predicated region
    $region14: #{tpu_custom_call.1} parent=1 // pred_check
      _
    $region15: #{tpu_custom_call.1} parent=1 // pred_check_branch
      %19 = sbr.rel (0) target = $region17
    $region16: #{tpu_custom_call.1} parent=1 // pred_region
      _
    $region17: #{tpu_custom_call.1} parent=1 // pred_fallthru
      _
    // Predicated region
    $region18: #{tpu_custom_call.1} parent=1 // pred_check
      _
    $region19: #{tpu_custom_call.1} parent=1 // pred_check_branch
      %21 = sbr.rel (0) target = $region21
    $region20: #{tpu_custom_call.1} parent=1 // pred_region
      _
    $region21: #{tpu_custom_call.1} parent=1 // pred_fallthru
      _
    // Predicated region
    $region22: #{tpu_custom_call.1} parent=1 // pred_check
      _
    $region23: #{tpu_custom_call.1} parent=1 // pred_check_branch
      %23 = sbr.rel (0) target = $region25
    $region24: #{tpu_custom_call.1} parent=1 // pred_region
      _
    $region25: #{tpu_custom_call.1} parent=1 // pred_fallthru
      _
    %v24 = vld [vmem:[%s5] sm:$0xff]
    %v25 = vld [vmem:[%s5 + $0x8] sm:$0xff]
    %v26 = vld [vmem:[%s5 + $0x10] sm:$0xff]
    %v27 = vld [vmem:[%s5 + $0x18] sm:$0xff]
    %v28 = vld [vmem:[%s5 + $0x20] sm:$0xff]
    %v29 = vld [vmem:[%s5 + $0x28] sm:$0xff]
    %v30 = vld [vmem:[%s5 + $0x30] sm:$0xff]
    %v31 = vld [vmem:[%s5 + $0x38] sm:$0xff]
    %v32 = vld [vmem:[%s5 + $0x40] sm:$0xff]
    %v33 = vld [vmem:[%s5 + $0x48] sm:$0xff]
    %v34 = vld [vmem:[%s5 + $0x50] sm:$0xff]
    %v35 = vld [vmem:[%s5 + $0x58] sm:$0xff]
    %v36 = vld [vmem:[%s5 + $0x60] sm:$0xff]
    %v37 = vld [vmem:[%s5 + $0x68] sm:$0xff]
    %v38 = vld [vmem:[%s5 + $0x70] sm:$0xff]
    %v39 = vld [vmem:[%s5 + $0x78] sm:$0xff]
    %v40 = vld [vmem:[%s5 + $0x80] sm:$0xff]
    %v41 = vld [vmem:[%s5 + $0x88] sm:$0xff]
    %v42 = vld [vmem:[%s5 + $0x90] sm:$0xff]
    %v43 = vld [vmem:[%s5 + $0x98] sm:$0xff]
    %v44 = vld [vmem:[%s5 + $0xa0] sm:$0xff]
    %v45 = vld [vmem:[%s5 + $0xa8] sm:$0xff]
    %v46 = vld [vmem:[%s5 + $0xb0] sm:$0xff]
    %v47 = vld [vmem:[%s5 + $0xb8] sm:$0xff]
    %v48 = vld [vmem:[%s5 + $0xc0] sm:$0xff]
    %v49 = vld [vmem:[%s5 + $0xc8] sm:$0xff]
    %v50 = vld [vmem:[%s5 + $0xd0] sm:$0xff]
    %v51 = vld [vmem:[%s5 + $0xd8] sm:$0xff]
    %v52 = vld [vmem:[%s5 + $0xe0] sm:$0xff]
    %v53 = vld [vmem:[%s5 + $0xe8] sm:$0xff]
    %v54 = vld [vmem:[%s5 + $0xf0] sm:$0xff]
    %v55 = vld [vmem:[%s5 + $0xf8] sm:$0xff]
    %v56 = vld [vmem:[%s5 + $0x100] sm:$0xff]
    %v57 = vld [vmem:[%s5 + $0x108] sm:$0xff]
    %v58 = vld [vmem:[%s5 + $0x110] sm:$0xff]
    %v59 = vld [vmem:[%s5 + $0x118] sm:$0xff]
    %v60 = vld [vmem:[%s5 + $0x120] sm:$0xff]
    %v61 = vld [vmem:[%s5 + $0x128] sm:$0xff]
    %v62 = vld [vmem:[%s5 + $0x130] sm:$0xff]
    %v63 = vld [vmem:[%s5 + $0x138] sm:$0xff]
    %v64 = vld [vmem:[%s5 + $0x140] sm:$0xff]
    %v65 = vld [vmem:[%s5 + $0x148] sm:$0xff]
    %v66 = vld [vmem:[%s5 + $0x150] sm:$0xff]
    %v67 = vld [vmem:[%s5 + $0x158] sm:$0xff]
    %v68 = vld [vmem:[%s5 + $0x160] sm:$0xff]
    %v69 = vld [vmem:[%s5 + $0x168] sm:$0xff]
    %v70 = vld [vmem:[%s5 + $0x170] sm:$0xff]
    %v71 = vld [vmem:[%s5 + $0x178] sm:$0xff]
    %v72 = vld [vmem:[%s5 + $0x180] sm:$0x1]
    %v73 = vld [vmem:[%s5 + $0x181] sm:$0x1]
    %v74 = vld [vmem:[%s5 + $0x182] sm:$0x1]
    %v75 = vld [vmem:[%s5 + $0x183] sm:$0x1]
    %v76 = vld [vmem:[%s5 + $0x184] sm:$0x1]
    %v77 = vld [vmem:[%s5 + $0x185] sm:$0x1]
    %v78 = vld [vmem:[%s5 + $0x186] sm:$0x1]
    %v79 = vld [vmem:[%s5 + $0x187] sm:$0x1]
    %v80 = vld [vmem:[%s5 + $0x188] sm:$0x1]
    %v81 = vld [vmem:[%s5 + $0x189] sm:$0x1]
    %v82 = vld [vmem:[%s5 + $0x18a] sm:$0x1]
    %v83 = vld [vmem:[%s0] sm:$0xff]
    %v84 = vld [vmem:[%s1] sm:$0xff]
    %v85 = vld [vmem:[%s2] sm:$0xff]
    %v86 = vld [vmem:[%s3] sm:$0xff]
    %v87 = vld [vmem:[%s4] sm:$0xff]
    %vm88 = vcmask 261120
    %v90 = vsel %vm88, %v83, 0
    %92 = vmatprep.subr.mxu0 0.0
    %93 = vmatpush1.msra.mxu0 0.0
    %94 = vmatprep.subr.mxu0 0.0
    %95 = vmatpush1.msra.mxu0 0.0
    %96 = vmatprep.subr.mxu0 0.0
    %97 = vmatpush1.msra.mxu0 0.0
    %98 = vmatprep.subr.mxu0 0.0
    %99 = vmatpush1.msra.mxu0 0.0
    %100 = vmatprep.subr.mxu0 0.0
    %101 = vmatpush1.msra.mxu0 0.0
    %102 = vmatprep.subr.mxu0 0.0
    %103 = vmatpush1.msra.mxu0 0.0
    %104 = vmatprep.subr.mxu0 0.0
    %105 = vmatpush1.msra.mxu0 0.0
    %106 = vmatprep.subr.mxu0 0.0
    %107 = vmatpush1.msra.mxu0 0.0
    %108 = vmatprep.subr.mxu0 0.0
    %109 = vmatpush1.msra.mxu0 0.0
    %110 = vmatprep.subr.mxu0 0.0
    %111 = vmatpush1.msra.mxu0 0.0
    %112 = vmatprep.subr.mxu0 0.0
    %113 = vmatpush1.msra.mxu0 0.0
    %114 = vmatprep.subr.mxu0 0.0
    %115 = vmatpush1.msra.mxu0 0.0
    %116 = vmatprep.subr.mxu0 0.0
    %117 = vmatpush1.msra.mxu0 %v27
    %118 = vmatprep.subr.mxu0 0.0
    %119 = vmatpush1.msra.mxu0 %v26
    %120 = vmatprep.subr.mxu0 0.0
    %121 = vmatpush1.msra.mxu0 %v25
    %122 = vmatprep.subr.mxu0 0.0
    %123 = vmatpush1.msra.mxu0 %v24
    %124 = vmatprep.subr.mxu0 0.0
    %125 = vmatpush2.msra.mxu0 0.0
    %126 = vmatprep.subr.mxu0 0.0
    %127 = vmatpush2.msra.mxu0 0.0
    %128 = vmatprep.subr.mxu0 0.0
    %129 = vmatpush2.msra.mxu0 0.0
    %130 = vmatprep.subr.mxu0 0.0
    %131 = vmatpush2.msra.mxu0 0.0
    %132 = vmatprep.subr.mxu0 0.0
    %133 = vmatpush2.msra.mxu0 0.0
    %134 = vmatprep.subr.mxu0 0.0
    %135 = vmatpush2.msra.mxu0 0.0
    %136 = vmatprep.subr.mxu0 0.0
    %137 = vmatpush2.msra.mxu0 0.0
    %138 = vmatprep.subr.mxu0 0.0
    %139 = vmatpush2.msra.mxu0 0.0
    %140 = vmatprep.subr.mxu0 0.0
    %141 = vmatpush2.msra.mxu0 0.0
    %142 = vmatprep.subr.mxu0 0.0
    %143 = vmatpush2.msra.mxu0 0.0
    %144 = vmatprep.subr.mxu0 0.0
    %145 = vmatpush2.msra.mxu0 0.0
    %146 = vmatprep.subr.mxu0 0.0
    %147 = vmatpush2.msra.mxu0 0.0
    %148 = vmatprep.subr.mxu0 0.0
    %149 = vmatpush2.msra.mxu0 0.0
    %150 = vmatprep.subr.mxu0 0.0
    %151 = vmatpush2.msra.mxu0 0.0
    %152 = vmatprep.subr.mxu0 0.0
    %153 = vmatpush2.msra.mxu0 0.0
    %154 = vmatprep.subr.mxu0 0.0
    %155 = vmatpush2.msra.mxu0 0.0
    %156 = vmatprep.mubr.f32.mxu0 0.0
    %157 = vmatmul.mubr.f32.gmra.mxu0 %v90
    %v158 = vpop.f32.mrf.mxu0
    %v159 = vadd.f32 0.0, %v158
    %v160 = vpop.f32.mrf.mxu0
    %161 = vdwg.mxu0
    %162 = vmatprep.subr.mxu0 0.0
    %163 = vmatpush1.msra.mxu0 0.0
    %164 = vmatprep.subr.mxu0 0.0
    %165 = vmatpush1.msra.mxu0 0.0
    %166 = vmatprep.subr.mxu0 0.0
    %167 = vmatpush1.msra.mxu0 0.0
    %168 = vmatprep.subr.mxu0 0.0
    %169 = vmatpush1.msra.mxu0 0.0
    %170 = vmatprep.subr.mxu0 0.0
    %171 = vmatpush1.msra.mxu0 0.0
    %172 = vmatprep.subr.mxu0 0.0
    %173 = vmatpush1.msra.mxu0 0.0
    %174 = vmatprep.subr.mxu0 0.0
    %175 = vmatpush1.msra.mxu0 0.0
    %176 = vmatprep.subr.mxu0 0.0
    %177 = vmatpush1.msra.mxu0 0.0
    %178 = vmatprep.subr.mxu0 0.0
    %179 = vmatpush1.msra.mxu0 0.0
    %180 = vmatprep.subr.mxu0 0.0
    %181 = vmatpush1.msra.mxu0 0.0
    %182 = vmatprep.subr.mxu0 0.0
    %183 = vmatpush1.msra.mxu0 0.0
    %184 = vmatprep.subr.mxu0 0.0
    %185 = vmatpush1.msra.mxu0 0.0
    %186 = vmatprep.subr.mxu0 0.0
    %187 = vmatpush1.msra.mxu0 %v31
    %188 = vmatprep.subr.mxu0 0.0
    %189 = vmatpush1.msra.mxu0 %v30
    %190 = vmatprep.subr.mxu0 0.0
    %191 = vmatpush1.msra.mxu0 %v29
    %192 = vmatprep.subr.mxu0 0.0
    %193 = vmatpush1.msra.mxu0 %v28
    %194 = vmatprep.subr.mxu0 0.0
    %195 = vmatpush2.msra.mxu0 0.0
    %196 = vmatprep.subr.mxu0 0.0
    %197 = vmatpush2.msra.mxu0 0.0
    %198 = vmatprep.subr.mxu0 0.0
    %199 = vmatpush2.msra.mxu0 0.0
    %200 = vmatprep.subr.mxu0 0.0
    %201 = vmatpush2.msra.mxu0 0.0
    %202 = vmatprep.subr.mxu0 0.0
    %203 = vmatpush2.msra.mxu0 0.0
    %204 = vmatprep.subr.mxu0 0.0
    %205 = vmatpush2.msra.mxu0 0.0
    %206 = vmatprep.subr.mxu0 0.0
    %207 = vmatpush2.msra.mxu0 0.0
    %208 = vmatprep.subr.mxu0 0.0
    %209 = vmatpush2.msra.mxu0 0.0
    %210 = vmatprep.subr.mxu0 0.0
    %211 = vmatpush2.msra.mxu0 0.0
    %212 = vmatprep.subr.mxu0 0.0
    %213 = vmatpush2.msra.mxu0 0.0
    %214 = vmatprep.subr.mxu0 0.0
    %215 = vmatpush2.msra.mxu0 0.0
    %216 = vmatprep.subr.mxu0 0.0
    %217 = vmatpush2.msra.mxu0 0.0
    %218 = vmatprep.subr.mxu0 0.0
    %219 = vmatpush2.msra.mxu0 0.0
    %220 = vmatprep.subr.mxu0 0.0
    %221 = vmatpush2.msra.mxu0 0.0
    %222 = vmatprep.subr.mxu0 0.0
    %223 = vmatpush2.msra.mxu0 0.0
    %224 = vmatprep.subr.mxu0 0.0
    %225 = vmatpush2.msra.mxu0 0.0
    %226 = vmatprep.mubr.f32.mxu0 0.0
    %227 = vmatmul.mubr.f32.gmra.mxu0 %v90
    %v228 = vpop.f32.mrf.mxu0
    %v229 = vadd.f32 0.0, %v228
    %v230 = vpop.f32.mrf.mxu0
    %231 = vdwg.mxu0
    %232 = vmatprep.subr.mxu0 0.0
    %233 = vmatpush1.msra.mxu0 0.0
    %234 = vmatprep.subr.mxu0 0.0
    %235 = vmatpush1.msra.mxu0 0.0
    %236 = vmatprep.subr.mxu0 0.0
    %237 = vmatpush1.msra.mxu0 0.0
    %238 = vmatprep.subr.mxu0 0.0
    %239 = vmatpush1.msra.mxu0 0.0
    %240 = vmatprep.subr.mxu0 0.0
    %241 = vmatpush1.msra.mxu0 0.0
    %242 = vmatprep.subr.mxu0 0.0
    %243 = vmatpush1.msra.mxu0 0.0
    %244 = vmatprep.subr.mxu0 0.0
    %245 = vmatpush1.msra.mxu0 0.0
    %246 = vmatprep.subr.mxu0 0.0
    %247 = vmatpush1.msra.mxu0 0.0
    %248 = vmatprep.subr.mxu0 0.0
    %249 = vmatpush1.msra.mxu0 0.0
    %250 = vmatprep.subr.mxu0 0.0
    %251 = vmatpush1.msra.mxu0 0.0
    %252 = vmatprep.subr.mxu0 0.0
    %253 = vmatpush1.msra.mxu0 0.0
    %254 = vmatprep.subr.mxu0 0.0
    %255 = vmatpush1.msra.mxu0 0.0
    %256 = vmatprep.subr.mxu0 0.0
    %257 = vmatpush1.msra.mxu0 %v35
    %258 = vmatprep.subr.mxu0 0.0
    %259 = vmatpush1.msra.mxu0 %v34
    %260 = vmatprep.subr.mxu0 0.0
    %261 = vmatpush1.msra.mxu0 %v33
    %262 = vmatprep.subr.mxu0 0.0
    %263 = vmatpush1.msra.mxu0 %v32
    %264 = vmatprep.subr.mxu0 0.0
    %265 = vmatpush2.msra.mxu0 0.0
    %266 = vmatprep.subr.mxu0 0.0
    %267 = vmatpush2.msra.mxu0 0.0
    %268 = vmatprep.subr.mxu0 0.0
    %269 = vmatpush2.msra.mxu0 0.0
    %270 = vmatprep.subr.mxu0 0.0
    %271 = vmatpush2.msra.mxu0 0.0
    %272 = vmatprep.subr.mxu0 0.0
    %273 = vmatpush2.msra.mxu0 0.0
    %274 = vmatprep.subr.mxu0 0.0
    %275 = vmatpush2.msra.mxu0 0.0
    %276 = vmatprep.subr.mxu0 0.0
    %277 = vmatpush2.msra.mxu0 0.0
    %278 = vmatprep.subr.mxu0 0.0
    %279 = vmatpush2.msra.mxu0 0.0
    %280 = vmatprep.subr.mxu0 0.0
    %281 = vmatpush2.msra.mxu0 0.0
    %282 = vmatprep.subr.mxu0 0.0
    %283 = vmatpush2.msra.mxu0 0.0
    %284 = vmatprep.subr.mxu0 0.0
    %285 = vmatpush2.msra.mxu0 0.0
    %286 = vmatprep.subr.mxu0 0.0
    %287 = vmatpush2.msra.mxu0 0.0
    %288 = vmatprep.subr.mxu0 0.0
    %289 = vmatpush2.msra.mxu0 0.0
    %290 = vmatprep.subr.mxu0 0.0
    %291 = vmatpush2.msra.mxu0 0.0
    %292 = vmatprep.subr.mxu0 0.0
    %293 = vmatpush2.msra.mxu0 0.0
    %294 = vmatprep.subr.mxu0 0.0
    %295 = vmatpush2.msra.mxu0 0.0
    %296 = vmatprep.mubr.f32.mxu0 0.0
    %297 = vmatmul.mubr.f32.gmra.mxu0 %v90
    %v298 = vpop.f32.mrf.mxu0
    %v299 = vadd.f32 0.0, %v298
    %v300 = vpop.f32.mrf.mxu0
    %301 = vdwg.mxu0
    %vm302 = vcmask 64512
    %v304 = vsel %vm302, %v159, 0
    %v307 = vsel %vm302, %v229, 0
    %309 = vmatprep.subr.mxu0 0.0
    %310 = vmatpush1.xpose.msra.mxu0 0.0
    %311 = vmatprep.subr.mxu0 0.0
    %312 = vmatpush1.xpose.msra.mxu0 0.0
    %313 = vmatprep.subr.mxu0 0.0
    %314 = vmatpush1.xpose.msra.mxu0 0.0
    %315 = vmatprep.subr.mxu0 0.0
    %316 = vmatpush1.xpose.msra.mxu0 0.0
    %317 = vmatprep.subr.mxu0 0.0
    %318 = vmatpush1.xpose.msra.mxu0 0.0
    %319 = vmatprep.subr.mxu0 0.0
    %320 = vmatpush1.xpose.msra.mxu0 0.0
    %321 = vmatprep.subr.mxu0 0.0
    %322 = vmatpush1.xpose.msra.mxu0 0.0
    %323 = vmatprep.subr.mxu0 0.0
    %324 = vmatpush1.xpose.msra.mxu0 0.0
    %325 = vmatprep.subr.mxu0 0.0
    %326 = vmatpush1.xpose.msra.mxu0 0.0
    %327 = vmatprep.subr.mxu0 0.0
    %328 = vmatpush1.xpose.msra.mxu0 0.0
    %329 = vmatprep.subr.mxu0 0.0
    %330 = vmatpush1.xpose.msra.mxu0 0.0
    %331 = vmatprep.subr.mxu0 0.0
    %332 = vmatpush1.xpose.msra.mxu0 0.0
    %333 = vmatprep.subr.mxu0 0.0
    %334 = vmatpush1.xpose.msra.mxu0 0.0
    %335 = vmatprep.subr.mxu0 0.0
    %336 = vmatpush1.xpose.msra.mxu0 0.0
    %337 = vmatprep.subr.mxu0 0.0
    %338 = vmatpush1.xpose.msra.mxu0 0.0
    %339 = vmatprep.subr.mxu0 0.0
    %340 = vmatpush1.xpose.msra.mxu0 %v307
    %341 = vmatprep.subr.mxu0 0.0
    %342 = vmatpush2.xpose.msra.mxu0 0.0
    %343 = vmatprep.subr.mxu0 0.0
    %344 = vmatpush2.xpose.msra.mxu0 0.0
    %345 = vmatprep.subr.mxu0 0.0
    %346 = vmatpush2.xpose.msra.mxu0 0.0
    %347 = vmatprep.subr.mxu0 0.0
    %348 = vmatpush2.xpose.msra.mxu0 0.0
    %349 = vmatprep.subr.mxu0 0.0
    %350 = vmatpush2.xpose.msra.mxu0 0.0
    %351 = vmatprep.subr.mxu0 0.0
    %352 = vmatpush2.xpose.msra.mxu0 0.0
    %353 = vmatprep.subr.mxu0 0.0
    %354 = vmatpush2.xpose.msra.mxu0 0.0
    %355 = vmatprep.subr.mxu0 0.0
    %356 = vmatpush2.xpose.msra.mxu0 0.0
    %357 = vmatprep.subr.mxu0 0.0
    %358 = vmatpush2.xpose.msra.mxu0 0.0
    %359 = vmatprep.subr.mxu0 0.0
    %360 = vmatpush2.xpose.msra.mxu0 0.0
    %361 = vmatprep.subr.mxu0 0.0
    %362 = vmatpush2.xpose.msra.mxu0 0.0
    %363 = vmatprep.subr.mxu0 0.0
    %364 = vmatpush2.xpose.msra.mxu0 0.0
    %365 = vmatprep.subr.mxu0 0.0
    %366 = vmatpush2.xpose.msra.mxu0 0.0
    %367 = vmatprep.subr.mxu0 0.0
    %368 = vmatpush2.xpose.msra.mxu0 0.0
    %369 = vmatprep.subr.mxu0 0.0
    %370 = vmatpush2.xpose.msra.mxu0 0.0
    %371 = vmatprep.subr.mxu0 0.0
    %372 = vmatpush2.xpose.msra.mxu0 0.0
    %373 = vmatprep.mubr.f32.mxu0 0.0
    %374 = vmatmul.mubr.f32.gmra.mxu0 %v304
    %v375 = vpop.f32.mrf.mxu0
    %v376 = vadd.f32 %v86, %v375
    %v377 = vpop.f32.mrf.mxu0
    %378 = vdwg.mxu0
    %v379 = vsel %vm302, %v376, -inf
    %380 = vmax.xlane.f32.xlu0 %v379
    %v381 = vpop.xlane.xlu0 %380
    %v382 = vsub.f32 %v376, %v381
    %v383 = vmul.f32 %v382, 1.442695
    %v384 = vpow.pop %v383
    %v385 = vsel %vm302, %v384, 0.0
    %386 = vadd.xlane.f32.xlu0 %v385
    %v387 = vpop.xlane.xlu0 %386
    %v388 = vrcp.pop %v387
    %v389 = vmul.f32 %v384, %v388
    %v391 = vsel %vm302, %v389, 0
    %393 = vmatprep.subr.mxu0 0.0
    %394 = vmatpush1.msra.mxu0 0.0
    %395 = vmatprep.subr.mxu0 0.0
    %396 = vmatpush1.msra.mxu0 0.0
    %397 = vmatprep.subr.mxu0 0.0
    %398 = vmatpush1.msra.mxu0 0.0
    %399 = vmatprep.subr.mxu0 0.0
    %400 = vmatpush1.msra.mxu0 0.0
    %401 = vmatprep.subr.mxu0 0.0
    %402 = vmatpush1.msra.mxu0 0.0
    %403 = vmatprep.subr.mxu0 0.0
    %404 = vmatpush1.msra.mxu0 0.0
    %405 = vmatprep.subr.mxu0 0.0
    %406 = vmatpush1.msra.mxu0 0.0
    %407 = vmatprep.subr.mxu0 0.0
    %408 = vmatpush1.msra.mxu0 0.0
    %409 = vmatprep.subr.mxu0 0.0
    %410 = vmatpush1.msra.mxu0 0.0
    %411 = vmatprep.subr.mxu0 0.0
    %412 = vmatpush1.msra.mxu0 0.0
    %413 = vmatprep.subr.mxu0 0.0
    %414 = vmatpush1.msra.mxu0 0.0
    %415 = vmatprep.subr.mxu0 0.0
    %416 = vmatpush1.msra.mxu0 0.0
    %417 = vmatprep.subr.mxu0 0.0
    %418 = vmatpush1.msra.mxu0 0.0
    %419 = vmatprep.subr.mxu0 0.0
    %420 = vmatpush1.msra.mxu0 0.0
    %421 = vmatprep.subr.mxu0 0.0
    %422 = vmatpush1.msra.mxu0 0.0
    %423 = vmatprep.subr.mxu0 0.0
    %424 = vmatpush1.msra.mxu0 %v299
    %425 = vmatprep.subr.mxu0 0.0
    %426 = vmatpush2.msra.mxu0 0.0
    %427 = vmatprep.subr.mxu0 0.0
    %428 = vmatpush2.msra.mxu0 0.0
    %429 = vmatprep.subr.mxu0 0.0
    %430 = vmatpush2.msra.mxu0 0.0
    %431 = vmatprep.subr.mxu0 0.0
    %432 = vmatpush2.msra.mxu0 0.0
    %433 = vmatprep.subr.mxu0 0.0
    %434 = vmatpush2.msra.mxu0 0.0
    %435 = vmatprep.subr.mxu0 0.0
    %436 = vmatpush2.msra.mxu0 0.0
    %437 = vmatprep.subr.mxu0 0.0
    %438 = vmatpush2.msra.mxu0 0.0
    %439 = vmatprep.subr.mxu0 0.0
    %440 = vmatpush2.msra.mxu0 0.0
    %441 = vmatprep.subr.mxu0 0.0
    %442 = vmatpush2.msra.mxu0 0.0
    %443 = vmatprep.subr.mxu0 0.0
    %444 = vmatpush2.msra.mxu0 0.0
    %445 = vmatprep.subr.mxu0 0.0
    %446 = vmatpush2.msra.mxu0 0.0
    %447 = vmatprep.subr.mxu0 0.0
    %448 = vmatpush2.msra.mxu0 0.0
    %449 = vmatprep.subr.mxu0 0.0
    %450 = vmatpush2.msra.mxu0 0.0
    %451 = vmatprep.subr.mxu0 0.0
    %452 = vmatpush2.msra.mxu0 0.0
    %453 = vmatprep.subr.mxu0 0.0
    %454 = vmatpush2.msra.mxu0 0.0
    %455 = vmatprep.subr.mxu0 0.0
    %456 = vmatpush2.msra.mxu0 0.0
    %457 = vmatprep.mubr.f32.mxu0 0.0
    %458 = vmatmul.mubr.f32.gmra.mxu0 %v391
    %v459 = vpop.f32.mrf.mxu0
    %v460 = vadd.f32 0.0, %v459
    %v461 = vpop.f32.mrf.mxu0
    %462 = vdwg.mxu0
    %463 = vrot.lane.b32.xlu0 %v159, 120
    %v464 = vpop.permute.xlu0 %463
    %465 = vrot.lane.b32.xlu0 %v229, 120
    %v466 = vpop.permute.xlu0 %465
    %v467 = vsel %vm302, %v464, 0
    %v469 = vsel %vm302, %v466, 0
    %471 = vmatprep.subr.mxu0 0.0
    %472 = vmatpush1.xpose.msra.mxu0 0.0
    %473 = vmatprep.subr.mxu0 0.0
    %474 = vmatpush1.xpose.msra.mxu0 0.0
    %475 = vmatprep.subr.mxu0 0.0
    %476 = vmatpush1.xpose.msra.mxu0 0.0
    %477 = vmatprep.subr.mxu0 0.0
    %478 = vmatpush1.xpose.msra.mxu0 0.0
    %479 = vmatprep.subr.mxu0 0.0
    %480 = vmatpush1.xpose.msra.mxu0 0.0
    %481 = vmatprep.subr.mxu0 0.0
    %482 = vmatpush1.xpose.msra.mxu0 0.0
    %483 = vmatprep.subr.mxu0 0.0
    %484 = vmatpush1.xpose.msra.mxu0 0.0
    %485 = vmatprep.subr.mxu0 0.0
    %486 = vmatpush1.xpose.msra.mxu0 0.0
    %487 = vmatprep.subr.mxu0 0.0
    %488 = vmatpush1.xpose.msra.mxu0 0.0
    %489 = vmatprep.subr.mxu0 0.0
    %490 = vmatpush1.xpose.msra.mxu0 0.0
    %491 = vmatprep.subr.mxu0 0.0
    %492 = vmatpush1.xpose.msra.mxu0 0.0
    %493 = vmatprep.subr.mxu0 0.0
    %494 = vmatpush1.xpose.msra.mxu0 0.0
    %495 = vmatprep.subr.mxu0 0.0
    %496 = vmatpush1.xpose.msra.mxu0 0.0
    %497 = vmatprep.subr.mxu0 0.0
    %498 = vmatpush1.xpose.msra.mxu0 0.0
    %499 = vmatprep.subr.mxu0 0.0
    %500 = vmatpush1.xpose.msra.mxu0 0.0
    %501 = vmatprep.subr.mxu0 0.0
    %502 = vmatpush1.xpose.msra.mxu0 %v469
    %503 = vmatprep.subr.mxu0 0.0
    %504 = vmatpush2.xpose.msra.mxu0 0.0
    %505 = vmatprep.subr.mxu0 0.0
    %506 = vmatpush2.xpose.msra.mxu0 0.0
    %507 = vmatprep.subr.mxu0 0.0
    %508 = vmatpush2.xpose.msra.mxu0 0.0
    %509 = vmatprep.subr.mxu0 0.0
    %510 = vmatpush2.xpose.msra.mxu0 0.0
    %511 = vmatprep.subr.mxu0 0.0
    %512 = vmatpush2.xpose.msra.mxu0 0.0
    %513 = vmatprep.subr.mxu0 0.0
    %514 = vmatpush2.xpose.msra.mxu0 0.0
    %515 = vmatprep.subr.mxu0 0.0
    %516 = vmatpush2.xpose.msra.mxu0 0.0
    %517 = vmatprep.subr.mxu0 0.0
    %518 = vmatpush2.xpose.msra.mxu0 0.0
    %519 = vmatprep.subr.mxu0 0.0
    %520 = vmatpush2.xpose.msra.mxu0 0.0
    %521 = vmatprep.subr.mxu0 0.0
    %522 = vmatpush2.xpose.msra.mxu0 0.0
    %523 = vmatprep.subr.mxu0 0.0
    %524 = vmatpush2.xpose.msra.mxu0 0.0
    %525 = vmatprep.subr.mxu0 0.0
    %526 = vmatpush2.xpose.msra.mxu0 0.0
    %527 = vmatprep.subr.mxu0 0.0
    %528 = vmatpush2.xpose.msra.mxu0 0.0
    %529 = vmatprep.subr.mxu0 0.0
    %530 = vmatpush2.xpose.msra.mxu0 0.0
    %531 = vmatprep.subr.mxu0 0.0
    %532 = vmatpush2.xpose.msra.mxu0 0.0
    %533 = vmatprep.subr.mxu0 0.0
    %534 = vmatpush2.xpose.msra.mxu0 0.0
    %535 = vmatprep.mubr.f32.mxu0 0.0
    %536 = vmatmul.mubr.f32.gmra.mxu0 %v467
    %v537 = vpop.f32.mrf.mxu0
    %v538 = vadd.f32 %v86, %v537
    %v539 = vpop.f32.mrf.mxu0
    %540 = vdwg.mxu0
    %v541 = vsel %vm302, %v538, -inf
    %542 = vmax.xlane.f32.xlu0 %v541
    %v543 = vpop.xlane.xlu0 %542
    %v544 = vsub.f32 %v538, %v543
    %v545 = vmul.f32 %v544, 1.442695
    %v546 = vpow.pop %v545
    %v547 = vsel %vm302, %v546, 0.0
    %548 = vadd.xlane.f32.xlu0 %v547
    %v549 = vpop.xlane.xlu0 %548
    %v550 = vrcp.pop %v549
    %v551 = vmul.f32 %v546, %v550
    %553 = vrot.lane.b32.xlu0 %v299, 120
    %v554 = vpop.permute.xlu0 %553
    %v557 = vsel %vm302, %v551, 0
    %559 = vmatprep.subr.mxu0 0.0
    %560 = vmatpush1.msra.mxu0 0.0
    %561 = vmatprep.subr.mxu0 0.0
    %562 = vmatpush1.msra.mxu0 0.0
    %563 = vmatprep.subr.mxu0 0.0
    %564 = vmatpush1.msra.mxu0 0.0
    %565 = vmatprep.subr.mxu0 0.0
    %566 = vmatpush1.msra.mxu0 0.0
    %567 = vmatprep.subr.mxu0 0.0
    %568 = vmatpush1.msra.mxu0 0.0
    %569 = vmatprep.subr.mxu0 0.0
    %570 = vmatpush1.msra.mxu0 0.0
    %571 = vmatprep.subr.mxu0 0.0
    %572 = vmatpush1.msra.mxu0 0.0
    %573 = vmatprep.subr.mxu0 0.0
    %574 = vmatpush1.msra.mxu0 0.0
    %575 = vmatprep.subr.mxu0 0.0
    %576 = vmatpush1.msra.mxu0 0.0
    %577 = vmatprep.subr.mxu0 0.0
    %578 = vmatpush1.msra.mxu0 0.0
    %579 = vmatprep.subr.mxu0 0.0
    %580 = vmatpush1.msra.mxu0 0.0
    %581 = vmatprep.subr.mxu0 0.0
    %582 = vmatpush1.msra.mxu0 0.0
    %583 = vmatprep.subr.mxu0 0.0
    %584 = vmatpush1.msra.mxu0 0.0
    %585 = vmatprep.subr.mxu0 0.0
    %586 = vmatpush1.msra.mxu0 0.0
    %587 = vmatprep.subr.mxu0 0.0
    %588 = vmatpush1.msra.mxu0 0.0
    %589 = vmatprep.subr.mxu0 0.0
    %590 = vmatpush1.msra.mxu0 %v554
    %591 = vmatprep.subr.mxu0 0.0
    %592 = vmatpush2.msra.mxu0 0.0
    %593 = vmatprep.subr.mxu0 0.0
    %594 = vmatpush2.msra.mxu0 0.0
    %595 = vmatprep.subr.mxu0 0.0
    %596 = vmatpush2.msra.mxu0 0.0
    %597 = vmatprep.subr.mxu0 0.0
    %598 = vmatpush2.msra.mxu0 0.0
    %599 = vmatprep.subr.mxu0 0.0
    %600 = vmatpush2.msra.mxu0 0.0
    %601 = vmatprep.subr.mxu0 0.0
    %602 = vmatpush2.msra.mxu0 0.0
    %603 = vmatprep.subr.mxu0 0.0
    %604 = vmatpush2.msra.mxu0 0.0
    %605 = vmatprep.subr.mxu0 0.0
    %606 = vmatpush2.msra.mxu0 0.0
    %607 = vmatprep.subr.mxu0 0.0
    %608 = vmatpush2.msra.mxu0 0.0
    %609 = vmatprep.subr.mxu0 0.0
    %610 = vmatpush2.msra.mxu0 0.0
    %611 = vmatprep.subr.mxu0 0.0
    %612 = vmatpush2.msra.mxu0 0.0
    %613 = vmatprep.subr.mxu0 0.0
    %614 = vmatpush2.msra.mxu0 0.0
    %615 = vmatprep.subr.mxu0 0.0
    %616 = vmatpush2.msra.mxu0 0.0
    %617 = vmatprep.subr.mxu0 0.0
    %618 = vmatpush2.msra.mxu0 0.0
    %619 = vmatprep.subr.mxu0 0.0
    %620 = vmatpush2.msra.mxu0 0.0
    %621 = vmatprep.subr.mxu0 0.0
    %622 = vmatpush2.msra.mxu0 0.0
    %623 = vmatprep.mubr.f32.mxu0 0.0
    %624 = vmatmul.mubr.f32.gmra.mxu0 %v557
    %v625 = vpop.f32.mrf.mxu0
    %v626 = vadd.f32 0.0, %v625
    %v627 = vpop.f32.mrf.mxu0
    %628 = vdwg.mxu0
    %v630 = vsel %vm302, %v626, 0
    %632 = vmatprep.subr.mxu0 0.0
    %633 = vmatpush1.msra.mxu0 0.0
    %634 = vmatprep.subr.mxu0 0.0
    %635 = vmatpush1.msra.mxu0 0.0
    %636 = vmatprep.subr.mxu0 0.0
    %637 = vmatpush1.msra.mxu0 0.0
    %638 = vmatprep.subr.mxu0 0.0
    %639 = vmatpush1.msra.mxu0 0.0
    %640 = vmatprep.subr.mxu0 0.0
    %641 = vmatpush1.msra.mxu0 0.0
    %642 = vmatprep.subr.mxu0 0.0
    %643 = vmatpush1.msra.mxu0 0.0
    %644 = vmatprep.subr.mxu0 0.0
    %645 = vmatpush1.msra.mxu0 0.0
    %646 = vmatprep.subr.mxu0 0.0
    %647 = vmatpush1.msra.mxu0 0.0
    %648 = vmatprep.subr.mxu0 0.0
    %649 = vmatpush1.msra.mxu0 0.0
    %650 = vmatprep.subr.mxu0 0.0
    %651 = vmatpush1.msra.mxu0 0.0
    %652 = vmatprep.subr.mxu0 0.0
    %653 = vmatpush1.msra.mxu0 0.0
    %654 = vmatprep.subr.mxu0 0.0
    %655 = vmatpush1.msra.mxu0 0.0
    %656 = vmatprep.subr.mxu0 0.0
    %657 = vmatpush1.msra.mxu0 0.0
    %658 = vmatprep.subr.mxu0 0.0
    %659 = vmatpush1.msra.mxu0 0.0
    %660 = vmatprep.subr.mxu0 0.0
    %661 = vmatpush1.msra.mxu0 0.0
    %662 = vmatprep.subr.mxu0 0.0
    %663 = vmatpush1.msra.mxu0 %v37
    %664 = vmatprep.subr.mxu0 0.0
    %665 = vmatpush2.msra.mxu0 0.0
    %666 = vmatprep.subr.mxu0 0.0
    %667 = vmatpush2.msra.mxu0 0.0
    %668 = vmatprep.subr.mxu0 0.0
    %669 = vmatpush2.msra.mxu0 0.0
    %670 = vmatprep.subr.mxu0 0.0
    %671 = vmatpush2.msra.mxu0 0.0
    %672 = vmatprep.subr.mxu0 0.0
    %673 = vmatpush2.msra.mxu0 0.0
    %674 = vmatprep.subr.mxu0 0.0
    %675 = vmatpush2.msra.mxu0 0.0
    %676 = vmatprep.subr.mxu0 0.0
    %677 = vmatpush2.msra.mxu0 0.0
    %678 = vmatprep.subr.mxu0 0.0
    %679 = vmatpush2.msra.mxu0 0.0
    %680 = vmatprep.subr.mxu0 0.0
    %681 = vmatpush2.msra.mxu0 0.0
    %682 = vmatprep.subr.mxu0 0.0
    %683 = vmatpush2.msra.mxu0 0.0
    %684 = vmatprep.subr.mxu0 0.0
    %685 = vmatpush2.msra.mxu0 0.0
    %686 = vmatprep.subr.mxu0 0.0
    %687 = vmatpush2.msra.mxu0 0.0
    %688 = vmatprep.subr.mxu0 0.0
    %689 = vmatpush2.msra.mxu0 0.0
    %690 = vmatprep.subr.mxu0 0.0
    %691 = vmatpush2.msra.mxu0 0.0
    %692 = vmatprep.subr.mxu0 0.0
    %693 = vmatpush2.msra.mxu0 0.0
    %694 = vmatprep.subr.mxu0 0.0
    %695 = vmatpush2.msra.mxu0 0.0
    %696 = vmatprep.mubr.f32.mxu0 0.0
    %697 = vmatmul.mubr.f32.gmra.mxu0 %v630
    %v698 = vpop.f32.mrf.mxu0
    %v699 = vadd.f32 0.0, %v698
    %v700 = vpop.f32.mrf.mxu0
    %701 = vdwg.mxu0
    %v703 = vsel %vm302, %v460, 0
    %705 = vmatprep.subr.mxu0 0.0
    %706 = vmatpush1.msra.mxu0 0.0
    %707 = vmatprep.subr.mxu0 0.0
    %708 = vmatpush1.msra.mxu0 0.0
    %709 = vmatprep.subr.mxu0 0.0
    %710 = vmatpush1.msra.mxu0 0.0
    %711 = vmatprep.subr.mxu0 0.0
    %712 = vmatpush1.msra.mxu0 0.0
    %713 = vmatprep.subr.mxu0 0.0
    %714 = vmatpush1.msra.mxu0 0.0
    %715 = vmatprep.subr.mxu0 0.0
    %716 = vmatpush1.msra.mxu0 0.0
    %717 = vmatprep.subr.mxu0 0.0
    %718 = vmatpush1.msra.mxu0 0.0
    %719 = vmatprep.subr.mxu0 0.0
    %720 = vmatpush1.msra.mxu0 0.0
    %721 = vmatprep.subr.mxu0 0.0
    %722 = vmatpush1.msra.mxu0 0.0
    %723 = vmatprep.subr.mxu0 0.0
    %724 = vmatpush1.msra.mxu0 0.0
    %725 = vmatprep.subr.mxu0 0.0
    %726 = vmatpush1.msra.mxu0 0.0
    %727 = vmatprep.subr.mxu0 0.0
    %728 = vmatpush1.msra.mxu0 0.0
    %729 = vmatprep.subr.mxu0 0.0
    %730 = vmatpush1.msra.mxu0 0.0
    %731 = vmatprep.subr.mxu0 0.0
    %732 = vmatpush1.msra.mxu0 0.0
    %733 = vmatprep.subr.mxu0 0.0
    %734 = vmatpush1.msra.mxu0 0.0
    %735 = vmatprep.subr.mxu0 0.0
    %736 = vmatpush1.msra.mxu0 %v36
    %737 = vmatprep.subr.mxu0 0.0
    %738 = vmatpush2.msra.mxu0 0.0
    %739 = vmatprep.subr.mxu0 0.0
    %740 = vmatpush2.msra.mxu0 0.0
    %741 = vmatprep.subr.mxu0 0.0
    %742 = vmatpush2.msra.mxu0 0.0
    %743 = vmatprep.subr.mxu0 0.0
    %744 = vmatpush2.msra.mxu0 0.0
    %745 = vmatprep.subr.mxu0 0.0
    %746 = vmatpush2.msra.mxu0 0.0
    %747 = vmatprep.subr.mxu0 0.0
    %748 = vmatpush2.msra.mxu0 0.0
    %749 = vmatprep.subr.mxu0 0.0
    %750 = vmatpush2.msra.mxu0 0.0
    %751 = vmatprep.subr.mxu0 0.0
    %752 = vmatpush2.msra.mxu0 0.0
    %753 = vmatprep.subr.mxu0 0.0
    %754 = vmatpush2.msra.mxu0 0.0
    %755 = vmatprep.subr.mxu0 0.0
    %756 = vmatpush2.msra.mxu0 0.0
    %757 = vmatprep.subr.mxu0 0.0
    %758 = vmatpush2.msra.mxu0 0.0
    %759 = vmatprep.subr.mxu0 0.0
    %760 = vmatpush2.msra.mxu0 0.0
    %761 = vmatprep.subr.mxu0 0.0
    %762 = vmatpush2.msra.mxu0 0.0
    %763 = vmatprep.subr.mxu0 0.0
    %764 = vmatpush2.msra.mxu0 0.0
    %765 = vmatprep.subr.mxu0 0.0
    %766 = vmatpush2.msra.mxu0 0.0
    %767 = vmatprep.subr.mxu0 0.0
    %768 = vmatpush2.msra.mxu0 0.0
    %769 = vmatprep.mubr.f32.mxu0 0.0
    %770 = vmatmul.mubr.f32.gmra.mxu0 %v703
    %v771 = vpop.f32.mrf.mxu0
    %v772 = vadd.f32 %v699, %v771
    %v773 = vpop.f32.mrf.mxu0
    %774 = vdwg.mxu0
    %775 = vrot.lane.b32.xlu0 %v159, 112
    %v776 = vpop.permute.xlu0 %775
    %777 = vrot.lane.b32.xlu0 %v229, 112
    %v778 = vpop.permute.xlu0 %777
    %v779 = vsel %vm302, %v776, 0
    %v781 = vsel %vm302, %v778, 0
    %783 = vmatprep.subr.mxu0 0.0
    %784 = vmatpush1.xpose.msra.mxu0 0.0
    %785 = vmatprep.subr.mxu0 0.0
    %786 = vmatpush1.xpose.msra.mxu0 0.0
    %787 = vmatprep.subr.mxu0 0.0
    %788 = vmatpush1.xpose.msra.mxu0 0.0
    %789 = vmatprep.subr.mxu0 0.0
    %790 = vmatpush1.xpose.msra.mxu0 0.0
    %791 = vmatprep.subr.mxu0 0.0
    %792 = vmatpush1.xpose.msra.mxu0 0.0
    %793 = vmatprep.subr.mxu0 0.0
    %794 = vmatpush1.xpose.msra.mxu0 0.0
    %795 = vmatprep.subr.mxu0 0.0
    %796 = vmatpush1.xpose.msra.mxu0 0.0
    %797 = vmatprep.subr.mxu0 0.0
    %798 = vmatpush1.xpose.msra.mxu0 0.0
    %799 = vmatprep.subr.mxu0 0.0
    %800 = vmatpush1.xpose.msra.mxu0 0.0
    %801 = vmatprep.subr.mxu0 0.0
    %802 = vmatpush1.xpose.msra.mxu0 0.0
    %803 = vmatprep.subr.mxu0 0.0
    %804 = vmatpush1.xpose.msra.mxu0 0.0
    %805 = vmatprep.subr.mxu0 0.0
    %806 = vmatpush1.xpose.msra.mxu0 0.0
    %807 = vmatprep.subr.mxu0 0.0
    %808 = vmatpush1.xpose.msra.mxu0 0.0
    %809 = vmatprep.subr.mxu0 0.0
    %810 = vmatpush1.xpose.msra.mxu0 0.0
    %811 = vmatprep.subr.mxu0 0.0
    %812 = vmatpush1.xpose.msra.mxu0 0.0
    %813 = vmatprep.subr.mxu0 0.0
    %814 = vmatpush1.xpose.msra.mxu0 %v781
    %815 = vmatprep.subr.mxu0 0.0
    %816 = vmatpush2.xpose.msra.mxu0 0.0
    %817 = vmatprep.subr.mxu0 0.0
    %818 = vmatpush2.xpose.msra.mxu0 0.0
    %819 = vmatprep.subr.mxu0 0.0
    %820 = vmatpush2.xpose.msra.mxu0 0.0
    %821 = vmatprep.subr.mxu0 0.0
    %822 = vmatpush2.xpose.msra.mxu0 0.0
    %823 = vmatprep.subr.mxu0 0.0
    %824 = vmatpush2.xpose.msra.mxu0 0.0
    %825 = vmatprep.subr.mxu0 0.0
    %826 = vmatpush2.xpose.msra.mxu0 0.0
    %827 = vmatprep.subr.mxu0 0.0
    %828 = vmatpush2.xpose.msra.mxu0 0.0
    %829 = vmatprep.subr.mxu0 0.0
    %830 = vmatpush2.xpose.msra.mxu0 0.0
    %831 = vmatprep.subr.mxu0 0.0
    %832 = vmatpush2.xpose.msra.mxu0 0.0
    %833 = vmatprep.subr.mxu0 0.0
    %834 = vmatpush2.xpose.msra.mxu0 0.0
    %835 = vmatprep.subr.mxu0 0.0
    %836 = vmatpush2.xpose.msra.mxu0 0.0
    %837 = vmatprep.subr.mxu0 0.0
    %838 = vmatpush2.xpose.msra.mxu0 0.0
    %839 = vmatprep.subr.mxu0 0.0
    %840 = vmatpush2.xpose.msra.mxu0 0.0
    %841 = vmatprep.subr.mxu0 0.0
    %842 = vmatpush2.xpose.msra.mxu0 0.0
    %843 = vmatprep.subr.mxu0 0.0
    %844 = vmatpush2.xpose.msra.mxu0 0.0
    %845 = vmatprep.subr.mxu0 0.0
    %846 = vmatpush2.xpose.msra.mxu0 0.0
    %847 = vmatprep.mubr.f32.mxu0 0.0
    %848 = vmatmul.mubr.f32.gmra.mxu0 %v779
    %v849 = vpop.f32.mrf.mxu0
    %v850 = vadd.f32 %v86, %v849
    %v851 = vpop.f32.mrf.mxu0
    %852 = vdwg.mxu0
    %v853 = vsel %vm302, %v850, -inf
    %854 = vmax.xlane.f32.xlu0 %v853
    %v855 = vpop.xlane.xlu0 %854
    %v856 = vsub.f32 %v850, %v855
    %v857 = vmul.f32 %v856, 1.442695
    %v858 = vpow.pop %v857
    %v859 = vsel %vm302, %v858, 0.0
    %860 = vadd.xlane.f32.xlu0 %v859
    %v861 = vpop.xlane.xlu0 %860
    %v862 = vrcp.pop %v861
    %v863 = vmul.f32 %v858, %v862
    %864 = vrot.lane.b32.xlu0 %v299, 112
    %v865 = vpop.permute.xlu0 %864
    %v868 = vsel %vm302, %v863, 0
    %870 = vmatprep.subr.mxu0 0.0
    %871 = vmatpush1.msra.mxu0 0.0
    %872 = vmatprep.subr.mxu0 0.0
    %873 = vmatpush1.msra.mxu0 0.0
    %874 = vmatprep.subr.mxu0 0.0
    %875 = vmatpush1.msra.mxu0 0.0
    %876 = vmatprep.subr.mxu0 0.0
    %877 = vmatpush1.msra.mxu0 0.0
    %878 = vmatprep.subr.mxu0 0.0
    %879 = vmatpush1.msra.mxu0 0.0
    %880 = vmatprep.subr.mxu0 0.0
    %881 = vmatpush1.msra.mxu0 0.0
    %882 = vmatprep.subr.mxu0 0.0
    %883 = vmatpush1.msra.mxu0 0.0
    %884 = vmatprep.subr.mxu0 0.0
    %885 = vmatpush1.msra.mxu0 0.0
    %886 = vmatprep.subr.mxu0 0.0
    %887 = vmatpush1.msra.mxu0 0.0
    %888 = vmatprep.subr.mxu0 0.0
    %889 = vmatpush1.msra.mxu0 0.0
    %890 = vmatprep.subr.mxu0 0.0
    %891 = vmatpush1.msra.mxu0 0.0
    %892 = vmatprep.subr.mxu0 0.0
    %893 = vmatpush1.msra.mxu0 0.0
    %894 = vmatprep.subr.mxu0 0.0
    %895 = vmatpush1.msra.mxu0 0.0
    %896 = vmatprep.subr.mxu0 0.0
    %897 = vmatpush1.msra.mxu0 0.0
    %898 = vmatprep.subr.mxu0 0.0
    %899 = vmatpush1.msra.mxu0 0.0
    %900 = vmatprep.subr.mxu0 0.0
    %901 = vmatpush1.msra.mxu0 %v865
    %902 = vmatprep.subr.mxu0 0.0
    %903 = vmatpush2.msra.mxu0 0.0
    %904 = vmatprep.subr.mxu0 0.0
    %905 = vmatpush2.msra.mxu0 0.0
    %906 = vmatprep.subr.mxu0 0.0
    %907 = vmatpush2.msra.mxu0 0.0
    %908 = vmatprep.subr.mxu0 0.0
    %909 = vmatpush2.msra.mxu0 0.0
    %910 = vmatprep.subr.mxu0 0.0
    %911 = vmatpush2.msra.mxu0 0.0
    %912 = vmatprep.subr.mxu0 0.0
    %913 = vmatpush2.msra.mxu0 0.0
    %914 = vmatprep.subr.mxu0 0.0
    %915 = vmatpush2.msra.mxu0 0.0
    %916 = vmatprep.subr.mxu0 0.0
    %917 = vmatpush2.msra.mxu0 0.0
    %918 = vmatprep.subr.mxu0 0.0
    %919 = vmatpush2.msra.mxu0 0.0
    %920 = vmatprep.subr.mxu0 0.0
    %921 = vmatpush2.msra.mxu0 0.0
    %922 = vmatprep.subr.mxu0 0.0
    %923 = vmatpush2.msra.mxu0 0.0
    %924 = vmatprep.subr.mxu0 0.0
    %925 = vmatpush2.msra.mxu0 0.0
    %926 = vmatprep.subr.mxu0 0.0
    %927 = vmatpush2.msra.mxu0 0.0
    %928 = vmatprep.subr.mxu0 0.0
    %929 = vmatpush2.msra.mxu0 0.0
    %930 = vmatprep.subr.mxu0 0.0
    %931 = vmatpush2.msra.mxu0 0.0
    %932 = vmatprep.subr.mxu0 0.0
    %933 = vmatpush2.msra.mxu0 0.0
    %934 = vmatprep.mubr.f32.mxu0 0.0
    %935 = vmatmul.mubr.f32.gmra.mxu0 %v868
    %v936 = vpop.f32.mrf.mxu0
    %v937 = vadd.f32 0.0, %v936
    %v938 = vpop.f32.mrf.mxu0
    %939 = vdwg.mxu0
    %v941 = vsel %vm302, %v937, 0
    %943 = vmatprep.subr.mxu0 0.0
    %944 = vmatpush1.msra.mxu0 0.0
    %945 = vmatprep.subr.mxu0 0.0
    %946 = vmatpush1.msra.mxu0 0.0
    %947 = vmatprep.subr.mxu0 0.0
    %948 = vmatpush1.msra.mxu0 0.0
    %949 = vmatprep.subr.mxu0 0.0
    %950 = vmatpush1.msra.mxu0 0.0
    %951 = vmatprep.subr.mxu0 0.0
    %952 = vmatpush1.msra.mxu0 0.0
    %953 = vmatprep.subr.mxu0 0.0
    %954 = vmatpush1.msra.mxu0 0.0
    %955 = vmatprep.subr.mxu0 0.0
    %956 = vmatpush1.msra.mxu0 0.0
    %957 = vmatprep.subr.mxu0 0.0
    %958 = vmatpush1.msra.mxu0 0.0
    %959 = vmatprep.subr.mxu0 0.0
    %960 = vmatpush1.msra.mxu0 0.0
    %961 = vmatprep.subr.mxu0 0.0
    %962 = vmatpush1.msra.mxu0 0.0
    %963 = vmatprep.subr.mxu0 0.0
    %964 = vmatpush1.msra.mxu0 0.0
    %965 = vmatprep.subr.mxu0 0.0
    %966 = vmatpush1.msra.mxu0 0.0
    %967 = vmatprep.subr.mxu0 0.0
    %968 = vmatpush1.msra.mxu0 0.0
    %969 = vmatprep.subr.mxu0 0.0
    %970 = vmatpush1.msra.mxu0 0.0
    %971 = vmatprep.subr.mxu0 0.0
    %972 = vmatpush1.msra.mxu0 0.0
    %973 = vmatprep.subr.mxu0 0.0
    %974 = vmatpush1.msra.mxu0 %v38
    %975 = vmatprep.subr.mxu0 0.0
    %976 = vmatpush2.msra.mxu0 0.0
    %977 = vmatprep.subr.mxu0 0.0
    %978 = vmatpush2.msra.mxu0 0.0
    %979 = vmatprep.subr.mxu0 0.0
    %980 = vmatpush2.msra.mxu0 0.0
    %981 = vmatprep.subr.mxu0 0.0
    %982 = vmatpush2.msra.mxu0 0.0
    %983 = vmatprep.subr.mxu0 0.0
    %984 = vmatpush2.msra.mxu0 0.0
    %985 = vmatprep.subr.mxu0 0.0
    %986 = vmatpush2.msra.mxu0 0.0
    %987 = vmatprep.subr.mxu0 0.0
    %988 = vmatpush2.msra.mxu0 0.0
    %989 = vmatprep.subr.mxu0 0.0
    %990 = vmatpush2.msra.mxu0 0.0
    %991 = vmatprep.subr.mxu0 0.0
    %992 = vmatpush2.msra.mxu0 0.0
    %993 = vmatprep.subr.mxu0 0.0
    %994 = vmatpush2.msra.mxu0 0.0
    %995 = vmatprep.subr.mxu0 0.0
    %996 = vmatpush2.msra.mxu0 0.0
    %997 = vmatprep.subr.mxu0 0.0
    %998 = vmatpush2.msra.mxu0 0.0
    %999 = vmatprep.subr.mxu0 0.0
    %1000 = vmatpush2.msra.mxu0 0.0
    %1001 = vmatprep.subr.mxu0 0.0
    %1002 = vmatpush2.msra.mxu0 0.0
    %1003 = vmatprep.subr.mxu0 0.0
    %1004 = vmatpush2.msra.mxu0 0.0
    %1005 = vmatprep.subr.mxu0 0.0
    %1006 = vmatpush2.msra.mxu0 0.0
    %1007 = vmatprep.mubr.f32.mxu0 0.0
    %1008 = vmatmul.mubr.f32.gmra.mxu0 %v941
    %v1009 = vpop.f32.mrf.mxu0
    %v1010 = vadd.f32 0.0, %v1009
    %v1011 = vpop.f32.mrf.mxu0
    %1012 = vdwg.mxu0
    %v1013 = vadd.f32 %v772, %v1010
    %1014 = vrot.lane.b32.xlu0 %v159, 104
    %v1015 = vpop.permute.xlu0 %1014
    %1016 = vrot.lane.b32.xlu0 %v229, 104
    %v1017 = vpop.permute.xlu0 %1016
    %v1018 = vsel %vm302, %v1015, 0
    %v1020 = vsel %vm302, %v1017, 0
    %1022 = vmatprep.subr.mxu0 0.0
    %1023 = vmatpush1.xpose.msra.mxu0 0.0
    %1024 = vmatprep.subr.mxu0 0.0
    %1025 = vmatpush1.xpose.msra.mxu0 0.0
    %1026 = vmatprep.subr.mxu0 0.0
    %1027 = vmatpush1.xpose.msra.mxu0 0.0
    %1028 = vmatprep.subr.mxu0 0.0
    %1029 = vmatpush1.xpose.msra.mxu0 0.0
    %1030 = vmatprep.subr.mxu0 0.0
    %1031 = vmatpush1.xpose.msra.mxu0 0.0
    %1032 = vmatprep.subr.mxu0 0.0
    %1033 = vmatpush1.xpose.msra.mxu0 0.0
    %1034 = vmatprep.subr.mxu0 0.0
    %1035 = vmatpush1.xpose.msra.mxu0 0.0
    %1036 = vmatprep.subr.mxu0 0.0
    %1037 = vmatpush1.xpose.msra.mxu0 0.0
    %1038 = vmatprep.subr.mxu0 0.0
    %1039 = vmatpush1.xpose.msra.mxu0 0.0
    %1040 = vmatprep.subr.mxu0 0.0
    %1041 = vmatpush1.xpose.msra.mxu0 0.0
    %1042 = vmatprep.subr.mxu0 0.0
    %1043 = vmatpush1.xpose.msra.mxu0 0.0
    %1044 = vmatprep.subr.mxu0 0.0
    %1045 = vmatpush1.xpose.msra.mxu0 0.0
    %1046 = vmatprep.subr.mxu0 0.0
    %1047 = vmatpush1.xpose.msra.mxu0 0.0
    %1048 = vmatprep.subr.mxu0 0.0
    %1049 = vmatpush1.xpose.msra.mxu0 0.0
    %1050 = vmatprep.subr.mxu0 0.0
    %1051 = vmatpush1.xpose.msra.mxu0 0.0
    %1052 = vmatprep.subr.mxu0 0.0
    %1053 = vmatpush1.xpose.msra.mxu0 %v1020
    %1054 = vmatprep.subr.mxu0 0.0
    %1055 = vmatpush2.xpose.msra.mxu0 0.0
    %1056 = vmatprep.subr.mxu0 0.0
    %1057 = vmatpush2.xpose.msra.mxu0 0.0
    %1058 = vmatprep.subr.mxu0 0.0
    %1059 = vmatpush2.xpose.msra.mxu0 0.0
    %1060 = vmatprep.subr.mxu0 0.0
    %1061 = vmatpush2.xpose.msra.mxu0 0.0
    %1062 = vmatprep.subr.mxu0 0.0
    %1063 = vmatpush2.xpose.msra.mxu0 0.0
    %1064 = vmatprep.subr.mxu0 0.0
    %1065 = vmatpush2.xpose.msra.mxu0 0.0
    %1066 = vmatprep.subr.mxu0 0.0
    %1067 = vmatpush2.xpose.msra.mxu0 0.0
    %1068 = vmatprep.subr.mxu0 0.0
    %1069 = vmatpush2.xpose.msra.mxu0 0.0
    %1070 = vmatprep.subr.mxu0 0.0
    %1071 = vmatpush2.xpose.msra.mxu0 0.0
    %1072 = vmatprep.subr.mxu0 0.0
    %1073 = vmatpush2.xpose.msra.mxu0 0.0
    %1074 = vmatprep.subr.mxu0 0.0
    %1075 = vmatpush2.xpose.msra.mxu0 0.0
    %1076 = vmatprep.subr.mxu0 0.0
    %1077 = vmatpush2.xpose.msra.mxu0 0.0
    %1078 = vmatprep.subr.mxu0 0.0
    %1079 = vmatpush2.xpose.msra.mxu0 0.0
    %1080 = vmatprep.subr.mxu0 0.0
    %1081 = vmatpush2.xpose.msra.mxu0 0.0
    %1082 = vmatprep.subr.mxu0 0.0
    %1083 = vmatpush2.xpose.msra.mxu0 0.0
    %1084 = vmatprep.subr.mxu0 0.0
    %1085 = vmatpush2.xpose.msra.mxu0 0.0
    %1086 = vmatprep.mubr.f32.mxu0 0.0
    %1087 = vmatmul.mubr.f32.gmra.mxu0 %v1018
    %v1088 = vpop.f32.mrf.mxu0
    %v1089 = vadd.f32 %v86, %v1088
    %v1090 = vpop.f32.mrf.mxu0
    %1091 = vdwg.mxu0
    %v1092 = vsel %vm302, %v1089, -inf
    %1093 = vmax.xlane.f32.xlu0 %v1092
    %v1094 = vpop.xlane.xlu0 %1093
    %v1095 = vsub.f32 %v1089, %v1094
    %v1096 = vmul.f32 %v1095, 1.442695
    %v1097 = vpow.pop %v1096
    %v1098 = vsel %vm302, %v1097, 0.0
    %1099 = vadd.xlane.f32.xlu0 %v1098
    %v1100 = vpop.xlane.xlu0 %1099
    %v1101 = vrcp.pop %v1100
    %v1102 = vmul.f32 %v1097, %v1101
    %1103 = vrot.lane.b32.xlu0 %v299, 104
    %v1104 = vpop.permute.xlu0 %1103
    %v1107 = vsel %vm302, %v1102, 0
    %1109 = vmatprep.subr.mxu0 0.0
    %1110 = vmatpush1.msra.mxu0 0.0
    %1111 = vmatprep.subr.mxu0 0.0
    %1112 = vmatpush1.msra.mxu0 0.0
    %1113 = vmatprep.subr.mxu0 0.0
    %1114 = vmatpush1.msra.mxu0 0.0
    %1115 = vmatprep.subr.mxu0 0.0
    %1116 = vmatpush1.msra.mxu0 0.0
    %1117 = vmatprep.subr.mxu0 0.0
    %1118 = vmatpush1.msra.mxu0 0.0
    %1119 = vmatprep.subr.mxu0 0.0
    %1120 = vmatpush1.msra.mxu0 0.0
    %1121 = vmatprep.subr.mxu0 0.0
    %1122 = vmatpush1.msra.mxu0 0.0
    %1123 = vmatprep.subr.mxu0 0.0
    %1124 = vmatpush1.msra.mxu0 0.0
    %1125 = vmatprep.subr.mxu0 0.0
    %1126 = vmatpush1.msra.mxu0 0.0
    %1127 = vmatprep.subr.mxu0 0.0
    %1128 = vmatpush1.msra.mxu0 0.0
    %1129 = vmatprep.subr.mxu0 0.0
    %1130 = vmatpush1.msra.mxu0 0.0
    %1131 = vmatprep.subr.mxu0 0.0
    %1132 = vmatpush1.msra.mxu0 0.0
    %1133 = vmatprep.subr.mxu0 0.0
    %1134 = vmatpush1.msra.mxu0 0.0
    %1135 = vmatprep.subr.mxu0 0.0
    %1136 = vmatpush1.msra.mxu0 0.0
    %1137 = vmatprep.subr.mxu0 0.0
    %1138 = vmatpush1.msra.mxu0 0.0
    %1139 = vmatprep.subr.mxu0 0.0
    %1140 = vmatpush1.msra.mxu0 %v1104
    %1141 = vmatprep.subr.mxu0 0.0
    %1142 = vmatpush2.msra.mxu0 0.0
    %1143 = vmatprep.subr.mxu0 0.0
    %1144 = vmatpush2.msra.mxu0 0.0
    %1145 = vmatprep.subr.mxu0 0.0
    %1146 = vmatpush2.msra.mxu0 0.0
    %1147 = vmatprep.subr.mxu0 0.0
    %1148 = vmatpush2.msra.mxu0 0.0
    %1149 = vmatprep.subr.mxu0 0.0
    %1150 = vmatpush2.msra.mxu0 0.0
    %1151 = vmatprep.subr.mxu0 0.0
    %1152 = vmatpush2.msra.mxu0 0.0
    %1153 = vmatprep.subr.mxu0 0.0
    %1154 = vmatpush2.msra.mxu0 0.0
    %1155 = vmatprep.subr.mxu0 0.0
    %1156 = vmatpush2.msra.mxu0 0.0
    %1157 = vmatprep.subr.mxu0 0.0
    %1158 = vmatpush2.msra.mxu0 0.0
    %1159 = vmatprep.subr.mxu0 0.0
    %1160 = vmatpush2.msra.mxu0 0.0
    %1161 = vmatprep.subr.mxu0 0.0
    %1162 = vmatpush2.msra.mxu0 0.0
    %1163 = vmatprep.subr.mxu0 0.0
    %1164 = vmatpush2.msra.mxu0 0.0
    %1165 = vmatprep.subr.mxu0 0.0
    %1166 = vmatpush2.msra.mxu0 0.0
    %1167 = vmatprep.subr.mxu0 0.0
    %1168 = vmatpush2.msra.mxu0 0.0
    %1169 = vmatprep.subr.mxu0 0.0
    %1170 = vmatpush2.msra.mxu0 0.0
    %1171 = vmatprep.subr.mxu0 0.0
    %1172 = vmatpush2.msra.mxu0 0.0
    %1173 = vmatprep.mubr.f32.mxu0 0.0
    %1174 = vmatmul.mubr.f32.gmra.mxu0 %v1107
    %v1175 = vpop.f32.mrf.mxu0
    %v1176 = vadd.f32 0.0, %v1175
    %v1177 = vpop.f32.mrf.mxu0
    %1178 = vdwg.mxu0
    %v1180 = vsel %vm302, %v1176, 0
    %1182 = vmatprep.subr.mxu0 0.0
    %1183 = vmatpush1.msra.mxu0 0.0
    %1184 = vmatprep.subr.mxu0 0.0
    %1185 = vmatpush1.msra.mxu0 0.0
    %1186 = vmatprep.subr.mxu0 0.0
    %1187 = vmatpush1.msra.mxu0 0.0
    %1188 = vmatprep.subr.mxu0 0.0
    %1189 = vmatpush1.msra.mxu0 0.0
    %1190 = vmatprep.subr.mxu0 0.0
    %1191 = vmatpush1.msra.mxu0 0.0
    %1192 = vmatprep.subr.mxu0 0.0
    %1193 = vmatpush1.msra.mxu0 0.0
    %1194 = vmatprep.subr.mxu0 0.0
    %1195 = vmatpush1.msra.mxu0 0.0
    %1196 = vmatprep.subr.mxu0 0.0
    %1197 = vmatpush1.msra.mxu0 0.0
    %1198 = vmatprep.subr.mxu0 0.0
    %1199 = vmatpush1.msra.mxu0 0.0
    %1200 = vmatprep.subr.mxu0 0.0
    %1201 = vmatpush1.msra.mxu0 0.0
    %1202 = vmatprep.subr.mxu0 0.0
    %1203 = vmatpush1.msra.mxu0 0.0
    %1204 = vmatprep.subr.mxu0 0.0
    %1205 = vmatpush1.msra.mxu0 0.0
    %1206 = vmatprep.subr.mxu0 0.0
    %1207 = vmatpush1.msra.mxu0 0.0
    %1208 = vmatprep.subr.mxu0 0.0
    %1209 = vmatpush1.msra.mxu0 0.0
    %1210 = vmatprep.subr.mxu0 0.0
    %1211 = vmatpush1.msra.mxu0 0.0
    %1212 = vmatprep.subr.mxu0 0.0
    %1213 = vmatpush1.msra.mxu0 %v39
    %1214 = vmatprep.subr.mxu0 0.0
    %1215 = vmatpush2.msra.mxu0 0.0
    %1216 = vmatprep.subr.mxu0 0.0
    %1217 = vmatpush2.msra.mxu0 0.0
    %1218 = vmatprep.subr.mxu0 0.0
    %1219 = vmatpush2.msra.mxu0 0.0
    %1220 = vmatprep.subr.mxu0 0.0
    %1221 = vmatpush2.msra.mxu0 0.0
    %1222 = vmatprep.subr.mxu0 0.0
    %1223 = vmatpush2.msra.mxu0 0.0
    %1224 = vmatprep.subr.mxu0 0.0
    %1225 = vmatpush2.msra.mxu0 0.0
    %1226 = vmatprep.subr.mxu0 0.0
    %1227 = vmatpush2.msra.mxu0 0.0
    %1228 = vmatprep.subr.mxu0 0.0
    %1229 = vmatpush2.msra.mxu0 0.0
    %1230 = vmatprep.subr.mxu0 0.0
    %1231 = vmatpush2.msra.mxu0 0.0
    %1232 = vmatprep.subr.mxu0 0.0
    %1233 = vmatpush2.msra.mxu0 0.0
    %1234 = vmatprep.subr.mxu0 0.0
    %1235 = vmatpush2.msra.mxu0 0.0
    %1236 = vmatprep.subr.mxu0 0.0
    %1237 = vmatpush2.msra.mxu0 0.0
    %1238 = vmatprep.subr.mxu0 0.0
    %1239 = vmatpush2.msra.mxu0 0.0
    %1240 = vmatprep.subr.mxu0 0.0
    %1241 = vmatpush2.msra.mxu0 0.0
    %1242 = vmatprep.subr.mxu0 0.0
    %1243 = vmatpush2.msra.mxu0 0.0
    %1244 = vmatprep.subr.mxu0 0.0
    %1245 = vmatpush2.msra.mxu0 0.0
    %1246 = vmatprep.mubr.f32.mxu0 0.0
    %1247 = vmatmul.mubr.f32.gmra.mxu0 %v1180
    %v1248 = vpop.f32.mrf.mxu0
    %v1249 = vadd.f32 0.0, %v1248
    %v1250 = vpop.f32.mrf.mxu0
    %1251 = vdwg.mxu0
    %v1252 = vadd.f32 %v1013, %v1249
    %v1253 = vlaneseq
    %v1254 = vshrl.u32 %v1253, 7
    %v1255 = vsub.s32 0, %v1254
    %v1256 = vrot.slane %v72, %v1255
    %v1257 = vadd.f32 %v1252, %v1256
    %v1258 = vadd.f32 %v1257, %v83
    %v1259 = vsel %vm88, %v1258, 0.0
    %1260 = vadd.xlane.f32.xlu0 %v1259
    %v1261 = vpop.xlane.xlu0 %1260
    %v1262 = vrcp.pop 32.0
    %v1263 = vmul.f32 %v1261, %v1262
    %v1264 = vsub.f32 %v1258, %v1263
    %v1265 = vmul.f32 %v1264, %v1264
    %v1266 = vsel %vm88, %v1265, 0.0
    %1267 = vadd.xlane.f32.xlu0 %v1266
    %v1268 = vpop.xlane.xlu0 %1267
    %v1269 = vmul.f32 %v1268, %v1262
    %v1270 = vadd.f32 %v1269, 1e-05
    %v1271 = vrsqrt.pop %v1270
    %v1272 = vmul.f32 %v1270, %v1271
    %vm1273 = vcmp.eq.f32.partialorder %v1270, inf
    %v1274 = vsel %vm1273, %v1270, %v1272
    %vm1275 = vcmp.eq.f32.partialorder %v1270, 0.0
    %v1276 = vand.u32 %v1270, 2147483648
    %v1277 = vsel %vm1275, %v1276, %v1274
    %v1278 = vrcp.pop %v1277
    %v1279 = vmul.f32 %v1264, %v1278
    %v1280 = vlaneseq
    %v1281 = vshrl.u32 %v1280, 7
    %v1282 = vsub.s32 0, %v1281
    %v1283 = vrot.slane %v73, %v1282
    %v1284 = vmul.f32 %v1279, %v1283
    %v1285 = vlaneseq
    %v1286 = vshrl.u32 %v1285, 7
    %v1287 = vsub.s32 0, %v1286
    %v1288 = vrot.slane %v74, %v1287
    %v1289 = vadd.f32 %v1284, %v1288
    %v1291 = vsel %vm88, %v1289, 0
    %1293 = vmatprep.subr.mxu0 0.0
    %1294 = vmatpush1.msra.mxu0 0.0
    %1295 = vmatprep.subr.mxu0 0.0
    %1296 = vmatpush1.msra.mxu0 0.0
    %1297 = vmatprep.subr.mxu0 0.0
    %1298 = vmatpush1.msra.mxu0 0.0
    %1299 = vmatprep.subr.mxu0 0.0
    %1300 = vmatpush1.msra.mxu0 0.0
    %1301 = vmatprep.subr.mxu0 0.0
    %1302 = vmatpush1.msra.mxu0 0.0
    %1303 = vmatprep.subr.mxu0 0.0
    %1304 = vmatpush1.msra.mxu0 0.0
    %1305 = vmatprep.subr.mxu0 0.0
    %1306 = vmatpush1.msra.mxu0 0.0
    %1307 = vmatprep.subr.mxu0 0.0
    %1308 = vmatpush1.msra.mxu0 0.0
    %1309 = vmatprep.subr.mxu0 0.0
    %1310 = vmatpush1.msra.mxu0 0.0
    %1311 = vmatprep.subr.mxu0 0.0
    %1312 = vmatpush1.msra.mxu0 0.0
    %1313 = vmatprep.subr.mxu0 0.0
    %1314 = vmatpush1.msra.mxu0 0.0
    %1315 = vmatprep.subr.mxu0 0.0
    %1316 = vmatpush1.msra.mxu0 0.0
    %1317 = vmatprep.subr.mxu0 0.0
    %1318 = vmatpush1.msra.mxu0 %v43
    %1319 = vmatprep.subr.mxu0 0.0
    %1320 = vmatpush1.msra.mxu0 %v42
    %1321 = vmatprep.subr.mxu0 0.0
    %1322 = vmatpush1.msra.mxu0 %v41
    %1323 = vmatprep.subr.mxu0 0.0
    %1324 = vmatpush1.msra.mxu0 %v40
    %1325 = vmatprep.subr.mxu0 0.0
    %1326 = vmatpush2.msra.mxu0 0.0
    %1327 = vmatprep.subr.mxu0 0.0
    %1328 = vmatpush2.msra.mxu0 0.0
    %1329 = vmatprep.subr.mxu0 0.0
    %1330 = vmatpush2.msra.mxu0 0.0
    %1331 = vmatprep.subr.mxu0 0.0
    %1332 = vmatpush2.msra.mxu0 0.0
    %1333 = vmatprep.subr.mxu0 0.0
    %1334 = vmatpush2.msra.mxu0 0.0
    %1335 = vmatprep.subr.mxu0 0.0
    %1336 = vmatpush2.msra.mxu0 0.0
    %1337 = vmatprep.subr.mxu0 0.0
    %1338 = vmatpush2.msra.mxu0 0.0
    %1339 = vmatprep.subr.mxu0 0.0
    %1340 = vmatpush2.msra.mxu0 0.0
    %1341 = vmatprep.subr.mxu0 0.0
    %1342 = vmatpush2.msra.mxu0 0.0
    %1343 = vmatprep.subr.mxu0 0.0
    %1344 = vmatpush2.msra.mxu0 0.0
    %1345 = vmatprep.subr.mxu0 0.0
    %1346 = vmatpush2.msra.mxu0 0.0
    %1347 = vmatprep.subr.mxu0 0.0
    %1348 = vmatpush2.msra.mxu0 0.0
    %1349 = vmatprep.subr.mxu0 0.0
    %1350 = vmatpush2.msra.mxu0 0.0
    %1351 = vmatprep.subr.mxu0 0.0
    %1352 = vmatpush2.msra.mxu0 0.0
    %1353 = vmatprep.subr.mxu0 0.0
    %1354 = vmatpush2.msra.mxu0 0.0
    %1355 = vmatprep.subr.mxu0 0.0
    %1356 = vmatpush2.msra.mxu0 0.0
    %1357 = vmatprep.mubr.f32.mxu0 0.0
    %1358 = vmatmul.mubr.f32.gmra.mxu0 %v1291
    %v1359 = vpop.f32.mrf.mxu0
    %v1360 = vadd.f32 0.0, %v1359
    %v1361 = vpop.f32.mrf.mxu0
    %1362 = vdwg.mxu0
    %v1364 = vsel %vm88, %v85, 0
    %1366 = vmatprep.subr.mxu0 0.0
    %1367 = vmatpush1.msra.mxu0 0.0
    %1368 = vmatprep.subr.mxu0 0.0
    %1369 = vmatpush1.msra.mxu0 0.0
    %1370 = vmatprep.subr.mxu0 0.0
    %1371 = vmatpush1.msra.mxu0 0.0
    %1372 = vmatprep.subr.mxu0 0.0
    %1373 = vmatpush1.msra.mxu0 0.0
    %1374 = vmatprep.subr.mxu0 0.0
    %1375 = vmatpush1.msra.mxu0 0.0
    %1376 = vmatprep.subr.mxu0 0.0
    %1377 = vmatpush1.msra.mxu0 0.0
    %1378 = vmatprep.subr.mxu0 0.0
    %1379 = vmatpush1.msra.mxu0 0.0
    %1380 = vmatprep.subr.mxu0 0.0
    %1381 = vmatpush1.msra.mxu0 0.0
    %1382 = vmatprep.subr.mxu0 0.0
    %1383 = vmatpush1.msra.mxu0 0.0
    %1384 = vmatprep.subr.mxu0 0.0
    %1385 = vmatpush1.msra.mxu0 0.0
    %1386 = vmatprep.subr.mxu0 0.0
    %1387 = vmatpush1.msra.mxu0 0.0
    %1388 = vmatprep.subr.mxu0 0.0
    %1389 = vmatpush1.msra.mxu0 0.0
    %1390 = vmatprep.subr.mxu0 0.0
    %1391 = vmatpush1.msra.mxu0 %v47
    %1392 = vmatprep.subr.mxu0 0.0
    %1393 = vmatpush1.msra.mxu0 %v46
    %1394 = vmatprep.subr.mxu0 0.0
    %1395 = vmatpush1.msra.mxu0 %v45
    %1396 = vmatprep.subr.mxu0 0.0
    %1397 = vmatpush1.msra.mxu0 %v44
    %1398 = vmatprep.subr.mxu0 0.0
    %1399 = vmatpush2.msra.mxu0 0.0
    %1400 = vmatprep.subr.mxu0 0.0
    %1401 = vmatpush2.msra.mxu0 0.0
    %1402 = vmatprep.subr.mxu0 0.0
    %1403 = vmatpush2.msra.mxu0 0.0
    %1404 = vmatprep.subr.mxu0 0.0
    %1405 = vmatpush2.msra.mxu0 0.0
    %1406 = vmatprep.subr.mxu0 0.0
    %1407 = vmatpush2.msra.mxu0 0.0
    %1408 = vmatprep.subr.mxu0 0.0
    %1409 = vmatpush2.msra.mxu0 0.0
    %1410 = vmatprep.subr.mxu0 0.0
    %1411 = vmatpush2.msra.mxu0 0.0
    %1412 = vmatprep.subr.mxu0 0.0
    %1413 = vmatpush2.msra.mxu0 0.0
    %1414 = vmatprep.subr.mxu0 0.0
    %1415 = vmatpush2.msra.mxu0 0.0
    %1416 = vmatprep.subr.mxu0 0.0
    %1417 = vmatpush2.msra.mxu0 0.0
    %1418 = vmatprep.subr.mxu0 0.0
    %1419 = vmatpush2.msra.mxu0 0.0
    %1420 = vmatprep.subr.mxu0 0.0
    %1421 = vmatpush2.msra.mxu0 0.0
    %1422 = vmatprep.subr.mxu0 0.0
    %1423 = vmatpush2.msra.mxu0 0.0
    %1424 = vmatprep.subr.mxu0 0.0
    %1425 = vmatpush2.msra.mxu0 0.0
    %1426 = vmatprep.subr.mxu0 0.0
    %1427 = vmatpush2.msra.mxu0 0.0
    %1428 = vmatprep.subr.mxu0 0.0
    %1429 = vmatpush2.msra.mxu0 0.0
    %1430 = vmatprep.mubr.f32.mxu0 0.0
    %1431 = vmatmul.mubr.f32.gmra.mxu0 %v1364
    %v1432 = vpop.f32.mrf.mxu0
    %v1433 = vadd.f32 0.0, %v1432
    %v1434 = vpop.f32.mrf.mxu0
    %1435 = vdwg.mxu0
    %v1437 = vsel %vm88, %v84, 0
    %1439 = vmatprep.subr.mxu0 0.0
    %1440 = vmatpush1.msra.mxu0 0.0
    %1441 = vmatprep.subr.mxu0 0.0
    %1442 = vmatpush1.msra.mxu0 0.0
    %1443 = vmatprep.subr.mxu0 0.0
    %1444 = vmatpush1.msra.mxu0 0.0
    %1445 = vmatprep.subr.mxu0 0.0
    %1446 = vmatpush1.msra.mxu0 0.0
    %1447 = vmatprep.subr.mxu0 0.0
    %1448 = vmatpush1.msra.mxu0 0.0
    %1449 = vmatprep.subr.mxu0 0.0
    %1450 = vmatpush1.msra.mxu0 0.0
    %1451 = vmatprep.subr.mxu0 0.0
    %1452 = vmatpush1.msra.mxu0 0.0
    %1453 = vmatprep.subr.mxu0 0.0
    %1454 = vmatpush1.msra.mxu0 0.0
    %1455 = vmatprep.subr.mxu0 0.0
    %1456 = vmatpush1.msra.mxu0 0.0
    %1457 = vmatprep.subr.mxu0 0.0
    %1458 = vmatpush1.msra.mxu0 0.0
    %1459 = vmatprep.subr.mxu0 0.0
    %1460 = vmatpush1.msra.mxu0 0.0
    %1461 = vmatprep.subr.mxu0 0.0
    %1462 = vmatpush1.msra.mxu0 0.0
    %1463 = vmatprep.subr.mxu0 0.0
    %1464 = vmatpush1.msra.mxu0 %v51
    %1465 = vmatprep.subr.mxu0 0.0
    %1466 = vmatpush1.msra.mxu0 %v50
    %1467 = vmatprep.subr.mxu0 0.0
    %1468 = vmatpush1.msra.mxu0 %v49
    %1469 = vmatprep.subr.mxu0 0.0
    %1470 = vmatpush1.msra.mxu0 %v48
    %1471 = vmatprep.subr.mxu0 0.0
    %1472 = vmatpush2.msra.mxu0 0.0
    %1473 = vmatprep.subr.mxu0 0.0
    %1474 = vmatpush2.msra.mxu0 0.0
    %1475 = vmatprep.subr.mxu0 0.0
    %1476 = vmatpush2.msra.mxu0 0.0
    %1477 = vmatprep.subr.mxu0 0.0
    %1478 = vmatpush2.msra.mxu0 0.0
    %1479 = vmatprep.subr.mxu0 0.0
    %1480 = vmatpush2.msra.mxu0 0.0
    %1481 = vmatprep.subr.mxu0 0.0
    %1482 = vmatpush2.msra.mxu0 0.0
    %1483 = vmatprep.subr.mxu0 0.0
    %1484 = vmatpush2.msra.mxu0 0.0
    %1485 = vmatprep.subr.mxu0 0.0
    %1486 = vmatpush2.msra.mxu0 0.0
    %1487 = vmatprep.subr.mxu0 0.0
    %1488 = vmatpush2.msra.mxu0 0.0
    %1489 = vmatprep.subr.mxu0 0.0
    %1490 = vmatpush2.msra.mxu0 0.0
    %1491 = vmatprep.subr.mxu0 0.0
    %1492 = vmatpush2.msra.mxu0 0.0
    %1493 = vmatprep.subr.mxu0 0.0
    %1494 = vmatpush2.msra.mxu0 0.0
    %1495 = vmatprep.subr.mxu0 0.0
    %1496 = vmatpush2.msra.mxu0 0.0
    %1497 = vmatprep.subr.mxu0 0.0
    %1498 = vmatpush2.msra.mxu0 0.0
    %1499 = vmatprep.subr.mxu0 0.0
    %1500 = vmatpush2.msra.mxu0 0.0
    %1501 = vmatprep.subr.mxu0 0.0
    %1502 = vmatpush2.msra.mxu0 0.0
    %1503 = vmatprep.mubr.f32.mxu0 0.0
    %1504 = vmatmul.mubr.f32.gmra.mxu0 %v1437
    %v1505 = vpop.f32.mrf.mxu0
    %v1506 = vadd.f32 0.0, %v1505
    %v1507 = vpop.f32.mrf.mxu0
    %1508 = vdwg.mxu0
    %v1510 = vsel %vm302, %v1360, 0
    %v1513 = vsel %vm302, %v1433, 0
    %1515 = vmatprep.subr.mxu0 0.0
    %1516 = vmatpush1.xpose.msra.mxu0 0.0
    %1517 = vmatprep.subr.mxu0 0.0
    %1518 = vmatpush1.xpose.msra.mxu0 0.0
    %1519 = vmatprep.subr.mxu0 0.0
    %1520 = vmatpush1.xpose.msra.mxu0 0.0
    %1521 = vmatprep.subr.mxu0 0.0
    %1522 = vmatpush1.xpose.msra.mxu0 0.0
    %1523 = vmatprep.subr.mxu0 0.0
    %1524 = vmatpush1.xpose.msra.mxu0 0.0
    %1525 = vmatprep.subr.mxu0 0.0
    %1526 = vmatpush1.xpose.msra.mxu0 0.0
    %1527 = vmatprep.subr.mxu0 0.0
    %1528 = vmatpush1.xpose.msra.mxu0 0.0
    %1529 = vmatprep.subr.mxu0 0.0
    %1530 = vmatpush1.xpose.msra.mxu0 0.0
    %1531 = vmatprep.subr.mxu0 0.0
    %1532 = vmatpush1.xpose.msra.mxu0 0.0
    %1533 = vmatprep.subr.mxu0 0.0
    %1534 = vmatpush1.xpose.msra.mxu0 0.0
    %1535 = vmatprep.subr.mxu0 0.0
    %1536 = vmatpush1.xpose.msra.mxu0 0.0
    %1537 = vmatprep.subr.mxu0 0.0
    %1538 = vmatpush1.xpose.msra.mxu0 0.0
    %1539 = vmatprep.subr.mxu0 0.0
    %1540 = vmatpush1.xpose.msra.mxu0 0.0
    %1541 = vmatprep.subr.mxu0 0.0
    %1542 = vmatpush1.xpose.msra.mxu0 0.0
    %1543 = vmatprep.subr.mxu0 0.0
    %1544 = vmatpush1.xpose.msra.mxu0 0.0
    %1545 = vmatprep.subr.mxu0 0.0
    %1546 = vmatpush1.xpose.msra.mxu0 %v1513
    %1547 = vmatprep.subr.mxu0 0.0
    %1548 = vmatpush2.xpose.msra.mxu0 0.0
    %1549 = vmatprep.subr.mxu0 0.0
    %1550 = vmatpush2.xpose.msra.mxu0 0.0
    %1551 = vmatprep.subr.mxu0 0.0
    %1552 = vmatpush2.xpose.msra.mxu0 0.0
    %1553 = vmatprep.subr.mxu0 0.0
    %1554 = vmatpush2.xpose.msra.mxu0 0.0
    %1555 = vmatprep.subr.mxu0 0.0
    %1556 = vmatpush2.xpose.msra.mxu0 0.0
    %1557 = vmatprep.subr.mxu0 0.0
    %1558 = vmatpush2.xpose.msra.mxu0 0.0
    %1559 = vmatprep.subr.mxu0 0.0
    %1560 = vmatpush2.xpose.msra.mxu0 0.0
    %1561 = vmatprep.subr.mxu0 0.0
    %1562 = vmatpush2.xpose.msra.mxu0 0.0
    %1563 = vmatprep.subr.mxu0 0.0
    %1564 = vmatpush2.xpose.msra.mxu0 0.0
    %1565 = vmatprep.subr.mxu0 0.0
    %1566 = vmatpush2.xpose.msra.mxu0 0.0
    %1567 = vmatprep.subr.mxu0 0.0
    %1568 = vmatpush2.xpose.msra.mxu0 0.0
    %1569 = vmatprep.subr.mxu0 0.0
    %1570 = vmatpush2.xpose.msra.mxu0 0.0
    %1571 = vmatprep.subr.mxu0 0.0
    %1572 = vmatpush2.xpose.msra.mxu0 0.0
    %1573 = vmatprep.subr.mxu0 0.0
    %1574 = vmatpush2.xpose.msra.mxu0 0.0
    %1575 = vmatprep.subr.mxu0 0.0
    %1576 = vmatpush2.xpose.msra.mxu0 0.0
    %1577 = vmatprep.subr.mxu0 0.0
    %1578 = vmatpush2.xpose.msra.mxu0 0.0
    %1579 = vmatprep.mubr.f32.mxu0 0.0
    %1580 = vmatmul.mubr.f32.gmra.mxu0 %v1510
    %v1581 = vpop.f32.mrf.mxu0
    %v1582 = vadd.f32 %v87, %v1581
    %v1583 = vpop.f32.mrf.mxu0
    %1584 = vdwg.mxu0
    %v1585 = vsel %vm302, %v1582, -inf
    %1586 = vmax.xlane.f32.xlu0 %v1585
    %v1587 = vpop.xlane.xlu0 %1586
    %v1588 = vsub.f32 %v1582, %v1587
    %v1589 = vmul.f32 %v1588, 1.442695
    %v1590 = vpow.pop %v1589
    %v1591 = vsel %vm302, %v1590, 0.0
    %1592 = vadd.xlane.f32.xlu0 %v1591
    %v1593 = vpop.xlane.xlu0 %1592
    %v1594 = vrcp.pop %v1593
    %v1595 = vmul.f32 %v1590, %v1594
    %v1597 = vsel %vm302, %v1595, 0
    %1599 = vmatprep.subr.mxu0 0.0
    %1600 = vmatpush1.msra.mxu0 0.0
    %1601 = vmatprep.subr.mxu0 0.0
    %1602 = vmatpush1.msra.mxu0 0.0
    %1603 = vmatprep.subr.mxu0 0.0
    %1604 = vmatpush1.msra.mxu0 0.0
    %1605 = vmatprep.subr.mxu0 0.0
    %1606 = vmatpush1.msra.mxu0 0.0
    %1607 = vmatprep.subr.mxu0 0.0
    %1608 = vmatpush1.msra.mxu0 0.0
    %1609 = vmatprep.subr.mxu0 0.0
    %1610 = vmatpush1.msra.mxu0 0.0
    %1611 = vmatprep.subr.mxu0 0.0
    %1612 = vmatpush1.msra.mxu0 0.0
    %1613 = vmatprep.subr.mxu0 0.0
    %1614 = vmatpush1.msra.mxu0 0.0
    %1615 = vmatprep.subr.mxu0 0.0
    %1616 = vmatpush1.msra.mxu0 0.0
    %1617 = vmatprep.subr.mxu0 0.0
    %1618 = vmatpush1.msra.mxu0 0.0
    %1619 = vmatprep.subr.mxu0 0.0
    %1620 = vmatpush1.msra.mxu0 0.0
    %1621 = vmatprep.subr.mxu0 0.0
    %1622 = vmatpush1.msra.mxu0 0.0
    %1623 = vmatprep.subr.mxu0 0.0
    %1624 = vmatpush1.msra.mxu0 0.0
    %1625 = vmatprep.subr.mxu0 0.0
    %1626 = vmatpush1.msra.mxu0 0.0
    %1627 = vmatprep.subr.mxu0 0.0
    %1628 = vmatpush1.msra.mxu0 0.0
    %1629 = vmatprep.subr.mxu0 0.0
    %1630 = vmatpush1.msra.mxu0 %v1506
    %1631 = vmatprep.subr.mxu0 0.0
    %1632 = vmatpush2.msra.mxu0 0.0
    %1633 = vmatprep.subr.mxu0 0.0
    %1634 = vmatpush2.msra.mxu0 0.0
    %1635 = vmatprep.subr.mxu0 0.0
    %1636 = vmatpush2.msra.mxu0 0.0
    %1637 = vmatprep.subr.mxu0 0.0
    %1638 = vmatpush2.msra.mxu0 0.0
    %1639 = vmatprep.subr.mxu0 0.0
    %1640 = vmatpush2.msra.mxu0 0.0
    %1641 = vmatprep.subr.mxu0 0.0
    %1642 = vmatpush2.msra.mxu0 0.0
    %1643 = vmatprep.subr.mxu0 0.0
    %1644 = vmatpush2.msra.mxu0 0.0
    %1645 = vmatprep.subr.mxu0 0.0
    %1646 = vmatpush2.msra.mxu0 0.0
    %1647 = vmatprep.subr.mxu0 0.0
    %1648 = vmatpush2.msra.mxu0 0.0
    %1649 = vmatprep.subr.mxu0 0.0
    %1650 = vmatpush2.msra.mxu0 0.0
    %1651 = vmatprep.subr.mxu0 0.0
    %1652 = vmatpush2.msra.mxu0 0.0
    %1653 = vmatprep.subr.mxu0 0.0
    %1654 = vmatpush2.msra.mxu0 0.0
    %1655 = vmatprep.subr.mxu0 0.0
    %1656 = vmatpush2.msra.mxu0 0.0
    %1657 = vmatprep.subr.mxu0 0.0
    %1658 = vmatpush2.msra.mxu0 0.0
    %1659 = vmatprep.subr.mxu0 0.0
    %1660 = vmatpush2.msra.mxu0 0.0
    %1661 = vmatprep.subr.mxu0 0.0
    %1662 = vmatpush2.msra.mxu0 0.0
    %1663 = vmatprep.mubr.f32.mxu0 0.0
    %1664 = vmatmul.mubr.f32.gmra.mxu0 %v1597
    %v1665 = vpop.f32.mrf.mxu0
    %v1666 = vadd.f32 0.0, %v1665
    %v1667 = vpop.f32.mrf.mxu0
    %1668 = vdwg.mxu0
    %1669 = vrot.lane.b32.xlu0 %v1360, 120
    %v1670 = vpop.permute.xlu0 %1669
    %1671 = vrot.lane.b32.xlu0 %v1433, 120
    %v1672 = vpop.permute.xlu0 %1671
    %v1673 = vsel %vm302, %v1670, 0
    %v1675 = vsel %vm302, %v1672, 0
    %1677 = vmatprep.subr.mxu0 0.0
    %1678 = vmatpush1.xpose.msra.mxu0 0.0
    %1679 = vmatprep.subr.mxu0 0.0
    %1680 = vmatpush1.xpose.msra.mxu0 0.0
    %1681 = vmatprep.subr.mxu0 0.0
    %1682 = vmatpush1.xpose.msra.mxu0 0.0
    %1683 = vmatprep.subr.mxu0 0.0
    %1684 = vmatpush1.xpose.msra.mxu0 0.0
    %1685 = vmatprep.subr.mxu0 0.0
    %1686 = vmatpush1.xpose.msra.mxu0 0.0
    %1687 = vmatprep.subr.mxu0 0.0
    %1688 = vmatpush1.xpose.msra.mxu0 0.0
    %1689 = vmatprep.subr.mxu0 0.0
    %1690 = vmatpush1.xpose.msra.mxu0 0.0
    %1691 = vmatprep.subr.mxu0 0.0
    %1692 = vmatpush1.xpose.msra.mxu0 0.0
    %1693 = vmatprep.subr.mxu0 0.0
    %1694 = vmatpush1.xpose.msra.mxu0 0.0
    %1695 = vmatprep.subr.mxu0 0.0
    %1696 = vmatpush1.xpose.msra.mxu0 0.0
    %1697 = vmatprep.subr.mxu0 0.0
    %1698 = vmatpush1.xpose.msra.mxu0 0.0
    %1699 = vmatprep.subr.mxu0 0.0
    %1700 = vmatpush1.xpose.msra.mxu0 0.0
    %1701 = vmatprep.subr.mxu0 0.0
    %1702 = vmatpush1.xpose.msra.mxu0 0.0
    %1703 = vmatprep.subr.mxu0 0.0
    %1704 = vmatpush1.xpose.msra.mxu0 0.0
    %1705 = vmatprep.subr.mxu0 0.0
    %1706 = vmatpush1.xpose.msra.mxu0 0.0
    %1707 = vmatprep.subr.mxu0 0.0
    %1708 = vmatpush1.xpose.msra.mxu0 %v1675
    %1709 = vmatprep.subr.mxu0 0.0
    %1710 = vmatpush2.xpose.msra.mxu0 0.0
    %1711 = vmatprep.subr.mxu0 0.0
    %1712 = vmatpush2.xpose.msra.mxu0 0.0
    %1713 = vmatprep.subr.mxu0 0.0
    %1714 = vmatpush2.xpose.msra.mxu0 0.0
    %1715 = vmatprep.subr.mxu0 0.0
    %1716 = vmatpush2.xpose.msra.mxu0 0.0
    %1717 = vmatprep.subr.mxu0 0.0
    %1718 = vmatpush2.xpose.msra.mxu0 0.0
    %1719 = vmatprep.subr.mxu0 0.0
    %1720 = vmatpush2.xpose.msra.mxu0 0.0
    %1721 = vmatprep.subr.mxu0 0.0
    %1722 = vmatpush2.xpose.msra.mxu0 0.0
    %1723 = vmatprep.subr.mxu0 0.0
    %1724 = vmatpush2.xpose.msra.mxu0 0.0
    %1725 = vmatprep.subr.mxu0 0.0
    %1726 = vmatpush2.xpose.msra.mxu0 0.0
    %1727 = vmatprep.subr.mxu0 0.0
    %1728 = vmatpush2.xpose.msra.mxu0 0.0
    %1729 = vmatprep.subr.mxu0 0.0
    %1730 = vmatpush2.xpose.msra.mxu0 0.0
    %1731 = vmatprep.subr.mxu0 0.0
    %1732 = vmatpush2.xpose.msra.mxu0 0.0
    %1733 = vmatprep.subr.mxu0 0.0
    %1734 = vmatpush2.xpose.msra.mxu0 0.0
    %1735 = vmatprep.subr.mxu0 0.0
    %1736 = vmatpush2.xpose.msra.mxu0 0.0
    %1737 = vmatprep.subr.mxu0 0.0
    %1738 = vmatpush2.xpose.msra.mxu0 0.0
    %1739 = vmatprep.subr.mxu0 0.0
    %1740 = vmatpush2.xpose.msra.mxu0 0.0
    %1741 = vmatprep.mubr.f32.mxu0 0.0
    %1742 = vmatmul.mubr.f32.gmra.mxu0 %v1673
    %v1743 = vpop.f32.mrf.mxu0
    %v1744 = vadd.f32 %v87, %v1743
    %v1745 = vpop.f32.mrf.mxu0
    %1746 = vdwg.mxu0
    %v1747 = vsel %vm302, %v1744, -inf
    %1748 = vmax.xlane.f32.xlu0 %v1747
    %v1749 = vpop.xlane.xlu0 %1748
    %v1750 = vsub.f32 %v1744, %v1749
    %v1751 = vmul.f32 %v1750, 1.442695
    %v1752 = vpow.pop %v1751
    %v1753 = vsel %vm302, %v1752, 0.0
    %1754 = vadd.xlane.f32.xlu0 %v1753
    %v1755 = vpop.xlane.xlu0 %1754
    %v1756 = vrcp.pop %v1755
    %v1757 = vmul.f32 %v1752, %v1756
    %1759 = vrot.lane.b32.xlu0 %v1506, 120
    %v1760 = vpop.permute.xlu0 %1759
    %v1763 = vsel %vm302, %v1757, 0
    %1765 = vmatprep.subr.mxu0 0.0
    %1766 = vmatpush1.msra.mxu0 0.0
    %1767 = vmatprep.subr.mxu0 0.0
    %1768 = vmatpush1.msra.mxu0 0.0
    %1769 = vmatprep.subr.mxu0 0.0
    %1770 = vmatpush1.msra.mxu0 0.0
    %1771 = vmatprep.subr.mxu0 0.0
    %1772 = vmatpush1.msra.mxu0 0.0
    %1773 = vmatprep.subr.mxu0 0.0
    %1774 = vmatpush1.msra.mxu0 0.0
    %1775 = vmatprep.subr.mxu0 0.0
    %1776 = vmatpush1.msra.mxu0 0.0
    %1777 = vmatprep.subr.mxu0 0.0
    %1778 = vmatpush1.msra.mxu0 0.0
    %1779 = vmatprep.subr.mxu0 0.0
    %1780 = vmatpush1.msra.mxu0 0.0
    %1781 = vmatprep.subr.mxu0 0.0
    %1782 = vmatpush1.msra.mxu0 0.0
    %1783 = vmatprep.subr.mxu0 0.0
    %1784 = vmatpush1.msra.mxu0 0.0
    %1785 = vmatprep.subr.mxu0 0.0
    %1786 = vmatpush1.msra.mxu0 0.0
    %1787 = vmatprep.subr.mxu0 0.0
    %1788 = vmatpush1.msra.mxu0 0.0
    %1789 = vmatprep.subr.mxu0 0.0
    %1790 = vmatpush1.msra.mxu0 0.0
    %1791 = vmatprep.subr.mxu0 0.0
    %1792 = vmatpush1.msra.mxu0 0.0
    %1793 = vmatprep.subr.mxu0 0.0
    %1794 = vmatpush1.msra.mxu0 0.0
    %1795 = vmatprep.subr.mxu0 0.0
    %1796 = vmatpush1.msra.mxu0 %v1760
    %1797 = vmatprep.subr.mxu0 0.0
    %1798 = vmatpush2.msra.mxu0 0.0
    %1799 = vmatprep.subr.mxu0 0.0
    %1800 = vmatpush2.msra.mxu0 0.0
    %1801 = vmatprep.subr.mxu0 0.0
    %1802 = vmatpush2.msra.mxu0 0.0
    %1803 = vmatprep.subr.mxu0 0.0
    %1804 = vmatpush2.msra.mxu0 0.0
    %1805 = vmatprep.subr.mxu0 0.0
    %1806 = vmatpush2.msra.mxu0 0.0
    %1807 = vmatprep.subr.mxu0 0.0
    %1808 = vmatpush2.msra.mxu0 0.0
    %1809 = vmatprep.subr.mxu0 0.0
    %1810 = vmatpush2.msra.mxu0 0.0
    %1811 = vmatprep.subr.mxu0 0.0
    %1812 = vmatpush2.msra.mxu0 0.0
    %1813 = vmatprep.subr.mxu0 0.0
    %1814 = vmatpush2.msra.mxu0 0.0
    %1815 = vmatprep.subr.mxu0 0.0
    %1816 = vmatpush2.msra.mxu0 0.0
    %1817 = vmatprep.subr.mxu0 0.0
    %1818 = vmatpush2.msra.mxu0 0.0
    %1819 = vmatprep.subr.mxu0 0.0
    %1820 = vmatpush2.msra.mxu0 0.0
    %1821 = vmatprep.subr.mxu0 0.0
    %1822 = vmatpush2.msra.mxu0 0.0
    %1823 = vmatprep.subr.mxu0 0.0
    %1824 = vmatpush2.msra.mxu0 0.0
    %1825 = vmatprep.subr.mxu0 0.0
    %1826 = vmatpush2.msra.mxu0 0.0
    %1827 = vmatprep.subr.mxu0 0.0
    %1828 = vmatpush2.msra.mxu0 0.0
    %1829 = vmatprep.mubr.f32.mxu0 0.0
    %1830 = vmatmul.mubr.f32.gmra.mxu0 %v1763
    %v1831 = vpop.f32.mrf.mxu0
    %v1832 = vadd.f32 0.0, %v1831
    %v1833 = vpop.f32.mrf.mxu0
    %1834 = vdwg.mxu0
    %v1836 = vsel %vm302, %v1832, 0
    %1838 = vmatprep.subr.mxu0 0.0
    %1839 = vmatpush1.msra.mxu0 0.0
    %1840 = vmatprep.subr.mxu0 0.0
    %1841 = vmatpush1.msra.mxu0 0.0
    %1842 = vmatprep.subr.mxu0 0.0
    %1843 = vmatpush1.msra.mxu0 0.0
    %1844 = vmatprep.subr.mxu0 0.0
    %1845 = vmatpush1.msra.mxu0 0.0
    %1846 = vmatprep.subr.mxu0 0.0
    %1847 = vmatpush1.msra.mxu0 0.0
    %1848 = vmatprep.subr.mxu0 0.0
    %1849 = vmatpush1.msra.mxu0 0.0
    %1850 = vmatprep.subr.mxu0 0.0
    %1851 = vmatpush1.msra.mxu0 0.0
    %1852 = vmatprep.subr.mxu0 0.0
    %1853 = vmatpush1.msra.mxu0 0.0
    %1854 = vmatprep.subr.mxu0 0.0
    %1855 = vmatpush1.msra.mxu0 0.0
    %1856 = vmatprep.subr.mxu0 0.0
    %1857 = vmatpush1.msra.mxu0 0.0
    %1858 = vmatprep.subr.mxu0 0.0
    %1859 = vmatpush1.msra.mxu0 0.0
    %1860 = vmatprep.subr.mxu0 0.0
    %1861 = vmatpush1.msra.mxu0 0.0
    %1862 = vmatprep.subr.mxu0 0.0
    %1863 = vmatpush1.msra.mxu0 0.0
    %1864 = vmatprep.subr.mxu0 0.0
    %1865 = vmatpush1.msra.mxu0 0.0
    %1866 = vmatprep.subr.mxu0 0.0
    %1867 = vmatpush1.msra.mxu0 0.0
    %1868 = vmatprep.subr.mxu0 0.0
    %1869 = vmatpush1.msra.mxu0 %v53
    %1870 = vmatprep.subr.mxu0 0.0
    %1871 = vmatpush2.msra.mxu0 0.0
    %1872 = vmatprep.subr.mxu0 0.0
    %1873 = vmatpush2.msra.mxu0 0.0
    %1874 = vmatprep.subr.mxu0 0.0
    %1875 = vmatpush2.msra.mxu0 0.0
    %1876 = vmatprep.subr.mxu0 0.0
    %1877 = vmatpush2.msra.mxu0 0.0
    %1878 = vmatprep.subr.mxu0 0.0
    %1879 = vmatpush2.msra.mxu0 0.0
    %1880 = vmatprep.subr.mxu0 0.0
    %1881 = vmatpush2.msra.mxu0 0.0
    %1882 = vmatprep.subr.mxu0 0.0
    %1883 = vmatpush2.msra.mxu0 0.0
    %1884 = vmatprep.subr.mxu0 0.0
    %1885 = vmatpush2.msra.mxu0 0.0
    %1886 = vmatprep.subr.mxu0 0.0
    %1887 = vmatpush2.msra.mxu0 0.0
    %1888 = vmatprep.subr.mxu0 0.0
    %1889 = vmatpush2.msra.mxu0 0.0
    %1890 = vmatprep.subr.mxu0 0.0
    %1891 = vmatpush2.msra.mxu0 0.0
    %1892 = vmatprep.subr.mxu0 0.0
    %1893 = vmatpush2.msra.mxu0 0.0
    %1894 = vmatprep.subr.mxu0 0.0
    %1895 = vmatpush2.msra.mxu0 0.0
    %1896 = vmatprep.subr.mxu0 0.0
    %1897 = vmatpush2.msra.mxu0 0.0
    %1898 = vmatprep.subr.mxu0 0.0
    %1899 = vmatpush2.msra.mxu0 0.0
    %1900 = vmatprep.subr.mxu0 0.0
    %1901 = vmatpush2.msra.mxu0 0.0
    %1902 = vmatprep.mubr.f32.mxu0 0.0
    %1903 = vmatmul.mubr.f32.gmra.mxu0 %v1836
    %v1904 = vpop.f32.mrf.mxu0
    %v1905 = vadd.f32 0.0, %v1904
    %v1906 = vpop.f32.mrf.mxu0
    %1907 = vdwg.mxu0
    %v1909 = vsel %vm302, %v1666, 0
    %1911 = vmatprep.subr.mxu0 0.0
    %1912 = vmatpush1.msra.mxu0 0.0
    %1913 = vmatprep.subr.mxu0 0.0
    %1914 = vmatpush1.msra.mxu0 0.0
    %1915 = vmatprep.subr.mxu0 0.0
    %1916 = vmatpush1.msra.mxu0 0.0
    %1917 = vmatprep.subr.mxu0 0.0
    %1918 = vmatpush1.msra.mxu0 0.0
    %1919 = vmatprep.subr.mxu0 0.0
    %1920 = vmatpush1.msra.mxu0 0.0
    %1921 = vmatprep.subr.mxu0 0.0
    %1922 = vmatpush1.msra.mxu0 0.0
    %1923 = vmatprep.subr.mxu0 0.0
    %1924 = vmatpush1.msra.mxu0 0.0
    %1925 = vmatprep.subr.mxu0 0.0
    %1926 = vmatpush1.msra.mxu0 0.0
    %1927 = vmatprep.subr.mxu0 0.0
    %1928 = vmatpush1.msra.mxu0 0.0
    %1929 = vmatprep.subr.mxu0 0.0
    %1930 = vmatpush1.msra.mxu0 0.0
    %1931 = vmatprep.subr.mxu0 0.0
    %1932 = vmatpush1.msra.mxu0 0.0
    %1933 = vmatprep.subr.mxu0 0.0
    %1934 = vmatpush1.msra.mxu0 0.0
    %1935 = vmatprep.subr.mxu0 0.0
    %1936 = vmatpush1.msra.mxu0 0.0
    %1937 = vmatprep.subr.mxu0 0.0
    %1938 = vmatpush1.msra.mxu0 0.0
    %1939 = vmatprep.subr.mxu0 0.0
    %1940 = vmatpush1.msra.mxu0 0.0
    %1941 = vmatprep.subr.mxu0 0.0
    %1942 = vmatpush1.msra.mxu0 %v52
    %1943 = vmatprep.subr.mxu0 0.0
    %1944 = vmatpush2.msra.mxu0 0.0
    %1945 = vmatprep.subr.mxu0 0.0
    %1946 = vmatpush2.msra.mxu0 0.0
    %1947 = vmatprep.subr.mxu0 0.0
    %1948 = vmatpush2.msra.mxu0 0.0
    %1949 = vmatprep.subr.mxu0 0.0
    %1950 = vmatpush2.msra.mxu0 0.0
    %1951 = vmatprep.subr.mxu0 0.0
    %1952 = vmatpush2.msra.mxu0 0.0
    %1953 = vmatprep.subr.mxu0 0.0
    %1954 = vmatpush2.msra.mxu0 0.0
    %1955 = vmatprep.subr.mxu0 0.0
    %1956 = vmatpush2.msra.mxu0 0.0
    %1957 = vmatprep.subr.mxu0 0.0
    %1958 = vmatpush2.msra.mxu0 0.0
    %1959 = vmatprep.subr.mxu0 0.0
    %1960 = vmatpush2.msra.mxu0 0.0
    %1961 = vmatprep.subr.mxu0 0.0
    %1962 = vmatpush2.msra.mxu0 0.0
    %1963 = vmatprep.subr.mxu0 0.0
    %1964 = vmatpush2.msra.mxu0 0.0
    %1965 = vmatprep.subr.mxu0 0.0
    %1966 = vmatpush2.msra.mxu0 0.0
    %1967 = vmatprep.subr.mxu0 0.0
    %1968 = vmatpush2.msra.mxu0 0.0
    %1969 = vmatprep.subr.mxu0 0.0
    %1970 = vmatpush2.msra.mxu0 0.0
    %1971 = vmatprep.subr.mxu0 0.0
    %1972 = vmatpush2.msra.mxu0 0.0
    %1973 = vmatprep.subr.mxu0 0.0
    %1974 = vmatpush2.msra.mxu0 0.0
    %1975 = vmatprep.mubr.f32.mxu0 0.0
    %1976 = vmatmul.mubr.f32.gmra.mxu0 %v1909
    %v1977 = vpop.f32.mrf.mxu0
    %v1978 = vadd.f32 %v1905, %v1977
    %v1979 = vpop.f32.mrf.mxu0
    %1980 = vdwg.mxu0
    %1981 = vrot.lane.b32.xlu0 %v1360, 112
    %v1982 = vpop.permute.xlu0 %1981
    %1983 = vrot.lane.b32.xlu0 %v1433, 112
    %v1984 = vpop.permute.xlu0 %1983
    %v1985 = vsel %vm302, %v1982, 0
    %v1987 = vsel %vm302, %v1984, 0
    %1989 = vmatprep.subr.mxu0 0.0
    %1990 = vmatpush1.xpose.msra.mxu0 0.0
    %1991 = vmatprep.subr.mxu0 0.0
    %1992 = vmatpush1.xpose.msra.mxu0 0.0
    %1993 = vmatprep.subr.mxu0 0.0
    %1994 = vmatpush1.xpose.msra.mxu0 0.0
    %1995 = vmatprep.subr.mxu0 0.0
    %1996 = vmatpush1.xpose.msra.mxu0 0.0
    %1997 = vmatprep.subr.mxu0 0.0
    %1998 = vmatpush1.xpose.msra.mxu0 0.0
    %1999 = vmatprep.subr.mxu0 0.0
    %2000 = vmatpush1.xpose.msra.mxu0 0.0
    %2001 = vmatprep.subr.mxu0 0.0
    %2002 = vmatpush1.xpose.msra.mxu0 0.0
    %2003 = vmatprep.subr.mxu0 0.0
    %2004 = vmatpush1.xpose.msra.mxu0 0.0
    %2005 = vmatprep.subr.mxu0 0.0
    %2006 = vmatpush1.xpose.msra.mxu0 0.0
    %2007 = vmatprep.subr.mxu0 0.0
    %2008 = vmatpush1.xpose.msra.mxu0 0.0
    %2009 = vmatprep.subr.mxu0 0.0
    %2010 = vmatpush1.xpose.msra.mxu0 0.0
    %2011 = vmatprep.subr.mxu0 0.0
    %2012 = vmatpush1.xpose.msra.mxu0 0.0
    %2013 = vmatprep.subr.mxu0 0.0
    %2014 = vmatpush1.xpose.msra.mxu0 0.0
    %2015 = vmatprep.subr.mxu0 0.0
    %2016 = vmatpush1.xpose.msra.mxu0 0.0
    %2017 = vmatprep.subr.mxu0 0.0
    %2018 = vmatpush1.xpose.msra.mxu0 0.0
    %2019 = vmatprep.subr.mxu0 0.0
    %2020 = vmatpush1.xpose.msra.mxu0 %v1987
    %2021 = vmatprep.subr.mxu0 0.0
    %2022 = vmatpush2.xpose.msra.mxu0 0.0
    %2023 = vmatprep.subr.mxu0 0.0
    %2024 = vmatpush2.xpose.msra.mxu0 0.0
    %2025 = vmatprep.subr.mxu0 0.0
    %2026 = vmatpush2.xpose.msra.mxu0 0.0
    %2027 = vmatprep.subr.mxu0 0.0
    %2028 = vmatpush2.xpose.msra.mxu0 0.0
    %2029 = vmatprep.subr.mxu0 0.0
    %2030 = vmatpush2.xpose.msra.mxu0 0.0
    %2031 = vmatprep.subr.mxu0 0.0
    %2032 = vmatpush2.xpose.msra.mxu0 0.0
    %2033 = vmatprep.subr.mxu0 0.0
    %2034 = vmatpush2.xpose.msra.mxu0 0.0
    %2035 = vmatprep.subr.mxu0 0.0
    %2036 = vmatpush2.xpose.msra.mxu0 0.0
    %2037 = vmatprep.subr.mxu0 0.0
    %2038 = vmatpush2.xpose.msra.mxu0 0.0
    %2039 = vmatprep.subr.mxu0 0.0
    %2040 = vmatpush2.xpose.msra.mxu0 0.0
    %2041 = vmatprep.subr.mxu0 0.0
    %2042 = vmatpush2.xpose.msra.mxu0 0.0
    %2043 = vmatprep.subr.mxu0 0.0
    %2044 = vmatpush2.xpose.msra.mxu0 0.0
    %2045 = vmatprep.subr.mxu0 0.0
    %2046 = vmatpush2.xpose.msra.mxu0 0.0
    %2047 = vmatprep.subr.mxu0 0.0
    %2048 = vmatpush2.xpose.msra.mxu0 0.0
    %2049 = vmatprep.subr.mxu0 0.0
    %2050 = vmatpush2.xpose.msra.mxu0 0.0
    %2051 = vmatprep.subr.mxu0 0.0
    %2052 = vmatpush2.xpose.msra.mxu0 0.0
    %2053 = vmatprep.mubr.f32.mxu0 0.0
    %2054 = vmatmul.mubr.f32.gmra.mxu0 %v1985
    %v2055 = vpop.f32.mrf.mxu0
    %v2056 = vadd.f32 %v87, %v2055
    %v2057 = vpop.f32.mrf.mxu0
    %2058 = vdwg.mxu0
    %v2059 = vsel %vm302, %v2056, -inf
    %2060 = vmax.xlane.f32.xlu0 %v2059
    %v2061 = vpop.xlane.xlu0 %2060
    %v2062 = vsub.f32 %v2056, %v2061
    %v2063 = vmul.f32 %v2062, 1.442695
    %v2064 = vpow.pop %v2063
    %v2065 = vsel %vm302, %v2064, 0.0
    %2066 = vadd.xlane.f32.xlu0 %v2065
    %v2067 = vpop.xlane.xlu0 %2066
    %v2068 = vrcp.pop %v2067
    %v2069 = vmul.f32 %v2064, %v2068
    %2070 = vrot.lane.b32.xlu0 %v1506, 112
    %v2071 = vpop.permute.xlu0 %2070
    %v2074 = vsel %vm302, %v2069, 0
    %2076 = vmatprep.subr.mxu0 0.0
    %2077 = vmatpush1.msra.mxu0 0.0
    %2078 = vmatprep.subr.mxu0 0.0
    %2079 = vmatpush1.msra.mxu0 0.0
    %2080 = vmatprep.subr.mxu0 0.0
    %2081 = vmatpush1.msra.mxu0 0.0
    %2082 = vmatprep.subr.mxu0 0.0
    %2083 = vmatpush1.msra.mxu0 0.0
    %2084 = vmatprep.subr.mxu0 0.0
    %2085 = vmatpush1.msra.mxu0 0.0
    %2086 = vmatprep.subr.mxu0 0.0
    %2087 = vmatpush1.msra.mxu0 0.0
    %2088 = vmatprep.subr.mxu0 0.0
    %2089 = vmatpush1.msra.mxu0 0.0
    %2090 = vmatprep.subr.mxu0 0.0
    %2091 = vmatpush1.msra.mxu0 0.0
    %2092 = vmatprep.subr.mxu0 0.0
    %2093 = vmatpush1.msra.mxu0 0.0
    %2094 = vmatprep.subr.mxu0 0.0
    %2095 = vmatpush1.msra.mxu0 0.0
    %2096 = vmatprep.subr.mxu0 0.0
    %2097 = vmatpush1.msra.mxu0 0.0
    %2098 = vmatprep.subr.mxu0 0.0
    %2099 = vmatpush1.msra.mxu0 0.0
    %2100 = vmatprep.subr.mxu0 0.0
    %2101 = vmatpush1.msra.mxu0 0.0
    %2102 = vmatprep.subr.mxu0 0.0
    %2103 = vmatpush1.msra.mxu0 0.0
    %2104 = vmatprep.subr.mxu0 0.0
    %2105 = vmatpush1.msra.mxu0 0.0
    %2106 = vmatprep.subr.mxu0 0.0
    %2107 = vmatpush1.msra.mxu0 %v2071
    %2108 = vmatprep.subr.mxu0 0.0
    %2109 = vmatpush2.msra.mxu0 0.0
    %2110 = vmatprep.subr.mxu0 0.0
    %2111 = vmatpush2.msra.mxu0 0.0
    %2112 = vmatprep.subr.mxu0 0.0
    %2113 = vmatpush2.msra.mxu0 0.0
    %2114 = vmatprep.subr.mxu0 0.0
    %2115 = vmatpush2.msra.mxu0 0.0
    %2116 = vmatprep.subr.mxu0 0.0
    %2117 = vmatpush2.msra.mxu0 0.0
    %2118 = vmatprep.subr.mxu0 0.0
    %2119 = vmatpush2.msra.mxu0 0.0
    %2120 = vmatprep.subr.mxu0 0.0
    %2121 = vmatpush2.msra.mxu0 0.0
    %2122 = vmatprep.subr.mxu0 0.0
    %2123 = vmatpush2.msra.mxu0 0.0
    %2124 = vmatprep.subr.mxu0 0.0
    %2125 = vmatpush2.msra.mxu0 0.0
    %2126 = vmatprep.subr.mxu0 0.0
    %2127 = vmatpush2.msra.mxu0 0.0
    %2128 = vmatprep.subr.mxu0 0.0
    %2129 = vmatpush2.msra.mxu0 0.0
    %2130 = vmatprep.subr.mxu0 0.0
    %2131 = vmatpush2.msra.mxu0 0.0
    %2132 = vmatprep.subr.mxu0 0.0
    %2133 = vmatpush2.msra.mxu0 0.0
    %2134 = vmatprep.subr.mxu0 0.0
    %2135 = vmatpush2.msra.mxu0 0.0
    %2136 = vmatprep.subr.mxu0 0.0
    %2137 = vmatpush2.msra.mxu0 0.0
    %2138 = vmatprep.subr.mxu0 0.0
    %2139 = vmatpush2.msra.mxu0 0.0
    %2140 = vmatprep.mubr.f32.mxu0 0.0
    %2141 = vmatmul.mubr.f32.gmra.mxu0 %v2074
    %v2142 = vpop.f32.mrf.mxu0
    %v2143 = vadd.f32 0.0, %v2142
    %v2144 = vpop.f32.mrf.mxu0
    %2145 = vdwg.mxu0
    %v2147 = vsel %vm302, %v2143, 0
    %2149 = vmatprep.subr.mxu0 0.0
    %2150 = vmatpush1.msra.mxu0 0.0
    %2151 = vmatprep.subr.mxu0 0.0
    %2152 = vmatpush1.msra.mxu0 0.0
    %2153 = vmatprep.subr.mxu0 0.0
    %2154 = vmatpush1.msra.mxu0 0.0
    %2155 = vmatprep.subr.mxu0 0.0
    %2156 = vmatpush1.msra.mxu0 0.0
    %2157 = vmatprep.subr.mxu0 0.0
    %2158 = vmatpush1.msra.mxu0 0.0
    %2159 = vmatprep.subr.mxu0 0.0
    %2160 = vmatpush1.msra.mxu0 0.0
    %2161 = vmatprep.subr.mxu0 0.0
    %2162 = vmatpush1.msra.mxu0 0.0
    %2163 = vmatprep.subr.mxu0 0.0
    %2164 = vmatpush1.msra.mxu0 0.0
    %2165 = vmatprep.subr.mxu0 0.0
    %2166 = vmatpush1.msra.mxu0 0.0
    %2167 = vmatprep.subr.mxu0 0.0
    %2168 = vmatpush1.msra.mxu0 0.0
    %2169 = vmatprep.subr.mxu0 0.0
    %2170 = vmatpush1.msra.mxu0 0.0
    %2171 = vmatprep.subr.mxu0 0.0
    %2172 = vmatpush1.msra.mxu0 0.0
    %2173 = vmatprep.subr.mxu0 0.0
    %2174 = vmatpush1.msra.mxu0 0.0
    %2175 = vmatprep.subr.mxu0 0.0
    %2176 = vmatpush1.msra.mxu0 0.0
    %2177 = vmatprep.subr.mxu0 0.0
    %2178 = vmatpush1.msra.mxu0 0.0
    %2179 = vmatprep.subr.mxu0 0.0
    %2180 = vmatpush1.msra.mxu0 %v54
    %2181 = vmatprep.subr.mxu0 0.0
    %2182 = vmatpush2.msra.mxu0 0.0
    %2183 = vmatprep.subr.mxu0 0.0
    %2184 = vmatpush2.msra.mxu0 0.0
    %2185 = vmatprep.subr.mxu0 0.0
    %2186 = vmatpush2.msra.mxu0 0.0
    %2187 = vmatprep.subr.mxu0 0.0
    %2188 = vmatpush2.msra.mxu0 0.0
    %2189 = vmatprep.subr.mxu0 0.0
    %2190 = vmatpush2.msra.mxu0 0.0
    %2191 = vmatprep.subr.mxu0 0.0
    %2192 = vmatpush2.msra.mxu0 0.0
    %2193 = vmatprep.subr.mxu0 0.0
    %2194 = vmatpush2.msra.mxu0 0.0
    %2195 = vmatprep.subr.mxu0 0.0
    %2196 = vmatpush2.msra.mxu0 0.0
    %2197 = vmatprep.subr.mxu0 0.0
    %2198 = vmatpush2.msra.mxu0 0.0
    %2199 = vmatprep.subr.mxu0 0.0
    %2200 = vmatpush2.msra.mxu0 0.0
    %2201 = vmatprep.subr.mxu0 0.0
    %2202 = vmatpush2.msra.mxu0 0.0
    %2203 = vmatprep.subr.mxu0 0.0
    %2204 = vmatpush2.msra.mxu0 0.0
    %2205 = vmatprep.subr.mxu0 0.0
    %2206 = vmatpush2.msra.mxu0 0.0
    %2207 = vmatprep.subr.mxu0 0.0
    %2208 = vmatpush2.msra.mxu0 0.0
    %2209 = vmatprep.subr.mxu0 0.0
    %2210 = vmatpush2.msra.mxu0 0.0
    %2211 = vmatprep.subr.mxu0 0.0
    %2212 = vmatpush2.msra.mxu0 0.0
    %2213 = vmatprep.mubr.f32.mxu0 0.0
    %2214 = vmatmul.mubr.f32.gmra.mxu0 %v2147
    %v2215 = vpop.f32.mrf.mxu0
    %v2216 = vadd.f32 0.0, %v2215
    %v2217 = vpop.f32.mrf.mxu0
    %2218 = vdwg.mxu0
    %v2219 = vadd.f32 %v1978, %v2216
    %2220 = vrot.lane.b32.xlu0 %v1360, 104
    %v2221 = vpop.permute.xlu0 %2220
    %2222 = vrot.lane.b32.xlu0 %v1433, 104
    %v2223 = vpop.permute.xlu0 %2222
    %v2224 = vsel %vm302, %v2221, 0
    %v2226 = vsel %vm302, %v2223, 0
    %2228 = vmatprep.subr.mxu0 0.0
    %2229 = vmatpush1.xpose.msra.mxu0 0.0
    %2230 = vmatprep.subr.mxu0 0.0
    %2231 = vmatpush1.xpose.msra.mxu0 0.0
    %2232 = vmatprep.subr.mxu0 0.0
    %2233 = vmatpush1.xpose.msra.mxu0 0.0
    %2234 = vmatprep.subr.mxu0 0.0
    %2235 = vmatpush1.xpose.msra.mxu0 0.0
    %2236 = vmatprep.subr.mxu0 0.0
    %2237 = vmatpush1.xpose.msra.mxu0 0.0
    %2238 = vmatprep.subr.mxu0 0.0
    %2239 = vmatpush1.xpose.msra.mxu0 0.0
    %2240 = vmatprep.subr.mxu0 0.0
    %2241 = vmatpush1.xpose.msra.mxu0 0.0
    %2242 = vmatprep.subr.mxu0 0.0
    %2243 = vmatpush1.xpose.msra.mxu0 0.0
    %2244 = vmatprep.subr.mxu0 0.0
    %2245 = vmatpush1.xpose.msra.mxu0 0.0
    %2246 = vmatprep.subr.mxu0 0.0
    %2247 = vmatpush1.xpose.msra.mxu0 0.0
    %2248 = vmatprep.subr.mxu0 0.0
    %2249 = vmatpush1.xpose.msra.mxu0 0.0
    %2250 = vmatprep.subr.mxu0 0.0
    %2251 = vmatpush1.xpose.msra.mxu0 0.0
    %2252 = vmatprep.subr.mxu0 0.0
    %2253 = vmatpush1.xpose.msra.mxu0 0.0
    %2254 = vmatprep.subr.mxu0 0.0
    %2255 = vmatpush1.xpose.msra.mxu0 0.0
    %2256 = vmatprep.subr.mxu0 0.0
    %2257 = vmatpush1.xpose.msra.mxu0 0.0
    %2258 = vmatprep.subr.mxu0 0.0
    %2259 = vmatpush1.xpose.msra.mxu0 %v2226
    %2260 = vmatprep.subr.mxu0 0.0
    %2261 = vmatpush2.xpose.msra.mxu0 0.0
    %2262 = vmatprep.subr.mxu0 0.0
    %2263 = vmatpush2.xpose.msra.mxu0 0.0
    %2264 = vmatprep.subr.mxu0 0.0
    %2265 = vmatpush2.xpose.msra.mxu0 0.0
    %2266 = vmatprep.subr.mxu0 0.0
    %2267 = vmatpush2.xpose.msra.mxu0 0.0
    %2268 = vmatprep.subr.mxu0 0.0
    %2269 = vmatpush2.xpose.msra.mxu0 0.0
    %2270 = vmatprep.subr.mxu0 0.0
    %2271 = vmatpush2.xpose.msra.mxu0 0.0
    %2272 = vmatprep.subr.mxu0 0.0
    %2273 = vmatpush2.xpose.msra.mxu0 0.0
    %2274 = vmatprep.subr.mxu0 0.0
    %2275 = vmatpush2.xpose.msra.mxu0 0.0
    %2276 = vmatprep.subr.mxu0 0.0
    %2277 = vmatpush2.xpose.msra.mxu0 0.0
    %2278 = vmatprep.subr.mxu0 0.0
    %2279 = vmatpush2.xpose.msra.mxu0 0.0
    %2280 = vmatprep.subr.mxu0 0.0
    %2281 = vmatpush2.xpose.msra.mxu0 0.0
    %2282 = vmatprep.subr.mxu0 0.0
    %2283 = vmatpush2.xpose.msra.mxu0 0.0
    %2284 = vmatprep.subr.mxu0 0.0
    %2285 = vmatpush2.xpose.msra.mxu0 0.0
    %2286 = vmatprep.subr.mxu0 0.0
    %2287 = vmatpush2.xpose.msra.mxu0 0.0
    %2288 = vmatprep.subr.mxu0 0.0
    %2289 = vmatpush2.xpose.msra.mxu0 0.0
    %2290 = vmatprep.subr.mxu0 0.0
    %2291 = vmatpush2.xpose.msra.mxu0 0.0
    %2292 = vmatprep.mubr.f32.mxu0 0.0
    %2293 = vmatmul.mubr.f32.gmra.mxu0 %v2224
    %v2294 = vpop.f32.mrf.mxu0
    %v2295 = vadd.f32 %v87, %v2294
    %v2296 = vpop.f32.mrf.mxu0
    %2297 = vdwg.mxu0
    %v2298 = vsel %vm302, %v2295, -inf
    %2299 = vmax.xlane.f32.xlu0 %v2298
    %v2300 = vpop.xlane.xlu0 %2299
    %v2301 = vsub.f32 %v2295, %v2300
    %v2302 = vmul.f32 %v2301, 1.442695
    %v2303 = vpow.pop %v2302
    %v2304 = vsel %vm302, %v2303, 0.0
    %2305 = vadd.xlane.f32.xlu0 %v2304
    %v2306 = vpop.xlane.xlu0 %2305
    %v2307 = vrcp.pop %v2306
    %v2308 = vmul.f32 %v2303, %v2307
    %2309 = vrot.lane.b32.xlu0 %v1506, 104
    %v2310 = vpop.permute.xlu0 %2309
    %v2313 = vsel %vm302, %v2308, 0
    %2315 = vmatprep.subr.mxu0 0.0
    %2316 = vmatpush1.msra.mxu0 0.0
    %2317 = vmatprep.subr.mxu0 0.0
    %2318 = vmatpush1.msra.mxu0 0.0
    %2319 = vmatprep.subr.mxu0 0.0
    %2320 = vmatpush1.msra.mxu0 0.0
    %2321 = vmatprep.subr.mxu0 0.0
    %2322 = vmatpush1.msra.mxu0 0.0
    %2323 = vmatprep.subr.mxu0 0.0
    %2324 = vmatpush1.msra.mxu0 0.0
    %2325 = vmatprep.subr.mxu0 0.0
    %2326 = vmatpush1.msra.mxu0 0.0
    %2327 = vmatprep.subr.mxu0 0.0
    %2328 = vmatpush1.msra.mxu0 0.0
    %2329 = vmatprep.subr.mxu0 0.0
    %2330 = vmatpush1.msra.mxu0 0.0
    %2331 = vmatprep.subr.mxu0 0.0
    %2332 = vmatpush1.msra.mxu0 0.0
    %2333 = vmatprep.subr.mxu0 0.0
    %2334 = vmatpush1.msra.mxu0 0.0
    %2335 = vmatprep.subr.mxu0 0.0
    %2336 = vmatpush1.msra.mxu0 0.0
    %2337 = vmatprep.subr.mxu0 0.0
    %2338 = vmatpush1.msra.mxu0 0.0
    %2339 = vmatprep.subr.mxu0 0.0
    %2340 = vmatpush1.msra.mxu0 0.0
    %2341 = vmatprep.subr.mxu0 0.0
    %2342 = vmatpush1.msra.mxu0 0.0
    %2343 = vmatprep.subr.mxu0 0.0
    %2344 = vmatpush1.msra.mxu0 0.0
    %2345 = vmatprep.subr.mxu0 0.0
    %2346 = vmatpush1.msra.mxu0 %v2310
    %2347 = vmatprep.subr.mxu0 0.0
    %2348 = vmatpush2.msra.mxu0 0.0
    %2349 = vmatprep.subr.mxu0 0.0
    %2350 = vmatpush2.msra.mxu0 0.0
    %2351 = vmatprep.subr.mxu0 0.0
    %2352 = vmatpush2.msra.mxu0 0.0
    %2353 = vmatprep.subr.mxu0 0.0
    %2354 = vmatpush2.msra.mxu0 0.0
    %2355 = vmatprep.subr.mxu0 0.0
    %2356 = vmatpush2.msra.mxu0 0.0
    %2357 = vmatprep.subr.mxu0 0.0
    %2358 = vmatpush2.msra.mxu0 0.0
    %2359 = vmatprep.subr.mxu0 0.0
    %2360 = vmatpush2.msra.mxu0 0.0
    %2361 = vmatprep.subr.mxu0 0.0
    %2362 = vmatpush2.msra.mxu0 0.0
    %2363 = vmatprep.subr.mxu0 0.0
    %2364 = vmatpush2.msra.mxu0 0.0
    %2365 = vmatprep.subr.mxu0 0.0
    %2366 = vmatpush2.msra.mxu0 0.0
    %2367 = vmatprep.subr.mxu0 0.0
    %2368 = vmatpush2.msra.mxu0 0.0
    %2369 = vmatprep.subr.mxu0 0.0
    %2370 = vmatpush2.msra.mxu0 0.0
    %2371 = vmatprep.subr.mxu0 0.0
    %2372 = vmatpush2.msra.mxu0 0.0
    %2373 = vmatprep.subr.mxu0 0.0
    %2374 = vmatpush2.msra.mxu0 0.0
    %2375 = vmatprep.subr.mxu0 0.0
    %2376 = vmatpush2.msra.mxu0 0.0
    %2377 = vmatprep.subr.mxu0 0.0
    %2378 = vmatpush2.msra.mxu0 0.0
    %2379 = vmatprep.mubr.f32.mxu0 0.0
    %2380 = vmatmul.mubr.f32.gmra.mxu0 %v2313
    %v2381 = vpop.f32.mrf.mxu0
    %v2382 = vadd.f32 0.0, %v2381
    %v2383 = vpop.f32.mrf.mxu0
    %2384 = vdwg.mxu0
    %v2386 = vsel %vm302, %v2382, 0
    %2388 = vmatprep.subr.mxu0 0.0
    %2389 = vmatpush1.msra.mxu0 0.0
    %2390 = vmatprep.subr.mxu0 0.0
    %2391 = vmatpush1.msra.mxu0 0.0
    %2392 = vmatprep.subr.mxu0 0.0
    %2393 = vmatpush1.msra.mxu0 0.0
    %2394 = vmatprep.subr.mxu0 0.0
    %2395 = vmatpush1.msra.mxu0 0.0
    %2396 = vmatprep.subr.mxu0 0.0
    %2397 = vmatpush1.msra.mxu0 0.0
    %2398 = vmatprep.subr.mxu0 0.0
    %2399 = vmatpush1.msra.mxu0 0.0
    %2400 = vmatprep.subr.mxu0 0.0
    %2401 = vmatpush1.msra.mxu0 0.0
    %2402 = vmatprep.subr.mxu0 0.0
    %2403 = vmatpush1.msra.mxu0 0.0
    %2404 = vmatprep.subr.mxu0 0.0
    %2405 = vmatpush1.msra.mxu0 0.0
    %2406 = vmatprep.subr.mxu0 0.0
    %2407 = vmatpush1.msra.mxu0 0.0
    %2408 = vmatprep.subr.mxu0 0.0
    %2409 = vmatpush1.msra.mxu0 0.0
    %2410 = vmatprep.subr.mxu0 0.0
    %2411 = vmatpush1.msra.mxu0 0.0
    %2412 = vmatprep.subr.mxu0 0.0
    %2413 = vmatpush1.msra.mxu0 0.0
    %2414 = vmatprep.subr.mxu0 0.0
    %2415 = vmatpush1.msra.mxu0 0.0
    %2416 = vmatprep.subr.mxu0 0.0
    %2417 = vmatpush1.msra.mxu0 0.0
    %2418 = vmatprep.subr.mxu0 0.0
    %2419 = vmatpush1.msra.mxu0 %v55
    %2420 = vmatprep.subr.mxu0 0.0
    %2421 = vmatpush2.msra.mxu0 0.0
    %2422 = vmatprep.subr.mxu0 0.0
    %2423 = vmatpush2.msra.mxu0 0.0
    %2424 = vmatprep.subr.mxu0 0.0
    %2425 = vmatpush2.msra.mxu0 0.0
    %2426 = vmatprep.subr.mxu0 0.0
    %2427 = vmatpush2.msra.mxu0 0.0
    %2428 = vmatprep.subr.mxu0 0.0
    %2429 = vmatpush2.msra.mxu0 0.0
    %2430 = vmatprep.subr.mxu0 0.0
    %2431 = vmatpush2.msra.mxu0 0.0
    %2432 = vmatprep.subr.mxu0 0.0
    %2433 = vmatpush2.msra.mxu0 0.0
    %2434 = vmatprep.subr.mxu0 0.0
    %2435 = vmatpush2.msra.mxu0 0.0
    %2436 = vmatprep.subr.mxu0 0.0
    %2437 = vmatpush2.msra.mxu0 0.0
    %2438 = vmatprep.subr.mxu0 0.0
    %2439 = vmatpush2.msra.mxu0 0.0
    %2440 = vmatprep.subr.mxu0 0.0
    %2441 = vmatpush2.msra.mxu0 0.0
    %2442 = vmatprep.subr.mxu0 0.0
    %2443 = vmatpush2.msra.mxu0 0.0
    %2444 = vmatprep.subr.mxu0 0.0
    %2445 = vmatpush2.msra.mxu0 0.0
    %2446 = vmatprep.subr.mxu0 0.0
    %2447 = vmatpush2.msra.mxu0 0.0
    %2448 = vmatprep.subr.mxu0 0.0
    %2449 = vmatpush2.msra.mxu0 0.0
    %2450 = vmatprep.subr.mxu0 0.0
    %2451 = vmatpush2.msra.mxu0 0.0
    %2452 = vmatprep.mubr.f32.mxu0 0.0
    %2453 = vmatmul.mubr.f32.gmra.mxu0 %v2386
    %v2454 = vpop.f32.mrf.mxu0
    %v2455 = vadd.f32 0.0, %v2454
    %v2456 = vpop.f32.mrf.mxu0
    %2457 = vdwg.mxu0
    %v2458 = vadd.f32 %v2219, %v2455
    %v2459 = vlaneseq
    %v2460 = vshrl.u32 %v2459, 7
    %v2461 = vsub.s32 0, %v2460
    %v2462 = vrot.slane %v75, %v2461
    %v2463 = vadd.f32 %v2458, %v2462
    %v2464 = vadd.f32 %v2463, %v1289
    %v2465 = vsel %vm88, %v2464, 0.0
    %2466 = vadd.xlane.f32.xlu0 %v2465
    %v2467 = vpop.xlane.xlu0 %2466
    %v2468 = vmul.f32 %v2467, %v1262
    %v2469 = vsub.f32 %v2464, %v2468
    %v2470 = vmul.f32 %v2469, %v2469
    %v2471 = vsel %vm88, %v2470, 0.0
    %2472 = vadd.xlane.f32.xlu0 %v2471
    %v2473 = vpop.xlane.xlu0 %2472
    %v2474 = vmul.f32 %v2473, %v1262
    %v2475 = vadd.f32 %v2474, 1e-05
    %v2476 = vrsqrt.pop %v2475
    %v2477 = vmul.f32 %v2475, %v2476
    %vm2478 = vcmp.eq.f32.partialorder %v2475, inf
    %v2479 = vsel %vm2478, %v2475, %v2477
    %vm2480 = vcmp.eq.f32.partialorder %v2475, 0.0
    %v2481 = vand.u32 %v2475, 2147483648
    %v2482 = vsel %vm2480, %v2481, %v2479
    %v2483 = vrcp.pop %v2482
    %v2484 = vmul.f32 %v2469, %v2483
    %v2485 = vlaneseq
    %v2486 = vshrl.u32 %v2485, 7
    %v2487 = vsub.s32 0, %v2486
    %v2488 = vrot.slane %v76, %v2487
    %v2489 = vmul.f32 %v2484, %v2488
    %v2490 = vlaneseq
    %v2491 = vshrl.u32 %v2490, 7
    %v2492 = vsub.s32 0, %v2491
    %v2493 = vrot.slane %v77, %v2492
    %v2494 = vadd.f32 %v2489, %v2493
    %v2495 = vlaneseq
    %v2496 = vshrl.u32 %v2495, 7
    %v2497 = vsub.s32 0, %v2496
    %v2498 = vrot.slane %v78, %v2497
    %v2500 = vsel %vm88, %v2494, 0
    %2502 = vmatprep.subr.mxu0 0.0
    %2503 = vmatpush1.msra.mxu0 0.0
    %2504 = vmatprep.subr.mxu0 0.0
    %2505 = vmatpush1.msra.mxu0 0.0
    %2506 = vmatprep.subr.mxu0 0.0
    %2507 = vmatpush1.msra.mxu0 0.0
    %2508 = vmatprep.subr.mxu0 0.0
    %2509 = vmatpush1.msra.mxu0 0.0
    %2510 = vmatprep.subr.mxu0 0.0
    %2511 = vmatpush1.msra.mxu0 0.0
    %2512 = vmatprep.subr.mxu0 0.0
    %2513 = vmatpush1.msra.mxu0 0.0
    %2514 = vmatprep.subr.mxu0 0.0
    %2515 = vmatpush1.msra.mxu0 0.0
    %2516 = vmatprep.subr.mxu0 0.0
    %2517 = vmatpush1.msra.mxu0 0.0
    %2518 = vmatprep.subr.mxu0 0.0
    %2519 = vmatpush1.msra.mxu0 0.0
    %2520 = vmatprep.subr.mxu0 0.0
    %2521 = vmatpush1.msra.mxu0 0.0
    %2522 = vmatprep.subr.mxu0 0.0
    %2523 = vmatpush1.msra.mxu0 0.0
    %2524 = vmatprep.subr.mxu0 0.0
    %2525 = vmatpush1.msra.mxu0 0.0
    %2526 = vmatprep.subr.mxu0 0.0
    %2527 = vmatpush1.msra.mxu0 %v59
    %2528 = vmatprep.subr.mxu0 0.0
    %2529 = vmatpush1.msra.mxu0 %v58
    %2530 = vmatprep.subr.mxu0 0.0
    %2531 = vmatpush1.msra.mxu0 %v57
    %2532 = vmatprep.subr.mxu0 0.0
    %2533 = vmatpush1.msra.mxu0 %v56
    %2534 = vmatprep.subr.mxu0 0.0
    %2535 = vmatpush2.msra.mxu0 0.0
    %2536 = vmatprep.subr.mxu0 0.0
    %2537 = vmatpush2.msra.mxu0 0.0
    %2538 = vmatprep.subr.mxu0 0.0
    %2539 = vmatpush2.msra.mxu0 0.0
    %2540 = vmatprep.subr.mxu0 0.0
    %2541 = vmatpush2.msra.mxu0 0.0
    %2542 = vmatprep.subr.mxu0 0.0
    %2543 = vmatpush2.msra.mxu0 0.0
    %2544 = vmatprep.subr.mxu0 0.0
    %2545 = vmatpush2.msra.mxu0 0.0
    %2546 = vmatprep.subr.mxu0 0.0
    %2547 = vmatpush2.msra.mxu0 0.0
    %2548 = vmatprep.subr.mxu0 0.0
    %2549 = vmatpush2.msra.mxu0 0.0
    %2550 = vmatprep.subr.mxu0 0.0
    %2551 = vmatpush2.msra.mxu0 0.0
    %2552 = vmatprep.subr.mxu0 0.0
    %2553 = vmatpush2.msra.mxu0 0.0
    %2554 = vmatprep.subr.mxu0 0.0
    %2555 = vmatpush2.msra.mxu0 0.0
    %2556 = vmatprep.subr.mxu0 0.0
    %2557 = vmatpush2.msra.mxu0 0.0
    %2558 = vmatprep.subr.mxu0 0.0
    %2559 = vmatpush2.msra.mxu0 0.0
    %2560 = vmatprep.subr.mxu0 0.0
    %2561 = vmatpush2.msra.mxu0 0.0
    %2562 = vmatprep.subr.mxu0 0.0
    %2563 = vmatpush2.msra.mxu0 0.0
    %2564 = vmatprep.subr.mxu0 0.0
    %2565 = vmatpush2.msra.mxu0 0.0
    %2566 = vmatprep.mubr.f32.mxu0 0.0
    %2567 = vmatmul.mubr.f32.gmra.mxu0 %v2500
    %v2568 = vpop.f32.mrf.mxu0
    %v2569 = vadd.f32 %v2498, %v2568
    %v2570 = vpop.f32.mrf.mxu0
    %2571 = vdwg.mxu0
    %v2572 = vmax.f32 %v2569, 0.0
    %v2573 = vlaneseq
    %v2574 = vshrl.u32 %v2573, 7
    %v2575 = vsub.s32 0, %v2574
    %v2576 = vrot.slane %v79, %v2575
    %2577 = vmatprep.subr.mxu0 0.0
    %2578 = vmatpush1.msra.mxu0 0.0
    %2579 = vmatprep.subr.mxu0 0.0
    %2580 = vmatpush1.msra.mxu0 0.0
    %2581 = vmatprep.subr.mxu0 0.0
    %2582 = vmatpush1.msra.mxu0 0.0
    %2583 = vmatprep.subr.mxu0 0.0
    %2584 = vmatpush1.msra.mxu0 0.0
    %2585 = vmatprep.subr.mxu0 0.0
    %2586 = vmatpush1.msra.mxu0 0.0
    %2587 = vmatprep.subr.mxu0 0.0
    %2588 = vmatpush1.msra.mxu0 0.0
    %2589 = vmatprep.subr.mxu0 0.0
    %2590 = vmatpush1.msra.mxu0 0.0
    %2591 = vmatprep.subr.mxu0 0.0
    %2592 = vmatpush1.msra.mxu0 0.0
    %2593 = vmatprep.subr.mxu0 0.0
    %2594 = vmatpush1.msra.mxu0 0.0
    %2595 = vmatprep.subr.mxu0 0.0
    %2596 = vmatpush1.msra.mxu0 0.0
    %2597 = vmatprep.subr.mxu0 0.0
    %2598 = vmatpush1.msra.mxu0 0.0
    %2599 = vmatprep.subr.mxu0 0.0
    %2600 = vmatpush1.msra.mxu0 0.0
    %2601 = vmatprep.subr.mxu0 0.0
    %2602 = vmatpush1.msra.mxu0 %v63
    %2603 = vmatprep.subr.mxu0 0.0
    %2604 = vmatpush1.msra.mxu0 %v62
    %2605 = vmatprep.subr.mxu0 0.0
    %2606 = vmatpush1.msra.mxu0 %v61
    %2607 = vmatprep.subr.mxu0 0.0
    %2608 = vmatpush1.msra.mxu0 %v60
    %2609 = vmatprep.subr.mxu0 0.0
    %2610 = vmatpush2.msra.mxu0 0.0
    %2611 = vmatprep.subr.mxu0 0.0
    %2612 = vmatpush2.msra.mxu0 0.0
    %2613 = vmatprep.subr.mxu0 0.0
    %2614 = vmatpush2.msra.mxu0 0.0
    %2615 = vmatprep.subr.mxu0 0.0
    %2616 = vmatpush2.msra.mxu0 0.0
    %2617 = vmatprep.subr.mxu0 0.0
    %2618 = vmatpush2.msra.mxu0 0.0
    %2619 = vmatprep.subr.mxu0 0.0
    %2620 = vmatpush2.msra.mxu0 0.0
    %2621 = vmatprep.subr.mxu0 0.0
    %2622 = vmatpush2.msra.mxu0 0.0
    %2623 = vmatprep.subr.mxu0 0.0
    %2624 = vmatpush2.msra.mxu0 0.0
    %2625 = vmatprep.subr.mxu0 0.0
    %2626 = vmatpush2.msra.mxu0 0.0
    %2627 = vmatprep.subr.mxu0 0.0
    %2628 = vmatpush2.msra.mxu0 0.0
    %2629 = vmatprep.subr.mxu0 0.0
    %2630 = vmatpush2.msra.mxu0 0.0
    %2631 = vmatprep.subr.mxu0 0.0
    %2632 = vmatpush2.msra.mxu0 0.0
    %2633 = vmatprep.subr.mxu0 0.0
    %2634 = vmatpush2.msra.mxu0 0.0
    %2635 = vmatprep.subr.mxu0 0.0
    %2636 = vmatpush2.msra.mxu0 0.0
    %2637 = vmatprep.subr.mxu0 0.0
    %2638 = vmatpush2.msra.mxu0 0.0
    %2639 = vmatprep.subr.mxu0 0.0
    %2640 = vmatpush2.msra.mxu0 0.0
    %2641 = vmatprep.mubr.f32.mxu0 0.0
    %2642 = vmatmul.mubr.f32.gmra.mxu0 %v2500
    %v2643 = vpop.f32.mrf.mxu0
    %v2644 = vadd.f32 %v2576, %v2643
    %v2645 = vpop.f32.mrf.mxu0
    %2646 = vdwg.mxu0
    %v2647 = vmax.f32 %v2644, 0.0
    %v2649 = vsel %vm88, %v2647, 0
    %2651 = vmatprep.subr.mxu0 0.0
    %2652 = vmatpush1.msra.mxu0 0.0
    %2653 = vmatprep.subr.mxu0 0.0
    %2654 = vmatpush1.msra.mxu0 0.0
    %2655 = vmatprep.subr.mxu0 0.0
    %2656 = vmatpush1.msra.mxu0 0.0
    %2657 = vmatprep.subr.mxu0 0.0
    %2658 = vmatpush1.msra.mxu0 0.0
    %2659 = vmatprep.subr.mxu0 0.0
    %2660 = vmatpush1.msra.mxu0 0.0
    %2661 = vmatprep.subr.mxu0 0.0
    %2662 = vmatpush1.msra.mxu0 0.0
    %2663 = vmatprep.subr.mxu0 0.0
    %2664 = vmatpush1.msra.mxu0 0.0
    %2665 = vmatprep.subr.mxu0 0.0
    %2666 = vmatpush1.msra.mxu0 0.0
    %2667 = vmatprep.subr.mxu0 0.0
    %2668 = vmatpush1.msra.mxu0 0.0
    %2669 = vmatprep.subr.mxu0 0.0
    %2670 = vmatpush1.msra.mxu0 0.0
    %2671 = vmatprep.subr.mxu0 0.0
    %2672 = vmatpush1.msra.mxu0 0.0
    %2673 = vmatprep.subr.mxu0 0.0
    %2674 = vmatpush1.msra.mxu0 0.0
    %2675 = vmatprep.subr.mxu0 0.0
    %2676 = vmatpush1.msra.mxu0 %v71
    %2677 = vmatprep.subr.mxu0 0.0
    %2678 = vmatpush1.msra.mxu0 %v70
    %2679 = vmatprep.subr.mxu0 0.0
    %2680 = vmatpush1.msra.mxu0 %v69
    %2681 = vmatprep.subr.mxu0 0.0
    %2682 = vmatpush1.msra.mxu0 %v68
    %2683 = vmatprep.subr.mxu0 0.0
    %2684 = vmatpush2.msra.mxu0 0.0
    %2685 = vmatprep.subr.mxu0 0.0
    %2686 = vmatpush2.msra.mxu0 0.0
    %2687 = vmatprep.subr.mxu0 0.0
    %2688 = vmatpush2.msra.mxu0 0.0
    %2689 = vmatprep.subr.mxu0 0.0
    %2690 = vmatpush2.msra.mxu0 0.0
    %2691 = vmatprep.subr.mxu0 0.0
    %2692 = vmatpush2.msra.mxu0 0.0
    %2693 = vmatprep.subr.mxu0 0.0
    %2694 = vmatpush2.msra.mxu0 0.0
    %2695 = vmatprep.subr.mxu0 0.0
    %2696 = vmatpush2.msra.mxu0 0.0
    %2697 = vmatprep.subr.mxu0 0.0
    %2698 = vmatpush2.msra.mxu0 0.0
    %2699 = vmatprep.subr.mxu0 0.0
    %2700 = vmatpush2.msra.mxu0 0.0
    %2701 = vmatprep.subr.mxu0 0.0
    %2702 = vmatpush2.msra.mxu0 0.0
    %2703 = vmatprep.subr.mxu0 0.0
    %2704 = vmatpush2.msra.mxu0 0.0
    %2705 = vmatprep.subr.mxu0 0.0
    %2706 = vmatpush2.msra.mxu0 0.0
    %2707 = vmatprep.subr.mxu0 0.0
    %2708 = vmatpush2.msra.mxu0 0.0
    %2709 = vmatprep.subr.mxu0 0.0
    %2710 = vmatpush2.msra.mxu0 0.0
    %2711 = vmatprep.subr.mxu0 0.0
    %2712 = vmatpush2.msra.mxu0 0.0
    %2713 = vmatprep.subr.mxu0 0.0
    %2714 = vmatpush2.msra.mxu0 0.0
    %2715 = vmatprep.mubr.f32.mxu0 0.0
    %2716 = vmatmul.mubr.f32.gmra.mxu0 %v2649
    %v2717 = vpop.f32.mrf.mxu0
    %v2718 = vadd.f32 0.0, %v2717
    %v2719 = vpop.f32.mrf.mxu0
    %2720 = vdwg.mxu0
    %v2722 = vsel %vm88, %v2572, 0
    %2724 = vmatprep.subr.mxu0 0.0
    %2725 = vmatpush1.msra.mxu0 0.0
    %2726 = vmatprep.subr.mxu0 0.0
    %2727 = vmatpush1.msra.mxu0 0.0
    %2728 = vmatprep.subr.mxu0 0.0
    %2729 = vmatpush1.msra.mxu0 0.0
    %2730 = vmatprep.subr.mxu0 0.0
    %2731 = vmatpush1.msra.mxu0 0.0
    %2732 = vmatprep.subr.mxu0 0.0
    %2733 = vmatpush1.msra.mxu0 0.0
    %2734 = vmatprep.subr.mxu0 0.0
    %2735 = vmatpush1.msra.mxu0 0.0
    %2736 = vmatprep.subr.mxu0 0.0
    %2737 = vmatpush1.msra.mxu0 0.0
    %2738 = vmatprep.subr.mxu0 0.0
    %2739 = vmatpush1.msra.mxu0 0.0
    %2740 = vmatprep.subr.mxu0 0.0
    %2741 = vmatpush1.msra.mxu0 0.0
    %2742 = vmatprep.subr.mxu0 0.0
    %2743 = vmatpush1.msra.mxu0 0.0
    %2744 = vmatprep.subr.mxu0 0.0
    %2745 = vmatpush1.msra.mxu0 0.0
    %2746 = vmatprep.subr.mxu0 0.0
    %2747 = vmatpush1.msra.mxu0 0.0
    %2748 = vmatprep.subr.mxu0 0.0
    %2749 = vmatpush1.msra.mxu0 %v67
    %2750 = vmatprep.subr.mxu0 0.0
    %2751 = vmatpush1.msra.mxu0 %v66
    %2752 = vmatprep.subr.mxu0 0.0
    %2753 = vmatpush1.msra.mxu0 %v65
    %2754 = vmatprep.subr.mxu0 0.0
    %2755 = vmatpush1.msra.mxu0 %v64
    %2756 = vmatprep.subr.mxu0 0.0
    %2757 = vmatpush2.msra.mxu0 0.0
    %2758 = vmatprep.subr.mxu0 0.0
    %2759 = vmatpush2.msra.mxu0 0.0
    %2760 = vmatprep.subr.mxu0 0.0
    %2761 = vmatpush2.msra.mxu0 0.0
    %2762 = vmatprep.subr.mxu0 0.0
    %2763 = vmatpush2.msra.mxu0 0.0
    %2764 = vmatprep.subr.mxu0 0.0
    %2765 = vmatpush2.msra.mxu0 0.0
    %2766 = vmatprep.subr.mxu0 0.0
    %2767 = vmatpush2.msra.mxu0 0.0
    %2768 = vmatprep.subr.mxu0 0.0
    %2769 = vmatpush2.msra.mxu0 0.0
    %2770 = vmatprep.subr.mxu0 0.0
    %2771 = vmatpush2.msra.mxu0 0.0
    %2772 = vmatprep.subr.mxu0 0.0
    %2773 = vmatpush2.msra.mxu0 0.0
    %2774 = vmatprep.subr.mxu0 0.0
    %2775 = vmatpush2.msra.mxu0 0.0
    %2776 = vmatprep.subr.mxu0 0.0
    %2777 = vmatpush2.msra.mxu0 0.0
    %2778 = vmatprep.subr.mxu0 0.0
    %2779 = vmatpush2.msra.mxu0 0.0
    %2780 = vmatprep.subr.mxu0 0.0
    %2781 = vmatpush2.msra.mxu0 0.0
    %2782 = vmatprep.subr.mxu0 0.0
    %2783 = vmatpush2.msra.mxu0 0.0
    %2784 = vmatprep.subr.mxu0 0.0
    %2785 = vmatpush2.msra.mxu0 0.0
    %2786 = vmatprep.subr.mxu0 0.0
    %2787 = vmatpush2.msra.mxu0 0.0
    %2788 = vmatprep.mubr.f32.mxu0 0.0
    %2789 = vmatmul.mubr.f32.gmra.mxu0 %v2722
    %v2790 = vpop.f32.mrf.mxu0
    %v2791 = vadd.f32 %v2718, %v2790
    %v2792 = vpop.f32.mrf.mxu0
    %2793 = vdwg.mxu0
    %v2794 = vlaneseq
    %v2795 = vshrl.u32 %v2794, 7
    %v2796 = vsub.s32 0, %v2795
    %v2797 = vrot.slane %v80, %v2796
    %v2798 = vadd.f32 %v2791, %v2797
    %v2799 = vadd.f32 %v2798, %v2494
    %v2800 = vsel %vm88, %v2799, 0.0
    %2801 = vadd.xlane.f32.xlu0 %v2800
    %v2802 = vpop.xlane.xlu0 %2801
    %v2803 = vmul.f32 %v2802, %v1262
    %v2804 = vsub.f32 %v2799, %v2803
    %v2805 = vmul.f32 %v2804, %v2804
    %v2806 = vsel %vm88, %v2805, 0.0
    %2807 = vadd.xlane.f32.xlu0 %v2806
    %v2808 = vpop.xlane.xlu0 %2807
    %v2809 = vmul.f32 %v2808, %v1262
    %v2810 = vadd.f32 %v2809, 1e-05
    %v2811 = vrsqrt.pop %v2810
    %v2812 = vmul.f32 %v2810, %v2811
    %vm2813 = vcmp.eq.f32.partialorder %v2810, inf
    %v2814 = vsel %vm2813, %v2810, %v2812
    %vm2815 = vcmp.eq.f32.partialorder %v2810, 0.0
    %v2816 = vand.u32 %v2810, 2147483648
    %v2817 = vsel %vm2815, %v2816, %v2814
    %v2818 = vrcp.pop %v2817
    %v2819 = vmul.f32 %v2804, %v2818
    %v2820 = vlaneseq
    %v2821 = vshrl.u32 %v2820, 7
    %v2822 = vsub.s32 0, %v2821
    %v2823 = vrot.slane %v81, %v2822
    %v2824 = vmul.f32 %v2819, %v2823
    %v2825 = vlaneseq
    %v2826 = vshrl.u32 %v2825, 7
    %v2827 = vsub.s32 0, %v2826
    %v2828 = vrot.slane %v82, %v2827
    %v2829 = vadd.f32 %v2824, %v2828
    %2830 = vst.msk [vmem:[#allocation2] sm:$0xff] %vm88, %v2829
    %v2831 = vld [vmem:[%s0 + $0x8] sm:$0xff]
    %v2832 = vld [vmem:[%s1 + $0x8] sm:$0xff]
    %v2833 = vld [vmem:[%s2 + $0x8] sm:$0xff]
    %s2834 = scalar_lea.vmem %s3, 8
    %v2835 = vld [vmem:[%s2834] sm:$0xff]
    %s2836 = scalar_lea.vmem %s4, 8
    %v2837 = vld [vmem:[%s2836] sm:$0xff]
    %v2839 = vsel %vm88, %v2831, 0
    %2841 = vmatprep.subr.mxu0 0.0
    %2842 = vmatpush1.msra.mxu0 0.0
    %2843 = vmatprep.subr.mxu0 0.0
    %2844 = vmatpush1.msra.mxu0 0.0
    %2845 = vmatprep.subr.mxu0 0.0
    %2846 = vmatpush1.msra.mxu0 0.0
    %2847 = vmatprep.subr.mxu0 0.0
    %2848 = vmatpush1.msra.mxu0 0.0
    %2849 = vmatprep.subr.mxu0 0.0
    %2850 = vmatpush1.msra.mxu0 0.0
    %2851 = vmatprep.subr.mxu0 0.0
    %2852 = vmatpush1.msra.mxu0 0.0
    %2853 = vmatprep.subr.mxu0 0.0
    %2854 = vmatpush1.msra.mxu0 0.0
    %2855 = vmatprep.subr.mxu0 0.0
    %2856 = vmatpush1.msra.mxu0 0.0
    %2857 = vmatprep.subr.mxu0 0.0
    %2858 = vmatpush1.msra.mxu0 0.0
    %2859 = vmatprep.subr.mxu0 0.0
    %2860 = vmatpush1.msra.mxu0 0.0
    %2861 = vmatprep.subr.mxu0 0.0
    %2862 = vmatpush1.msra.mxu0 0.0
    %2863 = vmatprep.subr.mxu0 0.0
    %2864 = vmatpush1.msra.mxu0 0.0
    %2865 = vmatprep.subr.mxu0 0.0
    %2866 = vmatpush1.msra.mxu0 %v27
    %2867 = vmatprep.subr.mxu0 0.0
    %2868 = vmatpush1.msra.mxu0 %v26
    %2869 = vmatprep.subr.mxu0 0.0
    %2870 = vmatpush1.msra.mxu0 %v25
    %2871 = vmatprep.subr.mxu0 0.0
    %2872 = vmatpush1.msra.mxu0 %v24
    %2873 = vmatprep.subr.mxu0 0.0
    %2874 = vmatpush2.msra.mxu0 0.0
    %2875 = vmatprep.subr.mxu0 0.0
    %2876 = vmatpush2.msra.mxu0 0.0
    %2877 = vmatprep.subr.mxu0 0.0
    %2878 = vmatpush2.msra.mxu0 0.0
    %2879 = vmatprep.subr.mxu0 0.0
    %2880 = vmatpush2.msra.mxu0 0.0
    %2881 = vmatprep.subr.mxu0 0.0
    %2882 = vmatpush2.msra.mxu0 0.0
    %2883 = vmatprep.subr.mxu0 0.0
    %2884 = vmatpush2.msra.mxu0 0.0
    %2885 = vmatprep.subr.mxu0 0.0
    %2886 = vmatpush2.msra.mxu0 0.0
    %2887 = vmatprep.subr.mxu0 0.0
    %2888 = vmatpush2.msra.mxu0 0.0
    %2889 = vmatprep.subr.mxu0 0.0
    %2890 = vmatpush2.msra.mxu0 0.0
    %2891 = vmatprep.subr.mxu0 0.0
    %2892 = vmatpush2.msra.mxu0 0.0
    %2893 = vmatprep.subr.mxu0 0.0
    %2894 = vmatpush2.msra.mxu0 0.0
    %2895 = vmatprep.subr.mxu0 0.0
    %2896 = vmatpush2.msra.mxu0 0.0
    %2897 = vmatprep.subr.mxu0 0.0
    %2898 = vmatpush2.msra.mxu0 0.0
    %2899 = vmatprep.subr.mxu0 0.0
    %2900 = vmatpush2.msra.mxu0 0.0
    %2901 = vmatprep.subr.mxu0 0.0
    %2902 = vmatpush2.msra.mxu0 0.0
    %2903 = vmatprep.subr.mxu0 0.0
    %2904 = vmatpush2.msra.mxu0 0.0
    %2905 = vmatprep.mubr.f32.mxu0 0.0
    %2906 = vmatmul.mubr.f32.gmra.mxu0 %v2839
    %v2907 = vpop.f32.mrf.mxu0
    %v2908 = vadd.f32 0.0, %v2907
    %v2909 = vpop.f32.mrf.mxu0
    %2910 = vdwg.mxu0
    %2911 = vmatprep.subr.mxu0 0.0
    %2912 = vmatpush1.msra.mxu0 0.0
    %2913 = vmatprep.subr.mxu0 0.0
    %2914 = vmatpush1.msra.mxu0 0.0
    %2915 = vmatprep.subr.mxu0 0.0
    %2916 = vmatpush1.msra.mxu0 0.0
    %2917 = vmatprep.subr.mxu0 0.0
    %2918 = vmatpush1.msra.mxu0 0.0
    %2919 = vmatprep.subr.mxu0 0.0
    %2920 = vmatpush1.msra.mxu0 0.0
    %2921 = vmatprep.subr.mxu0 0.0
    %2922 = vmatpush1.msra.mxu0 0.0
    %2923 = vmatprep.subr.mxu0 0.0
    %2924 = vmatpush1.msra.mxu0 0.0
    %2925 = vmatprep.subr.mxu0 0.0
    %2926 = vmatpush1.msra.mxu0 0.0
    %2927 = vmatprep.subr.mxu0 0.0
    %2928 = vmatpush1.msra.mxu0 0.0
    %2929 = vmatprep.subr.mxu0 0.0
    %2930 = vmatpush1.msra.mxu0 0.0
    %2931 = vmatprep.subr.mxu0 0.0
    %2932 = vmatpush1.msra.mxu0 0.0
    %2933 = vmatprep.subr.mxu0 0.0
    %2934 = vmatpush1.msra.mxu0 0.0
    %2935 = vmatprep.subr.mxu0 0.0
    %2936 = vmatpush1.msra.mxu0 %v31
    %2937 = vmatprep.subr.mxu0 0.0
    %2938 = vmatpush1.msra.mxu0 %v30
    %2939 = vmatprep.subr.mxu0 0.0
    %2940 = vmatpush1.msra.mxu0 %v29
    %2941 = vmatprep.subr.mxu0 0.0
    %2942 = vmatpush1.msra.mxu0 %v28
    %2943 = vmatprep.subr.mxu0 0.0
    %2944 = vmatpush2.msra.mxu0 0.0
    %2945 = vmatprep.subr.mxu0 0.0
    %2946 = vmatpush2.msra.mxu0 0.0
    %2947 = vmatprep.subr.mxu0 0.0
    %2948 = vmatpush2.msra.mxu0 0.0
    %2949 = vmatprep.subr.mxu0 0.0
    %2950 = vmatpush2.msra.mxu0 0.0
    %2951 = vmatprep.subr.mxu0 0.0
    %2952 = vmatpush2.msra.mxu0 0.0
    %2953 = vmatprep.subr.mxu0 0.0
    %2954 = vmatpush2.msra.mxu0 0.0
    %2955 = vmatprep.subr.mxu0 0.0
    %2956 = vmatpush2.msra.mxu0 0.0
    %2957 = vmatprep.subr.mxu0 0.0
    %2958 = vmatpush2.msra.mxu0 0.0
    %2959 = vmatprep.subr.mxu0 0.0
    %2960 = vmatpush2.msra.mxu0 0.0
    %2961 = vmatprep.subr.mxu0 0.0
    %2962 = vmatpush2.msra.mxu0 0.0
    %2963 = vmatprep.subr.mxu0 0.0
    %2964 = vmatpush2.msra.mxu0 0.0
    %2965 = vmatprep.subr.mxu0 0.0
    %2966 = vmatpush2.msra.mxu0 0.0
    %2967 = vmatprep.subr.mxu0 0.0
    %2968 = vmatpush2.msra.mxu0 0.0
    %2969 = vmatprep.subr.mxu0 0.0
    %2970 = vmatpush2.msra.mxu0 0.0
    %2971 = vmatprep.subr.mxu0 0.0
    %2972 = vmatpush2.msra.mxu0 0.0
    %2973 = vmatprep.subr.mxu0 0.0
    %2974 = vmatpush2.msra.mxu0 0.0
    %2975 = vmatprep.mubr.f32.mxu0 0.0
    %2976 = vmatmul.mubr.f32.gmra.mxu0 %v2839
    %v2977 = vpop.f32.mrf.mxu0
    %v2978 = vadd.f32 0.0, %v2977
    %v2979 = vpop.f32.mrf.mxu0
    %2980 = vdwg.mxu0
    %2981 = vmatprep.subr.mxu0 0.0
    %2982 = vmatpush1.msra.mxu0 0.0
    %2983 = vmatprep.subr.mxu0 0.0
    %2984 = vmatpush1.msra.mxu0 0.0
    %2985 = vmatprep.subr.mxu0 0.0
    %2986 = vmatpush1.msra.mxu0 0.0
    %2987 = vmatprep.subr.mxu0 0.0
    %2988 = vmatpush1.msra.mxu0 0.0
    %2989 = vmatprep.subr.mxu0 0.0
    %2990 = vmatpush1.msra.mxu0 0.0
    %2991 = vmatprep.subr.mxu0 0.0
    %2992 = vmatpush1.msra.mxu0 0.0
    %2993 = vmatprep.subr.mxu0 0.0
    %2994 = vmatpush1.msra.mxu0 0.0
    %2995 = vmatprep.subr.mxu0 0.0
    %2996 = vmatpush1.msra.mxu0 0.0
    %2997 = vmatprep.subr.mxu0 0.0
    %2998 = vmatpush1.msra.mxu0 0.0
    %2999 = vmatprep.subr.mxu0 0.0
    %3000 = vmatpush1.msra.mxu0 0.0
    %3001 = vmatprep.subr.mxu0 0.0
    %3002 = vmatpush1.msra.mxu0 0.0
    %3003 = vmatprep.subr.mxu0 0.0
    %3004 = vmatpush1.msra.mxu0 0.0
    %3005 = vmatprep.subr.mxu0 0.0
    %3006 = vmatpush1.msra.mxu0 %v35
    %3007 = vmatprep.subr.mxu0 0.0
    %3008 = vmatpush1.msra.mxu0 %v34
    %3009 = vmatprep.subr.mxu0 0.0
    %3010 = vmatpush1.msra.mxu0 %v33
    %3011 = vmatprep.subr.mxu0 0.0
    %3012 = vmatpush1.msra.mxu0 %v32
    %3013 = vmatprep.subr.mxu0 0.0
    %3014 = vmatpush2.msra.mxu0 0.0
    %3015 = vmatprep.subr.mxu0 0.0
    %3016 = vmatpush2.msra.mxu0 0.0
    %3017 = vmatprep.subr.mxu0 0.0
    %3018 = vmatpush2.msra.mxu0 0.0
    %3019 = vmatprep.subr.mxu0 0.0
    %3020 = vmatpush2.msra.mxu0 0.0
    %3021 = vmatprep.subr.mxu0 0.0
    %3022 = vmatpush2.msra.mxu0 0.0
    %3023 = vmatprep.subr.mxu0 0.0
    %3024 = vmatpush2.msra.mxu0 0.0
    %3025 = vmatprep.subr.mxu0 0.0
    %3026 = vmatpush2.msra.mxu0 0.0
    %3027 = vmatprep.subr.mxu0 0.0
    %3028 = vmatpush2.msra.mxu0 0.0
    %3029 = vmatprep.subr.mxu0 0.0
    %3030 = vmatpush2.msra.mxu0 0.0
    %3031 = vmatprep.subr.mxu0 0.0
    %3032 = vmatpush2.msra.mxu0 0.0
    %3033 = vmatprep.subr.mxu0 0.0
    %3034 = vmatpush2.msra.mxu0 0.0
    %3035 = vmatprep.subr.mxu0 0.0
    %3036 = vmatpush2.msra.mxu0 0.0
    %3037 = vmatprep.subr.mxu0 0.0
    %3038 = vmatpush2.msra.mxu0 0.0
    %3039 = vmatprep.subr.mxu0 0.0
    %3040 = vmatpush2.msra.mxu0 0.0
    %3041 = vmatprep.subr.mxu0 0.0
    %3042 = vmatpush2.msra.mxu0 0.0
    %3043 = vmatprep.subr.mxu0 0.0
    %3044 = vmatpush2.msra.mxu0 0.0
    %3045 = vmatprep.mubr.f32.mxu0 0.0
    %3046 = vmatmul.mubr.f32.gmra.mxu0 %v2839
    %v3047 = vpop.f32.mrf.mxu0
    %v3048 = vadd.f32 0.0, %v3047
    %v3049 = vpop.f32.mrf.mxu0
    %3050 = vdwg.mxu0
    %v3052 = vsel %vm302, %v2908, 0
    %v3055 = vsel %vm302, %v2978, 0
    %3057 = vmatprep.subr.mxu0 0.0
    %3058 = vmatpush1.xpose.msra.mxu0 0.0
    %3059 = vmatprep.subr.mxu0 0.0
    %3060 = vmatpush1.xpose.msra.mxu0 0.0
    %3061 = vmatprep.subr.mxu0 0.0
    %3062 = vmatpush1.xpose.msra.mxu0 0.0
    %3063 = vmatprep.subr.mxu0 0.0
    %3064 = vmatpush1.xpose.msra.mxu0 0.0
    %3065 = vmatprep.subr.mxu0 0.0
    %3066 = vmatpush1.xpose.msra.mxu0 0.0
    %3067 = vmatprep.subr.mxu0 0.0
    %3068 = vmatpush1.xpose.msra.mxu0 0.0
    %3069 = vmatprep.subr.mxu0 0.0
    %3070 = vmatpush1.xpose.msra.mxu0 0.0
    %3071 = vmatprep.subr.mxu0 0.0
    %3072 = vmatpush1.xpose.msra.mxu0 0.0
    %3073 = vmatprep.subr.mxu0 0.0
    %3074 = vmatpush1.xpose.msra.mxu0 0.0
    %3075 = vmatprep.subr.mxu0 0.0
    %3076 = vmatpush1.xpose.msra.mxu0 0.0
    %3077 = vmatprep.subr.mxu0 0.0
    %3078 = vmatpush1.xpose.msra.mxu0 0.0
    %3079 = vmatprep.subr.mxu0 0.0
    %3080 = vmatpush1.xpose.msra.mxu0 0.0
    %3081 = vmatprep.subr.mxu0 0.0
    %3082 = vmatpush1.xpose.msra.mxu0 0.0
    %3083 = vmatprep.subr.mxu0 0.0
    %3084 = vmatpush1.xpose.msra.mxu0 0.0
    %3085 = vmatprep.subr.mxu0 0.0
    %3086 = vmatpush1.xpose.msra.mxu0 0.0
    %3087 = vmatprep.subr.mxu0 0.0
    %3088 = vmatpush1.xpose.msra.mxu0 %v3055
    %3089 = vmatprep.subr.mxu0 0.0
    %3090 = vmatpush2.xpose.msra.mxu0 0.0
    %3091 = vmatprep.subr.mxu0 0.0
    %3092 = vmatpush2.xpose.msra.mxu0 0.0
    %3093 = vmatprep.subr.mxu0 0.0
    %3094 = vmatpush2.xpose.msra.mxu0 0.0
    %3095 = vmatprep.subr.mxu0 0.0
    %3096 = vmatpush2.xpose.msra.mxu0 0.0
    %3097 = vmatprep.subr.mxu0 0.0
    %3098 = vmatpush2.xpose.msra.mxu0 0.0
    %3099 = vmatprep.subr.mxu0 0.0
    %3100 = vmatpush2.xpose.msra.mxu0 0.0
    %3101 = vmatprep.subr.mxu0 0.0
    %3102 = vmatpush2.xpose.msra.mxu0 0.0
    %3103 = vmatprep.subr.mxu0 0.0
    %3104 = vmatpush2.xpose.msra.mxu0 0.0
    %3105 = vmatprep.subr.mxu0 0.0
    %3106 = vmatpush2.xpose.msra.mxu0 0.0
    %3107 = vmatprep.subr.mxu0 0.0
    %3108 = vmatpush2.xpose.msra.mxu0 0.0
    %3109 = vmatprep.subr.mxu0 0.0
    %3110 = vmatpush2.xpose.msra.mxu0 0.0
    %3111 = vmatprep.subr.mxu0 0.0
    %3112 = vmatpush2.xpose.msra.mxu0 0.0
    %3113 = vmatprep.subr.mxu0 0.0
    %3114 = vmatpush2.xpose.msra.mxu0 0.0
    %3115 = vmatprep.subr.mxu0 0.0
    %3116 = vmatpush2.xpose.msra.mxu0 0.0
    %3117 = vmatprep.subr.mxu0 0.0
    %3118 = vmatpush2.xpose.msra.mxu0 0.0
    %3119 = vmatprep.subr.mxu0 0.0
    %3120 = vmatpush2.xpose.msra.mxu0 0.0
    %3121 = vmatprep.mubr.f32.mxu0 0.0
    %3122 = vmatmul.mubr.f32.gmra.mxu0 %v3052
    %v3123 = vpop.f32.mrf.mxu0
    %v3124 = vadd.f32 %v2835, %v3123
    %v3125 = vpop.f32.mrf.mxu0
    %3126 = vdwg.mxu0
    %v3127 = vsel %vm302, %v3124, -inf
    %3128 = vmax.xlane.f32.xlu0 %v3127
    %v3129 = vpop.xlane.xlu0 %3128
    %v3130 = vsub.f32 %v3124, %v3129
    %v3131 = vmul.f32 %v3130, 1.442695
    %v3132 = vpow.pop %v3131
    %v3133 = vsel %vm302, %v3132, 0.0
    %3134 = vadd.xlane.f32.xlu0 %v3133
    %v3135 = vpop.xlane.xlu0 %3134
    %v3136 = vrcp.pop %v3135
    %v3137 = vmul.f32 %v3132, %v3136
    %v3139 = vsel %vm302, %v3137, 0
    %3141 = vmatprep.subr.mxu0 0.0
    %3142 = vmatpush1.msra.mxu0 0.0
    %3143 = vmatprep.subr.mxu0 0.0
    %3144 = vmatpush1.msra.mxu0 0.0
    %3145 = vmatprep.subr.mxu0 0.0
    %3146 = vmatpush1.msra.mxu0 0.0
    %3147 = vmatprep.subr.mxu0 0.0
    %3148 = vmatpush1.msra.mxu0 0.0
    %3149 = vmatprep.subr.mxu0 0.0
    %3150 = vmatpush1.msra.mxu0 0.0
    %3151 = vmatprep.subr.mxu0 0.0
    %3152 = vmatpush1.msra.mxu0 0.0
    %3153 = vmatprep.subr.mxu0 0.0
    %3154 = vmatpush1.msra.mxu0 0.0
    %3155 = vmatprep.subr.mxu0 0.0
    %3156 = vmatpush1.msra.mxu0 0.0
    %3157 = vmatprep.subr.mxu0 0.0
    %3158 = vmatpush1.msra.mxu0 0.0
    %3159 = vmatprep.subr.mxu0 0.0
    %3160 = vmatpush1.msra.mxu0 0.0
    %3161 = vmatprep.subr.mxu0 0.0
    %3162 = vmatpush1.msra.mxu0 0.0
    %3163 = vmatprep.subr.mxu0 0.0
    %3164 = vmatpush1.msra.mxu0 0.0
    %3165 = vmatprep.subr.mxu0 0.0
    %3166 = vmatpush1.msra.mxu0 0.0
    %3167 = vmatprep.subr.mxu0 0.0
    %3168 = vmatpush1.msra.mxu0 0.0
    %3169 = vmatprep.subr.mxu0 0.0
    %3170 = vmatpush1.msra.mxu0 0.0
    %3171 = vmatprep.subr.mxu0 0.0
    %3172 = vmatpush1.msra.mxu0 %v3048
    %3173 = vmatprep.subr.mxu0 0.0
    %3174 = vmatpush2.msra.mxu0 0.0
    %3175 = vmatprep.subr.mxu0 0.0
    %3176 = vmatpush2.msra.mxu0 0.0
    %3177 = vmatprep.subr.mxu0 0.0
    %3178 = vmatpush2.msra.mxu0 0.0
    %3179 = vmatprep.subr.mxu0 0.0
    %3180 = vmatpush2.msra.mxu0 0.0
    %3181 = vmatprep.subr.mxu0 0.0
    %3182 = vmatpush2.msra.mxu0 0.0
    %3183 = vmatprep.subr.mxu0 0.0
    %3184 = vmatpush2.msra.mxu0 0.0
    %3185 = vmatprep.subr.mxu0 0.0
    %3186 = vmatpush2.msra.mxu0 0.0
    %3187 = vmatprep.subr.mxu0 0.0
    %3188 = vmatpush2.msra.mxu0 0.0
    %3189 = vmatprep.subr.mxu0 0.0
    %3190 = vmatpush2.msra.mxu0 0.0
    %3191 = vmatprep.subr.mxu0 0.0
    %3192 = vmatpush2.msra.mxu0 0.0
    %3193 = vmatprep.subr.mxu0 0.0
    %3194 = vmatpush2.msra.mxu0 0.0
    %3195 = vmatprep.subr.mxu0 0.0
    %3196 = vmatpush2.msra.mxu0 0.0
    %3197 = vmatprep.subr.mxu0 0.0
    %3198 = vmatpush2.msra.mxu0 0.0
    %3199 = vmatprep.subr.mxu0 0.0
    %3200 = vmatpush2.msra.mxu0 0.0
    %3201 = vmatprep.subr.mxu0 0.0
    %3202 = vmatpush2.msra.mxu0 0.0
    %3203 = vmatprep.subr.mxu0 0.0
    %3204 = vmatpush2.msra.mxu0 0.0
    %3205 = vmatprep.mubr.f32.mxu0 0.0
    %3206 = vmatmul.mubr.f32.gmra.mxu0 %v3139
    %v3207 = vpop.f32.mrf.mxu0
    %v3208 = vadd.f32 0.0, %v3207
    %v3209 = vpop.f32.mrf.mxu0
    %3210 = vdwg.mxu0
    %3211 = vrot.lane.b32.xlu0 %v2908, 120
    %v3212 = vpop.permute.xlu0 %3211
    %3213 = vrot.lane.b32.xlu0 %v2978, 120
    %v3214 = vpop.permute.xlu0 %3213
    %v3215 = vsel %vm302, %v3212, 0
    %v3217 = vsel %vm302, %v3214, 0
    %3219 = vmatprep.subr.mxu0 0.0
    %3220 = vmatpush1.xpose.msra.mxu0 0.0
    %3221 = vmatprep.subr.mxu0 0.0
    %3222 = vmatpush1.xpose.msra.mxu0 0.0
    %3223 = vmatprep.subr.mxu0 0.0
    %3224 = vmatpush1.xpose.msra.mxu0 0.0
    %3225 = vmatprep.subr.mxu0 0.0
    %3226 = vmatpush1.xpose.msra.mxu0 0.0
    %3227 = vmatprep.subr.mxu0 0.0
    %3228 = vmatpush1.xpose.msra.mxu0 0.0
    %3229 = vmatprep.subr.mxu0 0.0
    %3230 = vmatpush1.xpose.msra.mxu0 0.0
    %3231 = vmatprep.subr.mxu0 0.0
    %3232 = vmatpush1.xpose.msra.mxu0 0.0
    %3233 = vmatprep.subr.mxu0 0.0
    %3234 = vmatpush1.xpose.msra.mxu0 0.0
    %3235 = vmatprep.subr.mxu0 0.0
    %3236 = vmatpush1.xpose.msra.mxu0 0.0
    %3237 = vmatprep.subr.mxu0 0.0
    %3238 = vmatpush1.xpose.msra.mxu0 0.0
    %3239 = vmatprep.subr.mxu0 0.0
    %3240 = vmatpush1.xpose.msra.mxu0 0.0
    %3241 = vmatprep.subr.mxu0 0.0
    %3242 = vmatpush1.xpose.msra.mxu0 0.0
    %3243 = vmatprep.subr.mxu0 0.0
    %3244 = vmatpush1.xpose.msra.mxu0 0.0
    %3245 = vmatprep.subr.mxu0 0.0
    %3246 = vmatpush1.xpose.msra.mxu0 0.0
    %3247 = vmatprep.subr.mxu0 0.0
    %3248 = vmatpush1.xpose.msra.mxu0 0.0
    %3249 = vmatprep.subr.mxu0 0.0
    %3250 = vmatpush1.xpose.msra.mxu0 %v3217
    %3251 = vmatprep.subr.mxu0 0.0
    %3252 = vmatpush2.xpose.msra.mxu0 0.0
    %3253 = vmatprep.subr.mxu0 0.0
    %3254 = vmatpush2.xpose.msra.mxu0 0.0
    %3255 = vmatprep.subr.mxu0 0.0
    %3256 = vmatpush2.xpose.msra.mxu0 0.0
    %3257 = vmatprep.subr.mxu0 0.0
    %3258 = vmatpush2.xpose.msra.mxu0 0.0
    %3259 = vmatprep.subr.mxu0 0.0
    %3260 = vmatpush2.xpose.msra.mxu0 0.0
    %3261 = vmatprep.subr.mxu0 0.0
    %3262 = vmatpush2.xpose.msra.mxu0 0.0
    %3263 = vmatprep.subr.mxu0 0.0
    %3264 = vmatpush2.xpose.msra.mxu0 0.0
    %3265 = vmatprep.subr.mxu0 0.0
    %3266 = vmatpush2.xpose.msra.mxu0 0.0
    %3267 = vmatprep.subr.mxu0 0.0
    %3268 = vmatpush2.xpose.msra.mxu0 0.0
    %3269 = vmatprep.subr.mxu0 0.0
    %3270 = vmatpush2.xpose.msra.mxu0 0.0
    %3271 = vmatprep.subr.mxu0 0.0
    %3272 = vmatpush2.xpose.msra.mxu0 0.0
    %3273 = vmatprep.subr.mxu0 0.0
    %3274 = vmatpush2.xpose.msra.mxu0 0.0
    %3275 = vmatprep.subr.mxu0 0.0
    %3276 = vmatpush2.xpose.msra.mxu0 0.0
    %3277 = vmatprep.subr.mxu0 0.0
    %3278 = vmatpush2.xpose.msra.mxu0 0.0
    %3279 = vmatprep.subr.mxu0 0.0
    %3280 = vmatpush2.xpose.msra.mxu0 0.0
    %3281 = vmatprep.subr.mxu0 0.0
    %3282 = vmatpush2.xpose.msra.mxu0 0.0
    %3283 = vmatprep.mubr.f32.mxu0 0.0
    %3284 = vmatmul.mubr.f32.gmra.mxu0 %v3215
    %v3285 = vpop.f32.mrf.mxu0
    %v3286 = vadd.f32 %v2835, %v3285
    %v3287 = vpop.f32.mrf.mxu0
    %3288 = vdwg.mxu0
    %v3289 = vsel %vm302, %v3286, -inf
    %3290 = vmax.xlane.f32.xlu0 %v3289
    %v3291 = vpop.xlane.xlu0 %3290
    %v3292 = vsub.f32 %v3286, %v3291
    %v3293 = vmul.f32 %v3292, 1.442695
    %v3294 = vpow.pop %v3293
    %v3295 = vsel %vm302, %v3294, 0.0
    %3296 = vadd.xlane.f32.xlu0 %v3295
    %v3297 = vpop.xlane.xlu0 %3296
    %v3298 = vrcp.pop %v3297
    %v3299 = vmul.f32 %v3294, %v3298
    %3301 = vrot.lane.b32.xlu0 %v3048, 120
    %v3302 = vpop.permute.xlu0 %3301
    %v3305 = vsel %vm302, %v3299, 0
    %3307 = vmatprep.subr.mxu0 0.0
    %3308 = vmatpush1.msra.mxu0 0.0
    %3309 = vmatprep.subr.mxu0 0.0
    %3310 = vmatpush1.msra.mxu0 0.0
    %3311 = vmatprep.subr.mxu0 0.0
    %3312 = vmatpush1.msra.mxu0 0.0
    %3313 = vmatprep.subr.mxu0 0.0
    %3314 = vmatpush1.msra.mxu0 0.0
    %3315 = vmatprep.subr.mxu0 0.0
    %3316 = vmatpush1.msra.mxu0 0.0
    %3317 = vmatprep.subr.mxu0 0.0
    %3318 = vmatpush1.msra.mxu0 0.0
    %3319 = vmatprep.subr.mxu0 0.0
    %3320 = vmatpush1.msra.mxu0 0.0
    %3321 = vmatprep.subr.mxu0 0.0
    %3322 = vmatpush1.msra.mxu0 0.0
    %3323 = vmatprep.subr.mxu0 0.0
    %3324 = vmatpush1.msra.mxu0 0.0
    %3325 = vmatprep.subr.mxu0 0.0
    %3326 = vmatpush1.msra.mxu0 0.0
    %3327 = vmatprep.subr.mxu0 0.0
    %3328 = vmatpush1.msra.mxu0 0.0
    %3329 = vmatprep.subr.mxu0 0.0
    %3330 = vmatpush1.msra.mxu0 0.0
    %3331 = vmatprep.subr.mxu0 0.0
    %3332 = vmatpush1.msra.mxu0 0.0
    %3333 = vmatprep.subr.mxu0 0.0
    %3334 = vmatpush1.msra.mxu0 0.0
    %3335 = vmatprep.subr.mxu0 0.0
    %3336 = vmatpush1.msra.mxu0 0.0
    %3337 = vmatprep.subr.mxu0 0.0
    %3338 = vmatpush1.msra.mxu0 %v3302
    %3339 = vmatprep.subr.mxu0 0.0
    %3340 = vmatpush2.msra.mxu0 0.0
    %3341 = vmatprep.subr.mxu0 0.0
    %3342 = vmatpush2.msra.mxu0 0.0
    %3343 = vmatprep.subr.mxu0 0.0
    %3344 = vmatpush2.msra.mxu0 0.0
    %3345 = vmatprep.subr.mxu0 0.0
    %3346 = vmatpush2.msra.mxu0 0.0
    %3347 = vmatprep.subr.mxu0 0.0
    %3348 = vmatpush2.msra.mxu0 0.0
    %3349 = vmatprep.subr.mxu0 0.0
    %3350 = vmatpush2.msra.mxu0 0.0
    %3351 = vmatprep.subr.mxu0 0.0
    %3352 = vmatpush2.msra.mxu0 0.0
    %3353 = vmatprep.subr.mxu0 0.0
    %3354 = vmatpush2.msra.mxu0 0.0
    %3355 = vmatprep.subr.mxu0 0.0
    %3356 = vmatpush2.msra.mxu0 0.0
    %3357 = vmatprep.subr.mxu0 0.0
    %3358 = vmatpush2.msra.mxu0 0.0
    %3359 = vmatprep.subr.mxu0 0.0
    %3360 = vmatpush2.msra.mxu0 0.0
    %3361 = vmatprep.subr.mxu0 0.0
    %3362 = vmatpush2.msra.mxu0 0.0
    %3363 = vmatprep.subr.mxu0 0.0
    %3364 = vmatpush2.msra.mxu0 0.0
    %3365 = vmatprep.subr.mxu0 0.0
    %3366 = vmatpush2.msra.mxu0 0.0
    %3367 = vmatprep.subr.mxu0 0.0
    %3368 = vmatpush2.msra.mxu0 0.0
    %3369 = vmatprep.subr.mxu0 0.0
    %3370 = vmatpush2.msra.mxu0 0.0
    %3371 = vmatprep.mubr.f32.mxu0 0.0
    %3372 = vmatmul.mubr.f32.gmra.mxu0 %v3305
    %v3373 = vpop.f32.mrf.mxu0
    %v3374 = vadd.f32 0.0, %v3373
    %v3375 = vpop.f32.mrf.mxu0
    %3376 = vdwg.mxu0
    %v3378 = vsel %vm302, %v3374, 0
    %3380 = vmatprep.subr.mxu0 0.0
    %3381 = vmatpush1.msra.mxu0 0.0
    %3382 = vmatprep.subr.mxu0 0.0
    %3383 = vmatpush1.msra.mxu0 0.0
    %3384 = vmatprep.subr.mxu0 0.0
    %3385 = vmatpush1.msra.mxu0 0.0
    %3386 = vmatprep.subr.mxu0 0.0
    %3387 = vmatpush1.msra.mxu0 0.0
    %3388 = vmatprep.subr.mxu0 0.0
    %3389 = vmatpush1.msra.mxu0 0.0
    %3390 = vmatprep.subr.mxu0 0.0
    %3391 = vmatpush1.msra.mxu0 0.0
    %3392 = vmatprep.subr.mxu0 0.0
    %3393 = vmatpush1.msra.mxu0 0.0
    %3394 = vmatprep.subr.mxu0 0.0
    %3395 = vmatpush1.msra.mxu0 0.0
    %3396 = vmatprep.subr.mxu0 0.0
    %3397 = vmatpush1.msra.mxu0 0.0
    %3398 = vmatprep.subr.mxu0 0.0
    %3399 = vmatpush1.msra.mxu0 0.0
    %3400 = vmatprep.subr.mxu0 0.0
    %3401 = vmatpush1.msra.mxu0 0.0
    %3402 = vmatprep.subr.mxu0 0.0
    %3403 = vmatpush1.msra.mxu0 0.0
    %3404 = vmatprep.subr.mxu0 0.0
    %3405 = vmatpush1.msra.mxu0 0.0
    %3406 = vmatprep.subr.mxu0 0.0
    %3407 = vmatpush1.msra.mxu0 0.0
    %3408 = vmatprep.subr.mxu0 0.0
    %3409 = vmatpush1.msra.mxu0 0.0
    %3410 = vmatprep.subr.mxu0 0.0
    %3411 = vmatpush1.msra.mxu0 %v37
    %3412 = vmatprep.subr.mxu0 0.0
    %3413 = vmatpush2.msra.mxu0 0.0
    %3414 = vmatprep.subr.mxu0 0.0
    %3415 = vmatpush2.msra.mxu0 0.0
    %3416 = vmatprep.subr.mxu0 0.0
    %3417 = vmatpush2.msra.mxu0 0.0
    %3418 = vmatprep.subr.mxu0 0.0
    %3419 = vmatpush2.msra.mxu0 0.0
    %3420 = vmatprep.subr.mxu0 0.0
    %3421 = vmatpush2.msra.mxu0 0.0
    %3422 = vmatprep.subr.mxu0 0.0
    %3423 = vmatpush2.msra.mxu0 0.0
    %3424 = vmatprep.subr.mxu0 0.0
    %3425 = vmatpush2.msra.mxu0 0.0
    %3426 = vmatprep.subr.mxu0 0.0
    %3427 = vmatpush2.msra.mxu0 0.0
    %3428 = vmatprep.subr.mxu0 0.0
    %3429 = vmatpush2.msra.mxu0 0.0
    %3430 = vmatprep.subr.mxu0 0.0
    %3431 = vmatpush2.msra.mxu0 0.0
    %3432 = vmatprep.subr.mxu0 0.0
    %3433 = vmatpush2.msra.mxu0 0.0
    %3434 = vmatprep.subr.mxu0 0.0
    %3435 = vmatpush2.msra.mxu0 0.0
    %3436 = vmatprep.subr.mxu0 0.0
    %3437 = vmatpush2.msra.mxu0 0.0
    %3438 = vmatprep.subr.mxu0 0.0
    %3439 = vmatpush2.msra.mxu0 0.0
    %3440 = vmatprep.subr.mxu0 0.0
    %3441 = vmatpush2.msra.mxu0 0.0
    %3442 = vmatprep.subr.mxu0 0.0
    %3443 = vmatpush2.msra.mxu0 0.0
    %3444 = vmatprep.mubr.f32.mxu0 0.0
    %3445 = vmatmul.mubr.f32.gmra.mxu0 %v3378
    %v3446 = vpop.f32.mrf.mxu0
    %v3447 = vadd.f32 0.0, %v3446
    %v3448 = vpop.f32.mrf.mxu0
    %3449 = vdwg.mxu0
    %v3451 = vsel %vm302, %v3208, 0
    %3453 = vmatprep.subr.mxu0 0.0
    %3454 = vmatpush1.msra.mxu0 0.0
    %3455 = vmatprep.subr.mxu0 0.0
    %3456 = vmatpush1.msra.mxu0 0.0
    %3457 = vmatprep.subr.mxu0 0.0
    %3458 = vmatpush1.msra.mxu0 0.0
    %3459 = vmatprep.subr.mxu0 0.0
    %3460 = vmatpush1.msra.mxu0 0.0
    %3461 = vmatprep.subr.mxu0 0.0
    %3462 = vmatpush1.msra.mxu0 0.0
    %3463 = vmatprep.subr.mxu0 0.0
    %3464 = vmatpush1.msra.mxu0 0.0
    %3465 = vmatprep.subr.mxu0 0.0
    %3466 = vmatpush1.msra.mxu0 0.0
    %3467 = vmatprep.subr.mxu0 0.0
    %3468 = vmatpush1.msra.mxu0 0.0
    %3469 = vmatprep.subr.mxu0 0.0
    %3470 = vmatpush1.msra.mxu0 0.0
    %3471 = vmatprep.subr.mxu0 0.0
    %3472 = vmatpush1.msra.mxu0 0.0
    %3473 = vmatprep.subr.mxu0 0.0
    %3474 = vmatpush1.msra.mxu0 0.0
    %3475 = vmatprep.subr.mxu0 0.0
    %3476 = vmatpush1.msra.mxu0 0.0
    %3477 = vmatprep.subr.mxu0 0.0
    %3478 = vmatpush1.msra.mxu0 0.0
    %3479 = vmatprep.subr.mxu0 0.0
    %3480 = vmatpush1.msra.mxu0 0.0
    %3481 = vmatprep.subr.mxu0 0.0
    %3482 = vmatpush1.msra.mxu0 0.0
    %3483 = vmatprep.subr.mxu0 0.0
    %3484 = vmatpush1.msra.mxu0 %v36
    %3485 = vmatprep.subr.mxu0 0.0
    %3486 = vmatpush2.msra.mxu0 0.0
    %3487 = vmatprep.subr.mxu0 0.0
    %3488 = vmatpush2.msra.mxu0 0.0
    %3489 = vmatprep.subr.mxu0 0.0
    %3490 = vmatpush2.msra.mxu0 0.0
    %3491 = vmatprep.subr.mxu0 0.0
    %3492 = vmatpush2.msra.mxu0 0.0
    %3493 = vmatprep.subr.mxu0 0.0
    %3494 = vmatpush2.msra.mxu0 0.0
    %3495 = vmatprep.subr.mxu0 0.0
    %3496 = vmatpush2.msra.mxu0 0.0
    %3497 = vmatprep.subr.mxu0 0.0
    %3498 = vmatpush2.msra.mxu0 0.0
    %3499 = vmatprep.subr.mxu0 0.0
    %3500 = vmatpush2.msra.mxu0 0.0
    %3501 = vmatprep.subr.mxu0 0.0
    %3502 = vmatpush2.msra.mxu0 0.0
    %3503 = vmatprep.subr.mxu0 0.0
    %3504 = vmatpush2.msra.mxu0 0.0
    %3505 = vmatprep.subr.mxu0 0.0
    %3506 = vmatpush2.msra.mxu0 0.0
    %3507 = vmatprep.subr.mxu0 0.0
    %3508 = vmatpush2.msra.mxu0 0.0
    %3509 = vmatprep.subr.mxu0 0.0
    %3510 = vmatpush2.msra.mxu0 0.0
    %3511 = vmatprep.subr.mxu0 0.0
    %3512 = vmatpush2.msra.mxu0 0.0
    %3513 = vmatprep.subr.mxu0 0.0
    %3514 = vmatpush2.msra.mxu0 0.0
    %3515 = vmatprep.subr.mxu0 0.0
    %3516 = vmatpush2.msra.mxu0 0.0
    %3517 = vmatprep.mubr.f32.mxu0 0.0
    %3518 = vmatmul.mubr.f32.gmra.mxu0 %v3451
    %v3519 = vpop.f32.mrf.mxu0
    %v3520 = vadd.f32 %v3447, %v3519
    %v3521 = vpop.f32.mrf.mxu0
    %3522 = vdwg.mxu0
    %3523 = vrot.lane.b32.xlu0 %v2908, 112
    %v3524 = vpop.permute.xlu0 %3523
    %3525 = vrot.lane.b32.xlu0 %v2978, 112
    %v3526 = vpop.permute.xlu0 %3525
    %v3527 = vsel %vm302, %v3524, 0
    %v3529 = vsel %vm302, %v3526, 0
    %3531 = vmatprep.subr.mxu0 0.0
    %3532 = vmatpush1.xpose.msra.mxu0 0.0
    %3533 = vmatprep.subr.mxu0 0.0
    %3534 = vmatpush1.xpose.msra.mxu0 0.0
    %3535 = vmatprep.subr.mxu0 0.0
    %3536 = vmatpush1.xpose.msra.mxu0 0.0
    %3537 = vmatprep.subr.mxu0 0.0
    %3538 = vmatpush1.xpose.msra.mxu0 0.0
    %3539 = vmatprep.subr.mxu0 0.0
    %3540 = vmatpush1.xpose.msra.mxu0 0.0
    %3541 = vmatprep.subr.mxu0 0.0
    %3542 = vmatpush1.xpose.msra.mxu0 0.0
    %3543 = vmatprep.subr.mxu0 0.0
    %3544 = vmatpush1.xpose.msra.mxu0 0.0
    %3545 = vmatprep.subr.mxu0 0.0
    %3546 = vmatpush1.xpose.msra.mxu0 0.0
    %3547 = vmatprep.subr.mxu0 0.0
    %3548 = vmatpush1.xpose.msra.mxu0 0.0
    %3549 = vmatprep.subr.mxu0 0.0
    %3550 = vmatpush1.xpose.msra.mxu0 0.0
    %3551 = vmatprep.subr.mxu0 0.0
    %3552 = vmatpush1.xpose.msra.mxu0 0.0
    %3553 = vmatprep.subr.mxu0 0.0
    %3554 = vmatpush1.xpose.msra.mxu0 0.0
    %3555 = vmatprep.subr.mxu0 0.0
    %3556 = vmatpush1.xpose.msra.mxu0 0.0
    %3557 = vmatprep.subr.mxu0 0.0
    %3558 = vmatpush1.xpose.msra.mxu0 0.0
    %3559 = vmatprep.subr.mxu0 0.0
    %3560 = vmatpush1.xpose.msra.mxu0 0.0
    %3561 = vmatprep.subr.mxu0 0.0
    %3562 = vmatpush1.xpose.msra.mxu0 %v3529
    %3563 = vmatprep.subr.mxu0 0.0
    %3564 = vmatpush2.xpose.msra.mxu0 0.0
    %3565 = vmatprep.subr.mxu0 0.0
    %3566 = vmatpush2.xpose.msra.mxu0 0.0
    %3567 = vmatprep.subr.mxu0 0.0
    %3568 = vmatpush2.xpose.msra.mxu0 0.0
    %3569 = vmatprep.subr.mxu0 0.0
    %3570 = vmatpush2.xpose.msra.mxu0 0.0
    %3571 = vmatprep.subr.mxu0 0.0
    %3572 = vmatpush2.xpose.msra.mxu0 0.0
    %3573 = vmatprep.subr.mxu0 0.0
    %3574 = vmatpush2.xpose.msra.mxu0 0.0
    %3575 = vmatprep.subr.mxu0 0.0
    %3576 = vmatpush2.xpose.msra.mxu0 0.0
    %3577 = vmatprep.subr.mxu0 0.0
    %3578 = vmatpush2.xpose.msra.mxu0 0.0
    %3579 = vmatprep.subr.mxu0 0.0
    %3580 = vmatpush2.xpose.msra.mxu0 0.0
    %3581 = vmatprep.subr.mxu0 0.0
    %3582 = vmatpush2.xpose.msra.mxu0 0.0
    %3583 = vmatprep.subr.mxu0 0.0
    %3584 = vmatpush2.xpose.msra.mxu0 0.0
    %3585 = vmatprep.subr.mxu0 0.0
    %3586 = vmatpush2.xpose.msra.mxu0 0.0
    %3587 = vmatprep.subr.mxu0 0.0
    %3588 = vmatpush2.xpose.msra.mxu0 0.0
    %3589 = vmatprep.subr.mxu0 0.0
    %3590 = vmatpush2.xpose.msra.mxu0 0.0
    %3591 = vmatprep.subr.mxu0 0.0
    %3592 = vmatpush2.xpose.msra.mxu0 0.0
    %3593 = vmatprep.subr.mxu0 0.0
    %3594 = vmatpush2.xpose.msra.mxu0 0.0
    %3595 = vmatprep.mubr.f32.mxu0 0.0
    %3596 = vmatmul.mubr.f32.gmra.mxu0 %v3527
    %v3597 = vpop.f32.mrf.mxu0
    %v3598 = vadd.f32 %v2835, %v3597
    %v3599 = vpop.f32.mrf.mxu0
    %3600 = vdwg.mxu0
    %v3601 = vsel %vm302, %v3598, -inf
    %3602 = vmax.xlane.f32.xlu0 %v3601
    %v3603 = vpop.xlane.xlu0 %3602
    %v3604 = vsub.f32 %v3598, %v3603
    %v3605 = vmul.f32 %v3604, 1.442695
    %v3606 = vpow.pop %v3605
    %v3607 = vsel %vm302, %v3606, 0.0
    %3608 = vadd.xlane.f32.xlu0 %v3607
    %v3609 = vpop.xlane.xlu0 %3608
    %v3610 = vrcp.pop %v3609
    %v3611 = vmul.f32 %v3606, %v3610
    %3612 = vrot.lane.b32.xlu0 %v3048, 112
    %v3613 = vpop.permute.xlu0 %3612
    %v3616 = vsel %vm302, %v3611, 0
    %3618 = vmatprep.subr.mxu0 0.0
    %3619 = vmatpush1.msra.mxu0 0.0
    %3620 = vmatprep.subr.mxu0 0.0
    %3621 = vmatpush1.msra.mxu0 0.0
    %3622 = vmatprep.subr.mxu0 0.0
    %3623 = vmatpush1.msra.mxu0 0.0
    %3624 = vmatprep.subr.mxu0 0.0
    %3625 = vmatpush1.msra.mxu0 0.0
    %3626 = vmatprep.subr.mxu0 0.0
    %3627 = vmatpush1.msra.mxu0 0.0
    %3628 = vmatprep.subr.mxu0 0.0
    %3629 = vmatpush1.msra.mxu0 0.0
    %3630 = vmatprep.subr.mxu0 0.0
    %3631 = vmatpush1.msra.mxu0 0.0
    %3632 = vmatprep.subr.mxu0 0.0
    %3633 = vmatpush1.msra.mxu0 0.0
    %3634 = vmatprep.subr.mxu0 0.0
    %3635 = vmatpush1.msra.mxu0 0.0
    %3636 = vmatprep.subr.mxu0 0.0
    %3637 = vmatpush1.msra.mxu0 0.0
    %3638 = vmatprep.subr.mxu0 0.0
    %3639 = vmatpush1.msra.mxu0 0.0
    %3640 = vmatprep.subr.mxu0 0.0
    %3641 = vmatpush1.msra.mxu0 0.0
    %3642 = vmatprep.subr.mxu0 0.0
    %3643 = vmatpush1.msra.mxu0 0.0
    %3644 = vmatprep.subr.mxu0 0.0
    %3645 = vmatpush1.msra.mxu0 0.0
    %3646 = vmatprep.subr.mxu0 0.0
    %3647 = vmatpush1.msra.mxu0 0.0
    %3648 = vmatprep.subr.mxu0 0.0
    %3649 = vmatpush1.msra.mxu0 %v3613
    %3650 = vmatprep.subr.mxu0 0.0
    %3651 = vmatpush2.msra.mxu0 0.0
    %3652 = vmatprep.subr.mxu0 0.0
    %3653 = vmatpush2.msra.mxu0 0.0
    %3654 = vmatprep.subr.mxu0 0.0
    %3655 = vmatpush2.msra.mxu0 0.0
    %3656 = vmatprep.subr.mxu0 0.0
    %3657 = vmatpush2.msra.mxu0 0.0
    %3658 = vmatprep.subr.mxu0 0.0
    %3659 = vmatpush2.msra.mxu0 0.0
    %3660 = vmatprep.subr.mxu0 0.0
    %3661 = vmatpush2.msra.mxu0 0.0
    %3662 = vmatprep.subr.mxu0 0.0
    %3663 = vmatpush2.msra.mxu0 0.0
    %3664 = vmatprep.subr.mxu0 0.0
    %3665 = vmatpush2.msra.mxu0 0.0
    %3666 = vmatprep.subr.mxu0 0.0
    %3667 = vmatpush2.msra.mxu0 0.0
    %3668 = vmatprep.subr.mxu0 0.0
    %3669 = vmatpush2.msra.mxu0 0.0
    %3670 = vmatprep.subr.mxu0 0.0
    %3671 = vmatpush2.msra.mxu0 0.0
    %3672 = vmatprep.subr.mxu0 0.0
    %3673 = vmatpush2.msra.mxu0 0.0
    %3674 = vmatprep.subr.mxu0 0.0
    %3675 = vmatpush2.msra.mxu0 0.0
    %3676 = vmatprep.subr.mxu0 0.0
    %3677 = vmatpush2.msra.mxu0 0.0
    %3678 = vmatprep.subr.mxu0 0.0
    %3679 = vmatpush2.msra.mxu0 0.0
    %3680 = vmatprep.subr.mxu0 0.0
    %3681 = vmatpush2.msra.mxu0 0.0
    %3682 = vmatprep.mubr.f32.mxu0 0.0
    %3683 = vmatmul.mubr.f32.gmra.mxu0 %v3616
    %v3684 = vpop.f32.mrf.mxu0
    %v3685 = vadd.f32 0.0, %v3684
    %v3686 = vpop.f32.mrf.mxu0
    %3687 = vdwg.mxu0
    %v3689 = vsel %vm302, %v3685, 0
    %3691 = vmatprep.subr.mxu0 0.0
    %3692 = vmatpush1.msra.mxu0 0.0
    %3693 = vmatprep.subr.mxu0 0.0
    %3694 = vmatpush1.msra.mxu0 0.0
    %3695 = vmatprep.subr.mxu0 0.0
    %3696 = vmatpush1.msra.mxu0 0.0
    %3697 = vmatprep.subr.mxu0 0.0
    %3698 = vmatpush1.msra.mxu0 0.0
    %3699 = vmatprep.subr.mxu0 0.0
    %3700 = vmatpush1.msra.mxu0 0.0
    %3701 = vmatprep.subr.mxu0 0.0
    %3702 = vmatpush1.msra.mxu0 0.0
    %3703 = vmatprep.subr.mxu0 0.0
    %3704 = vmatpush1.msra.mxu0 0.0
    %3705 = vmatprep.subr.mxu0 0.0
    %3706 = vmatpush1.msra.mxu0 0.0
    %3707 = vmatprep.subr.mxu0 0.0
    %3708 = vmatpush1.msra.mxu0 0.0
    %3709 = vmatprep.subr.mxu0 0.0
    %3710 = vmatpush1.msra.mxu0 0.0
    %3711 = vmatprep.subr.mxu0 0.0
    %3712 = vmatpush1.msra.mxu0 0.0
    %3713 = vmatprep.subr.mxu0 0.0
    %3714 = vmatpush1.msra.mxu0 0.0
    %3715 = vmatprep.subr.mxu0 0.0
    %3716 = vmatpush1.msra.mxu0 0.0
    %3717 = vmatprep.subr.mxu0 0.0
    %3718 = vmatpush1.msra.mxu0 0.0
    %3719 = vmatprep.subr.mxu0 0.0
    %3720 = vmatpush1.msra.mxu0 0.0
    %3721 = vmatprep.subr.mxu0 0.0
    %3722 = vmatpush1.msra.mxu0 %v38
    %3723 = vmatprep.subr.mxu0 0.0
    %3724 = vmatpush2.msra.mxu0 0.0
    %3725 = vmatprep.subr.mxu0 0.0
    %3726 = vmatpush2.msra.mxu0 0.0
    %3727 = vmatprep.subr.mxu0 0.0
    %3728 = vmatpush2.msra.mxu0 0.0
    %3729 = vmatprep.subr.mxu0 0.0
    %3730 = vmatpush2.msra.mxu0 0.0
    %3731 = vmatprep.subr.mxu0 0.0
    %3732 = vmatpush2.msra.mxu0 0.0
    %3733 = vmatprep.subr.mxu0 0.0
    %3734 = vmatpush2.msra.mxu0 0.0
    %3735 = vmatprep.subr.mxu0 0.0
    %3736 = vmatpush2.msra.mxu0 0.0
    %3737 = vmatprep.subr.mxu0 0.0
    %3738 = vmatpush2.msra.mxu0 0.0
    %3739 = vmatprep.subr.mxu0 0.0
    %3740 = vmatpush2.msra.mxu0 0.0
    %3741 = vmatprep.subr.mxu0 0.0
    %3742 = vmatpush2.msra.mxu0 0.0
    %3743 = vmatprep.subr.mxu0 0.0
    %3744 = vmatpush2.msra.mxu0 0.0
    %3745 = vmatprep.subr.mxu0 0.0
    %3746 = vmatpush2.msra.mxu0 0.0
    %3747 = vmatprep.subr.mxu0 0.0
    %3748 = vmatpush2.msra.mxu0 0.0
    %3749 = vmatprep.subr.mxu0 0.0
    %3750 = vmatpush2.msra.mxu0 0.0
    %3751 = vmatprep.subr.mxu0 0.0
    %3752 = vmatpush2.msra.mxu0 0.0
    %3753 = vmatprep.subr.mxu0 0.0
    %3754 = vmatpush2.msra.mxu0 0.0
    %3755 = vmatprep.mubr.f32.mxu0 0.0
    %3756 = vmatmul.mubr.f32.gmra.mxu0 %v3689
    %v3757 = vpop.f32.mrf.mxu0
    %v3758 = vadd.f32 0.0, %v3757
    %v3759 = vpop.f32.mrf.mxu0
    %3760 = vdwg.mxu0
    %v3761 = vadd.f32 %v3520, %v3758
    %3762 = vrot.lane.b32.xlu0 %v2908, 104
    %v3763 = vpop.permute.xlu0 %3762
    %3764 = vrot.lane.b32.xlu0 %v2978, 104
    %v3765 = vpop.permute.xlu0 %3764
    %v3766 = vsel %vm302, %v3763, 0
    %v3768 = vsel %vm302, %v3765, 0
    %3770 = vmatprep.subr.mxu0 0.0
    %3771 = vmatpush1.xpose.msra.mxu0 0.0
    %3772 = vmatprep.subr.mxu0 0.0
    %3773 = vmatpush1.xpose.msra.mxu0 0.0
    %3774 = vmatprep.subr.mxu0 0.0
    %3775 = vmatpush1.xpose.msra.mxu0 0.0
    %3776 = vmatprep.subr.mxu0 0.0
    %3777 = vmatpush1.xpose.msra.mxu0 0.0
    %3778 = vmatprep.subr.mxu0 0.0
    %3779 = vmatpush1.xpose.msra.mxu0 0.0
    %3780 = vmatprep.subr.mxu0 0.0
    %3781 = vmatpush1.xpose.msra.mxu0 0.0
    %3782 = vmatprep.subr.mxu0 0.0
    %3783 = vmatpush1.xpose.msra.mxu0 0.0
    %3784 = vmatprep.subr.mxu0 0.0
    %3785 = vmatpush1.xpose.msra.mxu0 0.0
    %3786 = vmatprep.subr.mxu0 0.0
    %3787 = vmatpush1.xpose.msra.mxu0 0.0
    %3788 = vmatprep.subr.mxu0 0.0
    %3789 = vmatpush1.xpose.msra.mxu0 0.0
    %3790 = vmatprep.subr.mxu0 0.0
    %3791 = vmatpush1.xpose.msra.mxu0 0.0
    %3792 = vmatprep.subr.mxu0 0.0
    %3793 = vmatpush1.xpose.msra.mxu0 0.0
    %3794 = vmatprep.subr.mxu0 0.0
    %3795 = vmatpush1.xpose.msra.mxu0 0.0
    %3796 = vmatprep.subr.mxu0 0.0
    %3797 = vmatpush1.xpose.msra.mxu0 0.0
    %3798 = vmatprep.subr.mxu0 0.0
    %3799 = vmatpush1.xpose.msra.mxu0 0.0
    %3800 = vmatprep.subr.mxu0 0.0
    %3801 = vmatpush1.xpose.msra.mxu0 %v3768
    %3802 = vmatprep.subr.mxu0 0.0
    %3803 = vmatpush2.xpose.msra.mxu0 0.0
    %3804 = vmatprep.subr.mxu0 0.0
    %3805 = vmatpush2.xpose.msra.mxu0 0.0
    %3806 = vmatprep.subr.mxu0 0.0
    %3807 = vmatpush2.xpose.msra.mxu0 0.0
    %3808 = vmatprep.subr.mxu0 0.0
    %3809 = vmatpush2.xpose.msra.mxu0 0.0
    %3810 = vmatprep.subr.mxu0 0.0
    %3811 = vmatpush2.xpose.msra.mxu0 0.0
    %3812 = vmatprep.subr.mxu0 0.0
    %3813 = vmatpush2.xpose.msra.mxu0 0.0
    %3814 = vmatprep.subr.mxu0 0.0
    %3815 = vmatpush2.xpose.msra.mxu0 0.0
    %3816 = vmatprep.subr.mxu0 0.0
    %3817 = vmatpush2.xpose.msra.mxu0 0.0
    %3818 = vmatprep.subr.mxu0 0.0
    %3819 = vmatpush2.xpose.msra.mxu0 0.0
    %3820 = vmatprep.subr.mxu0 0.0
    %3821 = vmatpush2.xpose.msra.mxu0 0.0
    %3822 = vmatprep.subr.mxu0 0.0
    %3823 = vmatpush2.xpose.msra.mxu0 0.0
    %3824 = vmatprep.subr.mxu0 0.0
    %3825 = vmatpush2.xpose.msra.mxu0 0.0
    %3826 = vmatprep.subr.mxu0 0.0
    %3827 = vmatpush2.xpose.msra.mxu0 0.0
    %3828 = vmatprep.subr.mxu0 0.0
    %3829 = vmatpush2.xpose.msra.mxu0 0.0
    %3830 = vmatprep.subr.mxu0 0.0
    %3831 = vmatpush2.xpose.msra.mxu0 0.0
    %3832 = vmatprep.subr.mxu0 0.0
    %3833 = vmatpush2.xpose.msra.mxu0 0.0
    %3834 = vmatprep.mubr.f32.mxu0 0.0
    %3835 = vmatmul.mubr.f32.gmra.mxu0 %v3766
    %v3836 = vpop.f32.mrf.mxu0
    %v3837 = vadd.f32 %v2835, %v3836
    %v3838 = vpop.f32.mrf.mxu0
    %3839 = vdwg.mxu0
    %v3840 = vsel %vm302, %v3837, -inf
    %3841 = vmax.xlane.f32.xlu0 %v3840
    %v3842 = vpop.xlane.xlu0 %3841
    %v3843 = vsub.f32 %v3837, %v3842
    %v3844 = vmul.f32 %v3843, 1.442695
    %v3845 = vpow.pop %v3844
    %v3846 = vsel %vm302, %v3845, 0.0
    %3847 = vadd.xlane.f32.xlu0 %v3846
    %v3848 = vpop.xlane.xlu0 %3847
    %v3849 = vrcp.pop %v3848
    %v3850 = vmul.f32 %v3845, %v3849
    %3851 = vrot.lane.b32.xlu0 %v3048, 104
    %v3852 = vpop.permute.xlu0 %3851
    %v3855 = vsel %vm302, %v3850, 0
    %3857 = vmatprep.subr.mxu0 0.0
    %3858 = vmatpush1.msra.mxu0 0.0
    %3859 = vmatprep.subr.mxu0 0.0
    %3860 = vmatpush1.msra.mxu0 0.0
    %3861 = vmatprep.subr.mxu0 0.0
    %3862 = vmatpush1.msra.mxu0 0.0
    %3863 = vmatprep.subr.mxu0 0.0
    %3864 = vmatpush1.msra.mxu0 0.0
    %3865 = vmatprep.subr.mxu0 0.0
    %3866 = vmatpush1.msra.mxu0 0.0
    %3867 = vmatprep.subr.mxu0 0.0
    %3868 = vmatpush1.msra.mxu0 0.0
    %3869 = vmatprep.subr.mxu0 0.0
    %3870 = vmatpush1.msra.mxu0 0.0
    %3871 = vmatprep.subr.mxu0 0.0
    %3872 = vmatpush1.msra.mxu0 0.0
    %3873 = vmatprep.subr.mxu0 0.0
    %3874 = vmatpush1.msra.mxu0 0.0
    %3875 = vmatprep.subr.mxu0 0.0
    %3876 = vmatpush1.msra.mxu0 0.0
    %3877 = vmatprep.subr.mxu0 0.0
    %3878 = vmatpush1.msra.mxu0 0.0
    %3879 = vmatprep.subr.mxu0 0.0
    %3880 = vmatpush1.msra.mxu0 0.0
    %3881 = vmatprep.subr.mxu0 0.0
    %3882 = vmatpush1.msra.mxu0 0.0
    %3883 = vmatprep.subr.mxu0 0.0
    %3884 = vmatpush1.msra.mxu0 0.0
    %3885 = vmatprep.subr.mxu0 0.0
    %3886 = vmatpush1.msra.mxu0 0.0
    %3887 = vmatprep.subr.mxu0 0.0
    %3888 = vmatpush1.msra.mxu0 %v3852
    %3889 = vmatprep.subr.mxu0 0.0
    %3890 = vmatpush2.msra.mxu0 0.0
    %3891 = vmatprep.subr.mxu0 0.0
    %3892 = vmatpush2.msra.mxu0 0.0
    %3893 = vmatprep.subr.mxu0 0.0
    %3894 = vmatpush2.msra.mxu0 0.0
    %3895 = vmatprep.subr.mxu0 0.0
    %3896 = vmatpush2.msra.mxu0 0.0
    %3897 = vmatprep.subr.mxu0 0.0
    %3898 = vmatpush2.msra.mxu0 0.0
    %3899 = vmatprep.subr.mxu0 0.0
    %3900 = vmatpush2.msra.mxu0 0.0
    %3901 = vmatprep.subr.mxu0 0.0
    %3902 = vmatpush2.msra.mxu0 0.0
    %3903 = vmatprep.subr.mxu0 0.0
    %3904 = vmatpush2.msra.mxu0 0.0
    %3905 = vmatprep.subr.mxu0 0.0
    %3906 = vmatpush2.msra.mxu0 0.0
    %3907 = vmatprep.subr.mxu0 0.0
    %3908 = vmatpush2.msra.mxu0 0.0
    %3909 = vmatprep.subr.mxu0 0.0
    %3910 = vmatpush2.msra.mxu0 0.0
    %3911 = vmatprep.subr.mxu0 0.0
    %3912 = vmatpush2.msra.mxu0 0.0
    %3913 = vmatprep.subr.mxu0 0.0
    %3914 = vmatpush2.msra.mxu0 0.0
    %3915 = vmatprep.subr.mxu0 0.0
    %3916 = vmatpush2.msra.mxu0 0.0
    %3917 = vmatprep.subr.mxu0 0.0
    %3918 = vmatpush2.msra.mxu0 0.0
    %3919 = vmatprep.subr.mxu0 0.0
    %3920 = vmatpush2.msra.mxu0 0.0
    %3921 = vmatprep.mubr.f32.mxu0 0.0
    %3922 = vmatmul.mubr.f32.gmra.mxu0 %v3855
    %v3923 = vpop.f32.mrf.mxu0
    %v3924 = vadd.f32 0.0, %v3923
    %v3925 = vpop.f32.mrf.mxu0
    %3926 = vdwg.mxu0
    %v3928 = vsel %vm302, %v3924, 0
    %3930 = vmatprep.subr.mxu0 0.0
    %3931 = vmatpush1.msra.mxu0 0.0
    %3932 = vmatprep.subr.mxu0 0.0
    %3933 = vmatpush1.msra.mxu0 0.0
    %3934 = vmatprep.subr.mxu0 0.0
    %3935 = vmatpush1.msra.mxu0 0.0
    %3936 = vmatprep.subr.mxu0 0.0
    %3937 = vmatpush1.msra.mxu0 0.0
    %3938 = vmatprep.subr.mxu0 0.0
    %3939 = vmatpush1.msra.mxu0 0.0
    %3940 = vmatprep.subr.mxu0 0.0
    %3941 = vmatpush1.msra.mxu0 0.0
    %3942 = vmatprep.subr.mxu0 0.0
    %3943 = vmatpush1.msra.mxu0 0.0
    %3944 = vmatprep.subr.mxu0 0.0
    %3945 = vmatpush1.msra.mxu0 0.0
    %3946 = vmatprep.subr.mxu0 0.0
    %3947 = vmatpush1.msra.mxu0 0.0
    %3948 = vmatprep.subr.mxu0 0.0
    %3949 = vmatpush1.msra.mxu0 0.0
    %3950 = vmatprep.subr.mxu0 0.0
    %3951 = vmatpush1.msra.mxu0 0.0
    %3952 = vmatprep.subr.mxu0 0.0
    %3953 = vmatpush1.msra.mxu0 0.0
    %3954 = vmatprep.subr.mxu0 0.0
    %3955 = vmatpush1.msra.mxu0 0.0
    %3956 = vmatprep.subr.mxu0 0.0
    %3957 = vmatpush1.msra.mxu0 0.0
    %3958 = vmatprep.subr.mxu0 0.0
    %3959 = vmatpush1.msra.mxu0 0.0
    %3960 = vmatprep.subr.mxu0 0.0
    %3961 = vmatpush1.msra.mxu0 %v39
    %3962 = vmatprep.subr.mxu0 0.0
    %3963 = vmatpush2.msra.mxu0 0.0
    %3964 = vmatprep.subr.mxu0 0.0
    %3965 = vmatpush2.msra.mxu0 0.0
    %3966 = vmatprep.subr.mxu0 0.0
    %3967 = vmatpush2.msra.mxu0 0.0
    %3968 = vmatprep.subr.mxu0 0.0
    %3969 = vmatpush2.msra.mxu0 0.0
    %3970 = vmatprep.subr.mxu0 0.0
    %3971 = vmatpush2.msra.mxu0 0.0
    %3972 = vmatprep.subr.mxu0 0.0
    %3973 = vmatpush2.msra.mxu0 0.0
    %3974 = vmatprep.subr.mxu0 0.0
    %3975 = vmatpush2.msra.mxu0 0.0
    %3976 = vmatprep.subr.mxu0 0.0
    %3977 = vmatpush2.msra.mxu0 0.0
    %3978 = vmatprep.subr.mxu0 0.0
    %3979 = vmatpush2.msra.mxu0 0.0
    %3980 = vmatprep.subr.mxu0 0.0
    %3981 = vmatpush2.msra.mxu0 0.0
    %3982 = vmatprep.subr.mxu0 0.0
    %3983 = vmatpush2.msra.mxu0 0.0
    %3984 = vmatprep.subr.mxu0 0.0
    %3985 = vmatpush2.msra.mxu0 0.0
    %3986 = vmatprep.subr.mxu0 0.0
    %3987 = vmatpush2.msra.mxu0 0.0
    %3988 = vmatprep.subr.mxu0 0.0
    %3989 = vmatpush2.msra.mxu0 0.0
    %3990 = vmatprep.subr.mxu0 0.0
    %3991 = vmatpush2.msra.mxu0 0.0
    %3992 = vmatprep.subr.mxu0 0.0
    %3993 = vmatpush2.msra.mxu0 0.0
    %3994 = vmatprep.mubr.f32.mxu0 0.0
    %3995 = vmatmul.mubr.f32.gmra.mxu0 %v3928
    %v3996 = vpop.f32.mrf.mxu0
    %v3997 = vadd.f32 0.0, %v3996
    %v3998 = vpop.f32.mrf.mxu0
    %3999 = vdwg.mxu0
    %v4000 = vadd.f32 %v3761, %v3997
    %v4001 = vadd.f32 %v4000, %v1256
    %v4002 = vadd.f32 %v4001, %v2831
    %v4003 = vsel %vm88, %v4002, 0.0
    %4004 = vadd.xlane.f32.xlu0 %v4003
    %v4005 = vpop.xlane.xlu0 %4004
    %v4006 = vmul.f32 %v4005, %v1262
    %v4007 = vsub.f32 %v4002, %v4006
    %v4008 = vmul.f32 %v4007, %v4007
    %v4009 = vsel %vm88, %v4008, 0.0
    %4010 = vadd.xlane.f32.xlu0 %v4009
    %v4011 = vpop.xlane.xlu0 %4010
    %v4012 = vmul.f32 %v4011, %v1262
    %v4013 = vadd.f32 %v4012, 1e-05
    %v4014 = vrsqrt.pop %v4013
    %v4015 = vmul.f32 %v4013, %v4014
    %vm4016 = vcmp.eq.f32.partialorder %v4013, inf
    %v4017 = vsel %vm4016, %v4013, %v4015
    %vm4018 = vcmp.eq.f32.partialorder %v4013, 0.0
    %v4019 = vand.u32 %v4013, 2147483648
    %v4020 = vsel %vm4018, %v4019, %v4017
    %v4021 = vrcp.pop %v4020
    %v4022 = vmul.f32 %v4007, %v4021
    %v4023 = vmul.f32 %v4022, %v1283
    %v4024 = vadd.f32 %v4023, %v1288
    %v4026 = vsel %vm88, %v4024, 0
    %4028 = vmatprep.subr.mxu0 0.0
    %4029 = vmatpush1.msra.mxu0 0.0
    %4030 = vmatprep.subr.mxu0 0.0
    %4031 = vmatpush1.msra.mxu0 0.0
    %4032 = vmatprep.subr.mxu0 0.0
    %4033 = vmatpush1.msra.mxu0 0.0
    %4034 = vmatprep.subr.mxu0 0.0
    %4035 = vmatpush1.msra.mxu0 0.0
    %4036 = vmatprep.subr.mxu0 0.0
    %4037 = vmatpush1.msra.mxu0 0.0
    %4038 = vmatprep.subr.mxu0 0.0
    %4039 = vmatpush1.msra.mxu0 0.0
    %4040 = vmatprep.subr.mxu0 0.0
    %4041 = vmatpush1.msra.mxu0 0.0
    %4042 = vmatprep.subr.mxu0 0.0
    %4043 = vmatpush1.msra.mxu0 0.0
    %4044 = vmatprep.subr.mxu0 0.0
    %4045 = vmatpush1.msra.mxu0 0.0
    %4046 = vmatprep.subr.mxu0 0.0
    %4047 = vmatpush1.msra.mxu0 0.0
    %4048 = vmatprep.subr.mxu0 0.0
    %4049 = vmatpush1.msra.mxu0 0.0
    %4050 = vmatprep.subr.mxu0 0.0
    %4051 = vmatpush1.msra.mxu0 0.0
    %4052 = vmatprep.subr.mxu0 0.0
    %4053 = vmatpush1.msra.mxu0 %v43
    %4054 = vmatprep.subr.mxu0 0.0
    %4055 = vmatpush1.msra.mxu0 %v42
    %4056 = vmatprep.subr.mxu0 0.0
    %4057 = vmatpush1.msra.mxu0 %v41
    %4058 = vmatprep.subr.mxu0 0.0
    %4059 = vmatpush1.msra.mxu0 %v40
    %4060 = vmatprep.subr.mxu0 0.0
    %4061 = vmatpush2.msra.mxu0 0.0
    %4062 = vmatprep.subr.mxu0 0.0
    %4063 = vmatpush2.msra.mxu0 0.0
    %4064 = vmatprep.subr.mxu0 0.0
    %4065 = vmatpush2.msra.mxu0 0.0
    %4066 = vmatprep.subr.mxu0 0.0
    %4067 = vmatpush2.msra.mxu0 0.0
    %4068 = vmatprep.subr.mxu0 0.0
    %4069 = vmatpush2.msra.mxu0 0.0
    %4070 = vmatprep.subr.mxu0 0.0
    %4071 = vmatpush2.msra.mxu0 0.0
    %4072 = vmatprep.subr.mxu0 0.0
    %4073 = vmatpush2.msra.mxu0 0.0
    %4074 = vmatprep.subr.mxu0 0.0
    %4075 = vmatpush2.msra.mxu0 0.0
    %4076 = vmatprep.subr.mxu0 0.0
    %4077 = vmatpush2.msra.mxu0 0.0
    %4078 = vmatprep.subr.mxu0 0.0
    %4079 = vmatpush2.msra.mxu0 0.0
    %4080 = vmatprep.subr.mxu0 0.0
    %4081 = vmatpush2.msra.mxu0 0.0
    %4082 = vmatprep.subr.mxu0 0.0
    %4083 = vmatpush2.msra.mxu0 0.0
    %4084 = vmatprep.subr.mxu0 0.0
    %4085 = vmatpush2.msra.mxu0 0.0
    %4086 = vmatprep.subr.mxu0 0.0
    %4087 = vmatpush2.msra.mxu0 0.0
    %4088 = vmatprep.subr.mxu0 0.0
    %4089 = vmatpush2.msra.mxu0 0.0
    %4090 = vmatprep.subr.mxu0 0.0
    %4091 = vmatpush2.msra.mxu0 0.0
    %4092 = vmatprep.mubr.f32.mxu0 0.0
    %4093 = vmatmul.mubr.f32.gmra.mxu0 %v4026
    %v4094 = vpop.f32.mrf.mxu0
    %v4095 = vadd.f32 0.0, %v4094
    %v4096 = vpop.f32.mrf.mxu0
    %4097 = vdwg.mxu0
    %v4099 = vsel %vm88, %v2833, 0
    %4101 = vmatprep.subr.mxu0 0.0
    %4102 = vmatpush1.msra.mxu0 0.0
    %4103 = vmatprep.subr.mxu0 0.0
    %4104 = vmatpush1.msra.mxu0 0.0
    %4105 = vmatprep.subr.mxu0 0.0
    %4106 = vmatpush1.msra.mxu0 0.0
    %4107 = vmatprep.subr.mxu0 0.0
    %4108 = vmatpush1.msra.mxu0 0.0
    %4109 = vmatprep.subr.mxu0 0.0
    %4110 = vmatpush1.msra.mxu0 0.0
    %4111 = vmatprep.subr.mxu0 0.0
    %4112 = vmatpush1.msra.mxu0 0.0
    %4113 = vmatprep.subr.mxu0 0.0
    %4114 = vmatpush1.msra.mxu0 0.0
    %4115 = vmatprep.subr.mxu0 0.0
    %4116 = vmatpush1.msra.mxu0 0.0
    %4117 = vmatprep.subr.mxu0 0.0
    %4118 = vmatpush1.msra.mxu0 0.0
    %4119 = vmatprep.subr.mxu0 0.0
    %4120 = vmatpush1.msra.mxu0 0.0
    %4121 = vmatprep.subr.mxu0 0.0
    %4122 = vmatpush1.msra.mxu0 0.0
    %4123 = vmatprep.subr.mxu0 0.0
    %4124 = vmatpush1.msra.mxu0 0.0
    %4125 = vmatprep.subr.mxu0 0.0
    %4126 = vmatpush1.msra.mxu0 %v47
    %4127 = vmatprep.subr.mxu0 0.0
    %4128 = vmatpush1.msra.mxu0 %v46
    %4129 = vmatprep.subr.mxu0 0.0
    %4130 = vmatpush1.msra.mxu0 %v45
    %4131 = vmatprep.subr.mxu0 0.0
    %4132 = vmatpush1.msra.mxu0 %v44
    %4133 = vmatprep.subr.mxu0 0.0
    %4134 = vmatpush2.msra.mxu0 0.0
    %4135 = vmatprep.subr.mxu0 0.0
    %4136 = vmatpush2.msra.mxu0 0.0
    %4137 = vmatprep.subr.mxu0 0.0
    %4138 = vmatpush2.msra.mxu0 0.0
    %4139 = vmatprep.subr.mxu0 0.0
    %4140 = vmatpush2.msra.mxu0 0.0
    %4141 = vmatprep.subr.mxu0 0.0
    %4142 = vmatpush2.msra.mxu0 0.0
    %4143 = vmatprep.subr.mxu0 0.0
    %4144 = vmatpush2.msra.mxu0 0.0
    %4145 = vmatprep.subr.mxu0 0.0
    %4146 = vmatpush2.msra.mxu0 0.0
    %4147 = vmatprep.subr.mxu0 0.0
    %4148 = vmatpush2.msra.mxu0 0.0
    %4149 = vmatprep.subr.mxu0 0.0
    %4150 = vmatpush2.msra.mxu0 0.0
    %4151 = vmatprep.subr.mxu0 0.0
    %4152 = vmatpush2.msra.mxu0 0.0
    %4153 = vmatprep.subr.mxu0 0.0
    %4154 = vmatpush2.msra.mxu0 0.0
    %4155 = vmatprep.subr.mxu0 0.0
    %4156 = vmatpush2.msra.mxu0 0.0
    %4157 = vmatprep.subr.mxu0 0.0
    %4158 = vmatpush2.msra.mxu0 0.0
    %4159 = vmatprep.subr.mxu0 0.0
    %4160 = vmatpush2.msra.mxu0 0.0
    %4161 = vmatprep.subr.mxu0 0.0
    %4162 = vmatpush2.msra.mxu0 0.0
    %4163 = vmatprep.subr.mxu0 0.0
    %4164 = vmatpush2.msra.mxu0 0.0
    %4165 = vmatprep.mubr.f32.mxu0 0.0
    %4166 = vmatmul.mubr.f32.gmra.mxu0 %v4099
    %v4167 = vpop.f32.mrf.mxu0
    %v4168 = vadd.f32 0.0, %v4167
    %v4169 = vpop.f32.mrf.mxu0
    %4170 = vdwg.mxu0
    %v4172 = vsel %vm88, %v2832, 0
    %4174 = vmatprep.subr.mxu0 0.0
    %4175 = vmatpush1.msra.mxu0 0.0
    %4176 = vmatprep.subr.mxu0 0.0
    %4177 = vmatpush1.msra.mxu0 0.0
    %4178 = vmatprep.subr.mxu0 0.0
    %4179 = vmatpush1.msra.mxu0 0.0
    %4180 = vmatprep.subr.mxu0 0.0
    %4181 = vmatpush1.msra.mxu0 0.0
    %4182 = vmatprep.subr.mxu0 0.0
    %4183 = vmatpush1.msra.mxu0 0.0
    %4184 = vmatprep.subr.mxu0 0.0
    %4185 = vmatpush1.msra.mxu0 0.0
    %4186 = vmatprep.subr.mxu0 0.0
    %4187 = vmatpush1.msra.mxu0 0.0
    %4188 = vmatprep.subr.mxu0 0.0
    %4189 = vmatpush1.msra.mxu0 0.0
    %4190 = vmatprep.subr.mxu0 0.0
    %4191 = vmatpush1.msra.mxu0 0.0
    %4192 = vmatprep.subr.mxu0 0.0
    %4193 = vmatpush1.msra.mxu0 0.0
    %4194 = vmatprep.subr.mxu0 0.0
    %4195 = vmatpush1.msra.mxu0 0.0
    %4196 = vmatprep.subr.mxu0 0.0
    %4197 = vmatpush1.msra.mxu0 0.0
    %4198 = vmatprep.subr.mxu0 0.0
    %4199 = vmatpush1.msra.mxu0 %v51
    %4200 = vmatprep.subr.mxu0 0.0
    %4201 = vmatpush1.msra.mxu0 %v50
    %4202 = vmatprep.subr.mxu0 0.0
    %4203 = vmatpush1.msra.mxu0 %v49
    %4204 = vmatprep.subr.mxu0 0.0
    %4205 = vmatpush1.msra.mxu0 %v48
    %4206 = vmatprep.subr.mxu0 0.0
    %4207 = vmatpush2.msra.mxu0 0.0
    %4208 = vmatprep.subr.mxu0 0.0
    %4209 = vmatpush2.msra.mxu0 0.0
    %4210 = vmatprep.subr.mxu0 0.0
    %4211 = vmatpush2.msra.mxu0 0.0
    %4212 = vmatprep.subr.mxu0 0.0
    %4213 = vmatpush2.msra.mxu0 0.0
    %4214 = vmatprep.subr.mxu0 0.0
    %4215 = vmatpush2.msra.mxu0 0.0
    %4216 = vmatprep.subr.mxu0 0.0
    %4217 = vmatpush2.msra.mxu0 0.0
    %4218 = vmatprep.subr.mxu0 0.0
    %4219 = vmatpush2.msra.mxu0 0.0
    %4220 = vmatprep.subr.mxu0 0.0
    %4221 = vmatpush2.msra.mxu0 0.0
    %4222 = vmatprep.subr.mxu0 0.0
    %4223 = vmatpush2.msra.mxu0 0.0
    %4224 = vmatprep.subr.mxu0 0.0
    %4225 = vmatpush2.msra.mxu0 0.0
    %4226 = vmatprep.subr.mxu0 0.0
    %4227 = vmatpush2.msra.mxu0 0.0
    %4228 = vmatprep.subr.mxu0 0.0
    %4229 = vmatpush2.msra.mxu0 0.0
    %4230 = vmatprep.subr.mxu0 0.0
    %4231 = vmatpush2.msra.mxu0 0.0
    %4232 = vmatprep.subr.mxu0 0.0
    %4233 = vmatpush2.msra.mxu0 0.0
    %4234 = vmatprep.subr.mxu0 0.0
    %4235 = vmatpush2.msra.mxu0 0.0
    %4236 = vmatprep.subr.mxu0 0.0
    %4237 = vmatpush2.msra.mxu0 0.0
    %4238 = vmatprep.mubr.f32.mxu0 0.0
    %4239 = vmatmul.mubr.f32.gmra.mxu0 %v4172
    %v4240 = vpop.f32.mrf.mxu0
    %v4241 = vadd.f32 0.0, %v4240
    %v4242 = vpop.f32.mrf.mxu0
    %4243 = vdwg.mxu0
    %v4245 = vsel %vm302, %v4095, 0
    %v4248 = vsel %vm302, %v4168, 0
    %4250 = vmatprep.subr.mxu0 0.0
    %4251 = vmatpush1.xpose.msra.mxu0 0.0
    %4252 = vmatprep.subr.mxu0 0.0
    %4253 = vmatpush1.xpose.msra.mxu0 0.0
    %4254 = vmatprep.subr.mxu0 0.0
    %4255 = vmatpush1.xpose.msra.mxu0 0.0
    %4256 = vmatprep.subr.mxu0 0.0
    %4257 = vmatpush1.xpose.msra.mxu0 0.0
    %4258 = vmatprep.subr.mxu0 0.0
    %4259 = vmatpush1.xpose.msra.mxu0 0.0
    %4260 = vmatprep.subr.mxu0 0.0
    %4261 = vmatpush1.xpose.msra.mxu0 0.0
    %4262 = vmatprep.subr.mxu0 0.0
    %4263 = vmatpush1.xpose.msra.mxu0 0.0
    %4264 = vmatprep.subr.mxu0 0.0
    %4265 = vmatpush1.xpose.msra.mxu0 0.0
    %4266 = vmatprep.subr.mxu0 0.0
    %4267 = vmatpush1.xpose.msra.mxu0 0.0
    %4268 = vmatprep.subr.mxu0 0.0
    %4269 = vmatpush1.xpose.msra.mxu0 0.0
    %4270 = vmatprep.subr.mxu0 0.0
    %4271 = vmatpush1.xpose.msra.mxu0 0.0
    %4272 = vmatprep.subr.mxu0 0.0
    %4273 = vmatpush1.xpose.msra.mxu0 0.0
    %4274 = vmatprep.subr.mxu0 0.0
    %4275 = vmatpush1.xpose.msra.mxu0 0.0
    %4276 = vmatprep.subr.mxu0 0.0
    %4277 = vmatpush1.xpose.msra.mxu0 0.0
    %4278 = vmatprep.subr.mxu0 0.0
    %4279 = vmatpush1.xpose.msra.mxu0 0.0
    %4280 = vmatprep.subr.mxu0 0.0
    %4281 = vmatpush1.xpose.msra.mxu0 %v4248
    %4282 = vmatprep.subr.mxu0 0.0
    %4283 = vmatpush2.xpose.msra.mxu0 0.0
    %4284 = vmatprep.subr.mxu0 0.0
    %4285 = vmatpush2.xpose.msra.mxu0 0.0
    %4286 = vmatprep.subr.mxu0 0.0
    %4287 = vmatpush2.xpose.msra.mxu0 0.0
    %4288 = vmatprep.subr.mxu0 0.0
    %4289 = vmatpush2.xpose.msra.mxu0 0.0
    %4290 = vmatprep.subr.mxu0 0.0
    %4291 = vmatpush2.xpose.msra.mxu0 0.0
    %4292 = vmatprep.subr.mxu0 0.0
    %4293 = vmatpush2.xpose.msra.mxu0 0.0
    %4294 = vmatprep.subr.mxu0 0.0
    %4295 = vmatpush2.xpose.msra.mxu0 0.0
    %4296 = vmatprep.subr.mxu0 0.0
    %4297 = vmatpush2.xpose.msra.mxu0 0.0
    %4298 = vmatprep.subr.mxu0 0.0
    %4299 = vmatpush2.xpose.msra.mxu0 0.0
    %4300 = vmatprep.subr.mxu0 0.0
    %4301 = vmatpush2.xpose.msra.mxu0 0.0
    %4302 = vmatprep.subr.mxu0 0.0
    %4303 = vmatpush2.xpose.msra.mxu0 0.0
    %4304 = vmatprep.subr.mxu0 0.0
    %4305 = vmatpush2.xpose.msra.mxu0 0.0
    %4306 = vmatprep.subr.mxu0 0.0
    %4307 = vmatpush2.xpose.msra.mxu0 0.0
    %4308 = vmatprep.subr.mxu0 0.0
    %4309 = vmatpush2.xpose.msra.mxu0 0.0
    %4310 = vmatprep.subr.mxu0 0.0
    %4311 = vmatpush2.xpose.msra.mxu0 0.0
    %4312 = vmatprep.subr.mxu0 0.0
    %4313 = vmatpush2.xpose.msra.mxu0 0.0
    %4314 = vmatprep.mubr.f32.mxu0 0.0
    %4315 = vmatmul.mubr.f32.gmra.mxu0 %v4245
    %v4316 = vpop.f32.mrf.mxu0
    %v4317 = vadd.f32 %v2837, %v4316
    %v4318 = vpop.f32.mrf.mxu0
    %4319 = vdwg.mxu0
    %v4320 = vsel %vm302, %v4317, -inf
    %4321 = vmax.xlane.f32.xlu0 %v4320
    %v4322 = vpop.xlane.xlu0 %4321
    %v4323 = vsub.f32 %v4317, %v4322
    %v4324 = vmul.f32 %v4323, 1.442695
    %v4325 = vpow.pop %v4324
    %v4326 = vsel %vm302, %v4325, 0.0
    %4327 = vadd.xlane.f32.xlu0 %v4326
    %v4328 = vpop.xlane.xlu0 %4327
    %v4329 = vrcp.pop %v4328
    %v4330 = vmul.f32 %v4325, %v4329
    %v4332 = vsel %vm302, %v4330, 0
    %4334 = vmatprep.subr.mxu0 0.0
    %4335 = vmatpush1.msra.mxu0 0.0
    %4336 = vmatprep.subr.mxu0 0.0
    %4337 = vmatpush1.msra.mxu0 0.0
    %4338 = vmatprep.subr.mxu0 0.0
    %4339 = vmatpush1.msra.mxu0 0.0
    %4340 = vmatprep.subr.mxu0 0.0
    %4341 = vmatpush1.msra.mxu0 0.0
    %4342 = vmatprep.subr.mxu0 0.0
    %4343 = vmatpush1.msra.mxu0 0.0
    %4344 = vmatprep.subr.mxu0 0.0
    %4345 = vmatpush1.msra.mxu0 0.0
    %4346 = vmatprep.subr.mxu0 0.0
    %4347 = vmatpush1.msra.mxu0 0.0
    %4348 = vmatprep.subr.mxu0 0.0
    %4349 = vmatpush1.msra.mxu0 0.0
    %4350 = vmatprep.subr.mxu0 0.0
    %4351 = vmatpush1.msra.mxu0 0.0
    %4352 = vmatprep.subr.mxu0 0.0
    %4353 = vmatpush1.msra.mxu0 0.0
    %4354 = vmatprep.subr.mxu0 0.0
    %4355 = vmatpush1.msra.mxu0 0.0
    %4356 = vmatprep.subr.mxu0 0.0
    %4357 = vmatpush1.msra.mxu0 0.0
    %4358 = vmatprep.subr.mxu0 0.0
    %4359 = vmatpush1.msra.mxu0 0.0
    %4360 = vmatprep.subr.mxu0 0.0
    %4361 = vmatpush1.msra.mxu0 0.0
    %4362 = vmatprep.subr.mxu0 0.0
    %4363 = vmatpush1.msra.mxu0 0.0
    %4364 = vmatprep.subr.mxu0 0.0
    %4365 = vmatpush1.msra.mxu0 %v4241
    %4366 = vmatprep.subr.mxu0 0.0
    %4367 = vmatpush2.msra.mxu0 0.0
    %4368 = vmatprep.subr.mxu0 0.0
    %4369 = vmatpush2.msra.mxu0 0.0
    %4370 = vmatprep.subr.mxu0 0.0
    %4371 = vmatpush2.msra.mxu0 0.0
    %4372 = vmatprep.subr.mxu0 0.0
    %4373 = vmatpush2.msra.mxu0 0.0
    %4374 = vmatprep.subr.mxu0 0.0
    %4375 = vmatpush2.msra.mxu0 0.0
    %4376 = vmatprep.subr.mxu0 0.0
    %4377 = vmatpush2.msra.mxu0 0.0
    %4378 = vmatprep.subr.mxu0 0.0
    %4379 = vmatpush2.msra.mxu0 0.0
    %4380 = vmatprep.subr.mxu0 0.0
    %4381 = vmatpush2.msra.mxu0 0.0
    %4382 = vmatprep.subr.mxu0 0.0
    %4383 = vmatpush2.msra.mxu0 0.0
    %4384 = vmatprep.subr.mxu0 0.0
    %4385 = vmatpush2.msra.mxu0 0.0
    %4386 = vmatprep.subr.mxu0 0.0
    %4387 = vmatpush2.msra.mxu0 0.0
    %4388 = vmatprep.subr.mxu0 0.0
    %4389 = vmatpush2.msra.mxu0 0.0
    %4390 = vmatprep.subr.mxu0 0.0
    %4391 = vmatpush2.msra.mxu0 0.0
    %4392 = vmatprep.subr.mxu0 0.0
    %4393 = vmatpush2.msra.mxu0 0.0
    %4394 = vmatprep.subr.mxu0 0.0
    %4395 = vmatpush2.msra.mxu0 0.0
    %4396 = vmatprep.subr.mxu0 0.0
    %4397 = vmatpush2.msra.mxu0 0.0
    %4398 = vmatprep.mubr.f32.mxu0 0.0
    %4399 = vmatmul.mubr.f32.gmra.mxu0 %v4332
    %v4400 = vpop.f32.mrf.mxu0
    %v4401 = vadd.f32 0.0, %v4400
    %v4402 = vpop.f32.mrf.mxu0
    %4403 = vdwg.mxu0
    %4404 = vrot.lane.b32.xlu0 %v4095, 120
    %v4405 = vpop.permute.xlu0 %4404
    %4406 = vrot.lane.b32.xlu0 %v4168, 120
    %v4407 = vpop.permute.xlu0 %4406
    %v4408 = vsel %vm302, %v4405, 0
    %v4410 = vsel %vm302, %v4407, 0
    %4412 = vmatprep.subr.mxu0 0.0
    %4413 = vmatpush1.xpose.msra.mxu0 0.0
    %4414 = vmatprep.subr.mxu0 0.0
    %4415 = vmatpush1.xpose.msra.mxu0 0.0
    %4416 = vmatprep.subr.mxu0 0.0
    %4417 = vmatpush1.xpose.msra.mxu0 0.0
    %4418 = vmatprep.subr.mxu0 0.0
    %4419 = vmatpush1.xpose.msra.mxu0 0.0
    %4420 = vmatprep.subr.mxu0 0.0
    %4421 = vmatpush1.xpose.msra.mxu0 0.0
    %4422 = vmatprep.subr.mxu0 0.0
    %4423 = vmatpush1.xpose.msra.mxu0 0.0
    %4424 = vmatprep.subr.mxu0 0.0
    %4425 = vmatpush1.xpose.msra.mxu0 0.0
    %4426 = vmatprep.subr.mxu0 0.0
    %4427 = vmatpush1.xpose.msra.mxu0 0.0
    %4428 = vmatprep.subr.mxu0 0.0
    %4429 = vmatpush1.xpose.msra.mxu0 0.0
    %4430 = vmatprep.subr.mxu0 0.0
    %4431 = vmatpush1.xpose.msra.mxu0 0.0
    %4432 = vmatprep.subr.mxu0 0.0
    %4433 = vmatpush1.xpose.msra.mxu0 0.0
    %4434 = vmatprep.subr.mxu0 0.0
    %4435 = vmatpush1.xpose.msra.mxu0 0.0
    %4436 = vmatprep.subr.mxu0 0.0
    %4437 = vmatpush1.xpose.msra.mxu0 0.0
    %4438 = vmatprep.subr.mxu0 0.0
    %4439 = vmatpush1.xpose.msra.mxu0 0.0
    %4440 = vmatprep.subr.mxu0 0.0
    %4441 = vmatpush1.xpose.msra.mxu0 0.0
    %4442 = vmatprep.subr.mxu0 0.0
    %4443 = vmatpush1.xpose.msra.mxu0 %v4410
    %4444 = vmatprep.subr.mxu0 0.0
    %4445 = vmatpush2.xpose.msra.mxu0 0.0
    %4446 = vmatprep.subr.mxu0 0.0
    %4447 = vmatpush2.xpose.msra.mxu0 0.0
    %4448 = vmatprep.subr.mxu0 0.0
    %4449 = vmatpush2.xpose.msra.mxu0 0.0
    %4450 = vmatprep.subr.mxu0 0.0
    %4451 = vmatpush2.xpose.msra.mxu0 0.0
    %4452 = vmatprep.subr.mxu0 0.0
    %4453 = vmatpush2.xpose.msra.mxu0 0.0
    %4454 = vmatprep.subr.mxu0 0.0
    %4455 = vmatpush2.xpose.msra.mxu0 0.0
    %4456 = vmatprep.subr.mxu0 0.0
    %4457 = vmatpush2.xpose.msra.mxu0 0.0
    %4458 = vmatprep.subr.mxu0 0.0
    %4459 = vmatpush2.xpose.msra.mxu0 0.0
    %4460 = vmatprep.subr.mxu0 0.0
    %4461 = vmatpush2.xpose.msra.mxu0 0.0
    %4462 = vmatprep.subr.mxu0 0.0
    %4463 = vmatpush2.xpose.msra.mxu0 0.0
    %4464 = vmatprep.subr.mxu0 0.0
    %4465 = vmatpush2.xpose.msra.mxu0 0.0
    %4466 = vmatprep.subr.mxu0 0.0
    %4467 = vmatpush2.xpose.msra.mxu0 0.0
    %4468 = vmatprep.subr.mxu0 0.0
    %4469 = vmatpush2.xpose.msra.mxu0 0.0
    %4470 = vmatprep.subr.mxu0 0.0
    %4471 = vmatpush2.xpose.msra.mxu0 0.0
    %4472 = vmatprep.subr.mxu0 0.0
    %4473 = vmatpush2.xpose.msra.mxu0 0.0
    %4474 = vmatprep.subr.mxu0 0.0
    %4475 = vmatpush2.xpose.msra.mxu0 0.0
    %4476 = vmatprep.mubr.f32.mxu0 0.0
    %4477 = vmatmul.mubr.f32.gmra.mxu0 %v4408
    %v4478 = vpop.f32.mrf.mxu0
    %v4479 = vadd.f32 %v2837, %v4478
    %v4480 = vpop.f32.mrf.mxu0
    %4481 = vdwg.mxu0
    %v4482 = vsel %vm302, %v4479, -inf
    %4483 = vmax.xlane.f32.xlu0 %v4482
    %v4484 = vpop.xlane.xlu0 %4483
    %v4485 = vsub.f32 %v4479, %v4484
    %v4486 = vmul.f32 %v4485, 1.442695
    %v4487 = vpow.pop %v4486
    %v4488 = vsel %vm302, %v4487, 0.0
    %4489 = vadd.xlane.f32.xlu0 %v4488
    %v4490 = vpop.xlane.xlu0 %4489
    %v4491 = vrcp.pop %v4490
    %v4492 = vmul.f32 %v4487, %v4491
    %4494 = vrot.lane.b32.xlu0 %v4241, 120
    %v4495 = vpop.permute.xlu0 %4494
    %v4498 = vsel %vm302, %v4492, 0
    %4500 = vmatprep.subr.mxu0 0.0
    %4501 = vmatpush1.msra.mxu0 0.0
    %4502 = vmatprep.subr.mxu0 0.0
    %4503 = vmatpush1.msra.mxu0 0.0
    %4504 = vmatprep.subr.mxu0 0.0
    %4505 = vmatpush1.msra.mxu0 0.0
    %4506 = vmatprep.subr.mxu0 0.0
    %4507 = vmatpush1.msra.mxu0 0.0
    %4508 = vmatprep.subr.mxu0 0.0
    %4509 = vmatpush1.msra.mxu0 0.0
    %4510 = vmatprep.subr.mxu0 0.0
    %4511 = vmatpush1.msra.mxu0 0.0
    %4512 = vmatprep.subr.mxu0 0.0
    %4513 = vmatpush1.msra.mxu0 0.0
    %4514 = vmatprep.subr.mxu0 0.0
    %4515 = vmatpush1.msra.mxu0 0.0
    %4516 = vmatprep.subr.mxu0 0.0
    %4517 = vmatpush1.msra.mxu0 0.0
    %4518 = vmatprep.subr.mxu0 0.0
    %4519 = vmatpush1.msra.mxu0 0.0
    %4520 = vmatprep.subr.mxu0 0.0
    %4521 = vmatpush1.msra.mxu0 0.0
    %4522 = vmatprep.subr.mxu0 0.0
    %4523 = vmatpush1.msra.mxu0 0.0
    %4524 = vmatprep.subr.mxu0 0.0
    %4525 = vmatpush1.msra.mxu0 0.0
    %4526 = vmatprep.subr.mxu0 0.0
    %4527 = vmatpush1.msra.mxu0 0.0
    %4528 = vmatprep.subr.mxu0 0.0
    %4529 = vmatpush1.msra.mxu0 0.0
    %4530 = vmatprep.subr.mxu0 0.0
    %4531 = vmatpush1.msra.mxu0 %v4495
    %4532 = vmatprep.subr.mxu0 0.0
    %4533 = vmatpush2.msra.mxu0 0.0
    %4534 = vmatprep.subr.mxu0 0.0
    %4535 = vmatpush2.msra.mxu0 0.0
    %4536 = vmatprep.subr.mxu0 0.0
    %4537 = vmatpush2.msra.mxu0 0.0
    %4538 = vmatprep.subr.mxu0 0.0
    %4539 = vmatpush2.msra.mxu0 0.0
    %4540 = vmatprep.subr.mxu0 0.0
    %4541 = vmatpush2.msra.mxu0 0.0
    %4542 = vmatprep.subr.mxu0 0.0
    %4543 = vmatpush2.msra.mxu0 0.0
    %4544 = vmatprep.subr.mxu0 0.0
    %4545 = vmatpush2.msra.mxu0 0.0
    %4546 = vmatprep.subr.mxu0 0.0
    %4547 = vmatpush2.msra.mxu0 0.0
    %4548 = vmatprep.subr.mxu0 0.0
    %4549 = vmatpush2.msra.mxu0 0.0
    %4550 = vmatprep.subr.mxu0 0.0
    %4551 = vmatpush2.msra.mxu0 0.0
    %4552 = vmatprep.subr.mxu0 0.0
    %4553 = vmatpush2.msra.mxu0 0.0
    %4554 = vmatprep.subr.mxu0 0.0
    %4555 = vmatpush2.msra.mxu0 0.0
    %4556 = vmatprep.subr.mxu0 0.0
    %4557 = vmatpush2.msra.mxu0 0.0
    %4558 = vmatprep.subr.mxu0 0.0
    %4559 = vmatpush2.msra.mxu0 0.0
    %4560 = vmatprep.subr.mxu0 0.0
    %4561 = vmatpush2.msra.mxu0 0.0
    %4562 = vmatprep.subr.mxu0 0.0
    %4563 = vmatpush2.msra.mxu0 0.0
    %4564 = vmatprep.mubr.f32.mxu0 0.0
    %4565 = vmatmul.mubr.f32.gmra.mxu0 %v4498
    %v4566 = vpop.f32.mrf.mxu0
    %v4567 = vadd.f32 0.0, %v4566
    %v4568 = vpop.f32.mrf.mxu0
    %4569 = vdwg.mxu0
    %v4571 = vsel %vm302, %v4567, 0
    %4573 = vmatprep.subr.mxu0 0.0
    %4574 = vmatpush1.msra.mxu0 0.0
    %4575 = vmatprep.subr.mxu0 0.0
    %4576 = vmatpush1.msra.mxu0 0.0
    %4577 = vmatprep.subr.mxu0 0.0
    %4578 = vmatpush1.msra.mxu0 0.0
    %4579 = vmatprep.subr.mxu0 0.0
    %4580 = vmatpush1.msra.mxu0 0.0
    %4581 = vmatprep.subr.mxu0 0.0
    %4582 = vmatpush1.msra.mxu0 0.0
    %4583 = vmatprep.subr.mxu0 0.0
    %4584 = vmatpush1.msra.mxu0 0.0
    %4585 = vmatprep.subr.mxu0 0.0
    %4586 = vmatpush1.msra.mxu0 0.0
    %4587 = vmatprep.subr.mxu0 0.0
    %4588 = vmatpush1.msra.mxu0 0.0
    %4589 = vmatprep.subr.mxu0 0.0
    %4590 = vmatpush1.msra.mxu0 0.0
    %4591 = vmatprep.subr.mxu0 0.0
    %4592 = vmatpush1.msra.mxu0 0.0
    %4593 = vmatprep.subr.mxu0 0.0
    %4594 = vmatpush1.msra.mxu0 0.0
    %4595 = vmatprep.subr.mxu0 0.0
    %4596 = vmatpush1.msra.mxu0 0.0
    %4597 = vmatprep.subr.mxu0 0.0
    %4598 = vmatpush1.msra.mxu0 0.0
    %4599 = vmatprep.subr.mxu0 0.0
    %4600 = vmatpush1.msra.mxu0 0.0
    %4601 = vmatprep.subr.mxu0 0.0
    %4602 = vmatpush1.msra.mxu0 0.0
    %4603 = vmatprep.subr.mxu0 0.0
    %4604 = vmatpush1.msra.mxu0 %v53
    %4605 = vmatprep.subr.mxu0 0.0
    %4606 = vmatpush2.msra.mxu0 0.0
    %4607 = vmatprep.subr.mxu0 0.0
    %4608 = vmatpush2.msra.mxu0 0.0
    %4609 = vmatprep.subr.mxu0 0.0
    %4610 = vmatpush2.msra.mxu0 0.0
    %4611 = vmatprep.subr.mxu0 0.0
    %4612 = vmatpush2.msra.mxu0 0.0
    %4613 = vmatprep.subr.mxu0 0.0
    %4614 = vmatpush2.msra.mxu0 0.0
    %4615 = vmatprep.subr.mxu0 0.0
    %4616 = vmatpush2.msra.mxu0 0.0
    %4617 = vmatprep.subr.mxu0 0.0
    %4618 = vmatpush2.msra.mxu0 0.0
    %4619 = vmatprep.subr.mxu0 0.0
    %4620 = vmatpush2.msra.mxu0 0.0
    %4621 = vmatprep.subr.mxu0 0.0
    %4622 = vmatpush2.msra.mxu0 0.0
    %4623 = vmatprep.subr.mxu0 0.0
    %4624 = vmatpush2.msra.mxu0 0.0
    %4625 = vmatprep.subr.mxu0 0.0
    %4626 = vmatpush2.msra.mxu0 0.0
    %4627 = vmatprep.subr.mxu0 0.0
    %4628 = vmatpush2.msra.mxu0 0.0
    %4629 = vmatprep.subr.mxu0 0.0
    %4630 = vmatpush2.msra.mxu0 0.0
    %4631 = vmatprep.subr.mxu0 0.0
    %4632 = vmatpush2.msra.mxu0 0.0
    %4633 = vmatprep.subr.mxu0 0.0
    %4634 = vmatpush2.msra.mxu0 0.0
    %4635 = vmatprep.subr.mxu0 0.0
    %4636 = vmatpush2.msra.mxu0 0.0
    %4637 = vmatprep.mubr.f32.mxu0 0.0
    %4638 = vmatmul.mubr.f32.gmra.mxu0 %v4571
    %v4639 = vpop.f32.mrf.mxu0
    %v4640 = vadd.f32 0.0, %v4639
    %v4641 = vpop.f32.mrf.mxu0
    %4642 = vdwg.mxu0
    %v4644 = vsel %vm302, %v4401, 0
    %4646 = vmatprep.subr.mxu0 0.0
    %4647 = vmatpush1.msra.mxu0 0.0
    %4648 = vmatprep.subr.mxu0 0.0
    %4649 = vmatpush1.msra.mxu0 0.0
    %4650 = vmatprep.subr.mxu0 0.0
    %4651 = vmatpush1.msra.mxu0 0.0
    %4652 = vmatprep.subr.mxu0 0.0
    %4653 = vmatpush1.msra.mxu0 0.0
    %4654 = vmatprep.subr.mxu0 0.0
    %4655 = vmatpush1.msra.mxu0 0.0
    %4656 = vmatprep.subr.mxu0 0.0
    %4657 = vmatpush1.msra.mxu0 0.0
    %4658 = vmatprep.subr.mxu0 0.0
    %4659 = vmatpush1.msra.mxu0 0.0
    %4660 = vmatprep.subr.mxu0 0.0
    %4661 = vmatpush1.msra.mxu0 0.0
    %4662 = vmatprep.subr.mxu0 0.0
    %4663 = vmatpush1.msra.mxu0 0.0
    %4664 = vmatprep.subr.mxu0 0.0
    %4665 = vmatpush1.msra.mxu0 0.0
    %4666 = vmatprep.subr.mxu0 0.0
    %4667 = vmatpush1.msra.mxu0 0.0
    %4668 = vmatprep.subr.mxu0 0.0
    %4669 = vmatpush1.msra.mxu0 0.0
    %4670 = vmatprep.subr.mxu0 0.0
    %4671 = vmatpush1.msra.mxu0 0.0
    %4672 = vmatprep.subr.mxu0 0.0
    %4673 = vmatpush1.msra.mxu0 0.0
    %4674 = vmatprep.subr.mxu0 0.0
    %4675 = vmatpush1.msra.mxu0 0.0
    %4676 = vmatprep.subr.mxu0 0.0
    %4677 = vmatpush1.msra.mxu0 %v52
    %4678 = vmatprep.subr.mxu0 0.0
    %4679 = vmatpush2.msra.mxu0 0.0
    %4680 = vmatprep.subr.mxu0 0.0
    %4681 = vmatpush2.msra.mxu0 0.0
    %4682 = vmatprep.subr.mxu0 0.0
    %4683 = vmatpush2.msra.mxu0 0.0
    %4684 = vmatprep.subr.mxu0 0.0
    %4685 = vmatpush2.msra.mxu0 0.0
    %4686 = vmatprep.subr.mxu0 0.0
    %4687 = vmatpush2.msra.mxu0 0.0
    %4688 = vmatprep.subr.mxu0 0.0
    %4689 = vmatpush2.msra.mxu0 0.0
    %4690 = vmatprep.subr.mxu0 0.0
    %4691 = vmatpush2.msra.mxu0 0.0
    %4692 = vmatprep.subr.mxu0 0.0
    %4693 = vmatpush2.msra.mxu0 0.0
    %4694 = vmatprep.subr.mxu0 0.0
    %4695 = vmatpush2.msra.mxu0 0.0
    %4696 = vmatprep.subr.mxu0 0.0
    %4697 = vmatpush2.msra.mxu0 0.0
    %4698 = vmatprep.subr.mxu0 0.0
    %4699 = vmatpush2.msra.mxu0 0.0
    %4700 = vmatprep.subr.mxu0 0.0
    %4701 = vmatpush2.msra.mxu0 0.0
    %4702 = vmatprep.subr.mxu0 0.0
    %4703 = vmatpush2.msra.mxu0 0.0
    %4704 = vmatprep.subr.mxu0 0.0
    %4705 = vmatpush2.msra.mxu0 0.0
    %4706 = vmatprep.subr.mxu0 0.0
    %4707 = vmatpush2.msra.mxu0 0.0
    %4708 = vmatprep.subr.mxu0 0.0
    %4709 = vmatpush2.msra.mxu0 0.0
    %4710 = vmatprep.mubr.f32.mxu0 0.0
    %4711 = vmatmul.mubr.f32.gmra.mxu0 %v4644
    %v4712 = vpop.f32.mrf.mxu0
    %v4713 = vadd.f32 %v4640, %v4712
    %v4714 = vpop.f32.mrf.mxu0
    %4715 = vdwg.mxu0
    %4716 = vrot.lane.b32.xlu0 %v4095, 112
    %v4717 = vpop.permute.xlu0 %4716
    %4718 = vrot.lane.b32.xlu0 %v4168, 112
    %v4719 = vpop.permute.xlu0 %4718
    %v4720 = vsel %vm302, %v4717, 0
    %v4722 = vsel %vm302, %v4719, 0
    %4724 = vmatprep.subr.mxu0 0.0
    %4725 = vmatpush1.xpose.msra.mxu0 0.0
    %4726 = vmatprep.subr.mxu0 0.0
    %4727 = vmatpush1.xpose.msra.mxu0 0.0
    %4728 = vmatprep.subr.mxu0 0.0
    %4729 = vmatpush1.xpose.msra.mxu0 0.0
    %4730 = vmatprep.subr.mxu0 0.0
    %4731 = vmatpush1.xpose.msra.mxu0 0.0
    %4732 = vmatprep.subr.mxu0 0.0
    %4733 = vmatpush1.xpose.msra.mxu0 0.0
    %4734 = vmatprep.subr.mxu0 0.0
    %4735 = vmatpush1.xpose.msra.mxu0 0.0
    %4736 = vmatprep.subr.mxu0 0.0
    %4737 = vmatpush1.xpose.msra.mxu0 0.0
    %4738 = vmatprep.subr.mxu0 0.0
    %4739 = vmatpush1.xpose.msra.mxu0 0.0
    %4740 = vmatprep.subr.mxu0 0.0
    %4741 = vmatpush1.xpose.msra.mxu0 0.0
    %4742 = vmatprep.subr.mxu0 0.0
    %4743 = vmatpush1.xpose.msra.mxu0 0.0
    %4744 = vmatprep.subr.mxu0 0.0
    %4745 = vmatpush1.xpose.msra.mxu0 0.0
    %4746 = vmatprep.subr.mxu0 0.0
    %4747 = vmatpush1.xpose.msra.mxu0 0.0
    %4748 = vmatprep.subr.mxu0 0.0
    %4749 = vmatpush1.xpose.msra.mxu0 0.0
    %4750 = vmatprep.subr.mxu0 0.0
    %4751 = vmatpush1.xpose.msra.mxu0 0.0
    %4752 = vmatprep.subr.mxu0 0.0
    %4753 = vmatpush1.xpose.msra.mxu0 0.0
    %4754 = vmatprep.subr.mxu0 0.0
    %4755 = vmatpush1.xpose.msra.mxu0 %v4722
    %4756 = vmatprep.subr.mxu0 0.0
    %4757 = vmatpush2.xpose.msra.mxu0 0.0
    %4758 = vmatprep.subr.mxu0 0.0
    %4759 = vmatpush2.xpose.msra.mxu0 0.0
    %4760 = vmatprep.subr.mxu0 0.0
    %4761 = vmatpush2.xpose.msra.mxu0 0.0
    %4762 = vmatprep.subr.mxu0 0.0
    %4763 = vmatpush2.xpose.msra.mxu0 0.0
    %4764 = vmatprep.subr.mxu0 0.0
    %4765 = vmatpush2.xpose.msra.mxu0 0.0
    %4766 = vmatprep.subr.mxu0 0.0
    %4767 = vmatpush2.xpose.msra.mxu0 0.0
    %4768 = vmatprep.subr.mxu0 0.0
    %4769 = vmatpush2.xpose.msra.mxu0 0.0
    %4770 = vmatprep.subr.mxu0 0.0
    %4771 = vmatpush2.xpose.msra.mxu0 0.0
    %4772 = vmatprep.subr.mxu0 0.0
    %4773 = vmatpush2.xpose.msra.mxu0 0.0
    %4774 = vmatprep.subr.mxu0 0.0
    %4775 = vmatpush2.xpose.msra.mxu0 0.0
    %4776 = vmatprep.subr.mxu0 0.0
    %4777 = vmatpush2.xpose.msra.mxu0 0.0
    %4778 = vmatprep.subr.mxu0 0.0
    %4779 = vmatpush2.xpose.msra.mxu0 0.0
    %4780 = vmatprep.subr.mxu0 0.0
    %4781 = vmatpush2.xpose.msra.mxu0 0.0
    %4782 = vmatprep.subr.mxu0 0.0
    %4783 = vmatpush2.xpose.msra.mxu0 0.0
    %4784 = vmatprep.subr.mxu0 0.0
    %4785 = vmatpush2.xpose.msra.mxu0 0.0
    %4786 = vmatprep.subr.mxu0 0.0
    %4787 = vmatpush2.xpose.msra.mxu0 0.0
    %4788 = vmatprep.mubr.f32.mxu0 0.0
    %4789 = vmatmul.mubr.f32.gmra.mxu0 %v4720
    %v4790 = vpop.f32.mrf.mxu0
    %v4791 = vadd.f32 %v2837, %v4790
    %v4792 = vpop.f32.mrf.mxu0
    %4793 = vdwg.mxu0
    %v4794 = vsel %vm302, %v4791, -inf
    %4795 = vmax.xlane.f32.xlu0 %v4794
    %v4796 = vpop.xlane.xlu0 %4795
    %v4797 = vsub.f32 %v4791, %v4796
    %v4798 = vmul.f32 %v4797, 1.442695
    %v4799 = vpow.pop %v4798
    %v4800 = vsel %vm302, %v4799, 0.0
    %4801 = vadd.xlane.f32.xlu0 %v4800
    %v4802 = vpop.xlane.xlu0 %4801
    %v4803 = vrcp.pop %v4802
    %v4804 = vmul.f32 %v4799, %v4803
    %4805 = vrot.lane.b32.xlu0 %v4241, 112
    %v4806 = vpop.permute.xlu0 %4805
    %v4809 = vsel %vm302, %v4804, 0
    %4811 = vmatprep.subr.mxu0 0.0
    %4812 = vmatpush1.msra.mxu0 0.0
    %4813 = vmatprep.subr.mxu0 0.0
    %4814 = vmatpush1.msra.mxu0 0.0
    %4815 = vmatprep.subr.mxu0 0.0
    %4816 = vmatpush1.msra.mxu0 0.0
    %4817 = vmatprep.subr.mxu0 0.0
    %4818 = vmatpush1.msra.mxu0 0.0
    %4819 = vmatprep.subr.mxu0 0.0
    %4820 = vmatpush1.msra.mxu0 0.0
    %4821 = vmatprep.subr.mxu0 0.0
    %4822 = vmatpush1.msra.mxu0 0.0
    %4823 = vmatprep.subr.mxu0 0.0
    %4824 = vmatpush1.msra.mxu0 0.0
    %4825 = vmatprep.subr.mxu0 0.0
    %4826 = vmatpush1.msra.mxu0 0.0
    %4827 = vmatprep.subr.mxu0 0.0
    %4828 = vmatpush1.msra.mxu0 0.0
    %4829 = vmatprep.subr.mxu0 0.0
    %4830 = vmatpush1.msra.mxu0 0.0
    %4831 = vmatprep.subr.mxu0 0.0
    %4832 = vmatpush1.msra.mxu0 0.0
    %4833 = vmatprep.subr.mxu0 0.0
    %4834 = vmatpush1.msra.mxu0 0.0
    %4835 = vmatprep.subr.mxu0 0.0
    %4836 = vmatpush1.msra.mxu0 0.0
    %4837 = vmatprep.subr.mxu0 0.0
    %4838 = vmatpush1.msra.mxu0 0.0
    %4839 = vmatprep.subr.mxu0 0.0
    %4840 = vmatpush1.msra.mxu0 0.0
    %4841 = vmatprep.subr.mxu0 0.0
    %4842 = vmatpush1.msra.mxu0 %v4806
    %4843 = vmatprep.subr.mxu0 0.0
    %4844 = vmatpush2.msra.mxu0 0.0
    %4845 = vmatprep.subr.mxu0 0.0
    %4846 = vmatpush2.msra.mxu0 0.0
    %4847 = vmatprep.subr.mxu0 0.0
    %4848 = vmatpush2.msra.mxu0 0.0
    %4849 = vmatprep.subr.mxu0 0.0
    %4850 = vmatpush2.msra.mxu0 0.0
    %4851 = vmatprep.subr.mxu0 0.0
    %4852 = vmatpush2.msra.mxu0 0.0
    %4853 = vmatprep.subr.mxu0 0.0
    %4854 = vmatpush2.msra.mxu0 0.0
    %4855 = vmatprep.subr.mxu0 0.0
    %4856 = vmatpush2.msra.mxu0 0.0
    %4857 = vmatprep.subr.mxu0 0.0
    %4858 = vmatpush2.msra.mxu0 0.0
    %4859 = vmatprep.subr.mxu0 0.0
    %4860 = vmatpush2.msra.mxu0 0.0
    %4861 = vmatprep.subr.mxu0 0.0
    %4862 = vmatpush2.msra.mxu0 0.0
    %4863 = vmatprep.subr.mxu0 0.0
    %4864 = vmatpush2.msra.mxu0 0.0
    %4865 = vmatprep.subr.mxu0 0.0
    %4866 = vmatpush2.msra.mxu0 0.0
    %4867 = vmatprep.subr.mxu0 0.0
    %4868 = vmatpush2.msra.mxu0 0.0
    %4869 = vmatprep.subr.mxu0 0.0
    %4870 = vmatpush2.msra.mxu0 0.0
    %4871 = vmatprep.subr.mxu0 0.0
    %4872 = vmatpush2.msra.mxu0 0.0
    %4873 = vmatprep.subr.mxu0 0.0
    %4874 = vmatpush2.msra.mxu0 0.0
    %4875 = vmatprep.mubr.f32.mxu0 0.0
    %4876 = vmatmul.mubr.f32.gmra.mxu0 %v4809
    %v4877 = vpop.f32.mrf.mxu0
    %v4878 = vadd.f32 0.0, %v4877
    %v4879 = vpop.f32.mrf.mxu0
    %4880 = vdwg.mxu0
    %v4882 = vsel %vm302, %v4878, 0
    %4884 = vmatprep.subr.mxu0 0.0
    %4885 = vmatpush1.msra.mxu0 0.0
    %4886 = vmatprep.subr.mxu0 0.0
    %4887 = vmatpush1.msra.mxu0 0.0
    %4888 = vmatprep.subr.mxu0 0.0
    %4889 = vmatpush1.msra.mxu0 0.0
    %4890 = vmatprep.subr.mxu0 0.0
    %4891 = vmatpush1.msra.mxu0 0.0
    %4892 = vmatprep.subr.mxu0 0.0
    %4893 = vmatpush1.msra.mxu0 0.0
    %4894 = vmatprep.subr.mxu0 0.0
    %4895 = vmatpush1.msra.mxu0 0.0
    %4896 = vmatprep.subr.mxu0 0.0
    %4897 = vmatpush1.msra.mxu0 0.0
    %4898 = vmatprep.subr.mxu0 0.0
    %4899 = vmatpush1.msra.mxu0 0.0
    %4900 = vmatprep.subr.mxu0 0.0
    %4901 = vmatpush1.msra.mxu0 0.0
    %4902 = vmatprep.subr.mxu0 0.0
    %4903 = vmatpush1.msra.mxu0 0.0
    %4904 = vmatprep.subr.mxu0 0.0
    %4905 = vmatpush1.msra.mxu0 0.0
    %4906 = vmatprep.subr.mxu0 0.0
    %4907 = vmatpush1.msra.mxu0 0.0
    %4908 = vmatprep.subr.mxu0 0.0
    %4909 = vmatpush1.msra.mxu0 0.0
    %4910 = vmatprep.subr.mxu0 0.0
    %4911 = vmatpush1.msra.mxu0 0.0
    %4912 = vmatprep.subr.mxu0 0.0
    %4913 = vmatpush1.msra.mxu0 0.0
    %4914 = vmatprep.subr.mxu0 0.0
    %4915 = vmatpush1.msra.mxu0 %v54
    %4916 = vmatprep.subr.mxu0 0.0
    %4917 = vmatpush2.msra.mxu0 0.0
    %4918 = vmatprep.subr.mxu0 0.0
    %4919 = vmatpush2.msra.mxu0 0.0
    %4920 = vmatprep.subr.mxu0 0.0
    %4921 = vmatpush2.msra.mxu0 0.0
    %4922 = vmatprep.subr.mxu0 0.0
    %4923 = vmatpush2.msra.mxu0 0.0
    %4924 = vmatprep.subr.mxu0 0.0
    %4925 = vmatpush2.msra.mxu0 0.0
    %4926 = vmatprep.subr.mxu0 0.0
    %4927 = vmatpush2.msra.mxu0 0.0
    %4928 = vmatprep.subr.mxu0 0.0
    %4929 = vmatpush2.msra.mxu0 0.0
    %4930 = vmatprep.subr.mxu0 0.0
    %4931 = vmatpush2.msra.mxu0 0.0
    %4932 = vmatprep.subr.mxu0 0.0
    %4933 = vmatpush2.msra.mxu0 0.0
    %4934 = vmatprep.subr.mxu0 0.0
    %4935 = vmatpush2.msra.mxu0 0.0
    %4936 = vmatprep.subr.mxu0 0.0
    %4937 = vmatpush2.msra.mxu0 0.0
    %4938 = vmatprep.subr.mxu0 0.0
    %4939 = vmatpush2.msra.mxu0 0.0
    %4940 = vmatprep.subr.mxu0 0.0
    %4941 = vmatpush2.msra.mxu0 0.0
    %4942 = vmatprep.subr.mxu0 0.0
    %4943 = vmatpush2.msra.mxu0 0.0
    %4944 = vmatprep.subr.mxu0 0.0
    %4945 = vmatpush2.msra.mxu0 0.0
    %4946 = vmatprep.subr.mxu0 0.0
    %4947 = vmatpush2.msra.mxu0 0.0
    %4948 = vmatprep.mubr.f32.mxu0 0.0
    %4949 = vmatmul.mubr.f32.gmra.mxu0 %v4882
    %v4950 = vpop.f32.mrf.mxu0
    %v4951 = vadd.f32 0.0, %v4950
    %v4952 = vpop.f32.mrf.mxu0
    %4953 = vdwg.mxu0
    %v4954 = vadd.f32 %v4713, %v4951
    %4955 = vrot.lane.b32.xlu0 %v4095, 104
    %v4956 = vpop.permute.xlu0 %4955
    %4957 = vrot.lane.b32.xlu0 %v4168, 104
    %v4958 = vpop.permute.xlu0 %4957
    %v4959 = vsel %vm302, %v4956, 0
    %v4961 = vsel %vm302, %v4958, 0
    %4963 = vmatprep.subr.mxu0 0.0
    %4964 = vmatpush1.xpose.msra.mxu0 0.0
    %4965 = vmatprep.subr.mxu0 0.0
    %4966 = vmatpush1.xpose.msra.mxu0 0.0
    %4967 = vmatprep.subr.mxu0 0.0
    %4968 = vmatpush1.xpose.msra.mxu0 0.0
    %4969 = vmatprep.subr.mxu0 0.0
    %4970 = vmatpush1.xpose.msra.mxu0 0.0
    %4971 = vmatprep.subr.mxu0 0.0
    %4972 = vmatpush1.xpose.msra.mxu0 0.0
    %4973 = vmatprep.subr.mxu0 0.0
    %4974 = vmatpush1.xpose.msra.mxu0 0.0
    %4975 = vmatprep.subr.mxu0 0.0
    %4976 = vmatpush1.xpose.msra.mxu0 0.0
    %4977 = vmatprep.subr.mxu0 0.0
    %4978 = vmatpush1.xpose.msra.mxu0 0.0
    %4979 = vmatprep.subr.mxu0 0.0
    %4980 = vmatpush1.xpose.msra.mxu0 0.0
    %4981 = vmatprep.subr.mxu0 0.0
    %4982 = vmatpush1.xpose.msra.mxu0 0.0
    %4983 = vmatprep.subr.mxu0 0.0
    %4984 = vmatpush1.xpose.msra.mxu0 0.0
    %4985 = vmatprep.subr.mxu0 0.0
    %4986 = vmatpush1.xpose.msra.mxu0 0.0
    %4987 = vmatprep.subr.mxu0 0.0
    %4988 = vmatpush1.xpose.msra.mxu0 0.0
    %4989 = vmatprep.subr.mxu0 0.0
    %4990 = vmatpush1.xpose.msra.mxu0 0.0
    %4991 = vmatprep.subr.mxu0 0.0
    %4992 = vmatpush1.xpose.msra.mxu0 0.0
    %4993 = vmatprep.subr.mxu0 0.0
    %4994 = vmatpush1.xpose.msra.mxu0 %v4961
    %4995 = vmatprep.subr.mxu0 0.0
    %4996 = vmatpush2.xpose.msra.mxu0 0.0
    %4997 = vmatprep.subr.mxu0 0.0
    %4998 = vmatpush2.xpose.msra.mxu0 0.0
    %4999 = vmatprep.subr.mxu0 0.0
    %5000 = vmatpush2.xpose.msra.mxu0 0.0
    %5001 = vmatprep.subr.mxu0 0.0
    %5002 = vmatpush2.xpose.msra.mxu0 0.0
    %5003 = vmatprep.subr.mxu0 0.0
    %5004 = vmatpush2.xpose.msra.mxu0 0.0
    %5005 = vmatprep.subr.mxu0 0.0
    %5006 = vmatpush2.xpose.msra.mxu0 0.0
    %5007 = vmatprep.subr.mxu0 0.0
    %5008 = vmatpush2.xpose.msra.mxu0 0.0
    %5009 = vmatprep.subr.mxu0 0.0
    %5010 = vmatpush2.xpose.msra.mxu0 0.0
    %5011 = vmatprep.subr.mxu0 0.0
    %5012 = vmatpush2.xpose.msra.mxu0 0.0
    %5013 = vmatprep.subr.mxu0 0.0
    %5014 = vmatpush2.xpose.msra.mxu0 0.0
    %5015 = vmatprep.subr.mxu0 0.0
    %5016 = vmatpush2.xpose.msra.mxu0 0.0
    %5017 = vmatprep.subr.mxu0 0.0
    %5018 = vmatpush2.xpose.msra.mxu0 0.0
    %5019 = vmatprep.subr.mxu0 0.0
    %5020 = vmatpush2.xpose.msra.mxu0 0.0
    %5021 = vmatprep.subr.mxu0 0.0
    %5022 = vmatpush2.xpose.msra.mxu0 0.0
    %5023 = vmatprep.subr.mxu0 0.0
    %5024 = vmatpush2.xpose.msra.mxu0 0.0
    %5025 = vmatprep.subr.mxu0 0.0
    %5026 = vmatpush2.xpose.msra.mxu0 0.0
    %5027 = vmatprep.mubr.f32.mxu0 0.0
    %5028 = vmatmul.mubr.f32.gmra.mxu0 %v4959
    %v5029 = vpop.f32.mrf.mxu0
    %v5030 = vadd.f32 %v2837, %v5029
    %v5031 = vpop.f32.mrf.mxu0
    %5032 = vdwg.mxu0
    %v5033 = vsel %vm302, %v5030, -inf
    %5034 = vmax.xlane.f32.xlu0 %v5033
    %v5035 = vpop.xlane.xlu0 %5034
    %v5036 = vsub.f32 %v5030, %v5035
    %v5037 = vmul.f32 %v5036, 1.442695
    %v5038 = vpow.pop %v5037
    %v5039 = vsel %vm302, %v5038, 0.0
    %5040 = vadd.xlane.f32.xlu0 %v5039
    %v5041 = vpop.xlane.xlu0 %5040
    %v5042 = vrcp.pop %v5041
    %v5043 = vmul.f32 %v5038, %v5042
    %5044 = vrot.lane.b32.xlu0 %v4241, 104
    %v5045 = vpop.permute.xlu0 %5044
    %v5048 = vsel %vm302, %v5043, 0
    %5050 = vmatprep.subr.mxu0 0.0
    %5051 = vmatpush1.msra.mxu0 0.0
    %5052 = vmatprep.subr.mxu0 0.0
    %5053 = vmatpush1.msra.mxu0 0.0
    %5054 = vmatprep.subr.mxu0 0.0
    %5055 = vmatpush1.msra.mxu0 0.0
    %5056 = vmatprep.subr.mxu0 0.0
    %5057 = vmatpush1.msra.mxu0 0.0
    %5058 = vmatprep.subr.mxu0 0.0
    %5059 = vmatpush1.msra.mxu0 0.0
    %5060 = vmatprep.subr.mxu0 0.0
    %5061 = vmatpush1.msra.mxu0 0.0
    %5062 = vmatprep.subr.mxu0 0.0
    %5063 = vmatpush1.msra.mxu0 0.0
    %5064 = vmatprep.subr.mxu0 0.0
    %5065 = vmatpush1.msra.mxu0 0.0
    %5066 = vmatprep.subr.mxu0 0.0
    %5067 = vmatpush1.msra.mxu0 0.0
    %5068 = vmatprep.subr.mxu0 0.0
    %5069 = vmatpush1.msra.mxu0 0.0
    %5070 = vmatprep.subr.mxu0 0.0
    %5071 = vmatpush1.msra.mxu0 0.0
    %5072 = vmatprep.subr.mxu0 0.0
    %5073 = vmatpush1.msra.mxu0 0.0
    %5074 = vmatprep.subr.mxu0 0.0
    %5075 = vmatpush1.msra.mxu0 0.0
    %5076 = vmatprep.subr.mxu0 0.0
    %5077 = vmatpush1.msra.mxu0 0.0
    %5078 = vmatprep.subr.mxu0 0.0
    %5079 = vmatpush1.msra.mxu0 0.0
    %5080 = vmatprep.subr.mxu0 0.0
    %5081 = vmatpush1.msra.mxu0 %v5045
    %5082 = vmatprep.subr.mxu0 0.0
    %5083 = vmatpush2.msra.mxu0 0.0
    %5084 = vmatprep.subr.mxu0 0.0
    %5085 = vmatpush2.msra.mxu0 0.0
    %5086 = vmatprep.subr.mxu0 0.0
    %5087 = vmatpush2.msra.mxu0 0.0
    %5088 = vmatprep.subr.mxu0 0.0
    %5089 = vmatpush2.msra.mxu0 0.0
    %5090 = vmatprep.subr.mxu0 0.0
    %5091 = vmatpush2.msra.mxu0 0.0
    %5092 = vmatprep.subr.mxu0 0.0
    %5093 = vmatpush2.msra.mxu0 0.0
    %5094 = vmatprep.subr.mxu0 0.0
    %5095 = vmatpush2.msra.mxu0 0.0
    %5096 = vmatprep.subr.mxu0 0.0
    %5097 = vmatpush2.msra.mxu0 0.0
    %5098 = vmatprep.subr.mxu0 0.0
    %5099 = vmatpush2.msra.mxu0 0.0
    %5100 = vmatprep.subr.mxu0 0.0
    %5101 = vmatpush2.msra.mxu0 0.0
    %5102 = vmatprep.subr.mxu0 0.0
    %5103 = vmatpush2.msra.mxu0 0.0
    %5104 = vmatprep.subr.mxu0 0.0
    %5105 = vmatpush2.msra.mxu0 0.0
    %5106 = vmatprep.subr.mxu0 0.0
    %5107 = vmatpush2.msra.mxu0 0.0
    %5108 = vmatprep.subr.mxu0 0.0
    %5109 = vmatpush2.msra.mxu0 0.0
    %5110 = vmatprep.subr.mxu0 0.0
    %5111 = vmatpush2.msra.mxu0 0.0
    %5112 = vmatprep.subr.mxu0 0.0
    %5113 = vmatpush2.msra.mxu0 0.0
    %5114 = vmatprep.mubr.f32.mxu0 0.0
    %5115 = vmatmul.mubr.f32.gmra.mxu0 %v5048
    %v5116 = vpop.f32.mrf.mxu0
    %v5117 = vadd.f32 0.0, %v5116
    %v5118 = vpop.f32.mrf.mxu0
    %5119 = vdwg.mxu0
    %v5121 = vsel %vm302, %v5117, 0
    %5123 = vmatprep.subr.mxu0 0.0
    %5124 = vmatpush1.msra.mxu0 0.0
    %5125 = vmatprep.subr.mxu0 0.0
    %5126 = vmatpush1.msra.mxu0 0.0
    %5127 = vmatprep.subr.mxu0 0.0
    %5128 = vmatpush1.msra.mxu0 0.0
    %5129 = vmatprep.subr.mxu0 0.0
    %5130 = vmatpush1.msra.mxu0 0.0
    %5131 = vmatprep.subr.mxu0 0.0
    %5132 = vmatpush1.msra.mxu0 0.0
    %5133 = vmatprep.subr.mxu0 0.0
    %5134 = vmatpush1.msra.mxu0 0.0
    %5135 = vmatprep.subr.mxu0 0.0
    %5136 = vmatpush1.msra.mxu0 0.0
    %5137 = vmatprep.subr.mxu0 0.0
    %5138 = vmatpush1.msra.mxu0 0.0
    %5139 = vmatprep.subr.mxu0 0.0
    %5140 = vmatpush1.msra.mxu0 0.0
    %5141 = vmatprep.subr.mxu0 0.0
    %5142 = vmatpush1.msra.mxu0 0.0
    %5143 = vmatprep.subr.mxu0 0.0
    %5144 = vmatpush1.msra.mxu0 0.0
    %5145 = vmatprep.subr.mxu0 0.0
    %5146 = vmatpush1.msra.mxu0 0.0
    %5147 = vmatprep.subr.mxu0 0.0
    %5148 = vmatpush1.msra.mxu0 0.0
    %5149 = vmatprep.subr.mxu0 0.0
    %5150 = vmatpush1.msra.mxu0 0.0
    %5151 = vmatprep.subr.mxu0 0.0
    %5152 = vmatpush1.msra.mxu0 0.0
    %5153 = vmatprep.subr.mxu0 0.0
    %5154 = vmatpush1.msra.mxu0 %v55
    %5155 = vmatprep.subr.mxu0 0.0
    %5156 = vmatpush2.msra.mxu0 0.0
    %5157 = vmatprep.subr.mxu0 0.0
    %5158 = vmatpush2.msra.mxu0 0.0
    %5159 = vmatprep.subr.mxu0 0.0
    %5160 = vmatpush2.msra.mxu0 0.0
    %5161 = vmatprep.subr.mxu0 0.0
    %5162 = vmatpush2.msra.mxu0 0.0
    %5163 = vmatprep.subr.mxu0 0.0
    %5164 = vmatpush2.msra.mxu0 0.0
    %5165 = vmatprep.subr.mxu0 0.0
    %5166 = vmatpush2.msra.mxu0 0.0
    %5167 = vmatprep.subr.mxu0 0.0
    %5168 = vmatpush2.msra.mxu0 0.0
    %5169 = vmatprep.subr.mxu0 0.0
    %5170 = vmatpush2.msra.mxu0 0.0
    %5171 = vmatprep.subr.mxu0 0.0
    %5172 = vmatpush2.msra.mxu0 0.0
    %5173 = vmatprep.subr.mxu0 0.0
    %5174 = vmatpush2.msra.mxu0 0.0
    %5175 = vmatprep.subr.mxu0 0.0
    %5176 = vmatpush2.msra.mxu0 0.0
    %5177 = vmatprep.subr.mxu0 0.0
    %5178 = vmatpush2.msra.mxu0 0.0
    %5179 = vmatprep.subr.mxu0 0.0
    %5180 = vmatpush2.msra.mxu0 0.0
    %5181 = vmatprep.subr.mxu0 0.0
    %5182 = vmatpush2.msra.mxu0 0.0
    %5183 = vmatprep.subr.mxu0 0.0
    %5184 = vmatpush2.msra.mxu0 0.0
    %5185 = vmatprep.subr.mxu0 0.0
    %5186 = vmatpush2.msra.mxu0 0.0
    %5187 = vmatprep.mubr.f32.mxu0 0.0
    %5188 = vmatmul.mubr.f32.gmra.mxu0 %v5121
    %v5189 = vpop.f32.mrf.mxu0
    %v5190 = vadd.f32 0.0, %v5189
    %v5191 = vpop.f32.mrf.mxu0
    %5192 = vdwg.mxu0
    %v5193 = vadd.f32 %v4954, %v5190
    %v5194 = vadd.f32 %v5193, %v2462
    %v5195 = vadd.f32 %v5194, %v4024
    %v5196 = vsel %vm88, %v5195, 0.0
    %5197 = vadd.xlane.f32.xlu0 %v5196
    %v5198 = vpop.xlane.xlu0 %5197
    %v5199 = vmul.f32 %v5198, %v1262
    %v5200 = vsub.f32 %v5195, %v5199
    %v5201 = vmul.f32 %v5200, %v5200
    %v5202 = vsel %vm88, %v5201, 0.0
    %5203 = vadd.xlane.f32.xlu0 %v5202
    %v5204 = vpop.xlane.xlu0 %5203
    %v5205 = vmul.f32 %v5204, %v1262
    %v5206 = vadd.f32 %v5205, 1e-05
    %v5207 = vrsqrt.pop %v5206
    %v5208 = vmul.f32 %v5206, %v5207
    %vm5209 = vcmp.eq.f32.partialorder %v5206, inf
    %v5210 = vsel %vm5209, %v5206, %v5208
    %vm5211 = vcmp.eq.f32.partialorder %v5206, 0.0
    %v5212 = vand.u32 %v5206, 2147483648
    %v5213 = vsel %vm5211, %v5212, %v5210
    %v5214 = vrcp.pop %v5213
    %v5215 = vmul.f32 %v5200, %v5214
    %v5216 = vmul.f32 %v5215, %v2488
    %v5217 = vadd.f32 %v5216, %v2493
    %v5219 = vsel %vm88, %v5217, 0
    %5221 = vmatprep.subr.mxu0 0.0
    %5222 = vmatpush1.msra.mxu0 0.0
    %5223 = vmatprep.subr.mxu0 0.0
    %5224 = vmatpush1.msra.mxu0 0.0
    %5225 = vmatprep.subr.mxu0 0.0
    %5226 = vmatpush1.msra.mxu0 0.0
    %5227 = vmatprep.subr.mxu0 0.0
    %5228 = vmatpush1.msra.mxu0 0.0
    %5229 = vmatprep.subr.mxu0 0.0
    %5230 = vmatpush1.msra.mxu0 0.0
    %5231 = vmatprep.subr.mxu0 0.0
    %5232 = vmatpush1.msra.mxu0 0.0
    %5233 = vmatprep.subr.mxu0 0.0
    %5234 = vmatpush1.msra.mxu0 0.0
    %5235 = vmatprep.subr.mxu0 0.0
    %5236 = vmatpush1.msra.mxu0 0.0
    %5237 = vmatprep.subr.mxu0 0.0
    %5238 = vmatpush1.msra.mxu0 0.0
    %5239 = vmatprep.subr.mxu0 0.0
    %5240 = vmatpush1.msra.mxu0 0.0
    %5241 = vmatprep.subr.mxu0 0.0
    %5242 = vmatpush1.msra.mxu0 0.0
    %5243 = vmatprep.subr.mxu0 0.0
    %5244 = vmatpush1.msra.mxu0 0.0
    %5245 = vmatprep.subr.mxu0 0.0
    %5246 = vmatpush1.msra.mxu0 %v59
    %5247 = vmatprep.subr.mxu0 0.0
    %5248 = vmatpush1.msra.mxu0 %v58
    %5249 = vmatprep.subr.mxu0 0.0
    %5250 = vmatpush1.msra.mxu0 %v57
    %5251 = vmatprep.subr.mxu0 0.0
    %5252 = vmatpush1.msra.mxu0 %v56
    %5253 = vmatprep.subr.mxu0 0.0
    %5254 = vmatpush2.msra.mxu0 0.0
    %5255 = vmatprep.subr.mxu0 0.0
    %5256 = vmatpush2.msra.mxu0 0.0
    %5257 = vmatprep.subr.mxu0 0.0
    %5258 = vmatpush2.msra.mxu0 0.0
    %5259 = vmatprep.subr.mxu0 0.0
    %5260 = vmatpush2.msra.mxu0 0.0
    %5261 = vmatprep.subr.mxu0 0.0
    %5262 = vmatpush2.msra.mxu0 0.0
    %5263 = vmatprep.subr.mxu0 0.0
    %5264 = vmatpush2.msra.mxu0 0.0
    %5265 = vmatprep.subr.mxu0 0.0
    %5266 = vmatpush2.msra.mxu0 0.0
    %5267 = vmatprep.subr.mxu0 0.0
    %5268 = vmatpush2.msra.mxu0 0.0
    %5269 = vmatprep.subr.mxu0 0.0
    %5270 = vmatpush2.msra.mxu0 0.0
    %5271 = vmatprep.subr.mxu0 0.0
    %5272 = vmatpush2.msra.mxu0 0.0
    %5273 = vmatprep.subr.mxu0 0.0
    %5274 = vmatpush2.msra.mxu0 0.0
    %5275 = vmatprep.subr.mxu0 0.0
    %5276 = vmatpush2.msra.mxu0 0.0
    %5277 = vmatprep.subr.mxu0 0.0
    %5278 = vmatpush2.msra.mxu0 0.0
    %5279 = vmatprep.subr.mxu0 0.0
    %5280 = vmatpush2.msra.mxu0 0.0
    %5281 = vmatprep.subr.mxu0 0.0
    %5282 = vmatpush2.msra.mxu0 0.0
    %5283 = vmatprep.subr.mxu0 0.0
    %5284 = vmatpush2.msra.mxu0 0.0
    %5285 = vmatprep.mubr.f32.mxu0 0.0
    %5286 = vmatmul.mubr.f32.gmra.mxu0 %v5219
    %v5287 = vpop.f32.mrf.mxu0
    %v5288 = vadd.f32 %v2498, %v5287
    %v5289 = vpop.f32.mrf.mxu0
    %5290 = vdwg.mxu0
    %v5291 = vmax.f32 %v5288, 0.0
    %5292 = vmatprep.subr.mxu0 0.0
    %5293 = vmatpush1.msra.mxu0 0.0
    %5294 = vmatprep.subr.mxu0 0.0
    %5295 = vmatpush1.msra.mxu0 0.0
    %5296 = vmatprep.subr.mxu0 0.0
    %5297 = vmatpush1.msra.mxu0 0.0
    %5298 = vmatprep.subr.mxu0 0.0
    %5299 = vmatpush1.msra.mxu0 0.0
    %5300 = vmatprep.subr.mxu0 0.0
    %5301 = vmatpush1.msra.mxu0 0.0
    %5302 = vmatprep.subr.mxu0 0.0
    %5303 = vmatpush1.msra.mxu0 0.0
    %5304 = vmatprep.subr.mxu0 0.0
    %5305 = vmatpush1.msra.mxu0 0.0
    %5306 = vmatprep.subr.mxu0 0.0
    %5307 = vmatpush1.msra.mxu0 0.0
    %5308 = vmatprep.subr.mxu0 0.0
    %5309 = vmatpush1.msra.mxu0 0.0
    %5310 = vmatprep.subr.mxu0 0.0
    %5311 = vmatpush1.msra.mxu0 0.0
    %5312 = vmatprep.subr.mxu0 0.0
    %5313 = vmatpush1.msra.mxu0 0.0
    %5314 = vmatprep.subr.mxu0 0.0
    %5315 = vmatpush1.msra.mxu0 0.0
    %5316 = vmatprep.subr.mxu0 0.0
    %5317 = vmatpush1.msra.mxu0 %v63
    %5318 = vmatprep.subr.mxu0 0.0
    %5319 = vmatpush1.msra.mxu0 %v62
    %5320 = vmatprep.subr.mxu0 0.0
    %5321 = vmatpush1.msra.mxu0 %v61
    %5322 = vmatprep.subr.mxu0 0.0
    %5323 = vmatpush1.msra.mxu0 %v60
    %5324 = vmatprep.subr.mxu0 0.0
    %5325 = vmatpush2.msra.mxu0 0.0
    %5326 = vmatprep.subr.mxu0 0.0
    %5327 = vmatpush2.msra.mxu0 0.0
    %5328 = vmatprep.subr.mxu0 0.0
    %5329 = vmatpush2.msra.mxu0 0.0
    %5330 = vmatprep.subr.mxu0 0.0
    %5331 = vmatpush2.msra.mxu0 0.0
    %5332 = vmatprep.subr.mxu0 0.0
    %5333 = vmatpush2.msra.mxu0 0.0
    %5334 = vmatprep.subr.mxu0 0.0
    %5335 = vmatpush2.msra.mxu0 0.0
    %5336 = vmatprep.subr.mxu0 0.0
    %5337 = vmatpush2.msra.mxu0 0.0
    %5338 = vmatprep.subr.mxu0 0.0
    %5339 = vmatpush2.msra.mxu0 0.0
    %5340 = vmatprep.subr.mxu0 0.0
    %5341 = vmatpush2.msra.mxu0 0.0
    %5342 = vmatprep.subr.mxu0 0.0
    %5343 = vmatpush2.msra.mxu0 0.0
    %5344 = vmatprep.subr.mxu0 0.0
    %5345 = vmatpush2.msra.mxu0 0.0
    %5346 = vmatprep.subr.mxu0 0.0
    %5347 = vmatpush2.msra.mxu0 0.0
    %5348 = vmatprep.subr.mxu0 0.0
    %5349 = vmatpush2.msra.mxu0 0.0
    %5350 = vmatprep.subr.mxu0 0.0
    %5351 = vmatpush2.msra.mxu0 0.0
    %5352 = vmatprep.subr.mxu0 0.0
    %5353 = vmatpush2.msra.mxu0 0.0
    %5354 = vmatprep.subr.mxu0 0.0
    %5355 = vmatpush2.msra.mxu0 0.0
    %5356 = vmatprep.mubr.f32.mxu0 0.0
    %5357 = vmatmul.mubr.f32.gmra.mxu0 %v5219
    %v5358 = vpop.f32.mrf.mxu0
    %v5359 = vadd.f32 %v2576, %v5358
    %v5360 = vpop.f32.mrf.mxu0
    %5361 = vdwg.mxu0
    %v5362 = vmax.f32 %v5359, 0.0
    %v5364 = vsel %vm88, %v5362, 0
    %5366 = vmatprep.subr.mxu0 0.0
    %5367 = vmatpush1.msra.mxu0 0.0
    %5368 = vmatprep.subr.mxu0 0.0
    %5369 = vmatpush1.msra.mxu0 0.0
    %5370 = vmatprep.subr.mxu0 0.0
    %5371 = vmatpush1.msra.mxu0 0.0
    %5372 = vmatprep.subr.mxu0 0.0
    %5373 = vmatpush1.msra.mxu0 0.0
    %5374 = vmatprep.subr.mxu0 0.0
    %5375 = vmatpush1.msra.mxu0 0.0
    %5376 = vmatprep.subr.mxu0 0.0
    %5377 = vmatpush1.msra.mxu0 0.0
    %5378 = vmatprep.subr.mxu0 0.0
    %5379 = vmatpush1.msra.mxu0 0.0
    %5380 = vmatprep.subr.mxu0 0.0
    %5381 = vmatpush1.msra.mxu0 0.0
    %5382 = vmatprep.subr.mxu0 0.0
    %5383 = vmatpush1.msra.mxu0 0.0
    %5384 = vmatprep.subr.mxu0 0.0
    %5385 = vmatpush1.msra.mxu0 0.0
    %5386 = vmatprep.subr.mxu0 0.0
    %5387 = vmatpush1.msra.mxu0 0.0
    %5388 = vmatprep.subr.mxu0 0.0
    %5389 = vmatpush1.msra.mxu0 0.0
    %5390 = vmatprep.subr.mxu0 0.0
    %5391 = vmatpush1.msra.mxu0 %v71
    %5392 = vmatprep.subr.mxu0 0.0
    %5393 = vmatpush1.msra.mxu0 %v70
    %5394 = vmatprep.subr.mxu0 0.0
    %5395 = vmatpush1.msra.mxu0 %v69
    %5396 = vmatprep.subr.mxu0 0.0
    %5397 = vmatpush1.msra.mxu0 %v68
    %5398 = vmatprep.subr.mxu0 0.0
    %5399 = vmatpush2.msra.mxu0 0.0
    %5400 = vmatprep.subr.mxu0 0.0
    %5401 = vmatpush2.msra.mxu0 0.0
    %5402 = vmatprep.subr.mxu0 0.0
    %5403 = vmatpush2.msra.mxu0 0.0
    %5404 = vmatprep.subr.mxu0 0.0
    %5405 = vmatpush2.msra.mxu0 0.0
    %5406 = vmatprep.subr.mxu0 0.0
    %5407 = vmatpush2.msra.mxu0 0.0
    %5408 = vmatprep.subr.mxu0 0.0
    %5409 = vmatpush2.msra.mxu0 0.0
    %5410 = vmatprep.subr.mxu0 0.0
    %5411 = vmatpush2.msra.mxu0 0.0
    %5412 = vmatprep.subr.mxu0 0.0
    %5413 = vmatpush2.msra.mxu0 0.0
    %5414 = vmatprep.subr.mxu0 0.0
    %5415 = vmatpush2.msra.mxu0 0.0
    %5416 = vmatprep.subr.mxu0 0.0
    %5417 = vmatpush2.msra.mxu0 0.0
    %5418 = vmatprep.subr.mxu0 0.0
    %5419 = vmatpush2.msra.mxu0 0.0
    %5420 = vmatprep.subr.mxu0 0.0
    %5421 = vmatpush2.msra.mxu0 0.0
    %5422 = vmatprep.subr.mxu0 0.0
    %5423 = vmatpush2.msra.mxu0 0.0
    %5424 = vmatprep.subr.mxu0 0.0
    %5425 = vmatpush2.msra.mxu0 0.0
    %5426 = vmatprep.subr.mxu0 0.0
    %5427 = vmatpush2.msra.mxu0 0.0
    %5428 = vmatprep.subr.mxu0 0.0
    %5429 = vmatpush2.msra.mxu0 0.0
    %5430 = vmatprep.mubr.f32.mxu0 0.0
    %5431 = vmatmul.mubr.f32.gmra.mxu0 %v5364
    %v5432 = vpop.f32.mrf.mxu0
    %v5433 = vadd.f32 0.0, %v5432
    %v5434 = vpop.f32.mrf.mxu0
    %5435 = vdwg.mxu0
    %v5437 = vsel %vm88, %v5291, 0
    %5439 = vmatprep.subr.mxu0 0.0
    %5440 = vmatpush1.msra.mxu0 0.0
    %5441 = vmatprep.subr.mxu0 0.0
    %5442 = vmatpush1.msra.mxu0 0.0
    %5443 = vmatprep.subr.mxu0 0.0
    %5444 = vmatpush1.msra.mxu0 0.0
    %5445 = vmatprep.subr.mxu0 0.0
    %5446 = vmatpush1.msra.mxu0 0.0
    %5447 = vmatprep.subr.mxu0 0.0
    %5448 = vmatpush1.msra.mxu0 0.0
    %5449 = vmatprep.subr.mxu0 0.0
    %5450 = vmatpush1.msra.mxu0 0.0
    %5451 = vmatprep.subr.mxu0 0.0
    %5452 = vmatpush1.msra.mxu0 0.0
    %5453 = vmatprep.subr.mxu0 0.0
    %5454 = vmatpush1.msra.mxu0 0.0
    %5455 = vmatprep.subr.mxu0 0.0
    %5456 = vmatpush1.msra.mxu0 0.0
    %5457 = vmatprep.subr.mxu0 0.0
    %5458 = vmatpush1.msra.mxu0 0.0
    %5459 = vmatprep.subr.mxu0 0.0
    %5460 = vmatpush1.msra.mxu0 0.0
    %5461 = vmatprep.subr.mxu0 0.0
    %5462 = vmatpush1.msra.mxu0 0.0
    %5463 = vmatprep.subr.mxu0 0.0
    %5464 = vmatpush1.msra.mxu0 %v67
    %5465 = vmatprep.subr.mxu0 0.0
    %5466 = vmatpush1.msra.mxu0 %v66
    %5467 = vmatprep.subr.mxu0 0.0
    %5468 = vmatpush1.msra.mxu0 %v65
    %5469 = vmatprep.subr.mxu0 0.0
    %5470 = vmatpush1.msra.mxu0 %v64
    %5471 = vmatprep.subr.mxu0 0.0
    %5472 = vmatpush2.msra.mxu0 0.0
    %5473 = vmatprep.subr.mxu0 0.0
    %5474 = vmatpush2.msra.mxu0 0.0
    %5475 = vmatprep.subr.mxu0 0.0
    %5476 = vmatpush2.msra.mxu0 0.0
    %5477 = vmatprep.subr.mxu0 0.0
    %5478 = vmatpush2.msra.mxu0 0.0
    %5479 = vmatprep.subr.mxu0 0.0
    %5480 = vmatpush2.msra.mxu0 0.0
    %5481 = vmatprep.subr.mxu0 0.0
    %5482 = vmatpush2.msra.mxu0 0.0
    %5483 = vmatprep.subr.mxu0 0.0
    %5484 = vmatpush2.msra.mxu0 0.0
    %5485 = vmatprep.subr.mxu0 0.0
    %5486 = vmatpush2.msra.mxu0 0.0
    %5487 = vmatprep.subr.mxu0 0.0
    %5488 = vmatpush2.msra.mxu0 0.0
    %5489 = vmatprep.subr.mxu0 0.0
    %5490 = vmatpush2.msra.mxu0 0.0
    %5491 = vmatprep.subr.mxu0 0.0
    %5492 = vmatpush2.msra.mxu0 0.0
    %5493 = vmatprep.subr.mxu0 0.0
    %5494 = vmatpush2.msra.mxu0 0.0
    %5495 = vmatprep.subr.mxu0 0.0
    %5496 = vmatpush2.msra.mxu0 0.0
    %5497 = vmatprep.subr.mxu0 0.0
    %5498 = vmatpush2.msra.mxu0 0.0
    %5499 = vmatprep.subr.mxu0 0.0
    %5500 = vmatpush2.msra.mxu0 0.0
    %5501 = vmatprep.subr.mxu0 0.0
    %5502 = vmatpush2.msra.mxu0 0.0
    %5503 = vmatprep.mubr.f32.mxu0 0.0
    %5504 = vmatmul.mubr.f32.gmra.mxu0 %v5437
    %v5505 = vpop.f32.mrf.mxu0
    %v5506 = vadd.f32 %v5433, %v5505
    %v5507 = vpop.f32.mrf.mxu0
    %5508 = vdwg.mxu0
    %v5509 = vadd.f32 %v5506, %v2797
    %v5510 = vadd.f32 %v5509, %v5217
    %v5511 = vsel %vm88, %v5510, 0.0
    %5512 = vadd.xlane.f32.xlu0 %v5511
    %v5513 = vpop.xlane.xlu0 %5512
    %v5514 = vmul.f32 %v5513, %v1262
    %v5515 = vsub.f32 %v5510, %v5514
    %v5516 = vmul.f32 %v5515, %v5515
    %v5517 = vsel %vm88, %v5516, 0.0
    %5518 = vadd.xlane.f32.xlu0 %v5517
    %v5519 = vpop.xlane.xlu0 %5518
    %v5520 = vmul.f32 %v5519, %v1262
    %v5521 = vadd.f32 %v5520, 1e-05
    %v5522 = vrsqrt.pop %v5521
    %v5523 = vmul.f32 %v5521, %v5522
    %vm5524 = vcmp.eq.f32.partialorder %v5521, inf
    %v5525 = vsel %vm5524, %v5521, %v5523
    %vm5526 = vcmp.eq.f32.partialorder %v5521, 0.0
    %v5527 = vand.u32 %v5521, 2147483648
    %v5528 = vsel %vm5526, %v5527, %v5525
    %v5529 = vrcp.pop %v5528
    %v5530 = vmul.f32 %v5515, %v5529
    %v5531 = vmul.f32 %v5530, %v2823
    %v5532 = vadd.f32 %v5531, %v2828
    %5533 = vst.msk [vmem:[#allocation2 + $0x8] sm:$0xff] %vm88, %v5532
    // Predicated region
    $region26: #{tpu_custom_call.1} parent=1 // pred_check
      _
    $region27: #{tpu_custom_call.1} parent=1 // pred_check_branch
      %5535 = sbr.rel (0) target = $region29
    $region28: #{tpu_custom_call.1} parent=1 // pred_region
      %s5537 = ssub.s32 256, 256
      %5538 = vsyncadd [#allocation3], %s5537
      %s5539 = sshll.u32 [#allocation2], 4
      %s5540 = int_to_ptr.vmem [resolvable:$true] %s5539
      %5545 = dma.vmem_to_hbm [thread:$0]  %s5540, 256, %s6, [#allocation3], 128, 128, 8
    $region29: #{tpu_custom_call.1} parent=1 // pred_fallthru
      _
    // Predicated region
    $region30: #{tpu_custom_call.1} parent=1 // pred_check
      _
    $region31: #{tpu_custom_call.1} parent=1 // pred_check_branch
      %5547 = sbr.rel (0) target = $region33
    $region32: #{tpu_custom_call.1} parent=1 // pred_region
      %5548 = dma.done [#allocation3], 256
    $region33: #{tpu_custom_call.1} parent=1 // pred_fallthru
      _
    %5549 = vsyncpa [#allocation3], 1

</llo_original>
